<compile_context>
chip_gen: v6e
topology: v6e:2x2x1
jax: 0.10.0
libtpu: 0.0.40
codegen_flags: <defaults>
</compile_context>

<pallas_src>
import jax
import jax.numpy as jnp
from jax.experimental import pallas as pl
from jax.experimental.pallas import tpu as pltpu

# ----------------------- small, module-consistent config ---------------------
N_CLASSES = 8          # opt.n_classes
LATENT = 16            # opt.latent_dim
CHANNELS = 1           # opt.channels
IMG_SIZE = 16          # opt.img_size
IMG_FLAT = CHANNELS * IMG_SIZE * IMG_SIZE
BN_EPS = 0.8           # BatchNorm1d(out_feat, 0.8) -> eps=0.8
LRELU_SLOPE = 0.2

HIDDEN = (128, 256, 512, 1024)   # fixed by the module definition
BN_BATCH = 128                   # rows per grid step == BatchNorm batch size

# Packed layout of all small (1, N) f32 operands (biases + BN affine params).
# Every offset / width is a multiple of 128 lanes -> clean static slices.
_VEC_ORDER = (("b2", HIDDEN[1]), ("g2", HIDDEN[1]), ("be2", HIDDEN[1]),
              ("b3", HIDDEN[2]), ("g3", HIDDEN[2]), ("be3", HIDDEN[2]),
              ("b4", HIDDEN[3]), ("g4", HIDDEN[3]), ("be4", HIDDEN[3]),
              ("b5", IMG_FLAT))
_VEC_LAYOUT = {}
_off = 0
for _name, _n in _VEC_ORDER:
    _VEC_LAYOUT[_name] = (_off, _n)
    _off += _n
VEC_WIDTH = _off                 # 5632

# MACs per batch row inside the kernel (label path handled by XLA gather).
_MACS_PER_ROW = (LATENT * HIDDEN[0] + HIDDEN[0] * HIDDEN[1]
                 + HIDDEN[1] * HIDDEN[2] + HIDDEN[2] * HIDDEN[3]
                 + HIDDEN[3] * IMG_FLAT)
_WEIGHT_BYTES = 2 * _MACS_PER_ROW        # bf16 weights streamed once per call


# ------------------------------ shared math helpers ---------------------------
def _leaky(x):
    return jnp.where(x > 0, x, LRELU_SLOPE * x)


def _bn_fused(x, gamma, beta):
    """Single-pass BatchNorm1d (training-mode, biased batch stats).

    var = E[x^2] - mean^2 is safe here because eps = 0.8 dominates any
    small negative rounding of the variance.  gamma * rsqrt(var + eps) is
    folded into one per-feature scale so the normalize step is one FMA.
    """
    inv_n = 1.0 / x.shape[0]
    mean = jnp.sum(x, axis=0, keepdims=True) * inv_n
    ex2 = jnp.sum(x * x, axis=0, keepdims=True) * inv_n
    var = ex2 - mean * mean
    scale = gamma * jax.lax.rsqrt(var + BN_EPS)
    return x * scale + (beta - mean * scale)


def _bn_twopass(x, gamma, beta):
    """Textbook two-pass BN, used only by the exact-f32 reference."""
    mean = jnp.mean(x, axis=0, keepdims=True)
    var = jnp.mean((x - mean) ** 2, axis=0, keepdims=True)
    return gamma * (x - mean) * jax.lax.rsqrt(var + BN_EPS) + beta


# --------------------------------- kernel ------------------------------------
def generator_kernel(labelc_ref, noise_ref,
                     w1n_ref, w2_ref, w3_ref, w4_ref, w5_ref,
                     vec_ref, out_ref):
    f32, bf16 = jnp.float32, jnp.bfloat16

    def vec(name):
        off, n = _VEC_LAYOUT[name]
        return vec_ref[:, off:off + n]          # static, lane-aligned slice

    # block(latent + n_classes, 128, normalize=False):
    # embedding lookup @ W1_label + b1 was folded into labelc in the wrapper.
    h = labelc_ref[...] + jnp.dot(noise_ref[...], w1n_ref[...],
                                  preferred_element_type=f32)
    h = _leaky(h)

    # block(128,256) / block(256,512) / block(512,1024):
    #   Linear -> BatchNorm1d(eps=0.8, batch stats) -> LeakyReLU(0.2)
    for w_ref, b, g, be in ((w2_ref, "b2", "g2", "be2"),
                            (w3_ref, "b3", "g3", "be3"),
                            (w4_ref, "b4", "g4", "be4")):
        x = jnp.dot(h.astype(bf16), w_ref[...],
                    preferred_element_type=f32) + vec(b)
        h = _leaky(_bn_fused(x, vec(g), vec(be)))

    # Linear(1024, C*H*W) + Tanh  (output last dim = 256 -> lane-dense store)
    out_ref[...] = jnp.tanh(
        jnp.dot(h.astype(bf16), w5_ref[...], preferred_element_type=f32)
        + vec("b5"))


# --------------------------------- params ------------------------------------
def init_params(key):
    """Deterministic PyTorch-style init. Linear weights stored as (in, out), f32."""
    params = {}
    ks = jax.random.split(key, 16)

    def linear(kw, kb, fan_in, fan_out):
        bound = 1.0 / jnp.sqrt(fan_in)
        w = jax.random.uniform(kw, (fan_in, fan_out), jnp.float32, -bound, bound)
        b = jax.random.uniform(kb, (1, fan_out), jnp.float32, -bound, bound)
        return w, b

    params["emb"] = jax.random.normal(ks[0], (N_CLASSES, N_CLASSES), jnp.float32)

    dims = [LATENT + N_CLASSES, *HIDDEN, IMG_FLAT]
    ki = 1
    for i in range(5):
        w, b = linear(ks[ki], ks[ki + 1], dims[i], dims[i + 1])
        params[f"w{i + 1}"], params[f"b{i + 1}"] = w, b
        ki += 2
    # BatchNorm affine params (layers 2..4), default init gamma=1, beta=0.
    for i in (2, 3, 4):
        d = dims[i]
        params[f"g{i}"] = jnp.ones((1, d), jnp.float32)
        params[f"be{i}"] = jnp.zeros((1, d), jnp.float32)
    return params


def prepare_params(params):
    """One-time prep: fold embedding into layer 1, cast weights to bf16 and
    pack all the small (1, N) f32 operands into a single vector."""
    w1 = params["w1"]                                   # (n_classes+latent, 128)
    prep = {
        # emb @ W1[:n_classes] fused in f32, then stored bf16;
        # a label's layer-1 contribution is one row of this matrix.
        "w1_label": (params["emb"] @ w1[:N_CLASSES]).astype(jnp.bfloat16),
        "w1_noise": w1[N_CLASSES:].astype(jnp.bfloat16),
        "b1": params["b1"],
    }
    for i in (2, 3, 4, 5):
        prep[f"w{i}"] = params[f"w{i}"].astype(jnp.bfloat16)
    prep["vec"] = jnp.concatenate(
        [params[name] for name, _ in _VEC_ORDER], axis=-1).astype(jnp.float32)
    return prep


# --------------------------------- wrapper -----------------------------------
@jax.jit
def generator_forward(noise, labels, prep):
    total = noise.shape[0]
    assert total % BN_BATCH == 0, "batch must be a multiple of BN_BATCH (128)"
    num_groups = total // BN_BATCH

    # Embedding + layer-1 label path + b1 folded outside the kernel:
    # one_hot(labels) @ (emb @ W1_label) == gather of the fused rows.
    label_contrib = (prep["w1_label"][labels.astype(jnp.int32)].astype(jnp.float32)
                     + prep["b1"])                                   # (B, 128) f32
    noise_bf16 = noise.astype(jnp.bfloat16)

    batched = lambda i: (i, 0)      # blocked along the batch/group axis
    resident = lambda i: (0, 0)     # same block every step -> loaded once

    in_specs = [
        pl.BlockSpec((BN_BATCH, HIDDEN[0]), batched),     # label_contrib
        pl.BlockSpec((BN_BATCH, LATENT), batched),        # noise (bf16)
        pl.BlockSpec((LATENT, HIDDEN[0]), resident),      # w1_noise
        pl.BlockSpec((HIDDEN[0], HIDDEN[1]), resident),   # w2
        pl.BlockSpec((HIDDEN[1], HIDDEN[2]), resident),   # w3
        pl.BlockSpec((HIDDEN[2], HIDDEN[3]), resident),   # w4
        pl.BlockSpec((HIDDEN[3], IMG_FLAT), resident),    # w5
        pl.BlockSpec((1, VEC_WIDTH), resident),           # packed biases / BN
    ]
    out_spec = pl.BlockSpec((BN_BATCH, IMG_FLAT), batched)

    bytes_accessed = (_WEIGHT_BYTES + 4 * VEC_WIDTH                  # once
                      + total * (4 * HIDDEN[0]                       # label_contrib
                                 + 2 * LATENT                        # noise bf16
                                 + 4 * IMG_FLAT))                    # output f32
    cost = pl.CostEstimate(
        flops=2 * total * _MACS_PER_ROW,
        transcendentals=(total * IMG_FLAT
                         + num_groups * (HIDDEN[1] + HIDDEN[2] + HIDDEN[3])),
        bytes_accessed=bytes_accessed,
    )

    flat = pl.pallas_call(
        generator_kernel,
        out_shape=jax.ShapeDtypeStruct((total, IMG_FLAT), jnp.float32),
        grid_spec=pltpu.PrefetchScalarGridSpec(
            num_scalar_prefetch=0,
            grid=(num_groups,),
            in_specs=in_specs,
            out_specs=out_spec,
        ),
        compiler_params=pltpu.CompilerParams(
            dimension_semantics=("parallel",),      # shard groups across TCs (v7x)
            vmem_limit_bytes=16 << 20),
        cost_estimate=cost,
    )(label_contrib, noise_bf16,
      prep["w1_noise"], prep["w2"], prep["w3"], prep["w4"], prep["w5"],
      prep["vec"])

    # img.view(B, C, H, W)
    return flat.reshape(total, CHANNELS, IMG_SIZE, IMG_SIZE)


# ------------------------------ pure-JAX references ---------------------------
def generator_reference_bf16(noise, labels, prep):
    """Mirrors the kernel's bf16-weight / f32-accumulate / fused-BN arithmetic,
    with BatchNorm statistics per BN_BATCH-row group (== per grid step)."""
    f32, bf16 = jnp.float32, jnp.bfloat16

    def vec(name):
        off, n = _VEC_LAYOUT[name]
        return prep["vec"][:, off:off + n]

    def one_group(noise_g, labels_g):
        h = _leaky(prep["w1_label"][labels_g].astype(f32) + prep["b1"]
                   + jnp.dot(noise_g.astype(bf16), prep["w1_noise"],
                             preferred_element_type=f32))
        for i, b, g, be in ((2, "b2", "g2", "be2"),
                            (3, "b3", "g3", "be3"),
                            (4, "b4", "g4", "be4")):
            x = jnp.dot(h.astype(bf16), prep[f"w{i}"],
                        preferred_element_type=f32) + vec(b)
            h = _leaky(_bn_fused(x, vec(g), vec(be)))
        return jnp.tanh(jnp.dot(h.astype(bf16), prep["w5"],
                                preferred_element_type=f32) + vec("b5"))

    groups = noise.shape[0] // BN_BATCH
    out = jax.vmap(one_group)(noise.reshape(groups, BN_BATCH, LATENT),
                              labels.reshape(groups, BN_BATCH))
    return out.reshape(-1, CHANNELS, IMG_SIZE, IMG_SIZE)


def generator_reference_f32(noise, labels, params):
    """Exact f32 PyTorch-equivalent path (original, unfused params), with BN
    statistics per BN_BATCH-row group (each group == one module forward)."""
    def one_group(noise_g, labels_g):
        emb = params["emb"][labels_g]
        x = jnp.concatenate([emb, noise_g], axis=-1)
        h = _leaky(x @ params["w1"] + params["b1"])
        for i in (2, 3, 4):
            h = _leaky(_bn_twopass(h @ params[f"w{i}"] + params[f"b{i}"],
                                   params[f"g{i}"], params[f"be{i}"]))
        return jnp.tanh(h @ params["w5"] + params["b5"])

    groups = noise.shape[0] // BN_BATCH
    out = jax.vmap(one_group)(noise.reshape(groups, BN_BATCH, LATENT),
                              labels.reshape(groups, BN_BATCH))
    return out.reshape(-1, CHANNELS, IMG_SIZE, IMG_SIZE)


# ----------------------------------- main ------------------------------------
if __name__ == "__main__":
    key = jax.random.PRNGKey(0)
    k_param, k_noise, k_lab = jax.random.split(key, 3)

    params = init_params(k_param)
    prep = prepare_params(params)

    # 2 BN groups of 128 rows -> 2 grid steps (equivalent to two forward calls
    # of the PyTorch module at batch 128).
    total_rows = 2 * BN_BATCH
    noise = jax.random.normal(k_noise, (total_rows, LATENT), jnp.float32)
    labels = jax.random.randint(k_lab, (total_rows,), 0, N_CLASSES, jnp.int32)

    img = generator_forward(noise, labels, prep)
    jax.block_until_ready(img)
    assert img.shape == (total_rows, CHANNELS, IMG_SIZE, IMG_SIZE)

    # Tight check against a reference with identical bf16-weight arithmetic.
    ref_bf16 = generator_reference_bf16(noise, labels, prep)
    err_bf16 = float(jnp.max(jnp.abs(img - ref_bf16)))
    assert err_bf16 < 2e-2, f"bf16-matched reference mismatch: {err_bf16}"

    # Loose sanity check against the exact f32 PyTorch-equivalent path
    # (bf16 weight quantization introduces small, bounded error).
    ref_f32 = generator_reference_f32(noise, labels, params)
    err_f32 = float(jnp.max(jnp.abs(img - ref_f32)))
    assert err_f32 < 1.5e-1, f"f32 reference mismatch: {err_f32}"

    print("KERNEL_OK")
</pallas_src>

<mosaic_0001>
module attributes {stable_mosaic.version = 11 : i64} {
  func.func @generator_kernel(%arg0: i32, %arg1: memref<128x128xf32, #tpu.memory_space<vmem>>, %arg2: memref<128x16xbf16, #tpu.memory_space<vmem>>, %arg3: memref<16x128xbf16, #tpu.memory_space<vmem>>, %arg4: memref<128x256xbf16, #tpu.memory_space<vmem>>, %arg5: memref<256x512xbf16, #tpu.memory_space<vmem>>, %arg6: memref<512x1024xbf16, #tpu.memory_space<vmem>>, %arg7: memref<1024x256xbf16, #tpu.memory_space<vmem>>, %arg8: memref<1x5632xf32, #tpu.memory_space<vmem>>, %arg9: memref<128x256xf32, #tpu.memory_space<vmem>>) attributes {dimension_semantics = [#tpu.dimension_semantics<parallel>], iteration_bounds = array<i64: 2>, scalar_prefetch = 0 : i64, scratch_operands = 0 : i64, tpu.core_type = #tpu.core_type<tc>, window_params = [{transform_indices = @transform_0, window_bounds = array<i64: 128, 128>}, {transform_indices = @transform_1, window_bounds = array<i64: 128, 16>}, {pipeline_mode = #tpu.pipeline_mode<synchronous>, transform_indices = @transform_2, window_bounds = array<i64: 16, 128>}, {pipeline_mode = #tpu.pipeline_mode<synchronous>, transform_indices = @transform_3, window_bounds = array<i64: 128, 256>}, {pipeline_mode = #tpu.pipeline_mode<synchronous>, transform_indices = @transform_4, window_bounds = array<i64: 256, 512>}, {pipeline_mode = #tpu.pipeline_mode<synchronous>, transform_indices = @transform_5, window_bounds = array<i64: 512, 1024>}, {pipeline_mode = #tpu.pipeline_mode<synchronous>, transform_indices = @transform_6, window_bounds = array<i64: 1024, 256>}, {pipeline_mode = #tpu.pipeline_mode<synchronous>, transform_indices = @transform_7, window_bounds = array<i64: 1, 5632>}, {transform_indices = @transform_8, window_bounds = array<i64: 128, 256>}]} {
    %c0 = arith.constant 0 : index
    %c0_0 = arith.constant 0 : index
    %0 = vector.load %arg1[%c0, %c0_0] : memref<128x128xf32, #tpu.memory_space<vmem>>, vector<128x128xf32>
    %c0_1 = arith.constant 0 : index
    %c0_2 = arith.constant 0 : index
    %1 = vector.load %arg2[%c0_1, %c0_2] : memref<128x16xbf16, #tpu.memory_space<vmem>>, vector<128x16xbf16>
    %c0_3 = arith.constant 0 : index
    %c0_4 = arith.constant 0 : index
    %2 = vector.load %arg3[%c0_3, %c0_4] : memref<16x128xbf16, #tpu.memory_space<vmem>>, vector<16x128xbf16>
    %cst = arith.constant dense<0.000000e+00> : vector<128x128xf32>
    %3 = tpu.matmul %1, %2, %cst {dimension_numbers = #tpu.dot_dimension_numbers<[1], [0], [0], [1], [0, 0, 1, 1], [], []>} : vector<128x16xbf16>, vector<16x128xbf16>, vector<128x128xf32> -> vector<128x128xf32>
    %4 = arith.addf %0, %3 : vector<128x128xf32>
    %cst_5 = arith.constant 0.000000e+00 : f32
    %5 = vector.broadcast %cst_5 : f32 to vector<128x128xf32>
    %6 = arith.cmpf ogt, %4, %5 : vector<128x128xf32>
    %cst_6 = arith.constant 2.000000e-01 : f32
    %7 = vector.broadcast %cst_6 : f32 to vector<128x128xf32>
    %8 = arith.mulf %7, %4 : vector<128x128xf32>
    %9 = arith.select %6, %4, %8 : vector<128x128xi1>, vector<128x128xf32>
    %10 = arith.truncf %9 : vector<128x128xf32> to vector<128x128xbf16>
    %c0_7 = arith.constant 0 : index
    %c0_8 = arith.constant 0 : index
    %11 = vector.load %arg4[%c0_7, %c0_8] : memref<128x256xbf16, #tpu.memory_space<vmem>>, vector<128x256xbf16>
    %cst_9 = arith.constant dense<0.000000e+00> : vector<128x256xf32>
    %12 = tpu.matmul %10, %11, %cst_9 {dimension_numbers = #tpu.dot_dimension_numbers<[1], [0], [0], [1], [0, 0, 1, 1], [], []>} : vector<128x128xbf16>, vector<128x256xbf16>, vector<128x256xf32> -> vector<128x256xf32>
    %c0_10 = arith.constant 0 : index
    %c0_11 = arith.constant 0 : index
    %13 = vector.load %arg8[%c0_10, %c0_11] : memref<1x5632xf32, #tpu.memory_space<vmem>>, vector<1x256xf32>
    %14 = vector.broadcast %13 : vector<1x256xf32> to vector<128x256xf32>
    %15 = arith.addf %12, %14 : vector<128x256xf32>
    %c0_12 = arith.constant 0 : index
    %c256 = arith.constant 256 : index
    %16 = vector.load %arg8[%c0_12, %c256] : memref<1x5632xf32, #tpu.memory_space<vmem>>, vector<1x256xf32>
    %c0_13 = arith.constant 0 : index
    %c512 = arith.constant 512 : index
    %17 = vector.load %arg8[%c0_13, %c512] : memref<1x5632xf32, #tpu.memory_space<vmem>>, vector<1x256xf32>
    %cst_14 = arith.constant dense<0.000000e+00> : vector<256xf32>
    %18 = vector.multi_reduction <add>, %15, %cst_14 [0] : vector<128x256xf32> to vector<256xf32>
    %19 = vector.shape_cast %18 : vector<256xf32> to vector<1x256xf32>
    %cst_15 = arith.constant 7.812500e-03 : f32
    %20 = vector.broadcast %cst_15 : f32 to vector<1x256xf32>
    %21 = arith.mulf %19, %20 : vector<1x256xf32>
    %22 = arith.mulf %15, %15 : vector<128x256xf32>
    %cst_16 = arith.constant dense<0.000000e+00> : vector<256xf32>
    %23 = vector.multi_reduction <add>, %22, %cst_16 [0] : vector<128x256xf32> to vector<256xf32>
    %24 = vector.shape_cast %23 : vector<256xf32> to vector<1x256xf32>
    %cst_17 = arith.constant 7.812500e-03 : f32
    %25 = vector.broadcast %cst_17 : f32 to vector<1x256xf32>
    %26 = arith.mulf %24, %25 : vector<1x256xf32>
    %27 = arith.mulf %21, %21 : vector<1x256xf32>
    %28 = arith.subf %26, %27 : vector<1x256xf32>
    %cst_18 = arith.constant 8.000000e-01 : f32
    %29 = vector.broadcast %cst_18 : f32 to vector<1x256xf32>
    %30 = arith.addf %28, %29 : vector<1x256xf32>
    %31 = math.rsqrt %30 : vector<1x256xf32>
    %32 = arith.mulf %16, %31 : vector<1x256xf32>
    %33 = vector.broadcast %32 : vector<1x256xf32> to vector<128x256xf32>
    %34 = arith.mulf %15, %33 : vector<128x256xf32>
    %35 = arith.mulf %21, %32 : vector<1x256xf32>
    %36 = arith.subf %17, %35 : vector<1x256xf32>
    %37 = vector.broadcast %36 : vector<1x256xf32> to vector<128x256xf32>
    %38 = arith.addf %34, %37 : vector<128x256xf32>
    %cst_19 = arith.constant 0.000000e+00 : f32
    %39 = vector.broadcast %cst_19 : f32 to vector<128x256xf32>
    %40 = arith.cmpf ogt, %38, %39 : vector<128x256xf32>
    %cst_20 = arith.constant 2.000000e-01 : f32
    %41 = vector.broadcast %cst_20 : f32 to vector<128x256xf32>
    %42 = arith.mulf %41, %38 : vector<128x256xf32>
    %43 = arith.select %40, %38, %42 : vector<128x256xi1>, vector<128x256xf32>
    %44 = arith.truncf %43 : vector<128x256xf32> to vector<128x256xbf16>
    %c0_21 = arith.constant 0 : index
    %c0_22 = arith.constant 0 : index
    %45 = vector.load %arg5[%c0_21, %c0_22] : memref<256x512xbf16, #tpu.memory_space<vmem>>, vector<256x512xbf16>
    %cst_23 = arith.constant dense<0.000000e+00> : vector<128x512xf32>
    %46 = tpu.matmul %44, %45, %cst_23 {dimension_numbers = #tpu.dot_dimension_numbers<[1], [0], [0], [1], [0, 0, 1, 1], [], []>} : vector<128x256xbf16>, vector<256x512xbf16>, vector<128x512xf32> -> vector<128x512xf32>
    %c0_24 = arith.constant 0 : index
    %c768 = arith.constant 768 : index
    %47 = vector.load %arg8[%c0_24, %c768] : memref<1x5632xf32, #tpu.memory_space<vmem>>, vector<1x512xf32>
    %48 = vector.broadcast %47 : vector<1x512xf32> to vector<128x512xf32>
    %49 = arith.addf %46, %48 : vector<128x512xf32>
    %c0_25 = arith.constant 0 : index
    %c1280 = arith.constant 1280 : index
    %50 = vector.load %arg8[%c0_25, %c1280] : memref<1x5632xf32, #tpu.memory_space<vmem>>, vector<1x512xf32>
    %c0_26 = arith.constant 0 : index
    %c1792 = arith.constant 1792 : index
    %51 = vector.load %arg8[%c0_26, %c1792] : memref<1x5632xf32, #tpu.memory_space<vmem>>, vector<1x512xf32>
    %cst_27 = arith.constant dense<0.000000e+00> : vector<512xf32>
    %52 = vector.multi_reduction <add>, %49, %cst_27 [0] : vector<128x512xf32> to vector<512xf32>
    %53 = vector.shape_cast %52 : vector<512xf32> to vector<1x512xf32>
    %cst_28 = arith.constant 7.812500e-03 : f32
    %54 = vector.broadcast %cst_28 : f32 to vector<1x512xf32>
    %55 = arith.mulf %53, %54 : vector<1x512xf32>
    %56 = arith.mulf %49, %49 : vector<128x512xf32>
    %cst_29 = arith.constant dense<0.000000e+00> : vector<512xf32>
    %57 = vector.multi_reduction <add>, %56, %cst_29 [0] : vector<128x512xf32> to vector<512xf32>
    %58 = vector.shape_cast %57 : vector<512xf32> to vector<1x512xf32>
    %cst_30 = arith.constant 7.812500e-03 : f32
    %59 = vector.broadcast %cst_30 : f32 to vector<1x512xf32>
    %60 = arith.mulf %58, %59 : vector<1x512xf32>
    %61 = arith.mulf %55, %55 : vector<1x512xf32>
    %62 = arith.subf %60, %61 : vector<1x512xf32>
    %cst_31 = arith.constant 8.000000e-01 : f32
    %63 = vector.broadcast %cst_31 : f32 to vector<1x512xf32>
    %64 = arith.addf %62, %63 : vector<1x512xf32>
    %65 = math.rsqrt %64 : vector<1x512xf32>
    %66 = arith.mulf %50, %65 : vector<1x512xf32>
    %67 = vector.broadcast %66 : vector<1x512xf32> to vector<128x512xf32>
    %68 = arith.mulf %49, %67 : vector<128x512xf32>
    %69 = arith.mulf %55, %66 : vector<1x512xf32>
    %70 = arith.subf %51, %69 : vector<1x512xf32>
    %71 = vector.broadcast %70 : vector<1x512xf32> to vector<128x512xf32>
    %72 = arith.addf %68, %71 : vector<128x512xf32>
    %cst_32 = arith.constant 0.000000e+00 : f32
    %73 = vector.broadcast %cst_32 : f32 to vector<128x512xf32>
    %74 = arith.cmpf ogt, %72, %73 : vector<128x512xf32>
    %cst_33 = arith.constant 2.000000e-01 : f32
    %75 = vector.broadcast %cst_33 : f32 to vector<128x512xf32>
    %76 = arith.mulf %75, %72 : vector<128x512xf32>
    %77 = arith.select %74, %72, %76 : vector<128x512xi1>, vector<128x512xf32>
    %78 = arith.truncf %77 : vector<128x512xf32> to vector<128x512xbf16>
    %c0_34 = arith.constant 0 : index
    %c0_35 = arith.constant 0 : index
    %79 = vector.load %arg6[%c0_34, %c0_35] : memref<512x1024xbf16, #tpu.memory_space<vmem>>, vector<512x1024xbf16>
    %cst_36 = arith.constant dense<0.000000e+00> : vector<128x1024xf32>
    %80 = tpu.matmul %78, %79, %cst_36 {dimension_numbers = #tpu.dot_dimension_numbers<[1], [0], [0], [1], [0, 0, 1, 1], [], []>} : vector<128x512xbf16>, vector<512x1024xbf16>, vector<128x1024xf32> -> vector<128x1024xf32>
    %c0_37 = arith.constant 0 : index
    %c2304 = arith.constant 2304 : index
    %81 = vector.load %arg8[%c0_37, %c2304] : memref<1x5632xf32, #tpu.memory_space<vmem>>, vector<1x1024xf32>
    %82 = vector.broadcast %81 : vector<1x1024xf32> to vector<128x1024xf32>
    %83 = arith.addf %80, %82 : vector<128x1024xf32>
    %c0_38 = arith.constant 0 : index
    %c3328 = arith.constant 3328 : index
    %84 = vector.load %arg8[%c0_38, %c3328] : memref<1x5632xf32, #tpu.memory_space<vmem>>, vector<1x1024xf32>
    %c0_39 = arith.constant 0 : index
    %c4352 = arith.constant 4352 : index
    %85 = vector.load %arg8[%c0_39, %c4352] : memref<1x5632xf32, #tpu.memory_space<vmem>>, vector<1x1024xf32>
    %cst_40 = arith.constant dense<0.000000e+00> : vector<1024xf32>
    %86 = vector.multi_reduction <add>, %83, %cst_40 [0] : vector<128x1024xf32> to vector<1024xf32>
    %87 = vector.shape_cast %86 : vector<1024xf32> to vector<1x1024xf32>
    %cst_41 = arith.constant 7.812500e-03 : f32
    %88 = vector.broadcast %cst_41 : f32 to vector<1x1024xf32>
    %89 = arith.mulf %87, %88 : vector<1x1024xf32>
    %90 = arith.mulf %83, %83 : vector<128x1024xf32>
    %cst_42 = arith.constant dense<0.000000e+00> : vector<1024xf32>
    %91 = vector.multi_reduction <add>, %90, %cst_42 [0] : vector<128x1024xf32> to vector<1024xf32>
    %92 = vector.shape_cast %91 : vector<1024xf32> to vector<1x1024xf32>
    %cst_43 = arith.constant 7.812500e-03 : f32
    %93 = vector.broadcast %cst_43 : f32 to vector<1x1024xf32>
    %94 = arith.mulf %92, %93 : vector<1x1024xf32>
    %95 = arith.mulf %89, %89 : vector<1x1024xf32>
    %96 = arith.subf %94, %95 : vector<1x1024xf32>
    %cst_44 = arith.constant 8.000000e-01 : f32
    %97 = vector.broadcast %cst_44 : f32 to vector<1x1024xf32>
    %98 = arith.addf %96, %97 : vector<1x1024xf32>
    %99 = math.rsqrt %98 : vector<1x1024xf32>
    %100 = arith.mulf %84, %99 : vector<1x1024xf32>
    %101 = vector.broadcast %100 : vector<1x1024xf32> to vector<128x1024xf32>
    %102 = arith.mulf %83, %101 : vector<128x1024xf32>
    %103 = arith.mulf %89, %100 : vector<1x1024xf32>
    %104 = arith.subf %85, %103 : vector<1x1024xf32>
    %105 = vector.broadcast %104 : vector<1x1024xf32> to vector<128x1024xf32>
    %106 = arith.addf %102, %105 : vector<128x1024xf32>
    %cst_45 = arith.constant 0.000000e+00 : f32
    %107 = vector.broadcast %cst_45 : f32 to vector<128x1024xf32>
    %108 = arith.cmpf ogt, %106, %107 : vector<128x1024xf32>
    %cst_46 = arith.constant 2.000000e-01 : f32
    %109 = vector.broadcast %cst_46 : f32 to vector<128x1024xf32>
    %110 = arith.mulf %109, %106 : vector<128x1024xf32>
    %111 = arith.select %108, %106, %110 : vector<128x1024xi1>, vector<128x1024xf32>
    %112 = arith.truncf %111 : vector<128x1024xf32> to vector<128x1024xbf16>
    %c0_47 = arith.constant 0 : index
    %c0_48 = arith.constant 0 : index
    %113 = vector.load %arg7[%c0_47, %c0_48] : memref<1024x256xbf16, #tpu.memory_space<vmem>>, vector<1024x256xbf16>
    %cst_49 = arith.constant dense<0.000000e+00> : vector<128x256xf32>
    %114 = tpu.matmul %112, %113, %cst_49 {dimension_numbers = #tpu.dot_dimension_numbers<[1], [0], [0], [1], [0, 0, 1, 1], [], []>} : vector<128x1024xbf16>, vector<1024x256xbf16>, vector<128x256xf32> -> vector<128x256xf32>
    %c0_50 = arith.constant 0 : index
    %c5376 = arith.constant 5376 : index
    %115 = vector.load %arg8[%c0_50, %c5376] : memref<1x5632xf32, #tpu.memory_space<vmem>>, vector<1x256xf32>
    %116 = vector.broadcast %115 : vector<1x256xf32> to vector<128x256xf32>
    %117 = arith.addf %114, %116 : vector<128x256xf32>
    %118 = math.tanh %117 : vector<128x256xf32>
    %c0_51 = arith.constant 0 : index
    %c0_52 = arith.constant 0 : index
    %119 = vector.load %arg9[%c0_51, %c0_52] : memref<128x256xf32, #tpu.memory_space<vmem>>, vector<128x256xf32>
    tpu.vector_store %arg9[%c0_51, %c0_52], %118 {strides = array<i32>} : memref<128x256xf32, #tpu.memory_space<vmem>>, vector<128x256xf32>,
    return
  }
  func.func @transform_0(%arg0: i32) -> (i32, i32) {
    %c0_i32 = arith.constant 0 : i32
    %c0_i32_0 = arith.constant 0 : i32
    return %arg0, %c0_i32 : i32, i32
  }
  func.func @transform_1(%arg0: i32) -> (i32, i32) {
    %c0_i32 = arith.constant 0 : i32
    %c0_i32_0 = arith.constant 0 : i32
    return %arg0, %c0_i32 : i32, i32
  }
  func.func @transform_2(%arg0: i32) -> (i32, i32) {
    %c0_i32 = arith.constant 0 : i32
    %c0_i32_0 = arith.constant 0 : i32
    %c0_i32_1 = arith.constant 0 : i32
    return %c0_i32, %c0_i32_0 : i32, i32
  }
  func.func @transform_3(%arg0: i32) -> (i32, i32) {
    %c0_i32 = arith.constant 0 : i32
    %c0_i32_0 = arith.constant 0 : i32
    %c0_i32_1 = arith.constant 0 : i32
    return %c0_i32, %c0_i32_0 : i32, i32
  }
  func.func @transform_4(%arg0: i32) -> (i32, i32) {
    %c0_i32 = arith.constant 0 : i32
    %c0_i32_0 = arith.constant 0 : i32
    %c0_i32_1 = arith.constant 0 : i32
    return %c0_i32, %c0_i32_0 : i32, i32
  }
  func.func @transform_5(%arg0: i32) -> (i32, i32) {
    %c0_i32 = arith.constant 0 : i32
    %c0_i32_0 = arith.constant 0 : i32
    %c0_i32_1 = arith.constant 0 : i32
    return %c0_i32, %c0_i32_0 : i32, i32
  }
  func.func @transform_6(%arg0: i32) -> (i32, i32) {
    %c0_i32 = arith.constant 0 : i32
    %c0_i32_0 = arith.constant 0 : i32
    %c0_i32_1 = arith.constant 0 : i32
    return %c0_i32, %c0_i32_0 : i32, i32
  }
  func.func @transform_7(%arg0: i32) -> (i32, i32) {
    %c0_i32 = arith.constant 0 : i32
    %c0_i32_0 = arith.constant 0 : i32
    %c0_i32_1 = arith.constant 0 : i32
    return %c0_i32, %c0_i32_0 : i32, i32
  }
  func.func @transform_8(%arg0: i32) -> (i32, i32) {
    %c0_i32 = arith.constant 0 : i32
    %c0_i32_0 = arith.constant 0 : i32
    return %arg0, %c0_i32 : i32, i32
  }
}

</mosaic_0001>

<llo_original>
// kernel: generator_forward.1
$region0: #{generator_forward.1}
  #allocation0 [shape = 'u32[]', space=smem, size = 0x4, offset = 0x4, fixed_abs, tag = 'smem constant byte address 0x4 - core index']
  #allocation1 [shape = 'u32[144,128]{1,0:T(1,128)}', space=vmem, size = 0x12000, scoped, tag = 'internal scratch']
  %s0 = inlined_call_operand.vmem [shape: f32[256,128], index: 0, kind: input, shape index: {}]
  %s1 = inlined_call_operand.vmem [shape: bf16[256,16], index: 1, kind: input, shape index: {}]
  %s2 = inlined_call_operand.vmem [shape: bf16[16,128], index: 2, kind: input, shape index: {}]
  %s3 = inlined_call_operand.vmem [shape: bf16[128,256], index: 3, kind: input, shape index: {}]
  %s4 = inlined_call_operand.vmem [shape: bf16[256,512], index: 4, kind: input, shape index: {}]
  %s5 = inlined_call_operand.hbm [shape: bf16[512,1024], index: 5, kind: input, shape index: {}]
  %s6 = inlined_call_operand.vmem [shape: bf16[1024,256], index: 6, kind: input, shape index: {}]
  %s7 = inlined_call_operand.vmem [shape: f32[1,5632], index: 7, kind: input, shape index: {}]
  %s8 = inlined_call_operand.vmem [shape: f32[256,256], index: 8, kind: output, shape index: {}]
  %s9 = sld [smem:[#allocation0]]
  $region69: #{generator_forward.1} parent=0
    _
  %s11 = ssub.s32 1, %s9
  %s12 = scalar_select 0, %s11, %s9
  $region1: #{generator_forward.1} parent=0
    #allocation2 [shape = 'u8[1048576]{0}', space=vmem, size = 0x100000, scoped, tag = 'input window, operand 5, single buffered']
    #allocation3 [shape = 's32[2]{0}', space=sflag, size = 0x8, scoped, tag = 'scoped memory for generator_forward.1']
    %13 = vsyncpa [#allocation3], 0
    loop: start=0, step=1, limit=4
    $region2: #{generator_forward.1} parent=1 // loop_pre_header
      _
    $region3: #{generator_forward.1} parent=1 // loop_header
      %s15 = sphi 0, %s19
      %p16 = scmp.ge.s32.totalorder %s15, 4
      %s25 = sphi 0, %s27
      %s28 = sphi 0, %s25
      %s29 = sphi 0, %s28
      %s45 = sphi 0, %s29
      %s51 = sphi 0, %s53
      %s54 = sphi 0, %s51
      %s55 = sphi 0, %s54
      %s71 = sphi 0, %s55
      %s75 = sphi 0, %s75
      %s77 = sphi 0, %s75
      %s78 = sphi 0, %s77
      %s92 = sphi 0, %s78
      %s96 = sphi 0, %s96
      %s98 = sphi 0, %s96
      %s99 = sphi 0, %s98
      %s113 = sphi 0, %s99
      %s117 = sphi 0, %s117
      %s119 = sphi 0, %s117
      %s120 = sphi 0, %s119
      %s134 = sphi 0, %s120
      %s138 = sphi 0, %s138
      %s140 = sphi 0, %s138
      %s141 = sphi 0, %s140
      %s155 = sphi 0, %s141
      %s159 = sphi 0, %s159
      %s161 = sphi 0, %s159
      %s162 = sphi 0, %s161
      %s176 = sphi 0, %s162
      %s180 = sphi 0, %s180
      %s182 = sphi 0, %s180
      %s183 = sphi 0, %s182
      %s197 = sphi 0, %s183
      %s203 = sphi 0, %s205
      %s206 = sphi 0, %s203
      %s207 = sphi 0, %s206
      %s223 = sphi 0, %s207
    $region4: #{generator_forward.1} parent=1 // loop_header_branch
      %18 = sbr.rel (%p16) target = $region8
    $region5: #{generator_forward.1} parent=1 // loop_body
      %s20 = ssub.s32 %s15, 1
      %s21 = ssub.s32 %s15, 2
      %s22 = sadd.s32 %s15, 1
      %s23 = ssub.s32 %s15, %s22
      %p24 = scmp.eq.s32.totalorder %s23, 0
      %s26 = sadd.s32 %s25, 1
      %s27 = scalar_select %p24, %s25, %s26
      %p30 = pneg %p24
      %p31 = scmp.eq.s32.totalorder %s15, 1
      %p32 = por %p30, %p31
      %p33 = scmp.ne.s32.totalorder %s25, %s28
      %p34 = scmp.eq.s32.totalorder %s15, 0
      %p35 = por %p33, %p34
      %p36 = scmp.ne.s32.totalorder %s25, %s28
      %p37 = scmp.eq.s32.totalorder %s20, 1
      %p38 = por %p36, %p37
      %p39 = scmp.ne.s32.totalorder %s28, %s29
      %p40 = scmp.eq.s32.totalorder %s20, 0
      %p41 = por %p39, %p40
      %p42 = scmp.ne.s32.totalorder %s28, %s29
      %p43 = scmp.eq.s32.totalorder %s21, 1
      %p44 = por %p42, %p43
      %p46 = scmp.ne.s32.totalorder %s29, %s45
      %p47 = scmp.eq.s32.totalorder %s21, 0
      %p48 = por %p46, %p47
      %s49 = ssub.s32 %s15, %s22
      %p50 = scmp.eq.s32.totalorder %s49, 0
      %s52 = sadd.s32 %s51, 1
      %s53 = scalar_select %p50, %s51, %s52
      %p56 = pneg %p50
      %p57 = scmp.eq.s32.totalorder %s15, 1
      %p58 = por %p56, %p57
      %p59 = scmp.ne.s32.totalorder %s51, %s54
      %p60 = scmp.eq.s32.totalorder %s15, 0
      %p61 = por %p59, %p60
      %p62 = scmp.ne.s32.totalorder %s51, %s54
      %p63 = scmp.eq.s32.totalorder %s20, 1
      %p64 = por %p62, %p63
      %p65 = scmp.ne.s32.totalorder %s54, %s55
      %p66 = scmp.eq.s32.totalorder %s20, 0
      %p67 = por %p65, %p66
      %p68 = scmp.ne.s32.totalorder %s54, %s55
      %p69 = scmp.eq.s32.totalorder %s21, 1
      %p70 = por %p68, %p69
      %p72 = scmp.ne.s32.totalorder %s55, %s71
      %p73 = scmp.eq.s32.totalorder %s21, 0
      %p74 = por %p72, %p73
      %s76 = sadd.s32 %s75, 1
      %p79 = scmp.eq.s32.totalorder %s15, 1
      %p80 = scmp.ne.s32.totalorder %s75, %s77
      %p81 = scmp.eq.s32.totalorder %s15, 0
      %p82 = por %p80, %p81
      %p83 = scmp.ne.s32.totalorder %s75, %s77
      %p84 = scmp.eq.s32.totalorder %s20, 1
      %p85 = por %p83, %p84
      %p86 = scmp.ne.s32.totalorder %s77, %s78
      %p87 = scmp.eq.s32.totalorder %s20, 0
      %p88 = por %p86, %p87
      %p89 = scmp.ne.s32.totalorder %s77, %s78
      %p90 = scmp.eq.s32.totalorder %s21, 1
      %p91 = por %p89, %p90
      %p93 = scmp.ne.s32.totalorder %s78, %s92
      %p94 = scmp.eq.s32.totalorder %s21, 0
      %p95 = por %p93, %p94
      %s97 = sadd.s32 %s96, 1
      %p100 = scmp.eq.s32.totalorder %s15, 1
      %p101 = scmp.ne.s32.totalorder %s96, %s98
      %p102 = scmp.eq.s32.totalorder %s15, 0
      %p103 = por %p101, %p102
      %p104 = scmp.ne.s32.totalorder %s96, %s98
      %p105 = scmp.eq.s32.totalorder %s20, 1
      %p106 = por %p104, %p105
      %p107 = scmp.ne.s32.totalorder %s98, %s99
      %p108 = scmp.eq.s32.totalorder %s20, 0
      %p109 = por %p107, %p108
      %p110 = scmp.ne.s32.totalorder %s98, %s99
      %p111 = scmp.eq.s32.totalorder %s21, 1
      %p112 = por %p110, %p111
      %p114 = scmp.ne.s32.totalorder %s99, %s113
      %p115 = scmp.eq.s32.totalorder %s21, 0
      %p116 = por %p114, %p115
      %s118 = sadd.s32 %s117, 1
      %p121 = scmp.eq.s32.totalorder %s15, 1
      %p122 = scmp.ne.s32.totalorder %s117, %s119
      %p123 = scmp.eq.s32.totalorder %s15, 0
      %p124 = por %p122, %p123
      %p125 = scmp.ne.s32.totalorder %s117, %s119
      %p126 = scmp.eq.s32.totalorder %s20, 1
      %p127 = por %p125, %p126
      %p128 = scmp.ne.s32.totalorder %s119, %s120
      %p129 = scmp.eq.s32.totalorder %s20, 0
      %p130 = por %p128, %p129
      %p131 = scmp.ne.s32.totalorder %s119, %s120
      %p132 = scmp.eq.s32.totalorder %s21, 1
      %p133 = por %p131, %p132
      %p135 = scmp.ne.s32.totalorder %s120, %s134
      %p136 = scmp.eq.s32.totalorder %s21, 0
      %p137 = por %p135, %p136
      %s139 = sadd.s32 %s138, 1
      %p142 = scmp.eq.s32.totalorder %s15, 1
      %p143 = scmp.ne.s32.totalorder %s138, %s140
      %p144 = scmp.eq.s32.totalorder %s15, 0
      %p145 = por %p143, %p144
      %p146 = scmp.ne.s32.totalorder %s138, %s140
      %p147 = scmp.eq.s32.totalorder %s20, 1
      %p148 = por %p146, %p147
      %p149 = scmp.ne.s32.totalorder %s140, %s141
      %p150 = scmp.eq.s32.totalorder %s20, 0
      %p151 = por %p149, %p150
      %p152 = scmp.ne.s32.totalorder %s140, %s141
      %p153 = scmp.eq.s32.totalorder %s21, 1
      %p154 = por %p152, %p153
      %p156 = scmp.ne.s32.totalorder %s141, %s155
      %p157 = scmp.eq.s32.totalorder %s21, 0
      %p158 = por %p156, %p157
      %s160 = sadd.s32 %s159, 1
      %p163 = scmp.eq.s32.totalorder %s15, 1
      %p164 = scmp.ne.s32.totalorder %s159, %s161
      %p165 = scmp.eq.s32.totalorder %s15, 0
      %p166 = por %p164, %p165
      %p167 = scmp.ne.s32.totalorder %s159, %s161
      %p168 = scmp.eq.s32.totalorder %s20, 1
      %p169 = por %p167, %p168
      %p170 = scmp.ne.s32.totalorder %s161, %s162
      %p171 = scmp.eq.s32.totalorder %s20, 0
      %p172 = por %p170, %p171
      %p173 = scmp.ne.s32.totalorder %s161, %s162
      %p174 = scmp.eq.s32.totalorder %s21, 1
      %p175 = por %p173, %p174
      %p177 = scmp.ne.s32.totalorder %s162, %s176
      %p178 = scmp.eq.s32.totalorder %s21, 0
      %p179 = por %p177, %p178
      %s181 = sadd.s32 %s180, 1
      %p184 = scmp.eq.s32.totalorder %s15, 1
      %p185 = scmp.ne.s32.totalorder %s180, %s182
      %p186 = scmp.eq.s32.totalorder %s15, 0
      %p187 = por %p185, %p186
      %p188 = scmp.ne.s32.totalorder %s180, %s182
      %p189 = scmp.eq.s32.totalorder %s20, 1
      %p190 = por %p188, %p189
      %p191 = scmp.ne.s32.totalorder %s182, %s183
      %p192 = scmp.eq.s32.totalorder %s20, 0
      %p193 = por %p191, %p192
      %p194 = scmp.ne.s32.totalorder %s182, %s183
      %p195 = scmp.eq.s32.totalorder %s21, 1
      %p196 = por %p194, %p195
      %p198 = scmp.ne.s32.totalorder %s183, %s197
      %p199 = scmp.eq.s32.totalorder %s21, 0
      %p200 = por %p198, %p199
      %s201 = ssub.s32 %s15, %s22
      %p202 = scmp.eq.s32.totalorder %s201, 0
      %s204 = sadd.s32 %s203, 1
      %s205 = scalar_select %p202, %s203, %s204
      %p208 = pneg %p202
      %p209 = scmp.eq.s32.totalorder %s15, 1
      %p210 = por %p208, %p209
      %p211 = scmp.ne.s32.totalorder %s203, %s206
      %p212 = scmp.eq.s32.totalorder %s15, 0
      %p213 = por %p211, %p212
      %p214 = scmp.ne.s32.totalorder %s203, %s206
      %p215 = scmp.eq.s32.totalorder %s20, 1
      %p216 = por %p214, %p215
      %p217 = scmp.ne.s32.totalorder %s206, %s207
      %p218 = scmp.eq.s32.totalorder %s20, 0
      %p219 = por %p217, %p218
      %p220 = scmp.ne.s32.totalorder %s206, %s207
      %p221 = scmp.eq.s32.totalorder %s21, 1
      %p222 = por %p220, %p221
      %p224 = scmp.ne.s32.totalorder %s207, %s223
      %p225 = scmp.eq.s32.totalorder %s21, 0
      %p226 = por %p224, %p225
      %p227 = scmp.le.s32.totalorder 1, %s15
      %p228 = scmp.lt.s32.totalorder %s15, 3
      %p229 = pnand %p227, %p228
      %p230 = pneg %p229
      // Predicated region
      $region9: #{generator_forward.1} parent=5 // pred_check
        _
      $region10: #{generator_forward.1} parent=5 // pred_check_branch
        %232 = sbr.rel (%p229) target = $region12
      $region11: #{generator_forward.1} parent=5 // pred_region
        %s233 = ssub.s32 %s15, 1
        // Predicated region
        $region13: #{generator_forward.1} parent=11 // pred_check
          %p234 = pneg %p88
        $region14: #{generator_forward.1} parent=11 // pred_check_branch
          %236 = sbr.rel (%p234) target = $region16
        $region15: #{generator_forward.1} parent=11 // pred_region
          _
        $region16: #{generator_forward.1} parent=11 // pred_fallthru
          _
        // Predicated region
        $region17: #{generator_forward.1} parent=11 // pred_check
          %p237 = pneg %p109
        $region18: #{generator_forward.1} parent=11 // pred_check_branch
          %239 = sbr.rel (%p237) target = $region20
        $region19: #{generator_forward.1} parent=11 // pred_region
          _
        $region20: #{generator_forward.1} parent=11 // pred_fallthru
          _
        // Predicated region
        $region21: #{generator_forward.1} parent=11 // pred_check
          %p240 = pneg %p130
        $region22: #{generator_forward.1} parent=11 // pred_check_branch
          %242 = sbr.rel (%p240) target = $region24
        $region23: #{generator_forward.1} parent=11 // pred_region
          _
        $region24: #{generator_forward.1} parent=11 // pred_fallthru
          _
        // Predicated region
        $region25: #{generator_forward.1} parent=11 // pred_check
          %p243 = pneg %p151
        $region26: #{generator_forward.1} parent=11 // pred_check_branch
          %245 = sbr.rel (%p243) target = $region28
        $region27: #{generator_forward.1} parent=11 // pred_region
          %s247 = ssub.s32 32768, 32768
          %248 = vsyncadd [#allocation3], %s247
          %s249 = sshll.u32 [#allocation2], 4
          %s250 = int_to_ptr.vmem [resolvable:$true] %s249
          %255 = dma.hbm_to_vmem [thread:$0]  %s5, 32768, %s250, [#allocation3], 512, 512, 32
        $region28: #{generator_forward.1} parent=11 // pred_fallthru
          _
        // Predicated region
        $region29: #{generator_forward.1} parent=11 // pred_check
          %p256 = pneg %p172
        $region30: #{generator_forward.1} parent=11 // pred_check_branch
          %258 = sbr.rel (%p256) target = $region32
        $region31: #{generator_forward.1} parent=11 // pred_region
          _
        $region32: #{generator_forward.1} parent=11 // pred_fallthru
          _
        // Predicated region
        $region33: #{generator_forward.1} parent=11 // pred_check
          %p259 = pneg %p193
        $region34: #{generator_forward.1} parent=11 // pred_check_branch
          %261 = sbr.rel (%p259) target = $region36
        $region35: #{generator_forward.1} parent=11 // pred_region
          _
        $region36: #{generator_forward.1} parent=11 // pred_fallthru
          _
      $region12: #{generator_forward.1} parent=5 // pred_fallthru
        _
      %p262 = scmp.lt.s32.totalorder %s15, 2
      // Predicated region
      $region37: #{generator_forward.1} parent=5 // pred_check
        %p263 = pneg %p262
      $region38: #{generator_forward.1} parent=5 // pred_check_branch
        %265 = sbr.rel (%p263) target = $region40
      $region39: #{generator_forward.1} parent=5 // pred_region
        // Predicated region
        $region41: #{generator_forward.1} parent=39 // pred_check
          %p266 = pneg %p35
        $region42: #{generator_forward.1} parent=39 // pred_check_branch
          %268 = sbr.rel (%p266) target = $region44
        $region43: #{generator_forward.1} parent=39 // pred_region
          %s269 = smul.u32 16, %s15
          %p270 = scmp.lt.s32.totalorder %s269, 31
          %s271 = scalar_select %p270, %s269, 31
          %s272 = smul.addr %s271, 8
          %s273 = scalar_lea.vmem %s0, %s272
          %s274 = smul.u32 16, %s15
        $region44: #{generator_forward.1} parent=39 // pred_fallthru
          _
        // Predicated region
        $region45: #{generator_forward.1} parent=39 // pred_check
          %p275 = pneg %p61
        $region46: #{generator_forward.1} parent=39 // pred_check_branch
          %277 = sbr.rel (%p275) target = $region48
        $region47: #{generator_forward.1} parent=39 // pred_region
          %s278 = smul.u32 16, %s15
          %p279 = scmp.lt.s32.totalorder %s278, 31
          %s280 = scalar_select %p279, %s278, 31
          %s281 = smul.addr %s280, 4
          %s282 = scalar_lea.vmem %s1, %s281
          %s283 = smul.u32 16, %s15
        $region48: #{generator_forward.1} parent=39 // pred_fallthru
          _
      $region40: #{generator_forward.1} parent=5 // pred_fallthru
        _
      %p284 = scmp.le.s32.totalorder 1, %s15
      %p285 = scmp.lt.s32.totalorder %s15, 3
      %p286 = pnand %p284, %p285
      %p287 = pneg %p286
      // Predicated region
      $region49: #{generator_forward.1} parent=5 // pred_check
        _
      $region50: #{generator_forward.1} parent=5 // pred_check_branch
        %289 = sbr.rel (%p286) target = $region52
      $region51: #{generator_forward.1} parent=5 // pred_region
        %s290 = ssub.s32 %s15, 1
        // Predicated region
        $region53: #{generator_forward.1} parent=51 // pred_check
          %p291 = pneg %p151
        $region54: #{generator_forward.1} parent=51 // pred_check_branch
          %293 = sbr.rel (%p291) target = $region56
        $region55: #{generator_forward.1} parent=51 // pred_region
          %294 = dma.done [#allocation3], 32768
        $region56: #{generator_forward.1} parent=51 // pred_fallthru
          _
        %s295 = smul.u32 16, %s20
        %p296 = scmp.lt.s32.totalorder %s295, 31
        %s297 = scalar_select %p296, %s295, 31
        %s298 = smul.addr %s297, 8
        %s299 = scalar_lea.vmem %s0, %s298
        %p300 = pneg %p41
        %p301 = pneg %p38
        %s302 = smul.u32 16, %s20
        %p303 = scmp.lt.s32.totalorder %s302, 31
        %s304 = scalar_select %p303, %s302, 31
        %s305 = smul.addr %s304, 4
        %s306 = scalar_lea.vmem %s1, %s305
        %p307 = pneg %p67
        %p308 = pneg %p64
        %p309 = pneg %p88
        %p310 = pneg %p85
        %p311 = pneg %p109
        %p312 = pneg %p106
        %p313 = pneg %p130
        %p314 = pneg %p127
        %p315 = pneg %p151
        %p316 = pneg %p148
        %p317 = pneg %p172
        %p318 = pneg %p169
        %p319 = pneg %p193
        %p320 = pneg %p190
        %p321 = pneg %p219
        %p322 = pneg %p216
        %s323 = smul.u32 16, %s20
        %p324 = scmp.lt.s32.totalorder %s323, 31
        %s325 = scalar_select %p324, %s323, 31
        %s326 = smul.addr %s325, 2
        %s327 = smul.addr %s326, 8
        %s328 = scalar_lea.vmem %s8, %s327
        %s329 = smul.u32 16, %s20
        %p330 = scmp.lt.s32.totalorder %s329, 31
        %s331 = scalar_select %p330, %s329, 31
        %s332 = smul.addr %s331, 8
        %s333 = scalar_lea.vmem %s0, %s332
        %s334 = smul.u32 16, %s20
        %s335 = smul.u32 16, %s20
        %p336 = scmp.lt.s32.totalorder %s335, 31
        %s337 = scalar_select %p336, %s335, 31
        %s338 = smul.addr %s337, 4
        %s339 = scalar_lea.vmem %s1, %s338
        %s340 = smul.u32 16, %s20
        %s341 = smul.u32 16, %s20
        %p342 = scmp.lt.s32.totalorder %s341, 31
        %s343 = scalar_select %p342, %s341, 31
        %s344 = smul.addr %s343, 2
        %s345 = smul.addr %s344, 8
        %s346 = scalar_lea.vmem %s8, %s345
        %s347 = smul.u32 16, %s20
        %v349 = vld [vmem:[%s333] sm:$0xff]
        %v350 = vld [vmem:[%s333 + $0x8] sm:$0xff]
        %v351 = vld [vmem:[%s333 + $0x10] sm:$0xff]
        %v352 = vld [vmem:[%s333 + $0x18] sm:$0xff]
        %v353 = vld [vmem:[%s333 + $0x20] sm:$0xff]
        %v354 = vld [vmem:[%s333 + $0x28] sm:$0xff]
        %v355 = vld [vmem:[%s333 + $0x30] sm:$0xff]
        %v356 = vld [vmem:[%s333 + $0x38] sm:$0xff]
        %v357 = vld [vmem:[%s333 + $0x40] sm:$0xff]
        %v358 = vld [vmem:[%s333 + $0x48] sm:$0xff]
        %v359 = vld [vmem:[%s333 + $0x50] sm:$0xff]
        %v360 = vld [vmem:[%s333 + $0x58] sm:$0xff]
        %v361 = vld [vmem:[%s333 + $0x60] sm:$0xff]
        %v362 = vld [vmem:[%s333 + $0x68] sm:$0xff]
        %v363 = vld [vmem:[%s333 + $0x70] sm:$0xff]
        %v364 = vld [vmem:[%s333 + $0x78] sm:$0xff]
        %v365 = vld [vmem:[%s339] sm:$0xf]
        %v366 = vld [vmem:[%s339 + $0x4] sm:$0xf]
        %v367 = vld [vmem:[%s339 + $0x8] sm:$0xf]
        %v368 = vld [vmem:[%s339 + $0xc] sm:$0xf]
        %v369 = vld [vmem:[%s339 + $0x10] sm:$0xf]
        %v370 = vld [vmem:[%s339 + $0x14] sm:$0xf]
        %v371 = vld [vmem:[%s339 + $0x18] sm:$0xf]
        %v372 = vld [vmem:[%s339 + $0x1c] sm:$0xf]
        %v373 = vld [vmem:[%s339 + $0x20] sm:$0xf]
        %v374 = vld [vmem:[%s339 + $0x24] sm:$0xf]
        %v375 = vld [vmem:[%s339 + $0x28] sm:$0xf]
        %v376 = vld [vmem:[%s339 + $0x2c] sm:$0xf]
        %v377 = vld [vmem:[%s339 + $0x30] sm:$0xf]
        %v378 = vld [vmem:[%s339 + $0x34] sm:$0xf]
        %v379 = vld [vmem:[%s339 + $0x38] sm:$0xf]
        %v380 = vld [vmem:[%s339 + $0x3c] sm:$0xf]
        %v381 = vld [vmem:[%s2] sm:$0xf]
        %v382 = vld [vmem:[%s2 + $0x4] sm:$0xf]
        %v399 = vunpack.c.l.b16 %v365
        %v400 = vunpack.c.l.b16 %v366
        %v401 = vunpack.c.l.b16 %v367
        %v402 = vunpack.c.l.b16 %v368
        %v403 = vunpack.c.l.b16 %v369
        %v404 = vunpack.c.l.b16 %v370
        %v405 = vunpack.c.l.b16 %v371
        %v406 = vunpack.c.l.b16 %v372
        %v407 = vunpack.c.l.b16 %v373
        %v408 = vunpack.c.l.b16 %v374
        %v409 = vunpack.c.l.b16 %v375
        %v410 = vunpack.c.l.b16 %v376
        %v411 = vunpack.c.l.b16 %v377
        %v412 = vunpack.c.l.b16 %v378
        %v413 = vunpack.c.l.b16 %v379
        %v414 = vunpack.c.l.b16 %v380
        %v415 = vpack.c.b16 %v400, %v399
        %v416 = vpack.c.b16 %v402, %v401
        %v417 = vpack.c.b16 %v404, %v403
        %v418 = vpack.c.b16 %v406, %v405
        %v419 = vpack.c.b16 %v408, %v407
        %v420 = vpack.c.b16 %v410, %v409
        %v421 = vpack.c.b16 %v412, %v411
        %v422 = vpack.c.b16 %v414, %v413
        %v425 = vunpack.c.l.b16 %v381
        %v426 = vunpack.c.l.b16 %v382
        %v427 = vpack.c.b16 %v426, %v425
        %vm429 = vcmask 130048
        %v431 = vsel %vm429, %v415, 0
        %v434 = vsel %vm429, %v416, 0
        %v437 = vsel %vm429, %v417, 0
        %v440 = vsel %vm429, %v418, 0
        %v443 = vsel %vm429, %v419, 0
        %v446 = vsel %vm429, %v420, 0
        %v449 = vsel %vm429, %v421, 0
        %v452 = vsel %vm429, %v422, 0
        %454 = vmatprep.subr.bf16.mxu0 0
        %455 = vmatpush1.bf16.msra.mxu0 0
        %456 = vmatprep.subr.bf16.mxu0 0
        %457 = vmatpush1.bf16.msra.mxu0 0
        %458 = vmatprep.subr.bf16.mxu0 0
        %459 = vmatpush1.bf16.msra.mxu0 0
        %460 = vmatprep.subr.bf16.mxu0 0
        %461 = vmatpush1.bf16.msra.mxu0 0
        %462 = vmatprep.subr.bf16.mxu0 0
        %463 = vmatpush1.bf16.msra.mxu0 0
        %464 = vmatprep.subr.bf16.mxu0 0
        %465 = vmatpush1.bf16.msra.mxu0 0
        %466 = vmatprep.subr.bf16.mxu0 0
        %467 = vmatpush1.bf16.msra.mxu0 0
        %468 = vmatprep.subr.bf16.mxu0 0
        %469 = vmatpush1.bf16.msra.mxu0 %v427
        %470 = vmatprep.subr.bf16.mxu0 0
        %471 = vmatpush2.bf16.msra.mxu0 0
        %472 = vmatprep.subr.bf16.mxu0 0
        %473 = vmatpush2.bf16.msra.mxu0 0
        %474 = vmatprep.subr.bf16.mxu0 0
        %475 = vmatpush2.bf16.msra.mxu0 0
        %476 = vmatprep.subr.bf16.mxu0 0
        %477 = vmatpush2.bf16.msra.mxu0 0
        %478 = vmatprep.subr.bf16.mxu0 0
        %479 = vmatpush2.bf16.msra.mxu0 0
        %480 = vmatprep.subr.bf16.mxu0 0
        %481 = vmatpush2.bf16.msra.mxu0 0
        %482 = vmatprep.subr.bf16.mxu0 0
        %483 = vmatpush2.bf16.msra.mxu0 0
        %484 = vmatprep.subr.bf16.mxu0 0
        %485 = vmatpush2.bf16.msra.mxu0 0
        %486 = vmatprep.mubr.bf16.mxu0 0
        %487 = vmatmul.mubr.bf16.gmra.mxu0 %v431
        %v488 = vpop.f32.mrf.mxu0
        %v489 = vadd.f32 0.0, %v488
        %v490 = vpop.f32.mrf.mxu0
        %v491 = vpop.f32.mrf.mxu0
        %v492 = vadd.f32 0.0, %v491
        %v493 = vpop.f32.mrf.mxu0
        %494 = vmatprep.mubr.bf16.mxu0 0
        %495 = vmatmul.mubr.bf16.gmra.mxu0 %v434
        %v496 = vpop.f32.mrf.mxu0
        %v497 = vadd.f32 0.0, %v496
        %v498 = vpop.f32.mrf.mxu0
        %v499 = vpop.f32.mrf.mxu0
        %v500 = vadd.f32 0.0, %v499
        %v501 = vpop.f32.mrf.mxu0
        %502 = vmatprep.mubr.bf16.mxu0 0
        %503 = vmatmul.mubr.bf16.gmra.mxu0 %v437
        %v504 = vpop.f32.mrf.mxu0
        %v505 = vadd.f32 0.0, %v504
        %v506 = vpop.f32.mrf.mxu0
        %v507 = vpop.f32.mrf.mxu0
        %v508 = vadd.f32 0.0, %v507
        %v509 = vpop.f32.mrf.mxu0
        %510 = vmatprep.mubr.bf16.mxu0 0
        %511 = vmatmul.mubr.bf16.gmra.mxu0 %v440
        %v512 = vpop.f32.mrf.mxu0
        %v513 = vadd.f32 0.0, %v512
        %v514 = vpop.f32.mrf.mxu0
        %v515 = vpop.f32.mrf.mxu0
        %v516 = vadd.f32 0.0, %v515
        %v517 = vpop.f32.mrf.mxu0
        %518 = vmatprep.mubr.bf16.mxu0 0
        %519 = vmatmul.mubr.bf16.gmra.mxu0 %v443
        %v520 = vpop.f32.mrf.mxu0
        %v521 = vadd.f32 0.0, %v520
        %v522 = vpop.f32.mrf.mxu0
        %v523 = vpop.f32.mrf.mxu0
        %v524 = vadd.f32 0.0, %v523
        %v525 = vpop.f32.mrf.mxu0
        %526 = vmatprep.mubr.bf16.mxu0 0
        %527 = vmatmul.mubr.bf16.gmra.mxu0 %v446
        %v528 = vpop.f32.mrf.mxu0
        %v529 = vadd.f32 0.0, %v528
        %v530 = vpop.f32.mrf.mxu0
        %v531 = vpop.f32.mrf.mxu0
        %v532 = vadd.f32 0.0, %v531
        %v533 = vpop.f32.mrf.mxu0
        %534 = vmatprep.mubr.bf16.mxu0 0
        %535 = vmatmul.mubr.bf16.gmra.mxu0 %v449
        %v536 = vpop.f32.mrf.mxu0
        %v537 = vadd.f32 0.0, %v536
        %v538 = vpop.f32.mrf.mxu0
        %v539 = vpop.f32.mrf.mxu0
        %v540 = vadd.f32 0.0, %v539
        %v541 = vpop.f32.mrf.mxu0
        %542 = vmatprep.mubr.bf16.mxu0 0
        %543 = vmatmul.mubr.bf16.gmra.mxu0 %v452
        %v544 = vpop.f32.mrf.mxu0
        %v545 = vadd.f32 0.0, %v544
        %v546 = vpop.f32.mrf.mxu0
        %v547 = vpop.f32.mrf.mxu0
        %v548 = vadd.f32 0.0, %v547
        %v549 = vpop.f32.mrf.mxu0
        %550 = vdwg.mxu0
        %v551 = vadd.f32 %v349, %v489
        %v552 = vadd.f32 %v350, %v492
        %v553 = vadd.f32 %v351, %v497
        %v554 = vadd.f32 %v352, %v500
        %v555 = vadd.f32 %v353, %v505
        %v556 = vadd.f32 %v354, %v508
        %v557 = vadd.f32 %v355, %v513
        %v558 = vadd.f32 %v356, %v516
        %v559 = vadd.f32 %v357, %v521
        %v560 = vadd.f32 %v358, %v524
        %v561 = vadd.f32 %v359, %v529
        %v562 = vadd.f32 %v360, %v532
        %v563 = vadd.f32 %v361, %v537
        %v564 = vadd.f32 %v362, %v540
        %v565 = vadd.f32 %v363, %v545
        %v566 = vadd.f32 %v364, %v548
        %vm567 = vcmp.gt.f32.partialorder %v551, 0.0
        %vm568 = vcmp.gt.f32.partialorder %v552, 0.0
        %vm569 = vcmp.gt.f32.partialorder %v553, 0.0
        %vm570 = vcmp.gt.f32.partialorder %v554, 0.0
        %vm571 = vcmp.gt.f32.partialorder %v555, 0.0
        %vm572 = vcmp.gt.f32.partialorder %v556, 0.0
        %vm573 = vcmp.gt.f32.partialorder %v557, 0.0
        %vm574 = vcmp.gt.f32.partialorder %v558, 0.0
        %vm575 = vcmp.gt.f32.partialorder %v559, 0.0
        %vm576 = vcmp.gt.f32.partialorder %v560, 0.0
        %vm577 = vcmp.gt.f32.partialorder %v561, 0.0
        %vm578 = vcmp.gt.f32.partialorder %v562, 0.0
        %vm579 = vcmp.gt.f32.partialorder %v563, 0.0
        %vm580 = vcmp.gt.f32.partialorder %v564, 0.0
        %vm581 = vcmp.gt.f32.partialorder %v565, 0.0
        %vm582 = vcmp.gt.f32.partialorder %v566, 0.0
        %v583 = vmul.f32 %v551, 0.2
        %v584 = vmul.f32 %v552, 0.2
        %v585 = vmul.f32 %v553, 0.2
        %v586 = vmul.f32 %v554, 0.2
        %v587 = vmul.f32 %v555, 0.2
        %v588 = vmul.f32 %v556, 0.2
        %v589 = vmul.f32 %v557, 0.2
        %v590 = vmul.f32 %v558, 0.2
        %v591 = vmul.f32 %v559, 0.2
        %v592 = vmul.f32 %v560, 0.2
        %v593 = vmul.f32 %v561, 0.2
        %v594 = vmul.f32 %v562, 0.2
        %v595 = vmul.f32 %v563, 0.2
        %v596 = vmul.f32 %v564, 0.2
        %v597 = vmul.f32 %v565, 0.2
        %v598 = vmul.f32 %v566, 0.2
        %v599 = vsel %vm567, %v551, %v583
        %v600 = vsel %vm568, %v552, %v584
        %v601 = vsel %vm569, %v553, %v585
        %v602 = vsel %vm570, %v554, %v586
        %v603 = vsel %vm571, %v555, %v587
        %v604 = vsel %vm572, %v556, %v588
        %v605 = vsel %vm573, %v557, %v589
        %v606 = vsel %vm574, %v558, %v590
        %v607 = vsel %vm575, %v559, %v591
        %v608 = vsel %vm576, %v560, %v592
        %v609 = vsel %vm577, %v561, %v593
        %v610 = vsel %vm578, %v562, %v594
        %v611 = vsel %vm579, %v563, %v595
        %v612 = vsel %vm580, %v564, %v596
        %v613 = vsel %vm581, %v565, %v597
        %v614 = vsel %vm582, %v566, %v598
        %v615 = vpack.c.bf16 %v600, %v599
        %v616 = vpack.c.bf16 %v602, %v601
        %v617 = vpack.c.bf16 %v604, %v603
        %v618 = vpack.c.bf16 %v606, %v605
        %v619 = vpack.c.bf16 %v608, %v607
        %v620 = vpack.c.bf16 %v610, %v609
        %v621 = vpack.c.bf16 %v612, %v611
        %v622 = vpack.c.bf16 %v614, %v613
        %v623 = vld [vmem:[%s3] sm:$0xff]
        %v624 = vld [vmem:[%s3 + $0x8] sm:$0xff]
        %v625 = vld [vmem:[%s3 + $0x10] sm:$0xff]
        %v626 = vld [vmem:[%s3 + $0x18] sm:$0xff]
        %v627 = vld [vmem:[%s3 + $0x20] sm:$0xff]
        %v628 = vld [vmem:[%s3 + $0x28] sm:$0xff]
        %v629 = vld [vmem:[%s3 + $0x30] sm:$0xff]
        %v630 = vld [vmem:[%s3 + $0x38] sm:$0xff]
        %v631 = vld [vmem:[%s3 + $0x40] sm:$0xff]
        %v632 = vld [vmem:[%s3 + $0x48] sm:$0xff]
        %v633 = vld [vmem:[%s3 + $0x50] sm:$0xff]
        %v634 = vld [vmem:[%s3 + $0x58] sm:$0xff]
        %v635 = vld [vmem:[%s3 + $0x60] sm:$0xff]
        %v636 = vld [vmem:[%s3 + $0x68] sm:$0xff]
        %v637 = vld [vmem:[%s3 + $0x70] sm:$0xff]
        %v638 = vld [vmem:[%s3 + $0x78] sm:$0xff]
        %v639 = vld [vmem:[%s7] sm:$0x3]
        %v641 = vlaneseq
        %v642 = vshrl.u32 %v641, 7
        %v643 = vsub.s32 0, %v642
        %v644 = vrot.slane %v639, %v643
        %v645 = vlaneseq
        %v646 = vshrl.u32 %v645, 7
        %v647 = vsub.s32 1, %v646
        %v648 = vrot.slane %v639, %v647
        %v667 = vunpack.c.l.b16 %v623
        %v668 = vunpack.c.h.b16 %v623
        %v669 = vunpack.c.l.b16 %v624
        %v670 = vunpack.c.h.b16 %v624
        %v671 = vunpack.c.l.b16 %v625
        %v672 = vunpack.c.h.b16 %v625
        %v673 = vunpack.c.l.b16 %v626
        %v674 = vunpack.c.h.b16 %v626
        %v675 = vunpack.c.l.b16 %v627
        %v676 = vunpack.c.h.b16 %v627
        %v677 = vunpack.c.l.b16 %v628
        %v678 = vunpack.c.h.b16 %v628
        %v679 = vunpack.c.l.b16 %v629
        %v680 = vunpack.c.h.b16 %v629
        %v681 = vunpack.c.l.b16 %v630
        %v682 = vunpack.c.h.b16 %v630
        %v683 = vunpack.c.l.b16 %v631
        %v684 = vunpack.c.h.b16 %v631
        %v685 = vunpack.c.l.b16 %v632
        %v686 = vunpack.c.h.b16 %v632
        %v687 = vunpack.c.l.b16 %v633
        %v688 = vunpack.c.h.b16 %v633
        %v689 = vunpack.c.l.b16 %v634
        %v690 = vunpack.c.h.b16 %v634
        %v691 = vunpack.c.l.b16 %v635
        %v692 = vunpack.c.h.b16 %v635
        %v693 = vunpack.c.l.b16 %v636
        %v694 = vunpack.c.h.b16 %v636
        %v695 = vunpack.c.l.b16 %v637
        %v696 = vunpack.c.h.b16 %v637
        %v697 = vunpack.c.l.b16 %v638
        %v698 = vunpack.c.h.b16 %v638
        %v699 = vpack.c.b16 %v669, %v667
        %v700 = vpack.c.b16 %v670, %v668
        %v701 = vpack.c.b16 %v673, %v671
        %v702 = vpack.c.b16 %v674, %v672
        %v703 = vpack.c.b16 %v677, %v675
        %v704 = vpack.c.b16 %v678, %v676
        %v705 = vpack.c.b16 %v681, %v679
        %v706 = vpack.c.b16 %v682, %v680
        %v707 = vpack.c.b16 %v685, %v683
        %v708 = vpack.c.b16 %v686, %v684
        %v709 = vpack.c.b16 %v689, %v687
        %v710 = vpack.c.b16 %v690, %v688
        %v711 = vpack.c.b16 %v693, %v691
        %v712 = vpack.c.b16 %v694, %v692
        %v713 = vpack.c.b16 %v697, %v695
        %v714 = vpack.c.b16 %v698, %v696
        %731 = vmatprep.subr.bf16.mxu0 %v714
        %732 = vmatpush1.bf16.msra.mxu0 %v713
        %733 = vmatprep.subr.bf16.mxu0 %v712
        %734 = vmatpush1.bf16.msra.mxu0 %v711
        %735 = vmatprep.subr.bf16.mxu0 %v710
        %736 = vmatpush1.bf16.msra.mxu0 %v709
        %737 = vmatprep.subr.bf16.mxu0 %v708
        %738 = vmatpush1.bf16.msra.mxu0 %v707
        %739 = vmatprep.subr.bf16.mxu0 %v706
        %740 = vmatpush1.bf16.msra.mxu0 %v705
        %741 = vmatprep.subr.bf16.mxu0 %v704
        %742 = vmatpush1.bf16.msra.mxu0 %v703
        %743 = vmatprep.subr.bf16.mxu0 %v702
        %744 = vmatpush1.bf16.msra.mxu0 %v701
        %745 = vmatprep.subr.bf16.mxu0 %v700
        %746 = vmatpush1.bf16.msra.mxu0 %v699
        %747 = vmatprep.subr.bf16.mxu0 0
        %748 = vmatpush2.bf16.msra.mxu0 0
        %749 = vmatprep.subr.bf16.mxu0 0
        %750 = vmatpush2.bf16.msra.mxu0 0
        %751 = vmatprep.subr.bf16.mxu0 0
        %752 = vmatpush2.bf16.msra.mxu0 0
        %753 = vmatprep.subr.bf16.mxu0 0
        %754 = vmatpush2.bf16.msra.mxu0 0
        %755 = vmatprep.subr.bf16.mxu0 0
        %756 = vmatpush2.bf16.msra.mxu0 0
        %757 = vmatprep.subr.bf16.mxu0 0
        %758 = vmatpush2.bf16.msra.mxu0 0
        %759 = vmatprep.subr.bf16.mxu0 0
        %760 = vmatpush2.bf16.msra.mxu0 0
        %761 = vmatprep.subr.bf16.mxu0 0
        %762 = vmatpush2.bf16.msra.mxu0 0
        %763 = vmatprep.mubr.bf16.mxu0 0
        %764 = vmatmul.mubr.bf16.gmra.mxu0 %v615
        %v765 = vpop.f32.mrf.mxu0
        %v766 = vadd.f32 %v644, %v765
        %v767 = vpop.f32.mrf.mxu0
        %v768 = vadd.f32 %v648, %v767
        %v769 = vpop.f32.mrf.mxu0
        %v770 = vadd.f32 %v644, %v769
        %v771 = vpop.f32.mrf.mxu0
        %v772 = vadd.f32 %v648, %v771
        %773 = vmatprep.mubr.bf16.mxu0 0
        %774 = vmatmul.mubr.bf16.gmra.mxu0 %v616
        %v775 = vpop.f32.mrf.mxu0
        %v776 = vadd.f32 %v644, %v775
        %v777 = vpop.f32.mrf.mxu0
        %v778 = vadd.f32 %v648, %v777
        %v779 = vpop.f32.mrf.mxu0
        %v780 = vadd.f32 %v644, %v779
        %v781 = vpop.f32.mrf.mxu0
        %v782 = vadd.f32 %v648, %v781
        %783 = vmatprep.mubr.bf16.mxu0 0
        %784 = vmatmul.mubr.bf16.gmra.mxu0 %v617
        %v785 = vpop.f32.mrf.mxu0
        %v786 = vadd.f32 %v644, %v785
        %v787 = vpop.f32.mrf.mxu0
        %v788 = vadd.f32 %v648, %v787
        %v789 = vpop.f32.mrf.mxu0
        %v790 = vadd.f32 %v644, %v789
        %v791 = vpop.f32.mrf.mxu0
        %v792 = vadd.f32 %v648, %v791
        %793 = vmatprep.mubr.bf16.mxu0 0
        %794 = vmatmul.mubr.bf16.gmra.mxu0 %v618
        %v795 = vpop.f32.mrf.mxu0
        %v796 = vadd.f32 %v644, %v795
        %v797 = vpop.f32.mrf.mxu0
        %v798 = vadd.f32 %v648, %v797
        %v799 = vpop.f32.mrf.mxu0
        %v800 = vadd.f32 %v644, %v799
        %v801 = vpop.f32.mrf.mxu0
        %v802 = vadd.f32 %v648, %v801
        %803 = vmatprep.mubr.bf16.mxu0 0
        %804 = vmatmul.mubr.bf16.gmra.mxu0 %v619
        %v805 = vpop.f32.mrf.mxu0
        %v806 = vadd.f32 %v644, %v805
        %v807 = vpop.f32.mrf.mxu0
        %v808 = vadd.f32 %v648, %v807
        %v809 = vpop.f32.mrf.mxu0
        %v810 = vadd.f32 %v644, %v809
        %v811 = vpop.f32.mrf.mxu0
        %v812 = vadd.f32 %v648, %v811
        %813 = vmatprep.mubr.bf16.mxu0 0
        %814 = vmatmul.mubr.bf16.gmra.mxu0 %v620
        %v815 = vpop.f32.mrf.mxu0
        %v816 = vadd.f32 %v644, %v815
        %v817 = vpop.f32.mrf.mxu0
        %v818 = vadd.f32 %v648, %v817
        %v819 = vpop.f32.mrf.mxu0
        %v820 = vadd.f32 %v644, %v819
        %v821 = vpop.f32.mrf.mxu0
        %v822 = vadd.f32 %v648, %v821
        %823 = vmatprep.mubr.bf16.mxu0 0
        %824 = vmatmul.mubr.bf16.gmra.mxu0 %v621
        %v825 = vpop.f32.mrf.mxu0
        %v826 = vadd.f32 %v644, %v825
        %v827 = vpop.f32.mrf.mxu0
        %v828 = vadd.f32 %v648, %v827
        %v829 = vpop.f32.mrf.mxu0
        %v830 = vadd.f32 %v644, %v829
        %v831 = vpop.f32.mrf.mxu0
        %v832 = vadd.f32 %v648, %v831
        %833 = vmatprep.mubr.bf16.mxu0 0
        %834 = vmatmul.mubr.bf16.gmra.mxu0 %v622
        %v835 = vpop.f32.mrf.mxu0
        %v836 = vadd.f32 %v644, %v835
        %v837 = vpop.f32.mrf.mxu0
        %v838 = vadd.f32 %v648, %v837
        %v839 = vpop.f32.mrf.mxu0
        %v840 = vadd.f32 %v644, %v839
        %v841 = vpop.f32.mrf.mxu0
        %v842 = vadd.f32 %v648, %v841
        %843 = vdwg.mxu0
        %v844 = vld [vmem:[%s7 + $0x2] sm:$0x3]
        %v845 = vld [vmem:[%s7 + $0x4] sm:$0x3]
        %v846 = vadd.f32 %v766, %v770
        %v847 = vadd.f32 %v846, %v776
        %v848 = vadd.f32 %v847, %v780
        %v849 = vadd.f32 %v848, %v786
        %v850 = vadd.f32 %v849, %v790
        %v851 = vadd.f32 %v850, %v796
        %v852 = vadd.f32 %v851, %v800
        %v853 = vadd.f32 %v852, %v806
        %v854 = vadd.f32 %v853, %v810
        %v855 = vadd.f32 %v854, %v816
        %v856 = vadd.f32 %v855, %v820
        %v857 = vadd.f32 %v856, %v826
        %v858 = vadd.f32 %v857, %v830
        %v859 = vadd.f32 %v858, %v836
        %v860 = vadd.f32 %v859, %v840
        %v861 = vrot.slane %v860, 4
        %v862 = vadd.f32 %v860, %v861
        %v863 = vrot.slane %v862, 2
        %v864 = vadd.f32 %v862, %v863
        %v865 = vrot.slane %v864, 1
        %v866 = vadd.f32 %v864, %v865
        %v867 = vadd.f32 %v768, %v772
        %v868 = vadd.f32 %v867, %v778
        %v869 = vadd.f32 %v868, %v782
        %v870 = vadd.f32 %v869, %v788
        %v871 = vadd.f32 %v870, %v792
        %v872 = vadd.f32 %v871, %v798
        %v873 = vadd.f32 %v872, %v802
        %v874 = vadd.f32 %v873, %v808
        %v875 = vadd.f32 %v874, %v812
        %v876 = vadd.f32 %v875, %v818
        %v877 = vadd.f32 %v876, %v822
        %v878 = vadd.f32 %v877, %v828
        %v879 = vadd.f32 %v878, %v832
        %v880 = vadd.f32 %v879, %v838
        %v881 = vadd.f32 %v880, %v842
        %v882 = vrot.slane %v881, 4
        %v883 = vadd.f32 %v881, %v882
        %v884 = vrot.slane %v883, 2
        %v885 = vadd.f32 %v883, %v884
        %v886 = vrot.slane %v885, 1
        %v887 = vadd.f32 %v885, %v886
        %v888 = vmul.f32 %v866, 0.0078125
        %v889 = vmul.f32 %v887, 0.0078125
        %v890 = vmul.f32 %v766, %v766
        %v891 = vmul.f32 %v768, %v768
        %v892 = vmul.f32 %v770, %v770
        %v893 = vmul.f32 %v772, %v772
        %v894 = vmul.f32 %v776, %v776
        %v895 = vmul.f32 %v778, %v778
        %v896 = vmul.f32 %v780, %v780
        %v897 = vmul.f32 %v782, %v782
        %v898 = vmul.f32 %v786, %v786
        %v899 = vmul.f32 %v788, %v788
        %v900 = vmul.f32 %v790, %v790
        %v901 = vmul.f32 %v792, %v792
        %v902 = vmul.f32 %v796, %v796
        %v903 = vmul.f32 %v798, %v798
        %v904 = vmul.f32 %v800, %v800
        %v905 = vmul.f32 %v802, %v802
        %v906 = vmul.f32 %v806, %v806
        %v907 = vmul.f32 %v808, %v808
        %v908 = vmul.f32 %v810, %v810
        %v909 = vmul.f32 %v812, %v812
        %v910 = vmul.f32 %v816, %v816
        %v911 = vmul.f32 %v818, %v818
        %v912 = vmul.f32 %v820, %v820
        %v913 = vmul.f32 %v822, %v822
        %v914 = vmul.f32 %v826, %v826
        %v915 = vmul.f32 %v828, %v828
        %v916 = vmul.f32 %v830, %v830
        %v917 = vmul.f32 %v832, %v832
        %v918 = vmul.f32 %v836, %v836
        %v919 = vmul.f32 %v838, %v838
        %v920 = vmul.f32 %v840, %v840
        %v921 = vmul.f32 %v842, %v842
        %v922 = vadd.f32 %v890, %v892
        %v923 = vadd.f32 %v922, %v894
        %v924 = vadd.f32 %v923, %v896
        %v925 = vadd.f32 %v924, %v898
        %v926 = vadd.f32 %v925, %v900
        %v927 = vadd.f32 %v926, %v902
        %v928 = vadd.f32 %v927, %v904
        %v929 = vadd.f32 %v928, %v906
        %v930 = vadd.f32 %v929, %v908
        %v931 = vadd.f32 %v930, %v910
        %v932 = vadd.f32 %v931, %v912
        %v933 = vadd.f32 %v932, %v914
        %v934 = vadd.f32 %v933, %v916
        %v935 = vadd.f32 %v934, %v918
        %v936 = vadd.f32 %v935, %v920
        %v937 = vrot.slane %v936, 4
        %v938 = vadd.f32 %v936, %v937
        %v939 = vrot.slane %v938, 2
        %v940 = vadd.f32 %v938, %v939
        %v941 = vrot.slane %v940, 1
        %v942 = vadd.f32 %v940, %v941
        %v943 = vadd.f32 %v891, %v893
        %v944 = vadd.f32 %v943, %v895
        %v945 = vadd.f32 %v944, %v897
        %v946 = vadd.f32 %v945, %v899
        %v947 = vadd.f32 %v946, %v901
        %v948 = vadd.f32 %v947, %v903
        %v949 = vadd.f32 %v948, %v905
        %v950 = vadd.f32 %v949, %v907
        %v951 = vadd.f32 %v950, %v909
        %v952 = vadd.f32 %v951, %v911
        %v953 = vadd.f32 %v952, %v913
        %v954 = vadd.f32 %v953, %v915
        %v955 = vadd.f32 %v954, %v917
        %v956 = vadd.f32 %v955, %v919
        %v957 = vadd.f32 %v956, %v921
        %v958 = vrot.slane %v957, 4
        %v959 = vadd.f32 %v957, %v958
        %v960 = vrot.slane %v959, 2
        %v961 = vadd.f32 %v959, %v960
        %v962 = vrot.slane %v961, 1
        %v963 = vadd.f32 %v961, %v962
        %v964 = vmul.f32 %v942, 0.0078125
        %v965 = vmul.f32 %v963, 0.0078125
        %v966 = vmul.f32 %v888, %v888
        %v967 = vmul.f32 %v889, %v889
        %v968 = vsub.f32 %v964, %v966
        %v969 = vsub.f32 %v965, %v967
        %v970 = vadd.f32 %v968, 0.8
        %v971 = vadd.f32 %v969, 0.8
        %v972 = vrsqrt.pop %v970
        %v973 = vrsqrt.pop %v971
        %v976 = vcombine.low %v972, %v973
        %v978 = vunpack.c.l.s4 1966171168
        %v979 = vunpack.c.0.s8 %v978
        %v980 = vlaneseq
        %v981 = vshrl.u32 %v980, 7
        %v982 = vsub.s32 %v979, %v981
        %v983 = vrot.slane %v976, %v982
        %v985 = vunpack.c.l.s4 1966171168
        %v986 = vunpack.c.0.s8 %v985
        %v987 = vlaneseq
        %v988 = vshrl.u32 %v987, 7
        %v989 = vsub.s32 %v986, %v988
        %v990 = vrot.slane %v983, %v989
        %v992 = vmul.f32 %v844, %v990
        %v994 = vlaneseq
        %v995 = vshrl.u32 %v994, 7
        %v996 = vsub.s32 0, %v995
        %v997 = vrot.slane %v992, %v996
        %v998 = vlaneseq
        %v999 = vshrl.u32 %v998, 7
        %v1000 = vsub.s32 1, %v999
        %v1001 = vrot.slane %v992, %v1000
        %v1004 = vmul.f32 %v766, %v997
        %v1005 = vmul.f32 %v768, %v1001
        %v1006 = vmul.f32 %v770, %v997
        %v1007 = vmul.f32 %v772, %v1001
        %v1008 = vmul.f32 %v776, %v997
        %v1009 = vmul.f32 %v778, %v1001
        %v1010 = vmul.f32 %v780, %v997
        %v1011 = vmul.f32 %v782, %v1001
        %v1012 = vmul.f32 %v786, %v997
        %v1013 = vmul.f32 %v788, %v1001
        %v1014 = vmul.f32 %v790, %v997
        %v1015 = vmul.f32 %v792, %v1001
        %v1016 = vmul.f32 %v796, %v997
        %v1017 = vmul.f32 %v798, %v1001
        %v1018 = vmul.f32 %v800, %v997
        %v1019 = vmul.f32 %v802, %v1001
        %v1020 = vmul.f32 %v806, %v997
        %v1021 = vmul.f32 %v808, %v1001
        %v1022 = vmul.f32 %v810, %v997
        %v1023 = vmul.f32 %v812, %v1001
        %v1024 = vmul.f32 %v816, %v997
        %v1025 = vmul.f32 %v818, %v1001
        %v1026 = vmul.f32 %v820, %v997
        %v1027 = vmul.f32 %v822, %v1001
        %v1028 = vmul.f32 %v826, %v997
        %v1029 = vmul.f32 %v828, %v1001
        %v1030 = vmul.f32 %v830, %v997
        %v1031 = vmul.f32 %v832, %v1001
        %v1032 = vmul.f32 %v836, %v997
        %v1033 = vmul.f32 %v838, %v1001
        %v1034 = vmul.f32 %v840, %v997
        %v1035 = vmul.f32 %v842, %v1001
        %v1036 = vmul.f32 %v888, %v997
        %v1037 = vmul.f32 %v889, %v1001
        %v1040 = vcombine.low %v1036, %v1037
        %v1042 = vunpack.c.l.s4 1966171168
        %v1043 = vunpack.c.0.s8 %v1042
        %v1044 = vlaneseq
        %v1045 = vshrl.u32 %v1044, 7
        %v1046 = vsub.s32 %v1043, %v1045
        %v1047 = vrot.slane %v1040, %v1046
        %v1049 = vunpack.c.l.s4 1966171168
        %v1050 = vunpack.c.0.s8 %v1049
        %v1051 = vlaneseq
        %v1052 = vshrl.u32 %v1051, 7
        %v1053 = vsub.s32 %v1050, %v1052
        %v1054 = vrot.slane %v1047, %v1053
        %v1056 = vsub.f32 %v845, %v1054
        %v1058 = vlaneseq
        %v1059 = vshrl.u32 %v1058, 7
        %v1060 = vsub.s32 0, %v1059
        %v1061 = vrot.slane %v1056, %v1060
        %v1062 = vlaneseq
        %v1063 = vshrl.u32 %v1062, 7
        %v1064 = vsub.s32 1, %v1063
        %v1065 = vrot.slane %v1056, %v1064
        %v1068 = vadd.f32 %v1004, %v1061
        %v1069 = vadd.f32 %v1005, %v1065
        %v1070 = vadd.f32 %v1006, %v1061
        %v1071 = vadd.f32 %v1007, %v1065
        %v1072 = vadd.f32 %v1008, %v1061
        %v1073 = vadd.f32 %v1009, %v1065
        %v1074 = vadd.f32 %v1010, %v1061
        %v1075 = vadd.f32 %v1011, %v1065
        %v1076 = vadd.f32 %v1012, %v1061
        %v1077 = vadd.f32 %v1013, %v1065
        %v1078 = vadd.f32 %v1014, %v1061
        %v1079 = vadd.f32 %v1015, %v1065
        %v1080 = vadd.f32 %v1016, %v1061
        %v1081 = vadd.f32 %v1017, %v1065
        %v1082 = vadd.f32 %v1018, %v1061
        %v1083 = vadd.f32 %v1019, %v1065
        %v1084 = vadd.f32 %v1020, %v1061
        %v1085 = vadd.f32 %v1021, %v1065
        %v1086 = vadd.f32 %v1022, %v1061
        %v1087 = vadd.f32 %v1023, %v1065
        %v1088 = vadd.f32 %v1024, %v1061
        %v1089 = vadd.f32 %v1025, %v1065
        %v1090 = vadd.f32 %v1026, %v1061
        %v1091 = vadd.f32 %v1027, %v1065
        %v1092 = vadd.f32 %v1028, %v1061
        %v1093 = vadd.f32 %v1029, %v1065
        %v1094 = vadd.f32 %v1030, %v1061
        %v1095 = vadd.f32 %v1031, %v1065
        %v1096 = vadd.f32 %v1032, %v1061
        %v1097 = vadd.f32 %v1033, %v1065
        %v1098 = vadd.f32 %v1034, %v1061
        %v1099 = vadd.f32 %v1035, %v1065
        %vm1100 = vcmp.gt.f32.partialorder %v1068, 0.0
        %vm1101 = vcmp.gt.f32.partialorder %v1069, 0.0
        %vm1102 = vcmp.gt.f32.partialorder %v1070, 0.0
        %vm1103 = vcmp.gt.f32.partialorder %v1071, 0.0
        %vm1104 = vcmp.gt.f32.partialorder %v1072, 0.0
        %vm1105 = vcmp.gt.f32.partialorder %v1073, 0.0
        %vm1106 = vcmp.gt.f32.partialorder %v1074, 0.0
        %vm1107 = vcmp.gt.f32.partialorder %v1075, 0.0
        %vm1108 = vcmp.gt.f32.partialorder %v1076, 0.0
        %vm1109 = vcmp.gt.f32.partialorder %v1077, 0.0
        %vm1110 = vcmp.gt.f32.partialorder %v1078, 0.0
        %vm1111 = vcmp.gt.f32.partialorder %v1079, 0.0
        %vm1112 = vcmp.gt.f32.partialorder %v1080, 0.0
        %vm1113 = vcmp.gt.f32.partialorder %v1081, 0.0
        %vm1114 = vcmp.gt.f32.partialorder %v1082, 0.0
        %vm1115 = vcmp.gt.f32.partialorder %v1083, 0.0
        %vm1116 = vcmp.gt.f32.partialorder %v1084, 0.0
        %vm1117 = vcmp.gt.f32.partialorder %v1085, 0.0
        %vm1118 = vcmp.gt.f32.partialorder %v1086, 0.0
        %vm1119 = vcmp.gt.f32.partialorder %v1087, 0.0
        %vm1120 = vcmp.gt.f32.partialorder %v1088, 0.0
        %vm1121 = vcmp.gt.f32.partialorder %v1089, 0.0
        %vm1122 = vcmp.gt.f32.partialorder %v1090, 0.0
        %vm1123 = vcmp.gt.f32.partialorder %v1091, 0.0
        %vm1124 = vcmp.gt.f32.partialorder %v1092, 0.0
        %vm1125 = vcmp.gt.f32.partialorder %v1093, 0.0
        %vm1126 = vcmp.gt.f32.partialorder %v1094, 0.0
        %vm1127 = vcmp.gt.f32.partialorder %v1095, 0.0
        %vm1128 = vcmp.gt.f32.partialorder %v1096, 0.0
        %vm1129 = vcmp.gt.f32.partialorder %v1097, 0.0
        %vm1130 = vcmp.gt.f32.partialorder %v1098, 0.0
        %vm1131 = vcmp.gt.f32.partialorder %v1099, 0.0
        %v1132 = vmul.f32 %v1068, 0.2
        %v1133 = vmul.f32 %v1069, 0.2
        %v1134 = vmul.f32 %v1070, 0.2
        %v1135 = vmul.f32 %v1071, 0.2
        %v1136 = vmul.f32 %v1072, 0.2
        %v1137 = vmul.f32 %v1073, 0.2
        %v1138 = vmul.f32 %v1074, 0.2
        %v1139 = vmul.f32 %v1075, 0.2
        %v1140 = vmul.f32 %v1076, 0.2
        %v1141 = vmul.f32 %v1077, 0.2
        %v1142 = vmul.f32 %v1078, 0.2
        %v1143 = vmul.f32 %v1079, 0.2
        %v1144 = vmul.f32 %v1080, 0.2
        %v1145 = vmul.f32 %v1081, 0.2
        %v1146 = vmul.f32 %v1082, 0.2
        %v1147 = vmul.f32 %v1083, 0.2
        %v1148 = vmul.f32 %v1084, 0.2
        %v1149 = vmul.f32 %v1085, 0.2
        %v1150 = vmul.f32 %v1086, 0.2
        %v1151 = vmul.f32 %v1087, 0.2
        %v1152 = vmul.f32 %v1088, 0.2
        %v1153 = vmul.f32 %v1089, 0.2
        %v1154 = vmul.f32 %v1090, 0.2
        %v1155 = vmul.f32 %v1091, 0.2
        %v1156 = vmul.f32 %v1092, 0.2
        %v1157 = vmul.f32 %v1093, 0.2
        %v1158 = vmul.f32 %v1094, 0.2
        %v1159 = vmul.f32 %v1095, 0.2
        %v1160 = vmul.f32 %v1096, 0.2
        %v1161 = vmul.f32 %v1097, 0.2
        %v1162 = vmul.f32 %v1098, 0.2
        %v1163 = vmul.f32 %v1099, 0.2
        %v1164 = vsel %vm1100, %v1068, %v1132
        %v1165 = vsel %vm1101, %v1069, %v1133
        %v1166 = vsel %vm1102, %v1070, %v1134
        %v1167 = vsel %vm1103, %v1071, %v1135
        %v1168 = vsel %vm1104, %v1072, %v1136
        %v1169 = vsel %vm1105, %v1073, %v1137
        %v1170 = vsel %vm1106, %v1074, %v1138
        %v1171 = vsel %vm1107, %v1075, %v1139
        %v1172 = vsel %vm1108, %v1076, %v1140
        %v1173 = vsel %vm1109, %v1077, %v1141
        %v1174 = vsel %vm1110, %v1078, %v1142
        %v1175 = vsel %vm1111, %v1079, %v1143
        %v1176 = vsel %vm1112, %v1080, %v1144
        %v1177 = vsel %vm1113, %v1081, %v1145
        %v1178 = vsel %vm1114, %v1082, %v1146
        %v1179 = vsel %vm1115, %v1083, %v1147
        %v1180 = vsel %vm1116, %v1084, %v1148
        %v1181 = vsel %vm1117, %v1085, %v1149
        %v1182 = vsel %vm1118, %v1086, %v1150
        %v1183 = vsel %vm1119, %v1087, %v1151
        %v1184 = vsel %vm1120, %v1088, %v1152
        %v1185 = vsel %vm1121, %v1089, %v1153
        %v1186 = vsel %vm1122, %v1090, %v1154
        %v1187 = vsel %vm1123, %v1091, %v1155
        %v1188 = vsel %vm1124, %v1092, %v1156
        %v1189 = vsel %vm1125, %v1093, %v1157
        %v1190 = vsel %vm1126, %v1094, %v1158
        %v1191 = vsel %vm1127, %v1095, %v1159
        %v1192 = vsel %vm1128, %v1096, %v1160
        %v1193 = vsel %vm1129, %v1097, %v1161
        %v1194 = vsel %vm1130, %v1098, %v1162
        %v1195 = vsel %vm1131, %v1099, %v1163
        %v1196 = vpack.c.bf16 %v1166, %v1164
        %v1197 = vpack.c.bf16 %v1167, %v1165
        %v1198 = vpack.c.bf16 %v1170, %v1168
        %v1199 = vpack.c.bf16 %v1171, %v1169
        %v1200 = vpack.c.bf16 %v1174, %v1172
        %v1201 = vpack.c.bf16 %v1175, %v1173
        %v1202 = vpack.c.bf16 %v1178, %v1176
        %v1203 = vpack.c.bf16 %v1179, %v1177
        %v1204 = vpack.c.bf16 %v1182, %v1180
        %v1205 = vpack.c.bf16 %v1183, %v1181
        %v1206 = vpack.c.bf16 %v1186, %v1184
        %v1207 = vpack.c.bf16 %v1187, %v1185
        %v1208 = vpack.c.bf16 %v1190, %v1188
        %v1209 = vpack.c.bf16 %v1191, %v1189
        %v1210 = vpack.c.bf16 %v1194, %v1192
        %v1211 = vpack.c.bf16 %v1195, %v1193
        %v1212 = vld [vmem:[%s4] sm:$0xff]
        %v1213 = vld [vmem:[%s4 + $0x8] sm:$0xff]
        %v1214 = vld [vmem:[%s4 + $0x10] sm:$0xff]
        %v1215 = vld [vmem:[%s4 + $0x18] sm:$0xff]
        %v1216 = vld [vmem:[%s4 + $0x20] sm:$0xff]
        %v1217 = vld [vmem:[%s4 + $0x28] sm:$0xff]
        %v1218 = vld [vmem:[%s4 + $0x30] sm:$0xff]
        %v1219 = vld [vmem:[%s4 + $0x38] sm:$0xff]
        %v1220 = vld [vmem:[%s4 + $0x40] sm:$0xff]
        %v1221 = vld [vmem:[%s4 + $0x48] sm:$0xff]
        %v1222 = vld [vmem:[%s4 + $0x50] sm:$0xff]
        %v1223 = vld [vmem:[%s4 + $0x58] sm:$0xff]
        %v1224 = vld [vmem:[%s4 + $0x60] sm:$0xff]
        %v1225 = vld [vmem:[%s4 + $0x68] sm:$0xff]
        %v1226 = vld [vmem:[%s4 + $0x70] sm:$0xff]
        %v1227 = vld [vmem:[%s4 + $0x78] sm:$0xff]
        %v1228 = vld [vmem:[%s4 + $0x80] sm:$0xff]
        %v1229 = vld [vmem:[%s4 + $0x88] sm:$0xff]
        %v1230 = vld [vmem:[%s4 + $0x90] sm:$0xff]
        %v1231 = vld [vmem:[%s4 + $0x98] sm:$0xff]
        %v1232 = vld [vmem:[%s4 + $0xa0] sm:$0xff]
        %v1233 = vld [vmem:[%s4 + $0xa8] sm:$0xff]
        %v1234 = vld [vmem:[%s4 + $0xb0] sm:$0xff]
        %v1235 = vld [vmem:[%s4 + $0xb8] sm:$0xff]
        %v1236 = vld [vmem:[%s4 + $0xc0] sm:$0xff]
        %v1237 = vld [vmem:[%s4 + $0xc8] sm:$0xff]
        %v1238 = vld [vmem:[%s4 + $0xd0] sm:$0xff]
        %v1239 = vld [vmem:[%s4 + $0xd8] sm:$0xff]
        %v1240 = vld [vmem:[%s4 + $0xe0] sm:$0xff]
        %v1241 = vld [vmem:[%s4 + $0xe8] sm:$0xff]
        %v1242 = vld [vmem:[%s4 + $0xf0] sm:$0xff]
        %v1243 = vld [vmem:[%s4 + $0xf8] sm:$0xff]
        %v1244 = vld [vmem:[%s4 + $0x100] sm:$0xff]
        %v1245 = vld [vmem:[%s4 + $0x108] sm:$0xff]
        %v1246 = vld [vmem:[%s4 + $0x110] sm:$0xff]
        %v1247 = vld [vmem:[%s4 + $0x118] sm:$0xff]
        %v1248 = vld [vmem:[%s4 + $0x120] sm:$0xff]
        %v1249 = vld [vmem:[%s4 + $0x128] sm:$0xff]
        %v1250 = vld [vmem:[%s4 + $0x130] sm:$0xff]
        %v1251 = vld [vmem:[%s4 + $0x138] sm:$0xff]
        %v1252 = vld [vmem:[%s4 + $0x140] sm:$0xff]
        %v1253 = vld [vmem:[%s4 + $0x148] sm:$0xff]
        %v1254 = vld [vmem:[%s4 + $0x150] sm:$0xff]
        %v1255 = vld [vmem:[%s4 + $0x158] sm:$0xff]
        %v1256 = vld [vmem:[%s4 + $0x160] sm:$0xff]
        %v1257 = vld [vmem:[%s4 + $0x168] sm:$0xff]
        %v1258 = vld [vmem:[%s4 + $0x170] sm:$0xff]
        %v1259 = vld [vmem:[%s4 + $0x178] sm:$0xff]
        %v1260 = vld [vmem:[%s4 + $0x180] sm:$0xff]
        %v1261 = vld [vmem:[%s4 + $0x188] sm:$0xff]
        %v1262 = vld [vmem:[%s4 + $0x190] sm:$0xff]
        %v1263 = vld [vmem:[%s4 + $0x198] sm:$0xff]
        %v1264 = vld [vmem:[%s4 + $0x1a0] sm:$0xff]
        %v1265 = vld [vmem:[%s4 + $0x1a8] sm:$0xff]
        %v1266 = vld [vmem:[%s4 + $0x1b0] sm:$0xff]
        %v1267 = vld [vmem:[%s4 + $0x1b8] sm:$0xff]
        %v1268 = vld [vmem:[%s4 + $0x1c0] sm:$0xff]
        %v1269 = vld [vmem:[%s4 + $0x1c8] sm:$0xff]
        %v1270 = vld [vmem:[%s4 + $0x1d0] sm:$0xff]
        %v1271 = vld [vmem:[%s4 + $0x1d8] sm:$0xff]
        %v1272 = vld [vmem:[%s4 + $0x1e0] sm:$0xff]
        %v1273 = vld [vmem:[%s4 + $0x1e8] sm:$0xff]
        %v1274 = vld [vmem:[%s4 + $0x1f0] sm:$0xff]
        %v1275 = vld [vmem:[%s4 + $0x1f8] sm:$0xff]
        %v1276 = vld [vmem:[%s7 + $0x6] sm:$0xf]
        %v1278 = vlaneseq
        %v1279 = vshrl.u32 %v1278, 7
        %v1280 = vsub.s32 0, %v1279
        %v1281 = vrot.slane %v1276, %v1280
        %v1282 = vlaneseq
        %v1283 = vshrl.u32 %v1282, 7
        %v1284 = vsub.s32 1, %v1283
        %v1285 = vrot.slane %v1276, %v1284
        %v1286 = vlaneseq
        %v1287 = vshrl.u32 %v1286, 7
        %v1288 = vsub.s32 2, %v1287
        %v1289 = vrot.slane %v1276, %v1288
        %v1290 = vlaneseq
        %v1291 = vshrl.u32 %v1290, 7
        %v1292 = vsub.s32 3, %v1291
        %v1293 = vrot.slane %v1276, %v1292
        %v1362 = vunpack.c.l.b16 %v1212
        %v1363 = vunpack.c.h.b16 %v1212
        %v1364 = vunpack.c.l.b16 %v1213
        %v1365 = vunpack.c.h.b16 %v1213
        %v1366 = vunpack.c.l.b16 %v1214
        %v1367 = vunpack.c.h.b16 %v1214
        %v1368 = vunpack.c.l.b16 %v1215
        %v1369 = vunpack.c.h.b16 %v1215
        %v1370 = vunpack.c.l.b16 %v1216
        %v1371 = vunpack.c.h.b16 %v1216
        %v1372 = vunpack.c.l.b16 %v1217
        %v1373 = vunpack.c.h.b16 %v1217
        %v1374 = vunpack.c.l.b16 %v1218
        %v1375 = vunpack.c.h.b16 %v1218
        %v1376 = vunpack.c.l.b16 %v1219
        %v1377 = vunpack.c.h.b16 %v1219
        %v1378 = vunpack.c.l.b16 %v1220
        %v1379 = vunpack.c.h.b16 %v1220
        %v1380 = vunpack.c.l.b16 %v1221
        %v1381 = vunpack.c.h.b16 %v1221
        %v1382 = vunpack.c.l.b16 %v1222
        %v1383 = vunpack.c.h.b16 %v1222
        %v1384 = vunpack.c.l.b16 %v1223
        %v1385 = vunpack.c.h.b16 %v1223
        %v1386 = vunpack.c.l.b16 %v1224
        %v1387 = vunpack.c.h.b16 %v1224
        %v1388 = vunpack.c.l.b16 %v1225
        %v1389 = vunpack.c.h.b16 %v1225
        %v1390 = vunpack.c.l.b16 %v1226
        %v1391 = vunpack.c.h.b16 %v1226
        %v1392 = vunpack.c.l.b16 %v1227
        %v1393 = vunpack.c.h.b16 %v1227
        %v1394 = vunpack.c.l.b16 %v1228
        %v1395 = vunpack.c.h.b16 %v1228
        %v1396 = vunpack.c.l.b16 %v1229
        %v1397 = vunpack.c.h.b16 %v1229
        %v1398 = vunpack.c.l.b16 %v1230
        %v1399 = vunpack.c.h.b16 %v1230
        %v1400 = vunpack.c.l.b16 %v1231
        %v1401 = vunpack.c.h.b16 %v1231
        %v1402 = vunpack.c.l.b16 %v1232
        %v1403 = vunpack.c.h.b16 %v1232
        %v1404 = vunpack.c.l.b16 %v1233
        %v1405 = vunpack.c.h.b16 %v1233
        %v1406 = vunpack.c.l.b16 %v1234
        %v1407 = vunpack.c.h.b16 %v1234
        %v1408 = vunpack.c.l.b16 %v1235
        %v1409 = vunpack.c.h.b16 %v1235
        %v1410 = vunpack.c.l.b16 %v1236
        %v1411 = vunpack.c.h.b16 %v1236
        %v1412 = vunpack.c.l.b16 %v1237
        %v1413 = vunpack.c.h.b16 %v1237
        %v1414 = vunpack.c.l.b16 %v1238
        %v1415 = vunpack.c.h.b16 %v1238
        %v1416 = vunpack.c.l.b16 %v1239
        %v1417 = vunpack.c.h.b16 %v1239
        %v1418 = vunpack.c.l.b16 %v1240
        %v1419 = vunpack.c.h.b16 %v1240
        %v1420 = vunpack.c.l.b16 %v1241
        %v1421 = vunpack.c.h.b16 %v1241
        %v1422 = vunpack.c.l.b16 %v1242
        %v1423 = vunpack.c.h.b16 %v1242
        %v1424 = vunpack.c.l.b16 %v1243
        %v1425 = vunpack.c.h.b16 %v1243
        %v1426 = vunpack.c.l.b16 %v1244
        %v1427 = vunpack.c.h.b16 %v1244
        %v1428 = vunpack.c.l.b16 %v1245
        %v1429 = vunpack.c.h.b16 %v1245
        %v1430 = vunpack.c.l.b16 %v1246
        %v1431 = vunpack.c.h.b16 %v1246
        %v1432 = vunpack.c.l.b16 %v1247
        %v1433 = vunpack.c.h.b16 %v1247
        %v1434 = vunpack.c.l.b16 %v1248
        %v1435 = vunpack.c.h.b16 %v1248
        %v1436 = vunpack.c.l.b16 %v1249
        %v1437 = vunpack.c.h.b16 %v1249
        %v1438 = vunpack.c.l.b16 %v1250
        %v1439 = vunpack.c.h.b16 %v1250
        %v1440 = vunpack.c.l.b16 %v1251
        %v1441 = vunpack.c.h.b16 %v1251
        %v1442 = vunpack.c.l.b16 %v1252
        %v1443 = vunpack.c.h.b16 %v1252
        %v1444 = vunpack.c.l.b16 %v1253
        %v1445 = vunpack.c.h.b16 %v1253
        %v1446 = vunpack.c.l.b16 %v1254
        %v1447 = vunpack.c.h.b16 %v1254
        %v1448 = vunpack.c.l.b16 %v1255
        %v1449 = vunpack.c.h.b16 %v1255
        %v1450 = vunpack.c.l.b16 %v1256
        %v1451 = vunpack.c.h.b16 %v1256
        %v1452 = vunpack.c.l.b16 %v1257
        %v1453 = vunpack.c.h.b16 %v1257
        %v1454 = vunpack.c.l.b16 %v1258
        %v1455 = vunpack.c.h.b16 %v1258
        %v1456 = vunpack.c.l.b16 %v1259
        %v1457 = vunpack.c.h.b16 %v1259
        %v1458 = vunpack.c.l.b16 %v1260
        %v1459 = vunpack.c.h.b16 %v1260
        %v1460 = vunpack.c.l.b16 %v1261
        %v1461 = vunpack.c.h.b16 %v1261
        %v1462 = vunpack.c.l.b16 %v1262
        %v1463 = vunpack.c.h.b16 %v1262
        %v1464 = vunpack.c.l.b16 %v1263
        %v1465 = vunpack.c.h.b16 %v1263
        %v1466 = vunpack.c.l.b16 %v1264
        %v1467 = vunpack.c.h.b16 %v1264
        %v1468 = vunpack.c.l.b16 %v1265
        %v1469 = vunpack.c.h.b16 %v1265
        %v1470 = vunpack.c.l.b16 %v1266
        %v1471 = vunpack.c.h.b16 %v1266
        %v1472 = vunpack.c.l.b16 %v1267
        %v1473 = vunpack.c.h.b16 %v1267
        %v1474 = vunpack.c.l.b16 %v1268
        %v1475 = vunpack.c.h.b16 %v1268
        %v1476 = vunpack.c.l.b16 %v1269
        %v1477 = vunpack.c.h.b16 %v1269
        %v1478 = vunpack.c.l.b16 %v1270
        %v1479 = vunpack.c.h.b16 %v1270
        %v1480 = vunpack.c.l.b16 %v1271
        %v1481 = vunpack.c.h.b16 %v1271
        %v1482 = vunpack.c.l.b16 %v1272
        %v1483 = vunpack.c.h.b16 %v1272
        %v1484 = vunpack.c.l.b16 %v1273
        %v1485 = vunpack.c.h.b16 %v1273
        %v1486 = vunpack.c.l.b16 %v1274
        %v1487 = vunpack.c.h.b16 %v1274
        %v1488 = vunpack.c.l.b16 %v1275
        %v1489 = vunpack.c.h.b16 %v1275
        %v1490 = vpack.c.b16 %v1366, %v1362
        %v1491 = vpack.c.b16 %v1367, %v1363
        %v1492 = vpack.c.b16 %v1368, %v1364
        %v1493 = vpack.c.b16 %v1369, %v1365
        %v1494 = vpack.c.b16 %v1374, %v1370
        %v1495 = vpack.c.b16 %v1375, %v1371
        %v1496 = vpack.c.b16 %v1376, %v1372
        %v1497 = vpack.c.b16 %v1377, %v1373
        %v1498 = vpack.c.b16 %v1382, %v1378
        %v1499 = vpack.c.b16 %v1383, %v1379
        %v1500 = vpack.c.b16 %v1384, %v1380
        %v1501 = vpack.c.b16 %v1385, %v1381
        %v1502 = vpack.c.b16 %v1390, %v1386
        %v1503 = vpack.c.b16 %v1391, %v1387
        %v1504 = vpack.c.b16 %v1392, %v1388
        %v1505 = vpack.c.b16 %v1393, %v1389
        %v1506 = vpack.c.b16 %v1398, %v1394
        %v1507 = vpack.c.b16 %v1399, %v1395
        %v1508 = vpack.c.b16 %v1400, %v1396
        %v1509 = vpack.c.b16 %v1401, %v1397
        %v1510 = vpack.c.b16 %v1406, %v1402
        %v1511 = vpack.c.b16 %v1407, %v1403
        %v1512 = vpack.c.b16 %v1408, %v1404
        %v1513 = vpack.c.b16 %v1409, %v1405
        %v1514 = vpack.c.b16 %v1414, %v1410
        %v1515 = vpack.c.b16 %v1415, %v1411
        %v1516 = vpack.c.b16 %v1416, %v1412
        %v1517 = vpack.c.b16 %v1417, %v1413
        %v1518 = vpack.c.b16 %v1422, %v1418
        %v1519 = vpack.c.b16 %v1423, %v1419
        %v1520 = vpack.c.b16 %v1424, %v1420
        %v1521 = vpack.c.b16 %v1425, %v1421
        %v1522 = vpack.c.b16 %v1430, %v1426
        %v1523 = vpack.c.b16 %v1431, %v1427
        %v1524 = vpack.c.b16 %v1432, %v1428
        %v1525 = vpack.c.b16 %v1433, %v1429
        %v1526 = vpack.c.b16 %v1438, %v1434
        %v1527 = vpack.c.b16 %v1439, %v1435
        %v1528 = vpack.c.b16 %v1440, %v1436
        %v1529 = vpack.c.b16 %v1441, %v1437
        %v1530 = vpack.c.b16 %v1446, %v1442
        %v1531 = vpack.c.b16 %v1447, %v1443
        %v1532 = vpack.c.b16 %v1448, %v1444
        %v1533 = vpack.c.b16 %v1449, %v1445
        %v1534 = vpack.c.b16 %v1454, %v1450
        %v1535 = vpack.c.b16 %v1455, %v1451
        %v1536 = vpack.c.b16 %v1456, %v1452
        %v1537 = vpack.c.b16 %v1457, %v1453
        %v1538 = vpack.c.b16 %v1462, %v1458
        %v1539 = vpack.c.b16 %v1463, %v1459
        %v1540 = vpack.c.b16 %v1464, %v1460
        %v1541 = vpack.c.b16 %v1465, %v1461
        %v1542 = vpack.c.b16 %v1470, %v1466
        %v1543 = vpack.c.b16 %v1471, %v1467
        %v1544 = vpack.c.b16 %v1472, %v1468
        %v1545 = vpack.c.b16 %v1473, %v1469
        %v1546 = vpack.c.b16 %v1478, %v1474
        %v1547 = vpack.c.b16 %v1479, %v1475
        %v1548 = vpack.c.b16 %v1480, %v1476
        %v1549 = vpack.c.b16 %v1481, %v1477
        %v1550 = vpack.c.b16 %v1486, %v1482
        %v1551 = vpack.c.b16 %v1487, %v1483
        %v1552 = vpack.c.b16 %v1488, %v1484
        %v1553 = vpack.c.b16 %v1489, %v1485
        %1618 = vmatprep.subr.bf16.mxu0 %v1519
        %1619 = vmatpush1.bf16.msra.mxu0 %v1518
        %1620 = vmatprep.subr.bf16.mxu0 %v1515
        %1621 = vmatpush1.bf16.msra.mxu0 %v1514
        %1622 = vmatprep.subr.bf16.mxu0 %v1511
        %1623 = vmatpush1.bf16.msra.mxu0 %v1510
        %1624 = vmatprep.subr.bf16.mxu0 %v1507
        %1625 = vmatpush1.bf16.msra.mxu0 %v1506
        %1626 = vmatprep.subr.bf16.mxu0 %v1503
        %1627 = vmatpush1.bf16.msra.mxu0 %v1502
        %1628 = vmatprep.subr.bf16.mxu0 %v1499
        %1629 = vmatpush1.bf16.msra.mxu0 %v1498
        %1630 = vmatprep.subr.bf16.mxu0 %v1495
        %1631 = vmatpush1.bf16.msra.mxu0 %v1494
        %1632 = vmatprep.subr.bf16.mxu0 %v1491
        %1633 = vmatpush1.bf16.msra.mxu0 %v1490
        %1634 = vmatprep.subr.bf16.mxu0 %v1551
        %1635 = vmatpush2.bf16.msra.mxu0 %v1550
        %1636 = vmatprep.subr.bf16.mxu0 %v1547
        %1637 = vmatpush2.bf16.msra.mxu0 %v1546
        %1638 = vmatprep.subr.bf16.mxu0 %v1543
        %1639 = vmatpush2.bf16.msra.mxu0 %v1542
        %1640 = vmatprep.subr.bf16.mxu0 %v1539
        %1641 = vmatpush2.bf16.msra.mxu0 %v1538
        %1642 = vmatprep.subr.bf16.mxu0 %v1535
        %1643 = vmatpush2.bf16.msra.mxu0 %v1534
        %1644 = vmatprep.subr.bf16.mxu0 %v1531
        %1645 = vmatpush2.bf16.msra.mxu0 %v1530
        %1646 = vmatprep.subr.bf16.mxu0 %v1527
        %1647 = vmatpush2.bf16.msra.mxu0 %v1526
        %1648 = vmatprep.subr.bf16.mxu0 %v1523
        %1649 = vmatpush2.bf16.msra.mxu0 %v1522
        %1650 = vmatprep.mubr.bf16.mxu0 %v1197
        %1651 = vmatmul.mubr.bf16.gmra.mxu0 %v1196
        %v1652 = vpop.f32.mrf.mxu0
        %v1653 = vadd.f32 %v1281, %v1652
        %v1654 = vpop.f32.mrf.mxu0
        %v1655 = vadd.f32 %v1285, %v1654
        %v1656 = vpop.f32.mrf.mxu0
        %v1657 = vadd.f32 %v1281, %v1656
        %v1658 = vpop.f32.mrf.mxu0
        %v1659 = vadd.f32 %v1285, %v1658
        %1660 = vmatprep.mubr.bf16.mxu0 %v1199
        %1661 = vmatmul.mubr.bf16.gmra.mxu0 %v1198
        %v1662 = vpop.f32.mrf.mxu0
        %v1663 = vadd.f32 %v1281, %v1662
        %v1664 = vpop.f32.mrf.mxu0
        %v1665 = vadd.f32 %v1285, %v1664
        %v1666 = vpop.f32.mrf.mxu0
        %v1667 = vadd.f32 %v1281, %v1666
        %v1668 = vpop.f32.mrf.mxu0
        %v1669 = vadd.f32 %v1285, %v1668
        %1670 = vmatprep.mubr.bf16.mxu0 %v1201
        %1671 = vmatmul.mubr.bf16.gmra.mxu0 %v1200
        %v1672 = vpop.f32.mrf.mxu0
        %v1673 = vadd.f32 %v1281, %v1672
        %v1674 = vpop.f32.mrf.mxu0
        %v1675 = vadd.f32 %v1285, %v1674
        %v1676 = vpop.f32.mrf.mxu0
        %v1677 = vadd.f32 %v1281, %v1676
        %v1678 = vpop.f32.mrf.mxu0
        %v1679 = vadd.f32 %v1285, %v1678
        %1680 = vmatprep.mubr.bf16.mxu0 %v1203
        %1681 = vmatmul.mubr.bf16.gmra.mxu0 %v1202
        %v1682 = vpop.f32.mrf.mxu0
        %v1683 = vadd.f32 %v1281, %v1682
        %v1684 = vpop.f32.mrf.mxu0
        %v1685 = vadd.f32 %v1285, %v1684
        %v1686 = vpop.f32.mrf.mxu0
        %v1687 = vadd.f32 %v1281, %v1686
        %v1688 = vpop.f32.mrf.mxu0
        %v1689 = vadd.f32 %v1285, %v1688
        %1690 = vmatprep.mubr.bf16.mxu0 %v1205
        %1691 = vmatmul.mubr.bf16.gmra.mxu0 %v1204
        %v1692 = vpop.f32.mrf.mxu0
        %v1693 = vadd.f32 %v1281, %v1692
        %v1694 = vpop.f32.mrf.mxu0
        %v1695 = vadd.f32 %v1285, %v1694
        %v1696 = vpop.f32.mrf.mxu0
        %v1697 = vadd.f32 %v1281, %v1696
        %v1698 = vpop.f32.mrf.mxu0
        %v1699 = vadd.f32 %v1285, %v1698
        %1700 = vmatprep.mubr.bf16.mxu0 %v1207
        %1701 = vmatmul.mubr.bf16.gmra.mxu0 %v1206
        %v1702 = vpop.f32.mrf.mxu0
        %v1703 = vadd.f32 %v1281, %v1702
        %v1704 = vpop.f32.mrf.mxu0
        %v1705 = vadd.f32 %v1285, %v1704
        %v1706 = vpop.f32.mrf.mxu0
        %v1707 = vadd.f32 %v1281, %v1706
        %v1708 = vpop.f32.mrf.mxu0
        %v1709 = vadd.f32 %v1285, %v1708
        %1710 = vmatprep.mubr.bf16.mxu0 %v1209
        %1711 = vmatmul.mubr.bf16.gmra.mxu0 %v1208
        %v1712 = vpop.f32.mrf.mxu0
        %v1713 = vadd.f32 %v1281, %v1712
        %v1714 = vpop.f32.mrf.mxu0
        %v1715 = vadd.f32 %v1285, %v1714
        %v1716 = vpop.f32.mrf.mxu0
        %v1717 = vadd.f32 %v1281, %v1716
        %v1718 = vpop.f32.mrf.mxu0
        %v1719 = vadd.f32 %v1285, %v1718
        %1720 = vmatprep.mubr.bf16.mxu0 %v1211
        %1721 = vmatmul.mubr.bf16.gmra.mxu0 %v1210
        %v1722 = vpop.f32.mrf.mxu0
        %v1723 = vadd.f32 %v1281, %v1722
        %v1724 = vpop.f32.mrf.mxu0
        %v1725 = vadd.f32 %v1285, %v1724
        %v1726 = vpop.f32.mrf.mxu0
        %v1727 = vadd.f32 %v1281, %v1726
        %v1728 = vpop.f32.mrf.mxu0
        %v1729 = vadd.f32 %v1285, %v1728
        %1730 = vdwg.mxu0
        %1731 = vmatprep.subr.bf16.mxu0 %v1521
        %1732 = vmatpush1.bf16.msra.mxu0 %v1520
        %1733 = vmatprep.subr.bf16.mxu0 %v1517
        %1734 = vmatpush1.bf16.msra.mxu0 %v1516
        %1735 = vmatprep.subr.bf16.mxu0 %v1513
        %1736 = vmatpush1.bf16.msra.mxu0 %v1512
        %1737 = vmatprep.subr.bf16.mxu0 %v1509
        %1738 = vmatpush1.bf16.msra.mxu0 %v1508
        %1739 = vmatprep.subr.bf16.mxu0 %v1505
        %1740 = vmatpush1.bf16.msra.mxu0 %v1504
        %1741 = vmatprep.subr.bf16.mxu0 %v1501
        %1742 = vmatpush1.bf16.msra.mxu0 %v1500
        %1743 = vmatprep.subr.bf16.mxu0 %v1497
        %1744 = vmatpush1.bf16.msra.mxu0 %v1496
        %1745 = vmatprep.subr.bf16.mxu0 %v1493
        %1746 = vmatpush1.bf16.msra.mxu0 %v1492
        %1747 = vmatprep.subr.bf16.mxu0 %v1553
        %1748 = vmatpush2.bf16.msra.mxu0 %v1552
        %1749 = vmatprep.subr.bf16.mxu0 %v1549
        %1750 = vmatpush2.bf16.msra.mxu0 %v1548
        %1751 = vmatprep.subr.bf16.mxu0 %v1545
        %1752 = vmatpush2.bf16.msra.mxu0 %v1544
        %1753 = vmatprep.subr.bf16.mxu0 %v1541
        %1754 = vmatpush2.bf16.msra.mxu0 %v1540
        %1755 = vmatprep.subr.bf16.mxu0 %v1537
        %1756 = vmatpush2.bf16.msra.mxu0 %v1536
        %1757 = vmatprep.subr.bf16.mxu0 %v1533
        %1758 = vmatpush2.bf16.msra.mxu0 %v1532
        %1759 = vmatprep.subr.bf16.mxu0 %v1529
        %1760 = vmatpush2.bf16.msra.mxu0 %v1528
        %1761 = vmatprep.subr.bf16.mxu0 %v1525
        %1762 = vmatpush2.bf16.msra.mxu0 %v1524
        %1763 = vmatprep.mubr.bf16.mxu0 %v1197
        %1764 = vmatmul.mubr.bf16.gmra.mxu0 %v1196
        %v1765 = vpop.f32.mrf.mxu0
        %v1766 = vadd.f32 %v1289, %v1765
        %v1767 = vpop.f32.mrf.mxu0
        %v1768 = vadd.f32 %v1293, %v1767
        %v1769 = vpop.f32.mrf.mxu0
        %v1770 = vadd.f32 %v1289, %v1769
        %v1771 = vpop.f32.mrf.mxu0
        %v1772 = vadd.f32 %v1293, %v1771
        %1773 = vmatprep.mubr.bf16.mxu0 %v1199
        %1774 = vmatmul.mubr.bf16.gmra.mxu0 %v1198
        %v1775 = vpop.f32.mrf.mxu0
        %v1776 = vadd.f32 %v1289, %v1775
        %v1777 = vpop.f32.mrf.mxu0
        %v1778 = vadd.f32 %v1293, %v1777
        %v1779 = vpop.f32.mrf.mxu0
        %v1780 = vadd.f32 %v1289, %v1779
        %v1781 = vpop.f32.mrf.mxu0
        %v1782 = vadd.f32 %v1293, %v1781
        %1783 = vmatprep.mubr.bf16.mxu0 %v1201
        %1784 = vmatmul.mubr.bf16.gmra.mxu0 %v1200
        %v1785 = vpop.f32.mrf.mxu0
        %v1786 = vadd.f32 %v1289, %v1785
        %v1787 = vpop.f32.mrf.mxu0
        %v1788 = vadd.f32 %v1293, %v1787
        %v1789 = vpop.f32.mrf.mxu0
        %v1790 = vadd.f32 %v1289, %v1789
        %v1791 = vpop.f32.mrf.mxu0
        %v1792 = vadd.f32 %v1293, %v1791
        %1793 = vmatprep.mubr.bf16.mxu0 %v1203
        %1794 = vmatmul.mubr.bf16.gmra.mxu0 %v1202
        %v1795 = vpop.f32.mrf.mxu0
        %v1796 = vadd.f32 %v1289, %v1795
        %v1797 = vpop.f32.mrf.mxu0
        %v1798 = vadd.f32 %v1293, %v1797
        %v1799 = vpop.f32.mrf.mxu0
        %v1800 = vadd.f32 %v1289, %v1799
        %v1801 = vpop.f32.mrf.mxu0
        %v1802 = vadd.f32 %v1293, %v1801
        %1803 = vmatprep.mubr.bf16.mxu0 %v1205
        %1804 = vmatmul.mubr.bf16.gmra.mxu0 %v1204
        %v1805 = vpop.f32.mrf.mxu0
        %v1806 = vadd.f32 %v1289, %v1805
        %v1807 = vpop.f32.mrf.mxu0
        %v1808 = vadd.f32 %v1293, %v1807
        %v1809 = vpop.f32.mrf.mxu0
        %v1810 = vadd.f32 %v1289, %v1809
        %v1811 = vpop.f32.mrf.mxu0
        %v1812 = vadd.f32 %v1293, %v1811
        %1813 = vmatprep.mubr.bf16.mxu0 %v1207
        %1814 = vmatmul.mubr.bf16.gmra.mxu0 %v1206
        %v1815 = vpop.f32.mrf.mxu0
        %v1816 = vadd.f32 %v1289, %v1815
        %v1817 = vpop.f32.mrf.mxu0
        %v1818 = vadd.f32 %v1293, %v1817
        %v1819 = vpop.f32.mrf.mxu0
        %v1820 = vadd.f32 %v1289, %v1819
        %v1821 = vpop.f32.mrf.mxu0
        %v1822 = vadd.f32 %v1293, %v1821
        %1823 = vmatprep.mubr.bf16.mxu0 %v1209
        %1824 = vmatmul.mubr.bf16.gmra.mxu0 %v1208
        %v1825 = vpop.f32.mrf.mxu0
        %v1826 = vadd.f32 %v1289, %v1825
        %v1827 = vpop.f32.mrf.mxu0
        %v1828 = vadd.f32 %v1293, %v1827
        %v1829 = vpop.f32.mrf.mxu0
        %v1830 = vadd.f32 %v1289, %v1829
        %v1831 = vpop.f32.mrf.mxu0
        %v1832 = vadd.f32 %v1293, %v1831
        %1833 = vmatprep.mubr.bf16.mxu0 %v1211
        %1834 = vmatmul.mubr.bf16.gmra.mxu0 %v1210
        %v1835 = vpop.f32.mrf.mxu0
        %v1836 = vadd.f32 %v1289, %v1835
        %v1837 = vpop.f32.mrf.mxu0
        %v1838 = vadd.f32 %v1293, %v1837
        %v1839 = vpop.f32.mrf.mxu0
        %v1840 = vadd.f32 %v1289, %v1839
        %v1841 = vpop.f32.mrf.mxu0
        %v1842 = vadd.f32 %v1293, %v1841
        %1843 = vdwg.mxu0
        %v1844 = vld [vmem:[%s7 + $0xa] sm:$0xf]
        %v1845 = vld [vmem:[%s7 + $0xe] sm:$0xf]
        %v1846 = vadd.f32 %v1653, %v1657
        %v1847 = vadd.f32 %v1846, %v1663
        %v1848 = vadd.f32 %v1847, %v1667
        %v1849 = vadd.f32 %v1848, %v1673
        %v1850 = vadd.f32 %v1849, %v1677
        %v1851 = vadd.f32 %v1850, %v1683
        %v1852 = vadd.f32 %v1851, %v1687
        %v1853 = vadd.f32 %v1852, %v1693
        %v1854 = vadd.f32 %v1853, %v1697
        %v1855 = vadd.f32 %v1854, %v1703
        %v1856 = vadd.f32 %v1855, %v1707
        %v1857 = vadd.f32 %v1856, %v1713
        %v1858 = vadd.f32 %v1857, %v1717
        %v1859 = vadd.f32 %v1858, %v1723
        %v1860 = vadd.f32 %v1859, %v1727
        %v1861 = vrot.slane %v1860, 4
        %v1862 = vadd.f32 %v1860, %v1861
        %v1863 = vrot.slane %v1862, 2
        %v1864 = vadd.f32 %v1862, %v1863
        %v1865 = vrot.slane %v1864, 1
        %v1866 = vadd.f32 %v1864, %v1865
        %v1867 = vadd.f32 %v1655, %v1659
        %v1868 = vadd.f32 %v1867, %v1665
        %v1869 = vadd.f32 %v1868, %v1669
        %v1870 = vadd.f32 %v1869, %v1675
        %v1871 = vadd.f32 %v1870, %v1679
        %v1872 = vadd.f32 %v1871, %v1685
        %v1873 = vadd.f32 %v1872, %v1689
        %v1874 = vadd.f32 %v1873, %v1695
        %v1875 = vadd.f32 %v1874, %v1699
        %v1876 = vadd.f32 %v1875, %v1705
        %v1877 = vadd.f32 %v1876, %v1709
        %v1878 = vadd.f32 %v1877, %v1715
        %v1879 = vadd.f32 %v1878, %v1719
        %v1880 = vadd.f32 %v1879, %v1725
        %v1881 = vadd.f32 %v1880, %v1729
        %v1882 = vrot.slane %v1881, 4
        %v1883 = vadd.f32 %v1881, %v1882
        %v1884 = vrot.slane %v1883, 2
        %v1885 = vadd.f32 %v1883, %v1884
        %v1886 = vrot.slane %v1885, 1
        %v1887 = vadd.f32 %v1885, %v1886
        %v1888 = vadd.f32 %v1766, %v1770
        %v1889 = vadd.f32 %v1888, %v1776
        %v1890 = vadd.f32 %v1889, %v1780
        %v1891 = vadd.f32 %v1890, %v1786
        %v1892 = vadd.f32 %v1891, %v1790
        %v1893 = vadd.f32 %v1892, %v1796
        %v1894 = vadd.f32 %v1893, %v1800
        %v1895 = vadd.f32 %v1894, %v1806
        %v1896 = vadd.f32 %v1895, %v1810
        %v1897 = vadd.f32 %v1896, %v1816
        %v1898 = vadd.f32 %v1897, %v1820
        %v1899 = vadd.f32 %v1898, %v1826
        %v1900 = vadd.f32 %v1899, %v1830
        %v1901 = vadd.f32 %v1900, %v1836
        %v1902 = vadd.f32 %v1901, %v1840
        %v1903 = vrot.slane %v1902, 4
        %v1904 = vadd.f32 %v1902, %v1903
        %v1905 = vrot.slane %v1904, 2
        %v1906 = vadd.f32 %v1904, %v1905
        %v1907 = vrot.slane %v1906, 1
        %v1908 = vadd.f32 %v1906, %v1907
        %v1909 = vadd.f32 %v1768, %v1772
        %v1910 = vadd.f32 %v1909, %v1778
        %v1911 = vadd.f32 %v1910, %v1782
        %v1912 = vadd.f32 %v1911, %v1788
        %v1913 = vadd.f32 %v1912, %v1792
        %v1914 = vadd.f32 %v1913, %v1798
        %v1915 = vadd.f32 %v1914, %v1802
        %v1916 = vadd.f32 %v1915, %v1808
        %v1917 = vadd.f32 %v1916, %v1812
        %v1918 = vadd.f32 %v1917, %v1818
        %v1919 = vadd.f32 %v1918, %v1822
        %v1920 = vadd.f32 %v1919, %v1828
        %v1921 = vadd.f32 %v1920, %v1832
        %v1922 = vadd.f32 %v1921, %v1838
        %v1923 = vadd.f32 %v1922, %v1842
        %v1924 = vrot.slane %v1923, 4
        %v1925 = vadd.f32 %v1923, %v1924
        %v1926 = vrot.slane %v1925, 2
        %v1927 = vadd.f32 %v1925, %v1926
        %v1928 = vrot.slane %v1927, 1
        %v1929 = vadd.f32 %v1927, %v1928
        %v1930 = vmul.f32 %v1866, 0.0078125
        %v1931 = vmul.f32 %v1887, 0.0078125
        %v1932 = vmul.f32 %v1908, 0.0078125
        %v1933 = vmul.f32 %v1929, 0.0078125
        %v1934 = vmul.f32 %v1653, %v1653
        %v1935 = vmul.f32 %v1655, %v1655
        %v1936 = vmul.f32 %v1766, %v1766
        %v1937 = vmul.f32 %v1768, %v1768
        %v1938 = vmul.f32 %v1657, %v1657
        %v1939 = vmul.f32 %v1659, %v1659
        %v1940 = vmul.f32 %v1770, %v1770
        %v1941 = vmul.f32 %v1772, %v1772
        %v1942 = vmul.f32 %v1663, %v1663
        %v1943 = vmul.f32 %v1665, %v1665
        %v1944 = vmul.f32 %v1776, %v1776
        %v1945 = vmul.f32 %v1778, %v1778
        %v1946 = vmul.f32 %v1667, %v1667
        %v1947 = vmul.f32 %v1669, %v1669
        %v1948 = vmul.f32 %v1780, %v1780
        %v1949 = vmul.f32 %v1782, %v1782
        %v1950 = vmul.f32 %v1673, %v1673
        %v1951 = vmul.f32 %v1675, %v1675
        %v1952 = vmul.f32 %v1786, %v1786
        %v1953 = vmul.f32 %v1788, %v1788
        %v1954 = vmul.f32 %v1677, %v1677
        %v1955 = vmul.f32 %v1679, %v1679
        %v1956 = vmul.f32 %v1790, %v1790
        %v1957 = vmul.f32 %v1792, %v1792
        %v1958 = vmul.f32 %v1683, %v1683
        %v1959 = vmul.f32 %v1685, %v1685
        %v1960 = vmul.f32 %v1796, %v1796
        %v1961 = vmul.f32 %v1798, %v1798
        %v1962 = vmul.f32 %v1687, %v1687
        %v1963 = vmul.f32 %v1689, %v1689
        %v1964 = vmul.f32 %v1800, %v1800
        %v1965 = vmul.f32 %v1802, %v1802
        %v1966 = vmul.f32 %v1693, %v1693
        %v1967 = vmul.f32 %v1695, %v1695
        %v1968 = vmul.f32 %v1806, %v1806
        %v1969 = vmul.f32 %v1808, %v1808
        %v1970 = vmul.f32 %v1697, %v1697
        %v1971 = vmul.f32 %v1699, %v1699
        %v1972 = vmul.f32 %v1810, %v1810
        %v1973 = vmul.f32 %v1812, %v1812
        %v1974 = vmul.f32 %v1703, %v1703
        %v1975 = vmul.f32 %v1705, %v1705
        %v1976 = vmul.f32 %v1816, %v1816
        %v1977 = vmul.f32 %v1818, %v1818
        %v1978 = vmul.f32 %v1707, %v1707
        %v1979 = vmul.f32 %v1709, %v1709
        %v1980 = vmul.f32 %v1820, %v1820
        %v1981 = vmul.f32 %v1822, %v1822
        %v1982 = vmul.f32 %v1713, %v1713
        %v1983 = vmul.f32 %v1715, %v1715
        %v1984 = vmul.f32 %v1826, %v1826
        %v1985 = vmul.f32 %v1828, %v1828
        %v1986 = vmul.f32 %v1717, %v1717
        %v1987 = vmul.f32 %v1719, %v1719
        %v1988 = vmul.f32 %v1830, %v1830
        %v1989 = vmul.f32 %v1832, %v1832
        %v1990 = vmul.f32 %v1723, %v1723
        %v1991 = vmul.f32 %v1725, %v1725
        %v1992 = vmul.f32 %v1836, %v1836
        %v1993 = vmul.f32 %v1838, %v1838
        %v1994 = vmul.f32 %v1727, %v1727
        %v1995 = vmul.f32 %v1729, %v1729
        %v1996 = vmul.f32 %v1840, %v1840
        %v1997 = vmul.f32 %v1842, %v1842
        %v1998 = vadd.f32 %v1934, %v1938
        %v1999 = vadd.f32 %v1998, %v1942
        %v2000 = vadd.f32 %v1999, %v1946
        %v2001 = vadd.f32 %v2000, %v1950
        %v2002 = vadd.f32 %v2001, %v1954
        %v2003 = vadd.f32 %v2002, %v1958
        %v2004 = vadd.f32 %v2003, %v1962
        %v2005 = vadd.f32 %v2004, %v1966
        %v2006 = vadd.f32 %v2005, %v1970
        %v2007 = vadd.f32 %v2006, %v1974
        %v2008 = vadd.f32 %v2007, %v1978
        %v2009 = vadd.f32 %v2008, %v1982
        %v2010 = vadd.f32 %v2009, %v1986
        %v2011 = vadd.f32 %v2010, %v1990
        %v2012 = vadd.f32 %v2011, %v1994
        %v2013 = vrot.slane %v2012, 4
        %v2014 = vadd.f32 %v2012, %v2013
        %v2015 = vrot.slane %v2014, 2
        %v2016 = vadd.f32 %v2014, %v2015
        %v2017 = vrot.slane %v2016, 1
        %v2018 = vadd.f32 %v2016, %v2017
        %v2019 = vadd.f32 %v1935, %v1939
        %v2020 = vadd.f32 %v2019, %v1943
        %v2021 = vadd.f32 %v2020, %v1947
        %v2022 = vadd.f32 %v2021, %v1951
        %v2023 = vadd.f32 %v2022, %v1955
        %v2024 = vadd.f32 %v2023, %v1959
        %v2025 = vadd.f32 %v2024, %v1963
        %v2026 = vadd.f32 %v2025, %v1967
        %v2027 = vadd.f32 %v2026, %v1971
        %v2028 = vadd.f32 %v2027, %v1975
        %v2029 = vadd.f32 %v2028, %v1979
        %v2030 = vadd.f32 %v2029, %v1983
        %v2031 = vadd.f32 %v2030, %v1987
        %v2032 = vadd.f32 %v2031, %v1991
        %v2033 = vadd.f32 %v2032, %v1995
        %v2034 = vrot.slane %v2033, 4
        %v2035 = vadd.f32 %v2033, %v2034
        %v2036 = vrot.slane %v2035, 2
        %v2037 = vadd.f32 %v2035, %v2036
        %v2038 = vrot.slane %v2037, 1
        %v2039 = vadd.f32 %v2037, %v2038
        %v2040 = vadd.f32 %v1936, %v1940
        %v2041 = vadd.f32 %v2040, %v1944
        %v2042 = vadd.f32 %v2041, %v1948
        %v2043 = vadd.f32 %v2042, %v1952
        %v2044 = vadd.f32 %v2043, %v1956
        %v2045 = vadd.f32 %v2044, %v1960
        %v2046 = vadd.f32 %v2045, %v1964
        %v2047 = vadd.f32 %v2046, %v1968
        %v2048 = vadd.f32 %v2047, %v1972
        %v2049 = vadd.f32 %v2048, %v1976
        %v2050 = vadd.f32 %v2049, %v1980
        %v2051 = vadd.f32 %v2050, %v1984
        %v2052 = vadd.f32 %v2051, %v1988
        %v2053 = vadd.f32 %v2052, %v1992
        %v2054 = vadd.f32 %v2053, %v1996
        %v2055 = vrot.slane %v2054, 4
        %v2056 = vadd.f32 %v2054, %v2055
        %v2057 = vrot.slane %v2056, 2
        %v2058 = vadd.f32 %v2056, %v2057
        %v2059 = vrot.slane %v2058, 1
        %v2060 = vadd.f32 %v2058, %v2059
        %v2061 = vadd.f32 %v1937, %v1941
        %v2062 = vadd.f32 %v2061, %v1945
        %v2063 = vadd.f32 %v2062, %v1949
        %v2064 = vadd.f32 %v2063, %v1953
        %v2065 = vadd.f32 %v2064, %v1957
        %v2066 = vadd.f32 %v2065, %v1961
        %v2067 = vadd.f32 %v2066, %v1965
        %v2068 = vadd.f32 %v2067, %v1969
        %v2069 = vadd.f32 %v2068, %v1973
        %v2070 = vadd.f32 %v2069, %v1977
        %v2071 = vadd.f32 %v2070, %v1981
        %v2072 = vadd.f32 %v2071, %v1985
        %v2073 = vadd.f32 %v2072, %v1989
        %v2074 = vadd.f32 %v2073, %v1993
        %v2075 = vadd.f32 %v2074, %v1997
        %v2076 = vrot.slane %v2075, 4
        %v2077 = vadd.f32 %v2075, %v2076
        %v2078 = vrot.slane %v2077, 2
        %v2079 = vadd.f32 %v2077, %v2078
        %v2080 = vrot.slane %v2079, 1
        %v2081 = vadd.f32 %v2079, %v2080
        %v2082 = vmul.f32 %v2018, 0.0078125
        %v2083 = vmul.f32 %v2039, 0.0078125
        %v2084 = vmul.f32 %v2060, 0.0078125
        %v2085 = vmul.f32 %v2081, 0.0078125
        %v2086 = vmul.f32 %v1930, %v1930
        %v2087 = vmul.f32 %v1931, %v1931
        %v2088 = vmul.f32 %v1932, %v1932
        %v2089 = vmul.f32 %v1933, %v1933
        %v2090 = vsub.f32 %v2082, %v2086
        %v2091 = vsub.f32 %v2083, %v2087
        %v2092 = vsub.f32 %v2084, %v2088
        %v2093 = vsub.f32 %v2085, %v2089
        %v2094 = vadd.f32 %v2090, 0.8
        %v2095 = vadd.f32 %v2091, 0.8
        %v2096 = vadd.f32 %v2092, 0.8
        %v2097 = vadd.f32 %v2093, 0.8
        %v2098 = vrsqrt.pop %v2094
        %v2099 = vrsqrt.pop %v2095
        %v2100 = vrsqrt.pop %v2096
        %v2101 = vrsqrt.pop %v2097
        %v2106 = vcombine.low %v2098, %v2099
        %v2107 = vcombine.low %v2100, %v2101
        %v2109 = vunpack.c.l.s4 1966171168
        %v2110 = vunpack.c.0.s8 %v2109
        %v2111 = vlaneseq
        %v2112 = vshrl.u32 %v2111, 7
        %v2113 = vsub.s32 %v2110, %v2112
        %v2114 = vrot.slane %v2106, %v2113
        %v2116 = vunpack.c.l.s4 1966171168
        %v2117 = vunpack.c.0.s8 %v2116
        %v2118 = vlaneseq
        %v2119 = vshrl.u32 %v2118, 7
        %v2120 = vsub.s32 %v2117, %v2119
        %v2121 = vrot.slane %v2107, %v2120
        %v2122 = vcombine.low %v2114, %v2121
        %v2124 = vunpack.c.l.s4 1966171168
        %v2125 = vunpack.c.0.s8 %v2124
        %v2126 = vlaneseq
        %v2127 = vshrl.u32 %v2126, 7
        %v2128 = vsub.s32 %v2125, %v2127
        %v2129 = vrot.slane %v2122, %v2128
        %v2131 = vmul.f32 %v1844, %v2129
        %v2133 = vlaneseq
        %v2134 = vshrl.u32 %v2133, 7
        %v2135 = vsub.s32 0, %v2134
        %v2136 = vrot.slane %v2131, %v2135
        %v2137 = vlaneseq
        %v2138 = vshrl.u32 %v2137, 7
        %v2139 = vsub.s32 1, %v2138
        %v2140 = vrot.slane %v2131, %v2139
        %v2141 = vlaneseq
        %v2142 = vshrl.u32 %v2141, 7
        %v2143 = vsub.s32 2, %v2142
        %v2144 = vrot.slane %v2131, %v2143
        %v2145 = vlaneseq
        %v2146 = vshrl.u32 %v2145, 7
        %v2147 = vsub.s32 3, %v2146
        %v2148 = vrot.slane %v2131, %v2147
        %v2153 = vmul.f32 %v1653, %v2136
        %v2154 = vmul.f32 %v1655, %v2140
        %v2155 = vmul.f32 %v1766, %v2144
        %v2156 = vmul.f32 %v1768, %v2148
        %v2157 = vmul.f32 %v1657, %v2136
        %v2158 = vmul.f32 %v1659, %v2140
        %v2159 = vmul.f32 %v1770, %v2144
        %v2160 = vmul.f32 %v1772, %v2148
        %v2161 = vmul.f32 %v1663, %v2136
        %v2162 = vmul.f32 %v1665, %v2140
        %v2163 = vmul.f32 %v1776, %v2144
        %v2164 = vmul.f32 %v1778, %v2148
        %v2165 = vmul.f32 %v1667, %v2136
        %v2166 = vmul.f32 %v1669, %v2140
        %v2167 = vmul.f32 %v1780, %v2144
        %v2168 = vmul.f32 %v1782, %v2148
        %v2169 = vmul.f32 %v1673, %v2136
        %v2170 = vmul.f32 %v1675, %v2140
        %v2171 = vmul.f32 %v1786, %v2144
        %v2172 = vmul.f32 %v1788, %v2148
        %v2173 = vmul.f32 %v1677, %v2136
        %v2174 = vmul.f32 %v1679, %v2140
        %v2175 = vmul.f32 %v1790, %v2144
        %v2176 = vmul.f32 %v1792, %v2148
        %v2177 = vmul.f32 %v1683, %v2136
        %v2178 = vmul.f32 %v1685, %v2140
        %v2179 = vmul.f32 %v1796, %v2144
        %v2180 = vmul.f32 %v1798, %v2148
        %v2181 = vmul.f32 %v1687, %v2136
        %v2182 = vmul.f32 %v1689, %v2140
        %v2183 = vmul.f32 %v1800, %v2144
        %v2184 = vmul.f32 %v1802, %v2148
        %v2185 = vmul.f32 %v1693, %v2136
        %v2186 = vmul.f32 %v1695, %v2140
        %v2187 = vmul.f32 %v1806, %v2144
        %v2188 = vmul.f32 %v1808, %v2148
        %v2189 = vmul.f32 %v1697, %v2136
        %v2190 = vmul.f32 %v1699, %v2140
        %v2191 = vmul.f32 %v1810, %v2144
        %v2192 = vmul.f32 %v1812, %v2148
        %v2193 = vmul.f32 %v1703, %v2136
        %v2194 = vmul.f32 %v1705, %v2140
        %v2195 = vmul.f32 %v1816, %v2144
        %v2196 = vmul.f32 %v1818, %v2148
        %v2197 = vmul.f32 %v1707, %v2136
        %v2198 = vmul.f32 %v1709, %v2140
        %v2199 = vmul.f32 %v1820, %v2144
        %v2200 = vmul.f32 %v1822, %v2148
        %v2201 = vmul.f32 %v1713, %v2136
        %v2202 = vmul.f32 %v1715, %v2140
        %v2203 = vmul.f32 %v1826, %v2144
        %v2204 = vmul.f32 %v1828, %v2148
        %v2205 = vmul.f32 %v1717, %v2136
        %v2206 = vmul.f32 %v1719, %v2140
        %v2207 = vmul.f32 %v1830, %v2144
        %v2208 = vmul.f32 %v1832, %v2148
        %v2209 = vmul.f32 %v1723, %v2136
        %v2210 = vmul.f32 %v1725, %v2140
        %v2211 = vmul.f32 %v1836, %v2144
        %v2212 = vmul.f32 %v1838, %v2148
        %v2213 = vmul.f32 %v1727, %v2136
        %v2214 = vmul.f32 %v1729, %v2140
        %v2215 = vmul.f32 %v1840, %v2144
        %v2216 = vmul.f32 %v1842, %v2148
        %v2217 = vmul.f32 %v1930, %v2136
        %v2218 = vmul.f32 %v1931, %v2140
        %v2219 = vmul.f32 %v1932, %v2144
        %v2220 = vmul.f32 %v1933, %v2148
        %v2225 = vcombine.low %v2217, %v2218
        %v2226 = vcombine.low %v2219, %v2220
        %v2228 = vunpack.c.l.s4 1966171168
        %v2229 = vunpack.c.0.s8 %v2228
        %v2230 = vlaneseq
        %v2231 = vshrl.u32 %v2230, 7
        %v2232 = vsub.s32 %v2229, %v2231
        %v2233 = vrot.slane %v2225, %v2232
        %v2235 = vunpack.c.l.s4 1966171168
        %v2236 = vunpack.c.0.s8 %v2235
        %v2237 = vlaneseq
        %v2238 = vshrl.u32 %v2237, 7
        %v2239 = vsub.s32 %v2236, %v2238
        %v2240 = vrot.slane %v2226, %v2239
        %v2241 = vcombine.low %v2233, %v2240
        %v2243 = vunpack.c.l.s4 1966171168
        %v2244 = vunpack.c.0.s8 %v2243
        %v2245 = vlaneseq
        %v2246 = vshrl.u32 %v2245, 7
        %v2247 = vsub.s32 %v2244, %v2246
        %v2248 = vrot.slane %v2241, %v2247
        %v2250 = vsub.f32 %v1845, %v2248
        %v2252 = vlaneseq
        %v2253 = vshrl.u32 %v2252, 7
        %v2254 = vsub.s32 0, %v2253
        %v2255 = vrot.slane %v2250, %v2254
        %v2256 = vlaneseq
        %v2257 = vshrl.u32 %v2256, 7
        %v2258 = vsub.s32 1, %v2257
        %v2259 = vrot.slane %v2250, %v2258
        %v2260 = vlaneseq
        %v2261 = vshrl.u32 %v2260, 7
        %v2262 = vsub.s32 2, %v2261
        %v2263 = vrot.slane %v2250, %v2262
        %v2264 = vlaneseq
        %v2265 = vshrl.u32 %v2264, 7
        %v2266 = vsub.s32 3, %v2265
        %v2267 = vrot.slane %v2250, %v2266
        %v2272 = vadd.f32 %v2153, %v2255
        %v2273 = vadd.f32 %v2154, %v2259
        %v2274 = vadd.f32 %v2155, %v2263
        %v2275 = vadd.f32 %v2156, %v2267
        %v2276 = vadd.f32 %v2157, %v2255
        %v2277 = vadd.f32 %v2158, %v2259
        %v2278 = vadd.f32 %v2159, %v2263
        %v2279 = vadd.f32 %v2160, %v2267
        %v2280 = vadd.f32 %v2161, %v2255
        %v2281 = vadd.f32 %v2162, %v2259
        %v2282 = vadd.f32 %v2163, %v2263
        %v2283 = vadd.f32 %v2164, %v2267
        %v2284 = vadd.f32 %v2165, %v2255
        %v2285 = vadd.f32 %v2166, %v2259
        %v2286 = vadd.f32 %v2167, %v2263
        %v2287 = vadd.f32 %v2168, %v2267
        %v2288 = vadd.f32 %v2169, %v2255
        %v2289 = vadd.f32 %v2170, %v2259
        %v2290 = vadd.f32 %v2171, %v2263
        %v2291 = vadd.f32 %v2172, %v2267
        %v2292 = vadd.f32 %v2173, %v2255
        %v2293 = vadd.f32 %v2174, %v2259
        %v2294 = vadd.f32 %v2175, %v2263
        %v2295 = vadd.f32 %v2176, %v2267
        %v2296 = vadd.f32 %v2177, %v2255
        %v2297 = vadd.f32 %v2178, %v2259
        %v2298 = vadd.f32 %v2179, %v2263
        %v2299 = vadd.f32 %v2180, %v2267
        %v2300 = vadd.f32 %v2181, %v2255
        %v2301 = vadd.f32 %v2182, %v2259
        %v2302 = vadd.f32 %v2183, %v2263
        %v2303 = vadd.f32 %v2184, %v2267
        %v2304 = vadd.f32 %v2185, %v2255
        %v2305 = vadd.f32 %v2186, %v2259
        %v2306 = vadd.f32 %v2187, %v2263
        %v2307 = vadd.f32 %v2188, %v2267
        %v2308 = vadd.f32 %v2189, %v2255
        %v2309 = vadd.f32 %v2190, %v2259
        %v2310 = vadd.f32 %v2191, %v2263
        %v2311 = vadd.f32 %v2192, %v2267
        %v2312 = vadd.f32 %v2193, %v2255
        %v2313 = vadd.f32 %v2194, %v2259
        %v2314 = vadd.f32 %v2195, %v2263
        %v2315 = vadd.f32 %v2196, %v2267
        %v2316 = vadd.f32 %v2197, %v2255
        %v2317 = vadd.f32 %v2198, %v2259
        %v2318 = vadd.f32 %v2199, %v2263
        %v2319 = vadd.f32 %v2200, %v2267
        %v2320 = vadd.f32 %v2201, %v2255
        %v2321 = vadd.f32 %v2202, %v2259
        %v2322 = vadd.f32 %v2203, %v2263
        %v2323 = vadd.f32 %v2204, %v2267
        %v2324 = vadd.f32 %v2205, %v2255
        %v2325 = vadd.f32 %v2206, %v2259
        %v2326 = vadd.f32 %v2207, %v2263
        %v2327 = vadd.f32 %v2208, %v2267
        %v2328 = vadd.f32 %v2209, %v2255
        %v2329 = vadd.f32 %v2210, %v2259
        %v2330 = vadd.f32 %v2211, %v2263
        %v2331 = vadd.f32 %v2212, %v2267
        %v2332 = vadd.f32 %v2213, %v2255
        %v2333 = vadd.f32 %v2214, %v2259
        %v2334 = vadd.f32 %v2215, %v2263
        %v2335 = vadd.f32 %v2216, %v2267
        %vm2336 = vcmp.gt.f32.partialorder %v2272, 0.0
        %vm2337 = vcmp.gt.f32.partialorder %v2273, 0.0
        %vm2338 = vcmp.gt.f32.partialorder %v2274, 0.0
        %vm2339 = vcmp.gt.f32.partialorder %v2275, 0.0
        %vm2340 = vcmp.gt.f32.partialorder %v2276, 0.0
        %vm2341 = vcmp.gt.f32.partialorder %v2277, 0.0
        %vm2342 = vcmp.gt.f32.partialorder %v2278, 0.0
        %vm2343 = vcmp.gt.f32.partialorder %v2279, 0.0
        %vm2344 = vcmp.gt.f32.partialorder %v2280, 0.0
        %vm2345 = vcmp.gt.f32.partialorder %v2281, 0.0
        %vm2346 = vcmp.gt.f32.partialorder %v2282, 0.0
        %vm2347 = vcmp.gt.f32.partialorder %v2283, 0.0
        %vm2348 = vcmp.gt.f32.partialorder %v2284, 0.0
        %vm2349 = vcmp.gt.f32.partialorder %v2285, 0.0
        %vm2350 = vcmp.gt.f32.partialorder %v2286, 0.0
        %vm2351 = vcmp.gt.f32.partialorder %v2287, 0.0
        %vm2352 = vcmp.gt.f32.partialorder %v2288, 0.0
        %vm2353 = vcmp.gt.f32.partialorder %v2289, 0.0
        %vm2354 = vcmp.gt.f32.partialorder %v2290, 0.0
        %vm2355 = vcmp.gt.f32.partialorder %v2291, 0.0
        %vm2356 = vcmp.gt.f32.partialorder %v2292, 0.0
        %vm2357 = vcmp.gt.f32.partialorder %v2293, 0.0
        %vm2358 = vcmp.gt.f32.partialorder %v2294, 0.0
        %vm2359 = vcmp.gt.f32.partialorder %v2295, 0.0
        %vm2360 = vcmp.gt.f32.partialorder %v2296, 0.0
        %vm2361 = vcmp.gt.f32.partialorder %v2297, 0.0
        %vm2362 = vcmp.gt.f32.partialorder %v2298, 0.0
        %vm2363 = vcmp.gt.f32.partialorder %v2299, 0.0
        %vm2364 = vcmp.gt.f32.partialorder %v2300, 0.0
        %vm2365 = vcmp.gt.f32.partialorder %v2301, 0.0
        %vm2366 = vcmp.gt.f32.partialorder %v2302, 0.0
        %vm2367 = vcmp.gt.f32.partialorder %v2303, 0.0
        %vm2368 = vcmp.gt.f32.partialorder %v2304, 0.0
        %vm2369 = vcmp.gt.f32.partialorder %v2305, 0.0
        %vm2370 = vcmp.gt.f32.partialorder %v2306, 0.0
        %vm2371 = vcmp.gt.f32.partialorder %v2307, 0.0
        %vm2372 = vcmp.gt.f32.partialorder %v2308, 0.0
        %vm2373 = vcmp.gt.f32.partialorder %v2309, 0.0
        %vm2374 = vcmp.gt.f32.partialorder %v2310, 0.0
        %vm2375 = vcmp.gt.f32.partialorder %v2311, 0.0
        %vm2376 = vcmp.gt.f32.partialorder %v2312, 0.0
        %vm2377 = vcmp.gt.f32.partialorder %v2313, 0.0
        %vm2378 = vcmp.gt.f32.partialorder %v2314, 0.0
        %vm2379 = vcmp.gt.f32.partialorder %v2315, 0.0
        %vm2380 = vcmp.gt.f32.partialorder %v2316, 0.0
        %vm2381 = vcmp.gt.f32.partialorder %v2317, 0.0
        %vm2382 = vcmp.gt.f32.partialorder %v2318, 0.0
        %vm2383 = vcmp.gt.f32.partialorder %v2319, 0.0
        %vm2384 = vcmp.gt.f32.partialorder %v2320, 0.0
        %vm2385 = vcmp.gt.f32.partialorder %v2321, 0.0
        %vm2386 = vcmp.gt.f32.partialorder %v2322, 0.0
        %vm2387 = vcmp.gt.f32.partialorder %v2323, 0.0
        %vm2388 = vcmp.gt.f32.partialorder %v2324, 0.0
        %vm2389 = vcmp.gt.f32.partialorder %v2325, 0.0
        %vm2390 = vcmp.gt.f32.partialorder %v2326, 0.0
        %vm2391 = vcmp.gt.f32.partialorder %v2327, 0.0
        %vm2392 = vcmp.gt.f32.partialorder %v2328, 0.0
        %vm2393 = vcmp.gt.f32.partialorder %v2329, 0.0
        %vm2394 = vcmp.gt.f32.partialorder %v2330, 0.0
        %vm2395 = vcmp.gt.f32.partialorder %v2331, 0.0
        %vm2396 = vcmp.gt.f32.partialorder %v2332, 0.0
        %vm2397 = vcmp.gt.f32.partialorder %v2333, 0.0
        %vm2398 = vcmp.gt.f32.partialorder %v2334, 0.0
        %vm2399 = vcmp.gt.f32.partialorder %v2335, 0.0
        %v2400 = vmul.f32 %v2272, 0.2
        %v2401 = vmul.f32 %v2273, 0.2
        %v2402 = vmul.f32 %v2274, 0.2
        %v2403 = vmul.f32 %v2275, 0.2
        %v2404 = vmul.f32 %v2276, 0.2
        %v2405 = vmul.f32 %v2277, 0.2
        %v2406 = vmul.f32 %v2278, 0.2
        %v2407 = vmul.f32 %v2279, 0.2
        %v2408 = vmul.f32 %v2280, 0.2
        %v2409 = vmul.f32 %v2281, 0.2
        %v2410 = vmul.f32 %v2282, 0.2
        %v2411 = vmul.f32 %v2283, 0.2
        %v2412 = vmul.f32 %v2284, 0.2
        %v2413 = vmul.f32 %v2285, 0.2
        %v2414 = vmul.f32 %v2286, 0.2
        %v2415 = vmul.f32 %v2287, 0.2
        %v2416 = vmul.f32 %v2288, 0.2
        %v2417 = vmul.f32 %v2289, 0.2
        %v2418 = vmul.f32 %v2290, 0.2
        %v2419 = vmul.f32 %v2291, 0.2
        %v2420 = vmul.f32 %v2292, 0.2
        %v2421 = vmul.f32 %v2293, 0.2
        %v2422 = vmul.f32 %v2294, 0.2
        %v2423 = vmul.f32 %v2295, 0.2
        %v2424 = vmul.f32 %v2296, 0.2
        %v2425 = vmul.f32 %v2297, 0.2
        %v2426 = vmul.f32 %v2298, 0.2
        %v2427 = vmul.f32 %v2299, 0.2
        %v2428 = vmul.f32 %v2300, 0.2
        %v2429 = vmul.f32 %v2301, 0.2
        %v2430 = vmul.f32 %v2302, 0.2
        %v2431 = vmul.f32 %v2303, 0.2
        %v2432 = vmul.f32 %v2304, 0.2
        %v2433 = vmul.f32 %v2305, 0.2
        %v2434 = vmul.f32 %v2306, 0.2
        %v2435 = vmul.f32 %v2307, 0.2
        %v2436 = vmul.f32 %v2308, 0.2
        %v2437 = vmul.f32 %v2309, 0.2
        %v2438 = vmul.f32 %v2310, 0.2
        %v2439 = vmul.f32 %v2311, 0.2
        %v2440 = vmul.f32 %v2312, 0.2
        %v2441 = vmul.f32 %v2313, 0.2
        %v2442 = vmul.f32 %v2314, 0.2
        %v2443 = vmul.f32 %v2315, 0.2
        %v2444 = vmul.f32 %v2316, 0.2
        %v2445 = vmul.f32 %v2317, 0.2
        %v2446 = vmul.f32 %v2318, 0.2
        %v2447 = vmul.f32 %v2319, 0.2
        %v2448 = vmul.f32 %v2320, 0.2
        %v2449 = vmul.f32 %v2321, 0.2
        %v2450 = vmul.f32 %v2322, 0.2
        %v2451 = vmul.f32 %v2323, 0.2
        %v2452 = vmul.f32 %v2324, 0.2
        %v2453 = vmul.f32 %v2325, 0.2
        %v2454 = vmul.f32 %v2326, 0.2
        %v2455 = vmul.f32 %v2327, 0.2
        %v2456 = vmul.f32 %v2328, 0.2
        %v2457 = vmul.f32 %v2329, 0.2
        %v2458 = vmul.f32 %v2330, 0.2
        %v2459 = vmul.f32 %v2331, 0.2
        %v2460 = vmul.f32 %v2332, 0.2
        %v2461 = vmul.f32 %v2333, 0.2
        %v2462 = vmul.f32 %v2334, 0.2
        %v2463 = vmul.f32 %v2335, 0.2
        %v2464 = vsel %vm2336, %v2272, %v2400
        %v2465 = vsel %vm2337, %v2273, %v2401
        %v2466 = vsel %vm2338, %v2274, %v2402
        %v2467 = vsel %vm2339, %v2275, %v2403
        %v2468 = vsel %vm2340, %v2276, %v2404
        %v2469 = vsel %vm2341, %v2277, %v2405
        %v2470 = vsel %vm2342, %v2278, %v2406
        %v2471 = vsel %vm2343, %v2279, %v2407
        %v2472 = vsel %vm2344, %v2280, %v2408
        %v2473 = vsel %vm2345, %v2281, %v2409
        %v2474 = vsel %vm2346, %v2282, %v2410
        %v2475 = vsel %vm2347, %v2283, %v2411
        %v2476 = vsel %vm2348, %v2284, %v2412
        %v2477 = vsel %vm2349, %v2285, %v2413
        %v2478 = vsel %vm2350, %v2286, %v2414
        %v2479 = vsel %vm2351, %v2287, %v2415
        %v2480 = vsel %vm2352, %v2288, %v2416
        %v2481 = vsel %vm2353, %v2289, %v2417
        %v2482 = vsel %vm2354, %v2290, %v2418
        %v2483 = vsel %vm2355, %v2291, %v2419
        %v2484 = vsel %vm2356, %v2292, %v2420
        %v2485 = vsel %vm2357, %v2293, %v2421
        %v2486 = vsel %vm2358, %v2294, %v2422
        %v2487 = vsel %vm2359, %v2295, %v2423
        %v2488 = vsel %vm2360, %v2296, %v2424
        %v2489 = vsel %vm2361, %v2297, %v2425
        %v2490 = vsel %vm2362, %v2298, %v2426
        %v2491 = vsel %vm2363, %v2299, %v2427
        %v2492 = vsel %vm2364, %v2300, %v2428
        %v2493 = vsel %vm2365, %v2301, %v2429
        %v2494 = vsel %vm2366, %v2302, %v2430
        %v2495 = vsel %vm2367, %v2303, %v2431
        %v2496 = vsel %vm2368, %v2304, %v2432
        %v2497 = vsel %vm2369, %v2305, %v2433
        %v2498 = vsel %vm2370, %v2306, %v2434
        %v2499 = vsel %vm2371, %v2307, %v2435
        %v2500 = vsel %vm2372, %v2308, %v2436
        %v2501 = vsel %vm2373, %v2309, %v2437
        %v2502 = vsel %vm2374, %v2310, %v2438
        %v2503 = vsel %vm2375, %v2311, %v2439
        %v2504 = vsel %vm2376, %v2312, %v2440
        %v2505 = vsel %vm2377, %v2313, %v2441
        %v2506 = vsel %vm2378, %v2314, %v2442
        %v2507 = vsel %vm2379, %v2315, %v2443
        %v2508 = vsel %vm2380, %v2316, %v2444
        %v2509 = vsel %vm2381, %v2317, %v2445
        %v2510 = vsel %vm2382, %v2318, %v2446
        %v2511 = vsel %vm2383, %v2319, %v2447
        %v2512 = vsel %vm2384, %v2320, %v2448
        %v2513 = vsel %vm2385, %v2321, %v2449
        %v2514 = vsel %vm2386, %v2322, %v2450
        %v2515 = vsel %vm2387, %v2323, %v2451
        %v2516 = vsel %vm2388, %v2324, %v2452
        %v2517 = vsel %vm2389, %v2325, %v2453
        %v2518 = vsel %vm2390, %v2326, %v2454
        %v2519 = vsel %vm2391, %v2327, %v2455
        %v2520 = vsel %vm2392, %v2328, %v2456
        %v2521 = vsel %vm2393, %v2329, %v2457
        %v2522 = vsel %vm2394, %v2330, %v2458
        %v2523 = vsel %vm2395, %v2331, %v2459
        %v2524 = vsel %vm2396, %v2332, %v2460
        %v2525 = vsel %vm2397, %v2333, %v2461
        %v2526 = vsel %vm2398, %v2334, %v2462
        %v2527 = vsel %vm2399, %v2335, %v2463
        %v2528 = vpack.c.bf16 %v2468, %v2464
        %v2529 = vpack.c.bf16 %v2469, %v2465
        %v2530 = vpack.c.bf16 %v2470, %v2466
        %v2531 = vpack.c.bf16 %v2471, %v2467
        %v2532 = vpack.c.bf16 %v2476, %v2472
        %v2533 = vpack.c.bf16 %v2477, %v2473
        %v2534 = vpack.c.bf16 %v2478, %v2474
        %v2535 = vpack.c.bf16 %v2479, %v2475
        %v2536 = vpack.c.bf16 %v2484, %v2480
        %v2537 = vpack.c.bf16 %v2485, %v2481
        %v2538 = vpack.c.bf16 %v2486, %v2482
        %v2539 = vpack.c.bf16 %v2487, %v2483
        %v2540 = vpack.c.bf16 %v2492, %v2488
        %v2541 = vpack.c.bf16 %v2493, %v2489
        %v2542 = vpack.c.bf16 %v2494, %v2490
        %v2543 = vpack.c.bf16 %v2495, %v2491
        %v2544 = vpack.c.bf16 %v2500, %v2496
        %v2545 = vpack.c.bf16 %v2501, %v2497
        %v2546 = vpack.c.bf16 %v2502, %v2498
        %v2547 = vpack.c.bf16 %v2503, %v2499
        %v2548 = vpack.c.bf16 %v2508, %v2504
        %v2549 = vpack.c.bf16 %v2509, %v2505
        %v2550 = vpack.c.bf16 %v2510, %v2506
        %v2551 = vpack.c.bf16 %v2511, %v2507
        %v2552 = vpack.c.bf16 %v2516, %v2512
        %v2553 = vpack.c.bf16 %v2517, %v2513
        %v2554 = vpack.c.bf16 %v2518, %v2514
        %v2555 = vpack.c.bf16 %v2519, %v2515
        %v2556 = vpack.c.bf16 %v2524, %v2520
        %v2557 = vpack.c.bf16 %v2525, %v2521
        %v2558 = vpack.c.bf16 %v2526, %v2522
        %v2559 = vpack.c.bf16 %v2527, %v2523
        %v2560 = vld [vmem:[#allocation2] sm:$0xff]
        %v2561 = vld [vmem:[#allocation2 + $0x8] sm:$0xff]
        %v2562 = vld [vmem:[#allocation2 + $0x10] sm:$0xff]
        %v2563 = vld [vmem:[#allocation2 + $0x18] sm:$0xff]
        %v2564 = vld [vmem:[#allocation2 + $0x20] sm:$0xff]
        %v2565 = vld [vmem:[#allocation2 + $0x28] sm:$0xff]
        %v2566 = vld [vmem:[#allocation2 + $0x30] sm:$0xff]
        %v2567 = vld [vmem:[#allocation2 + $0x38] sm:$0xff]
        %v2568 = vld [vmem:[#allocation2 + $0x40] sm:$0xff]
        %v2569 = vld [vmem:[#allocation2 + $0x48] sm:$0xff]
        %v2570 = vld [vmem:[#allocation2 + $0x50] sm:$0xff]
        %v2571 = vld [vmem:[#allocation2 + $0x58] sm:$0xff]
        %v2572 = vld [vmem:[#allocation2 + $0x60] sm:$0xff]
        %v2573 = vld [vmem:[#allocation2 + $0x68] sm:$0xff]
        %v2574 = vld [vmem:[#allocation2 + $0x70] sm:$0xff]
        %v2575 = vld [vmem:[#allocation2 + $0x78] sm:$0xff]
        %v2576 = vld [vmem:[#allocation2 + $0x80] sm:$0xff]
        %v2577 = vld [vmem:[#allocation2 + $0x88] sm:$0xff]
        %v2578 = vld [vmem:[#allocation2 + $0x90] sm:$0xff]
        %v2579 = vld [vmem:[#allocation2 + $0x98] sm:$0xff]
        %v2580 = vld [vmem:[#allocation2 + $0xa0] sm:$0xff]
        %v2581 = vld [vmem:[#allocation2 + $0xa8] sm:$0xff]
        %v2582 = vld [vmem:[#allocation2 + $0xb0] sm:$0xff]
        %v2583 = vld [vmem:[#allocation2 + $0xb8] sm:$0xff]
        %v2584 = vld [vmem:[#allocation2 + $0xc0] sm:$0xff]
        %v2585 = vld [vmem:[#allocation2 + $0xc8] sm:$0xff]
        %v2586 = vld [vmem:[#allocation2 + $0xd0] sm:$0xff]
        %v2587 = vld [vmem:[#allocation2 + $0xd8] sm:$0xff]
        %v2588 = vld [vmem:[#allocation2 + $0xe0] sm:$0xff]
        %v2589 = vld [vmem:[#allocation2 + $0xe8] sm:$0xff]
        %v2590 = vld [vmem:[#allocation2 + $0xf0] sm:$0xff]
        %v2591 = vld [vmem:[#allocation2 + $0xf8] sm:$0xff]
        %v2592 = vld [vmem:[#allocation2 + $0x100] sm:$0xff]
        %v2593 = vld [vmem:[#allocation2 + $0x108] sm:$0xff]
        %v2594 = vld [vmem:[#allocation2 + $0x110] sm:$0xff]
        %v2595 = vld [vmem:[#allocation2 + $0x118] sm:$0xff]
        %v2596 = vld [vmem:[#allocation2 + $0x120] sm:$0xff]
        %v2597 = vld [vmem:[#allocation2 + $0x128] sm:$0xff]
        %v2598 = vld [vmem:[#allocation2 + $0x130] sm:$0xff]
        %v2599 = vld [vmem:[#allocation2 + $0x138] sm:$0xff]
        %v2600 = vld [vmem:[#allocation2 + $0x140] sm:$0xff]
        %v2601 = vld [vmem:[#allocation2 + $0x148] sm:$0xff]
        %v2602 = vld [vmem:[#allocation2 + $0x150] sm:$0xff]
        %v2603 = vld [vmem:[#allocation2 + $0x158] sm:$0xff]
        %v2604 = vld [vmem:[#allocation2 + $0x160] sm:$0xff]
        %v2605 = vld [vmem:[#allocation2 + $0x168] sm:$0xff]
        %v2606 = vld [vmem:[#allocation2 + $0x170] sm:$0xff]
        %v2607 = vld [vmem:[#allocation2 + $0x178] sm:$0xff]
        %v2608 = vld [vmem:[#allocation2 + $0x180] sm:$0xff]
        %v2609 = vld [vmem:[#allocation2 + $0x188] sm:$0xff]
        %v2610 = vld [vmem:[#allocation2 + $0x190] sm:$0xff]
        %v2611 = vld [vmem:[#allocation2 + $0x198] sm:$0xff]
        %v2612 = vld [vmem:[#allocation2 + $0x1a0] sm:$0xff]
        %v2613 = vld [vmem:[#allocation2 + $0x1a8] sm:$0xff]
        %v2614 = vld [vmem:[#allocation2 + $0x1b0] sm:$0xff]
        %v2615 = vld [vmem:[#allocation2 + $0x1b8] sm:$0xff]
        %v2616 = vld [vmem:[#allocation2 + $0x1c0] sm:$0xff]
        %v2617 = vld [vmem:[#allocation2 + $0x1c8] sm:$0xff]
        %v2618 = vld [vmem:[#allocation2 + $0x1d0] sm:$0xff]
        %v2619 = vld [vmem:[#allocation2 + $0x1d8] sm:$0xff]
        %v2620 = vld [vmem:[#allocation2 + $0x1e0] sm:$0xff]
        %v2621 = vld [vmem:[#allocation2 + $0x1e8] sm:$0xff]
        %v2622 = vld [vmem:[#allocation2 + $0x1f0] sm:$0xff]
        %v2623 = vld [vmem:[#allocation2 + $0x1f8] sm:$0xff]
        %v2624 = vld [vmem:[#allocation2 + $0x200] sm:$0xff]
        %v2625 = vld [vmem:[#allocation2 + $0x208] sm:$0xff]
        %v2626 = vld [vmem:[#allocation2 + $0x210] sm:$0xff]
        %v2627 = vld [vmem:[#allocation2 + $0x218] sm:$0xff]
        %v2628 = vld [vmem:[#allocation2 + $0x220] sm:$0xff]
        %v2629 = vld [vmem:[#allocation2 + $0x228] sm:$0xff]
        %v2630 = vld [vmem:[#allocation2 + $0x230] sm:$0xff]
        %v2631 = vld [vmem:[#allocation2 + $0x238] sm:$0xff]
        %v2632 = vld [vmem:[#allocation2 + $0x240] sm:$0xff]
        %v2633 = vld [vmem:[#allocation2 + $0x248] sm:$0xff]
        %v2634 = vld [vmem:[#allocation2 + $0x250] sm:$0xff]
        %v2635 = vld [vmem:[#allocation2 + $0x258] sm:$0xff]
        %v2636 = vld [vmem:[#allocation2 + $0x260] sm:$0xff]
        %v2637 = vld [vmem:[#allocation2 + $0x268] sm:$0xff]
        %v2638 = vld [vmem:[#allocation2 + $0x270] sm:$0xff]
        %v2639 = vld [vmem:[#allocation2 + $0x278] sm:$0xff]
        %v2640 = vld [vmem:[#allocation2 + $0x280] sm:$0xff]
        %v2641 = vld [vmem:[#allocation2 + $0x288] sm:$0xff]
        %v2642 = vld [vmem:[#allocation2 + $0x290] sm:$0xff]
        %v2643 = vld [vmem:[#allocation2 + $0x298] sm:$0xff]
        %v2644 = vld [vmem:[#allocation2 + $0x2a0] sm:$0xff]
        %v2645 = vld [vmem:[#allocation2 + $0x2a8] sm:$0xff]
        %v2646 = vld [vmem:[#allocation2 + $0x2b0] sm:$0xff]
        %v2647 = vld [vmem:[#allocation2 + $0x2b8] sm:$0xff]
        %v2648 = vld [vmem:[#allocation2 + $0x2c0] sm:$0xff]
        %v2649 = vld [vmem:[#allocation2 + $0x2c8] sm:$0xff]
        %v2650 = vld [vmem:[#allocation2 + $0x2d0] sm:$0xff]
        %v2651 = vld [vmem:[#allocation2 + $0x2d8] sm:$0xff]
        %v2652 = vld [vmem:[#allocation2 + $0x2e0] sm:$0xff]
        %v2653 = vld [vmem:[#allocation2 + $0x2e8] sm:$0xff]
        %v2654 = vld [vmem:[#allocation2 + $0x2f0] sm:$0xff]
        %v2655 = vld [vmem:[#allocation2 + $0x2f8] sm:$0xff]
        %v2656 = vld [vmem:[#allocation2 + $0x300] sm:$0xff]
        %v2657 = vld [vmem:[#allocation2 + $0x308] sm:$0xff]
        %v2658 = vld [vmem:[#allocation2 + $0x310] sm:$0xff]
        %v2659 = vld [vmem:[#allocation2 + $0x318] sm:$0xff]
        %v2660 = vld [vmem:[#allocation2 + $0x320] sm:$0xff]
        %v2661 = vld [vmem:[#allocation2 + $0x328] sm:$0xff]
        %v2662 = vld [vmem:[#allocation2 + $0x330] sm:$0xff]
        %v2663 = vld [vmem:[#allocation2 + $0x338] sm:$0xff]
        %v2664 = vld [vmem:[#allocation2 + $0x340] sm:$0xff]
        %v2665 = vld [vmem:[#allocation2 + $0x348] sm:$0xff]
        %v2666 = vld [vmem:[#allocation2 + $0x350] sm:$0xff]
        %v2667 = vld [vmem:[#allocation2 + $0x358] sm:$0xff]
        %v2668 = vld [vmem:[#allocation2 + $0x360] sm:$0xff]
        %v2669 = vld [vmem:[#allocation2 + $0x368] sm:$0xff]
        %v2670 = vld [vmem:[#allocation2 + $0x370] sm:$0xff]
        %v2671 = vld [vmem:[#allocation2 + $0x378] sm:$0xff]
        %v2672 = vld [vmem:[#allocation2 + $0x380] sm:$0xff]
        %v2673 = vld [vmem:[#allocation2 + $0x388] sm:$0xff]
        %v2674 = vld [vmem:[#allocation2 + $0x390] sm:$0xff]
        %v2675 = vld [vmem:[#allocation2 + $0x398] sm:$0xff]
        %v2676 = vld [vmem:[#allocation2 + $0x3a0] sm:$0xff]
        %v2677 = vld [vmem:[#allocation2 + $0x3a8] sm:$0xff]
        %v2678 = vld [vmem:[#allocation2 + $0x3b0] sm:$0xff]
        %v2679 = vld [vmem:[#allocation2 + $0x3b8] sm:$0xff]
        %v2680 = vld [vmem:[#allocation2 + $0x3c0] sm:$0xff]
        %v2681 = vld [vmem:[#allocation2 + $0x3c8] sm:$0xff]
        %v2682 = vld [vmem:[#allocation2 + $0x3d0] sm:$0xff]
        %v2683 = vld [vmem:[#allocation2 + $0x3d8] sm:$0xff]
        %v2684 = vld [vmem:[#allocation2 + $0x3e0] sm:$0xff]
        %v2685 = vld [vmem:[#allocation2 + $0x3e8] sm:$0xff]
        %v2686 = vld [vmem:[#allocation2 + $0x3f0] sm:$0xff]
        %v2687 = vld [vmem:[#allocation2 + $0x3f8] sm:$0xff]
        %v2688 = vld [vmem:[#allocation2 + $0x400] sm:$0xff]
        %v2689 = vld [vmem:[#allocation2 + $0x408] sm:$0xff]
        %v2690 = vld [vmem:[#allocation2 + $0x410] sm:$0xff]
        %v2691 = vld [vmem:[#allocation2 + $0x418] sm:$0xff]
        %v2692 = vld [vmem:[#allocation2 + $0x420] sm:$0xff]
        %v2693 = vld [vmem:[#allocation2 + $0x428] sm:$0xff]
        %v2694 = vld [vmem:[#allocation2 + $0x430] sm:$0xff]
        %v2695 = vld [vmem:[#allocation2 + $0x438] sm:$0xff]
        %v2696 = vld [vmem:[#allocation2 + $0x440] sm:$0xff]
        %v2697 = vld [vmem:[#allocation2 + $0x448] sm:$0xff]
        %v2698 = vld [vmem:[#allocation2 + $0x450] sm:$0xff]
        %v2699 = vld [vmem:[#allocation2 + $0x458] sm:$0xff]
        %v2700 = vld [vmem:[#allocation2 + $0x460] sm:$0xff]
        %v2701 = vld [vmem:[#allocation2 + $0x468] sm:$0xff]
        %v2702 = vld [vmem:[#allocation2 + $0x470] sm:$0xff]
        %v2703 = vld [vmem:[#allocation2 + $0x478] sm:$0xff]
        %v2704 = vld [vmem:[#allocation2 + $0x480] sm:$0xff]
        %v2705 = vld [vmem:[#allocation2 + $0x488] sm:$0xff]
        %v2706 = vld [vmem:[#allocation2 + $0x490] sm:$0xff]
        %v2707 = vld [vmem:[#allocation2 + $0x498] sm:$0xff]
        %v2708 = vld [vmem:[#allocation2 + $0x4a0] sm:$0xff]
        %v2709 = vld [vmem:[#allocation2 + $0x4a8] sm:$0xff]
        %v2710 = vld [vmem:[#allocation2 + $0x4b0] sm:$0xff]
        %v2711 = vld [vmem:[#allocation2 + $0x4b8] sm:$0xff]
        %v2712 = vld [vmem:[#allocation2 + $0x4c0] sm:$0xff]
        %v2713 = vld [vmem:[#allocation2 + $0x4c8] sm:$0xff]
        %v2714 = vld [vmem:[#allocation2 + $0x4d0] sm:$0xff]
        %v2715 = vld [vmem:[#allocation2 + $0x4d8] sm:$0xff]
        %v2716 = vld [vmem:[#allocation2 + $0x4e0] sm:$0xff]
        %v2717 = vld [vmem:[#allocation2 + $0x4e8] sm:$0xff]
        %v2718 = vld [vmem:[#allocation2 + $0x4f0] sm:$0xff]
        %v2719 = vld [vmem:[#allocation2 + $0x4f8] sm:$0xff]
        %v2720 = vld [vmem:[#allocation2 + $0x500] sm:$0xff]
        %v2721 = vld [vmem:[#allocation2 + $0x508] sm:$0xff]
        %v2722 = vld [vmem:[#allocation2 + $0x510] sm:$0xff]
        %v2723 = vld [vmem:[#allocation2 + $0x518] sm:$0xff]
        %v2724 = vld [vmem:[#allocation2 + $0x520] sm:$0xff]
        %v2725 = vld [vmem:[#allocation2 + $0x528] sm:$0xff]
        %v2726 = vld [vmem:[#allocation2 + $0x530] sm:$0xff]
        %v2727 = vld [vmem:[#allocation2 + $0x538] sm:$0xff]
        %v2728 = vld [vmem:[#allocation2 + $0x540] sm:$0xff]
        %v2729 = vld [vmem:[#allocation2 + $0x548] sm:$0xff]
        %v2730 = vld [vmem:[#allocation2 + $0x550] sm:$0xff]
        %v2731 = vld [vmem:[#allocation2 + $0x558] sm:$0xff]
        %v2732 = vld [vmem:[#allocation2 + $0x560] sm:$0xff]
        %v2733 = vld [vmem:[#allocation2 + $0x568] sm:$0xff]
        %v2734 = vld [vmem:[#allocation2 + $0x570] sm:$0xff]
        %v2735 = vld [vmem:[#allocation2 + $0x578] sm:$0xff]
        %v2736 = vld [vmem:[#allocation2 + $0x580] sm:$0xff]
        %v2737 = vld [vmem:[#allocation2 + $0x588] sm:$0xff]
        %v2738 = vld [vmem:[#allocation2 + $0x590] sm:$0xff]
        %v2739 = vld [vmem:[#allocation2 + $0x598] sm:$0xff]
        %v2740 = vld [vmem:[#allocation2 + $0x5a0] sm:$0xff]
        %v2741 = vld [vmem:[#allocation2 + $0x5a8] sm:$0xff]
        %v2742 = vld [vmem:[#allocation2 + $0x5b0] sm:$0xff]
        %v2743 = vld [vmem:[#allocation2 + $0x5b8] sm:$0xff]
        %v2744 = vld [vmem:[#allocation2 + $0x5c0] sm:$0xff]
        %v2745 = vld [vmem:[#allocation2 + $0x5c8] sm:$0xff]
        %v2746 = vld [vmem:[#allocation2 + $0x5d0] sm:$0xff]
        %v2747 = vld [vmem:[#allocation2 + $0x5d8] sm:$0xff]
        %v2748 = vld [vmem:[#allocation2 + $0x5e0] sm:$0xff]
        %v2749 = vld [vmem:[#allocation2 + $0x5e8] sm:$0xff]
        %v2750 = vld [vmem:[#allocation2 + $0x5f0] sm:$0xff]
        %v2751 = vld [vmem:[#allocation2 + $0x5f8] sm:$0xff]
        %v2752 = vld [vmem:[#allocation2 + $0x600] sm:$0xff]
        %v2753 = vld [vmem:[#allocation2 + $0x608] sm:$0xff]
        %v2754 = vld [vmem:[#allocation2 + $0x610] sm:$0xff]
        %v2755 = vld [vmem:[#allocation2 + $0x618] sm:$0xff]
        %v2756 = vld [vmem:[#allocation2 + $0x620] sm:$0xff]
        %v2757 = vld [vmem:[#allocation2 + $0x628] sm:$0xff]
        %v2758 = vld [vmem:[#allocation2 + $0x630] sm:$0xff]
        %v2759 = vld [vmem:[#allocation2 + $0x638] sm:$0xff]
        %v2760 = vld [vmem:[#allocation2 + $0x640] sm:$0xff]
        %v2761 = vld [vmem:[#allocation2 + $0x648] sm:$0xff]
        %v2762 = vld [vmem:[#allocation2 + $0x650] sm:$0xff]
        %v2763 = vld [vmem:[#allocation2 + $0x658] sm:$0xff]
        %v2764 = vld [vmem:[#allocation2 + $0x660] sm:$0xff]
        %v2765 = vld [vmem:[#allocation2 + $0x668] sm:$0xff]
        %v2766 = vld [vmem:[#allocation2 + $0x670] sm:$0xff]
        %v2767 = vld [vmem:[#allocation2 + $0x678] sm:$0xff]
        %v2768 = vld [vmem:[#allocation2 + $0x680] sm:$0xff]
        %v2769 = vld [vmem:[#allocation2 + $0x688] sm:$0xff]
        %v2770 = vld [vmem:[#allocation2 + $0x690] sm:$0xff]
        %v2771 = vld [vmem:[#allocation2 + $0x698] sm:$0xff]
        %v2772 = vld [vmem:[#allocation2 + $0x6a0] sm:$0xff]
        %v2773 = vld [vmem:[#allocation2 + $0x6a8] sm:$0xff]
        %v2774 = vld [vmem:[#allocation2 + $0x6b0] sm:$0xff]
        %v2775 = vld [vmem:[#allocation2 + $0x6b8] sm:$0xff]
        %v2776 = vld [vmem:[#allocation2 + $0x6c0] sm:$0xff]
        %v2777 = vld [vmem:[#allocation2 + $0x6c8] sm:$0xff]
        %v2778 = vld [vmem:[#allocation2 + $0x6d0] sm:$0xff]
        %v2779 = vld [vmem:[#allocation2 + $0x6d8] sm:$0xff]
        %v2780 = vld [vmem:[#allocation2 + $0x6e0] sm:$0xff]
        %v2781 = vld [vmem:[#allocation2 + $0x6e8] sm:$0xff]
        %v2782 = vld [vmem:[#allocation2 + $0x6f0] sm:$0xff]
        %v2783 = vld [vmem:[#allocation2 + $0x6f8] sm:$0xff]
        %v2784 = vld [vmem:[#allocation2 + $0x700] sm:$0xff]
        %v2785 = vld [vmem:[#allocation2 + $0x708] sm:$0xff]
        %v2786 = vld [vmem:[#allocation2 + $0x710] sm:$0xff]
        %v2787 = vld [vmem:[#allocation2 + $0x718] sm:$0xff]
        %v2788 = vld [vmem:[#allocation2 + $0x720] sm:$0xff]
        %v2789 = vld [vmem:[#allocation2 + $0x728] sm:$0xff]
        %v2790 = vld [vmem:[#allocation2 + $0x730] sm:$0xff]
        %v2791 = vld [vmem:[#allocation2 + $0x738] sm:$0xff]
        %v2792 = vld [vmem:[#allocation2 + $0x740] sm:$0xff]
        %v2793 = vld [vmem:[#allocation2 + $0x748] sm:$0xff]
        %v2794 = vld [vmem:[#allocation2 + $0x750] sm:$0xff]
        %v2795 = vld [vmem:[#allocation2 + $0x758] sm:$0xff]
        %v2796 = vld [vmem:[#allocation2 + $0x760] sm:$0xff]
        %v2797 = vld [vmem:[#allocation2 + $0x768] sm:$0xff]
        %v2798 = vld [vmem:[#allocation2 + $0x770] sm:$0xff]
        %v2799 = vld [vmem:[#allocation2 + $0x778] sm:$0xff]
        %v2800 = vld [vmem:[#allocation2 + $0x780] sm:$0xff]
        %v2801 = vld [vmem:[#allocation2 + $0x788] sm:$0xff]
        %v2802 = vld [vmem:[#allocation2 + $0x790] sm:$0xff]
        %v2803 = vld [vmem:[#allocation2 + $0x798] sm:$0xff]
        %v2804 = vld [vmem:[#allocation2 + $0x7a0] sm:$0xff]
        %v2805 = vld [vmem:[#allocation2 + $0x7a8] sm:$0xff]
        %v2806 = vld [vmem:[#allocation2 + $0x7b0] sm:$0xff]
        %v2807 = vld [vmem:[#allocation2 + $0x7b8] sm:$0xff]
        %v2808 = vld [vmem:[#allocation2 + $0x7c0] sm:$0xff]
        %v2809 = vld [vmem:[#allocation2 + $0x7c8] sm:$0xff]
        %v2810 = vld [vmem:[#allocation2 + $0x7d0] sm:$0xff]
        %v2811 = vld [vmem:[#allocation2 + $0x7d8] sm:$0xff]
        %v2812 = vld [vmem:[#allocation2 + $0x7e0] sm:$0xff]
        %v2813 = vld [vmem:[#allocation2 + $0x7e8] sm:$0xff]
        %v2814 = vld [vmem:[#allocation2 + $0x7f0] sm:$0xff]
        %v2815 = vld [vmem:[#allocation2 + $0x7f8] sm:$0xff]
        %v2816 = vld [vmem:[%s7 + $0x12] sm:$0xff]
        %v2818 = vlaneseq
        %v2819 = vshrl.u32 %v2818, 7
        %v2820 = vsub.s32 0, %v2819
        %v2821 = vrot.slane %v2816, %v2820
        %v2822 = vlaneseq
        %v2823 = vshrl.u32 %v2822, 7
        %v2824 = vsub.s32 1, %v2823
        %v2825 = vrot.slane %v2816, %v2824
        %v2826 = vlaneseq
        %v2827 = vshrl.u32 %v2826, 7
        %v2828 = vsub.s32 2, %v2827
        %v2829 = vrot.slane %v2816, %v2828
        %v2830 = vlaneseq
        %v2831 = vshrl.u32 %v2830, 7
        %v2832 = vsub.s32 3, %v2831
        %v2833 = vrot.slane %v2816, %v2832
        %v2834 = vlaneseq
        %v2835 = vshrl.u32 %v2834, 7
        %v2836 = vsub.s32 4, %v2835
        %v2837 = vrot.slane %v2816, %v2836
        %v2838 = vlaneseq
        %v2839 = vshrl.u32 %v2838, 7
        %v2840 = vsub.s32 5, %v2839
        %v2841 = vrot.slane %v2816, %v2840
        %v2842 = vlaneseq
        %v2843 = vshrl.u32 %v2842, 7
        %v2844 = vsub.s32 6, %v2843
        %v2845 = vrot.slane %v2816, %v2844
        %v2846 = vlaneseq
        %v2847 = vshrl.u32 %v2846, 7
        %v2848 = vsub.s32 7, %v2847
        %v2849 = vrot.slane %v2816, %v2848
        %v3114 = vunpack.c.l.b16 %v2560
        %v3115 = vunpack.c.h.b16 %v2560
        %v3116 = vunpack.c.l.b16 %v2561
        %v3117 = vunpack.c.h.b16 %v2561
        %v3118 = vunpack.c.l.b16 %v2562
        %v3119 = vunpack.c.h.b16 %v2562
        %v3120 = vunpack.c.l.b16 %v2563
        %v3121 = vunpack.c.h.b16 %v2563
        %v3122 = vunpack.c.l.b16 %v2564
        %v3123 = vunpack.c.h.b16 %v2564
        %v3124 = vunpack.c.l.b16 %v2565
        %v3125 = vunpack.c.h.b16 %v2565
        %v3126 = vunpack.c.l.b16 %v2566
        %v3127 = vunpack.c.h.b16 %v2566
        %v3128 = vunpack.c.l.b16 %v2567
        %v3129 = vunpack.c.h.b16 %v2567
        %v3130 = vunpack.c.l.b16 %v2568
        %v3131 = vunpack.c.h.b16 %v2568
        %v3132 = vunpack.c.l.b16 %v2569
        %v3133 = vunpack.c.h.b16 %v2569
        %v3134 = vunpack.c.l.b16 %v2570
        %v3135 = vunpack.c.h.b16 %v2570
        %v3136 = vunpack.c.l.b16 %v2571
        %v3137 = vunpack.c.h.b16 %v2571
        %v3138 = vunpack.c.l.b16 %v2572
        %v3139 = vunpack.c.h.b16 %v2572
        %v3140 = vunpack.c.l.b16 %v2573
        %v3141 = vunpack.c.h.b16 %v2573
        %v3142 = vunpack.c.l.b16 %v2574
        %v3143 = vunpack.c.h.b16 %v2574
        %v3144 = vunpack.c.l.b16 %v2575
        %v3145 = vunpack.c.h.b16 %v2575
        %v3146 = vunpack.c.l.b16 %v2576
        %v3147 = vunpack.c.h.b16 %v2576
        %v3148 = vunpack.c.l.b16 %v2577
        %v3149 = vunpack.c.h.b16 %v2577
        %v3150 = vunpack.c.l.b16 %v2578
        %v3151 = vunpack.c.h.b16 %v2578
        %v3152 = vunpack.c.l.b16 %v2579
        %v3153 = vunpack.c.h.b16 %v2579
        %v3154 = vunpack.c.l.b16 %v2580
        %v3155 = vunpack.c.h.b16 %v2580
        %v3156 = vunpack.c.l.b16 %v2581
        %v3157 = vunpack.c.h.b16 %v2581
        %v3158 = vunpack.c.l.b16 %v2582
        %v3159 = vunpack.c.h.b16 %v2582
        %v3160 = vunpack.c.l.b16 %v2583
        %v3161 = vunpack.c.h.b16 %v2583
        %v3162 = vunpack.c.l.b16 %v2584
        %v3163 = vunpack.c.h.b16 %v2584
        %v3164 = vunpack.c.l.b16 %v2585
        %v3165 = vunpack.c.h.b16 %v2585
        %v3166 = vunpack.c.l.b16 %v2586
        %v3167 = vunpack.c.h.b16 %v2586
        %v3168 = vunpack.c.l.b16 %v2587
        %v3169 = vunpack.c.h.b16 %v2587
        %v3170 = vunpack.c.l.b16 %v2588
        %v3171 = vunpack.c.h.b16 %v2588
        %v3172 = vunpack.c.l.b16 %v2589
        %v3173 = vunpack.c.h.b16 %v2589
        %v3174 = vunpack.c.l.b16 %v2590
        %v3175 = vunpack.c.h.b16 %v2590
        %v3176 = vunpack.c.l.b16 %v2591
        %v3177 = vunpack.c.h.b16 %v2591
        %v3178 = vunpack.c.l.b16 %v2592
        %v3179 = vunpack.c.h.b16 %v2592
        %v3180 = vunpack.c.l.b16 %v2593
        %v3181 = vunpack.c.h.b16 %v2593
        %v3182 = vunpack.c.l.b16 %v2594
        %v3183 = vunpack.c.h.b16 %v2594
        %v3184 = vunpack.c.l.b16 %v2595
        %v3185 = vunpack.c.h.b16 %v2595
        %v3186 = vunpack.c.l.b16 %v2596
        %v3187 = vunpack.c.h.b16 %v2596
        %v3188 = vunpack.c.l.b16 %v2597
        %v3189 = vunpack.c.h.b16 %v2597
        %v3190 = vunpack.c.l.b16 %v2598
        %v3191 = vunpack.c.h.b16 %v2598
        %v3192 = vunpack.c.l.b16 %v2599
        %v3193 = vunpack.c.h.b16 %v2599
        %v3194 = vunpack.c.l.b16 %v2600
        %v3195 = vunpack.c.h.b16 %v2600
        %v3196 = vunpack.c.l.b16 %v2601
        %v3197 = vunpack.c.h.b16 %v2601
        %v3198 = vunpack.c.l.b16 %v2602
        %v3199 = vunpack.c.h.b16 %v2602
        %v3200 = vunpack.c.l.b16 %v2603
        %v3201 = vunpack.c.h.b16 %v2603
        %v3202 = vunpack.c.l.b16 %v2604
        %v3203 = vunpack.c.h.b16 %v2604
        %v3204 = vunpack.c.l.b16 %v2605
        %v3205 = vunpack.c.h.b16 %v2605
        %v3206 = vunpack.c.l.b16 %v2606
        %v3207 = vunpack.c.h.b16 %v2606
        %v3208 = vunpack.c.l.b16 %v2607
        %v3209 = vunpack.c.h.b16 %v2607
        %v3210 = vunpack.c.l.b16 %v2608
        %v3211 = vunpack.c.h.b16 %v2608
        %v3212 = vunpack.c.l.b16 %v2609
        %v3213 = vunpack.c.h.b16 %v2609
        %v3214 = vunpack.c.l.b16 %v2610
        %v3215 = vunpack.c.h.b16 %v2610
        %v3216 = vunpack.c.l.b16 %v2611
        %v3217 = vunpack.c.h.b16 %v2611
        %v3218 = vunpack.c.l.b16 %v2612
        %v3219 = vunpack.c.h.b16 %v2612
        %v3220 = vunpack.c.l.b16 %v2613
        %v3221 = vunpack.c.h.b16 %v2613
        %v3222 = vunpack.c.l.b16 %v2614
        %v3223 = vunpack.c.h.b16 %v2614
        %v3224 = vunpack.c.l.b16 %v2615
        %v3225 = vunpack.c.h.b16 %v2615
        %v3226 = vunpack.c.l.b16 %v2616
        %v3227 = vunpack.c.h.b16 %v2616
        %v3228 = vunpack.c.l.b16 %v2617
        %v3229 = vunpack.c.h.b16 %v2617
        %v3230 = vunpack.c.l.b16 %v2618
        %v3231 = vunpack.c.h.b16 %v2618
        %v3232 = vunpack.c.l.b16 %v2619
        %v3233 = vunpack.c.h.b16 %v2619
        %v3234 = vunpack.c.l.b16 %v2620
        %v3235 = vunpack.c.h.b16 %v2620
        %v3236 = vunpack.c.l.b16 %v2621
        %v3237 = vunpack.c.h.b16 %v2621
        %v3238 = vunpack.c.l.b16 %v2622
        %v3239 = vunpack.c.h.b16 %v2622
        %v3240 = vunpack.c.l.b16 %v2623
        %v3241 = vunpack.c.h.b16 %v2623
        %v3242 = vunpack.c.l.b16 %v2624
        %v3243 = vunpack.c.h.b16 %v2624
        %v3244 = vunpack.c.l.b16 %v2625
        %v3245 = vunpack.c.h.b16 %v2625
        %v3246 = vunpack.c.l.b16 %v2626
        %v3247 = vunpack.c.h.b16 %v2626
        %v3248 = vunpack.c.l.b16 %v2627
        %v3249 = vunpack.c.h.b16 %v2627
        %v3250 = vunpack.c.l.b16 %v2628
        %v3251 = vunpack.c.h.b16 %v2628
        %v3252 = vunpack.c.l.b16 %v2629
        %v3253 = vunpack.c.h.b16 %v2629
        %v3254 = vunpack.c.l.b16 %v2630
        %v3255 = vunpack.c.h.b16 %v2630
        %v3256 = vunpack.c.l.b16 %v2631
        %v3257 = vunpack.c.h.b16 %v2631
        %v3258 = vunpack.c.l.b16 %v2632
        %v3259 = vunpack.c.h.b16 %v2632
        %v3260 = vunpack.c.l.b16 %v2633
        %v3261 = vunpack.c.h.b16 %v2633
        %v3262 = vunpack.c.l.b16 %v2634
        %v3263 = vunpack.c.h.b16 %v2634
        %v3264 = vunpack.c.l.b16 %v2635
        %v3265 = vunpack.c.h.b16 %v2635
        %v3266 = vunpack.c.l.b16 %v2636
        %v3267 = vunpack.c.h.b16 %v2636
        %v3268 = vunpack.c.l.b16 %v2637
        %v3269 = vunpack.c.h.b16 %v2637
        %v3270 = vunpack.c.l.b16 %v2638
        %v3271 = vunpack.c.h.b16 %v2638
        %v3272 = vunpack.c.l.b16 %v2639
        %v3273 = vunpack.c.h.b16 %v2639
        %v3274 = vunpack.c.l.b16 %v2640
        %v3275 = vunpack.c.h.b16 %v2640
        %v3276 = vunpack.c.l.b16 %v2641
        %v3277 = vunpack.c.h.b16 %v2641
        %v3278 = vunpack.c.l.b16 %v2642
        %v3279 = vunpack.c.h.b16 %v2642
        %v3280 = vunpack.c.l.b16 %v2643
        %v3281 = vunpack.c.h.b16 %v2643
        %v3282 = vunpack.c.l.b16 %v2644
        %v3283 = vunpack.c.h.b16 %v2644
        %v3284 = vunpack.c.l.b16 %v2645
        %v3285 = vunpack.c.h.b16 %v2645
        %v3286 = vunpack.c.l.b16 %v2646
        %v3287 = vunpack.c.h.b16 %v2646
        %v3288 = vunpack.c.l.b16 %v2647
        %v3289 = vunpack.c.h.b16 %v2647
        %v3290 = vunpack.c.l.b16 %v2648
        %v3291 = vunpack.c.h.b16 %v2648
        %v3292 = vunpack.c.l.b16 %v2649
        %v3293 = vunpack.c.h.b16 %v2649
        %v3294 = vunpack.c.l.b16 %v2650
        %v3295 = vunpack.c.h.b16 %v2650
        %v3296 = vunpack.c.l.b16 %v2651
        %v3297 = vunpack.c.h.b16 %v2651
        %v3298 = vunpack.c.l.b16 %v2652
        %v3299 = vunpack.c.h.b16 %v2652
        %v3300 = vunpack.c.l.b16 %v2653
        %v3301 = vunpack.c.h.b16 %v2653
        %v3302 = vunpack.c.l.b16 %v2654
        %v3303 = vunpack.c.h.b16 %v2654
        %v3304 = vunpack.c.l.b16 %v2655
        %v3305 = vunpack.c.h.b16 %v2655
        %v3306 = vunpack.c.l.b16 %v2656
        %v3307 = vunpack.c.h.b16 %v2656
        %v3308 = vunpack.c.l.b16 %v2657
        %v3309 = vunpack.c.h.b16 %v2657
        %v3310 = vunpack.c.l.b16 %v2658
        %v3311 = vunpack.c.h.b16 %v2658
        %v3312 = vunpack.c.l.b16 %v2659
        %v3313 = vunpack.c.h.b16 %v2659
        %v3314 = vunpack.c.l.b16 %v2660
        %v3315 = vunpack.c.h.b16 %v2660
        %v3316 = vunpack.c.l.b16 %v2661
        %v3317 = vunpack.c.h.b16 %v2661
        %v3318 = vunpack.c.l.b16 %v2662
        %v3319 = vunpack.c.h.b16 %v2662
        %v3320 = vunpack.c.l.b16 %v2663
        %v3321 = vunpack.c.h.b16 %v2663
        %v3322 = vunpack.c.l.b16 %v2664
        %v3323 = vunpack.c.h.b16 %v2664
        %v3324 = vunpack.c.l.b16 %v2665
        %v3325 = vunpack.c.h.b16 %v2665
        %v3326 = vunpack.c.l.b16 %v2666
        %v3327 = vunpack.c.h.b16 %v2666
        %v3328 = vunpack.c.l.b16 %v2667
        %v3329 = vunpack.c.h.b16 %v2667
        %v3330 = vunpack.c.l.b16 %v2668
        %v3331 = vunpack.c.h.b16 %v2668
        %v3332 = vunpack.c.l.b16 %v2669
        %v3333 = vunpack.c.h.b16 %v2669
        %v3334 = vunpack.c.l.b16 %v2670
        %v3335 = vunpack.c.h.b16 %v2670
        %v3336 = vunpack.c.l.b16 %v2671
        %v3337 = vunpack.c.h.b16 %v2671
        %v3338 = vunpack.c.l.b16 %v2672
        %v3339 = vunpack.c.h.b16 %v2672
        %v3340 = vunpack.c.l.b16 %v2673
        %v3341 = vunpack.c.h.b16 %v2673
        %v3342 = vunpack.c.l.b16 %v2674
        %v3343 = vunpack.c.h.b16 %v2674
        %v3344 = vunpack.c.l.b16 %v2675
        %v3345 = vunpack.c.h.b16 %v2675
        %v3346 = vunpack.c.l.b16 %v2676
        %v3347 = vunpack.c.h.b16 %v2676
        %v3348 = vunpack.c.l.b16 %v2677
        %v3349 = vunpack.c.h.b16 %v2677
        %v3350 = vunpack.c.l.b16 %v2678
        %v3351 = vunpack.c.h.b16 %v2678
        %v3352 = vunpack.c.l.b16 %v2679
        %v3353 = vunpack.c.h.b16 %v2679
        %v3354 = vunpack.c.l.b16 %v2680
        %v3355 = vunpack.c.h.b16 %v2680
        %v3356 = vunpack.c.l.b16 %v2681
        %v3357 = vunpack.c.h.b16 %v2681
        %v3358 = vunpack.c.l.b16 %v2682
        %v3359 = vunpack.c.h.b16 %v2682
        %v3360 = vunpack.c.l.b16 %v2683
        %v3361 = vunpack.c.h.b16 %v2683
        %v3362 = vunpack.c.l.b16 %v2684
        %v3363 = vunpack.c.h.b16 %v2684
        %v3364 = vunpack.c.l.b16 %v2685
        %v3365 = vunpack.c.h.b16 %v2685
        %v3366 = vunpack.c.l.b16 %v2686
        %v3367 = vunpack.c.h.b16 %v2686
        %v3368 = vunpack.c.l.b16 %v2687
        %v3369 = vunpack.c.h.b16 %v2687
        %v3370 = vunpack.c.l.b16 %v2688
        %v3371 = vunpack.c.h.b16 %v2688
        %v3372 = vunpack.c.l.b16 %v2689
        %v3373 = vunpack.c.h.b16 %v2689
        %v3374 = vunpack.c.l.b16 %v2690
        %v3375 = vunpack.c.h.b16 %v2690
        %v3376 = vunpack.c.l.b16 %v2691
        %v3377 = vunpack.c.h.b16 %v2691
        %v3378 = vunpack.c.l.b16 %v2692
        %v3379 = vunpack.c.h.b16 %v2692
        %v3380 = vunpack.c.l.b16 %v2693
        %v3381 = vunpack.c.h.b16 %v2693
        %v3382 = vunpack.c.l.b16 %v2694
        %v3383 = vunpack.c.h.b16 %v2694
        %v3384 = vunpack.c.l.b16 %v2695
        %v3385 = vunpack.c.h.b16 %v2695
        %v3386 = vunpack.c.l.b16 %v2696
        %v3387 = vunpack.c.h.b16 %v2696
        %v3388 = vunpack.c.l.b16 %v2697
        %v3389 = vunpack.c.h.b16 %v2697
        %v3390 = vunpack.c.l.b16 %v2698
        %v3391 = vunpack.c.h.b16 %v2698
        %v3392 = vunpack.c.l.b16 %v2699
        %v3393 = vunpack.c.h.b16 %v2699
        %v3394 = vunpack.c.l.b16 %v2700
        %v3395 = vunpack.c.h.b16 %v2700
        %v3396 = vunpack.c.l.b16 %v2701
        %v3397 = vunpack.c.h.b16 %v2701
        %v3398 = vunpack.c.l.b16 %v2702
        %v3399 = vunpack.c.h.b16 %v2702
        %v3400 = vunpack.c.l.b16 %v2703
        %v3401 = vunpack.c.h.b16 %v2703
        %v3402 = vunpack.c.l.b16 %v2704
        %v3403 = vunpack.c.h.b16 %v2704
        %v3404 = vunpack.c.l.b16 %v2705
        %v3405 = vunpack.c.h.b16 %v2705
        %v3406 = vunpack.c.l.b16 %v2706
        %v3407 = vunpack.c.h.b16 %v2706
        %v3408 = vunpack.c.l.b16 %v2707
        %v3409 = vunpack.c.h.b16 %v2707
        %v3410 = vunpack.c.l.b16 %v2708
        %v3411 = vunpack.c.h.b16 %v2708
        %v3412 = vunpack.c.l.b16 %v2709
        %v3413 = vunpack.c.h.b16 %v2709
        %v3414 = vunpack.c.l.b16 %v2710
        %v3415 = vunpack.c.h.b16 %v2710
        %v3416 = vunpack.c.l.b16 %v2711
        %v3417 = vunpack.c.h.b16 %v2711
        %v3418 = vunpack.c.l.b16 %v2712
        %v3419 = vunpack.c.h.b16 %v2712
        %v3420 = vunpack.c.l.b16 %v2713
        %v3421 = vunpack.c.h.b16 %v2713
        %v3422 = vunpack.c.l.b16 %v2714
        %v3423 = vunpack.c.h.b16 %v2714
        %v3424 = vunpack.c.l.b16 %v2715
        %v3425 = vunpack.c.h.b16 %v2715
        %v3426 = vunpack.c.l.b16 %v2716
        %v3427 = vunpack.c.h.b16 %v2716
        %v3428 = vunpack.c.l.b16 %v2717
        %v3429 = vunpack.c.h.b16 %v2717
        %v3430 = vunpack.c.l.b16 %v2718
        %v3431 = vunpack.c.h.b16 %v2718
        %v3432 = vunpack.c.l.b16 %v2719
        %v3433 = vunpack.c.h.b16 %v2719
        %v3434 = vunpack.c.l.b16 %v2720
        %v3435 = vunpack.c.h.b16 %v2720
        %v3436 = vunpack.c.l.b16 %v2721
        %v3437 = vunpack.c.h.b16 %v2721
        %v3438 = vunpack.c.l.b16 %v2722
        %v3439 = vunpack.c.h.b16 %v2722
        %v3440 = vunpack.c.l.b16 %v2723
        %v3441 = vunpack.c.h.b16 %v2723
        %v3442 = vunpack.c.l.b16 %v2724
        %v3443 = vunpack.c.h.b16 %v2724
        %v3444 = vunpack.c.l.b16 %v2725
        %v3445 = vunpack.c.h.b16 %v2725
        %v3446 = vunpack.c.l.b16 %v2726
        %v3447 = vunpack.c.h.b16 %v2726
        %v3448 = vunpack.c.l.b16 %v2727
        %v3449 = vunpack.c.h.b16 %v2727
        %v3450 = vunpack.c.l.b16 %v2728
        %v3451 = vunpack.c.h.b16 %v2728
        %v3452 = vunpack.c.l.b16 %v2729
        %v3453 = vunpack.c.h.b16 %v2729
        %v3454 = vunpack.c.l.b16 %v2730
        %v3455 = vunpack.c.h.b16 %v2730
        %v3456 = vunpack.c.l.b16 %v2731
        %v3457 = vunpack.c.h.b16 %v2731
        %v3458 = vunpack.c.l.b16 %v2732
        %v3459 = vunpack.c.h.b16 %v2732
        %v3460 = vunpack.c.l.b16 %v2733
        %v3461 = vunpack.c.h.b16 %v2733
        %v3462 = vunpack.c.l.b16 %v2734
        %v3463 = vunpack.c.h.b16 %v2734
        %v3464 = vunpack.c.l.b16 %v2735
        %v3465 = vunpack.c.h.b16 %v2735
        %v3466 = vunpack.c.l.b16 %v2736
        %v3467 = vunpack.c.h.b16 %v2736
        %v3468 = vunpack.c.l.b16 %v2737
        %v3469 = vunpack.c.h.b16 %v2737
        %v3470 = vunpack.c.l.b16 %v2738
        %v3471 = vunpack.c.h.b16 %v2738
        %v3472 = vunpack.c.l.b16 %v2739
        %v3473 = vunpack.c.h.b16 %v2739
        %v3474 = vunpack.c.l.b16 %v2740
        %v3475 = vunpack.c.h.b16 %v2740
        %v3476 = vunpack.c.l.b16 %v2741
        %v3477 = vunpack.c.h.b16 %v2741
        %v3478 = vunpack.c.l.b16 %v2742
        %v3479 = vunpack.c.h.b16 %v2742
        %v3480 = vunpack.c.l.b16 %v2743
        %v3481 = vunpack.c.h.b16 %v2743
        %v3482 = vunpack.c.l.b16 %v2744
        %v3483 = vunpack.c.h.b16 %v2744
        %v3484 = vunpack.c.l.b16 %v2745
        %v3485 = vunpack.c.h.b16 %v2745
        %v3486 = vunpack.c.l.b16 %v2746
        %v3487 = vunpack.c.h.b16 %v2746
        %v3488 = vunpack.c.l.b16 %v2747
        %v3489 = vunpack.c.h.b16 %v2747
        %v3490 = vunpack.c.l.b16 %v2748
        %v3491 = vunpack.c.h.b16 %v2748
        %v3492 = vunpack.c.l.b16 %v2749
        %v3493 = vunpack.c.h.b16 %v2749
        %v3494 = vunpack.c.l.b16 %v2750
        %v3495 = vunpack.c.h.b16 %v2750
        %v3496 = vunpack.c.l.b16 %v2751
        %v3497 = vunpack.c.h.b16 %v2751
        %v3498 = vunpack.c.l.b16 %v2752
        %v3499 = vunpack.c.h.b16 %v2752
        %v3500 = vunpack.c.l.b16 %v2753
        %v3501 = vunpack.c.h.b16 %v2753
        %v3502 = vunpack.c.l.b16 %v2754
        %v3503 = vunpack.c.h.b16 %v2754
        %v3504 = vunpack.c.l.b16 %v2755
        %v3505 = vunpack.c.h.b16 %v2755
        %v3506 = vunpack.c.l.b16 %v2756
        %v3507 = vunpack.c.h.b16 %v2756
        %v3508 = vunpack.c.l.b16 %v2757
        %v3509 = vunpack.c.h.b16 %v2757
        %v3510 = vunpack.c.l.b16 %v2758
        %v3511 = vunpack.c.h.b16 %v2758
        %v3512 = vunpack.c.l.b16 %v2759
        %v3513 = vunpack.c.h.b16 %v2759
        %v3514 = vunpack.c.l.b16 %v2760
        %v3515 = vunpack.c.h.b16 %v2760
        %v3516 = vunpack.c.l.b16 %v2761
        %v3517 = vunpack.c.h.b16 %v2761
        %v3518 = vunpack.c.l.b16 %v2762
        %v3519 = vunpack.c.h.b16 %v2762
        %v3520 = vunpack.c.l.b16 %v2763
        %v3521 = vunpack.c.h.b16 %v2763
        %v3522 = vunpack.c.l.b16 %v2764
        %v3523 = vunpack.c.h.b16 %v2764
        %v3524 = vunpack.c.l.b16 %v2765
        %v3525 = vunpack.c.h.b16 %v2765
        %v3526 = vunpack.c.l.b16 %v2766
        %v3527 = vunpack.c.h.b16 %v2766
        %v3528 = vunpack.c.l.b16 %v2767
        %v3529 = vunpack.c.h.b16 %v2767
        %v3530 = vunpack.c.l.b16 %v2768
        %v3531 = vunpack.c.h.b16 %v2768
        %v3532 = vunpack.c.l.b16 %v2769
        %v3533 = vunpack.c.h.b16 %v2769
        %v3534 = vunpack.c.l.b16 %v2770
        %v3535 = vunpack.c.h.b16 %v2770
        %v3536 = vunpack.c.l.b16 %v2771
        %v3537 = vunpack.c.h.b16 %v2771
        %v3538 = vunpack.c.l.b16 %v2772
        %v3539 = vunpack.c.h.b16 %v2772
        %v3540 = vunpack.c.l.b16 %v2773
        %v3541 = vunpack.c.h.b16 %v2773
        %v3542 = vunpack.c.l.b16 %v2774
        %v3543 = vunpack.c.h.b16 %v2774
        %v3544 = vunpack.c.l.b16 %v2775
        %v3545 = vunpack.c.h.b16 %v2775
        %v3546 = vunpack.c.l.b16 %v2776
        %v3547 = vunpack.c.h.b16 %v2776
        %v3548 = vunpack.c.l.b16 %v2777
        %v3549 = vunpack.c.h.b16 %v2777
        %v3550 = vunpack.c.l.b16 %v2778
        %v3551 = vunpack.c.h.b16 %v2778
        %v3552 = vunpack.c.l.b16 %v2779
        %v3553 = vunpack.c.h.b16 %v2779
        %v3554 = vunpack.c.l.b16 %v2780
        %v3555 = vunpack.c.h.b16 %v2780
        %v3556 = vunpack.c.l.b16 %v2781
        %v3557 = vunpack.c.h.b16 %v2781
        %v3558 = vunpack.c.l.b16 %v2782
        %v3559 = vunpack.c.h.b16 %v2782
        %v3560 = vunpack.c.l.b16 %v2783
        %v3561 = vunpack.c.h.b16 %v2783
        %v3562 = vunpack.c.l.b16 %v2784
        %v3563 = vunpack.c.h.b16 %v2784
        %v3564 = vunpack.c.l.b16 %v2785
        %v3565 = vunpack.c.h.b16 %v2785
        %v3566 = vunpack.c.l.b16 %v2786
        %v3567 = vunpack.c.h.b16 %v2786
        %v3568 = vunpack.c.l.b16 %v2787
        %v3569 = vunpack.c.h.b16 %v2787
        %v3570 = vunpack.c.l.b16 %v2788
        %v3571 = vunpack.c.h.b16 %v2788
        %v3572 = vunpack.c.l.b16 %v2789
        %v3573 = vunpack.c.h.b16 %v2789
        %v3574 = vunpack.c.l.b16 %v2790
        %v3575 = vunpack.c.h.b16 %v2790
        %v3576 = vunpack.c.l.b16 %v2791
        %v3577 = vunpack.c.h.b16 %v2791
        %v3578 = vunpack.c.l.b16 %v2792
        %v3579 = vunpack.c.h.b16 %v2792
        %v3580 = vunpack.c.l.b16 %v2793
        %v3581 = vunpack.c.h.b16 %v2793
        %v3582 = vunpack.c.l.b16 %v2794
        %v3583 = vunpack.c.h.b16 %v2794
        %v3584 = vunpack.c.l.b16 %v2795
        %v3585 = vunpack.c.h.b16 %v2795
        %v3586 = vunpack.c.l.b16 %v2796
        %v3587 = vunpack.c.h.b16 %v2796
        %v3588 = vunpack.c.l.b16 %v2797
        %v3589 = vunpack.c.h.b16 %v2797
        %v3590 = vunpack.c.l.b16 %v2798
        %v3591 = vunpack.c.h.b16 %v2798
        %v3592 = vunpack.c.l.b16 %v2799
        %v3593 = vunpack.c.h.b16 %v2799
        %v3594 = vunpack.c.l.b16 %v2800
        %v3595 = vunpack.c.h.b16 %v2800
        %v3596 = vunpack.c.l.b16 %v2801
        %v3597 = vunpack.c.h.b16 %v2801
        %v3598 = vunpack.c.l.b16 %v2802
        %v3599 = vunpack.c.h.b16 %v2802
        %v3600 = vunpack.c.l.b16 %v2803
        %v3601 = vunpack.c.h.b16 %v2803
        %v3602 = vunpack.c.l.b16 %v2804
        %v3603 = vunpack.c.h.b16 %v2804
        %v3604 = vunpack.c.l.b16 %v2805
        %v3605 = vunpack.c.h.b16 %v2805
        %v3606 = vunpack.c.l.b16 %v2806
        %v3607 = vunpack.c.h.b16 %v2806
        %v3608 = vunpack.c.l.b16 %v2807
        %v3609 = vunpack.c.h.b16 %v2807
        %v3610 = vunpack.c.l.b16 %v2808
        %v3611 = vunpack.c.h.b16 %v2808
        %v3612 = vunpack.c.l.b16 %v2809
        %v3613 = vunpack.c.h.b16 %v2809
        %v3614 = vunpack.c.l.b16 %v2810
        %v3615 = vunpack.c.h.b16 %v2810
        %v3616 = vunpack.c.l.b16 %v2811
        %v3617 = vunpack.c.h.b16 %v2811
        %v3618 = vunpack.c.l.b16 %v2812
        %v3619 = vunpack.c.h.b16 %v2812
        %v3620 = vunpack.c.l.b16 %v2813
        %v3621 = vunpack.c.h.b16 %v2813
        %v3622 = vunpack.c.l.b16 %v2814
        %v3623 = vunpack.c.h.b16 %v2814
        %v3624 = vunpack.c.l.b16 %v2815
        %v3625 = vunpack.c.h.b16 %v2815
        %v3626 = vpack.c.b16 %v3122, %v3114
        %v3627 = vpack.c.b16 %v3123, %v3115
        %v3628 = vpack.c.b16 %v3124, %v3116
        %v3629 = vpack.c.b16 %v3125, %v3117
        %v3630 = vpack.c.b16 %v3126, %v3118
        %v3631 = vpack.c.b16 %v3127, %v3119
        %v3632 = vpack.c.b16 %v3128, %v3120
        %v3633 = vpack.c.b16 %v3129, %v3121
        %v3634 = vpack.c.b16 %v3138, %v3130
        %v3635 = vpack.c.b16 %v3139, %v3131
        %v3636 = vpack.c.b16 %v3140, %v3132
        %v3637 = vpack.c.b16 %v3141, %v3133
        %v3638 = vpack.c.b16 %v3142, %v3134
        %v3639 = vpack.c.b16 %v3143, %v3135
        %v3640 = vpack.c.b16 %v3144, %v3136
        %v3641 = vpack.c.b16 %v3145, %v3137
        %v3642 = vpack.c.b16 %v3154, %v3146
        %v3643 = vpack.c.b16 %v3155, %v3147
        %v3644 = vpack.c.b16 %v3156, %v3148
        %v3645 = vpack.c.b16 %v3157, %v3149
        %v3646 = vpack.c.b16 %v3158, %v3150
        %v3647 = vpack.c.b16 %v3159, %v3151
        %v3648 = vpack.c.b16 %v3160, %v3152
        %v3649 = vpack.c.b16 %v3161, %v3153
        %v3650 = vpack.c.b16 %v3170, %v3162
        %v3651 = vpack.c.b16 %v3171, %v3163
        %v3652 = vpack.c.b16 %v3172, %v3164
        %v3653 = vpack.c.b16 %v3173, %v3165
        %v3654 = vpack.c.b16 %v3174, %v3166
        %v3655 = vpack.c.b16 %v3175, %v3167
        %v3656 = vpack.c.b16 %v3176, %v3168
        %v3657 = vpack.c.b16 %v3177, %v3169
        %v3658 = vpack.c.b16 %v3186, %v3178
        %v3659 = vpack.c.b16 %v3187, %v3179
        %v3660 = vpack.c.b16 %v3188, %v3180
        %v3661 = vpack.c.b16 %v3189, %v3181
        %v3662 = vpack.c.b16 %v3190, %v3182
        %v3663 = vpack.c.b16 %v3191, %v3183
        %v3664 = vpack.c.b16 %v3192, %v3184
        %v3665 = vpack.c.b16 %v3193, %v3185
        %v3666 = vpack.c.b16 %v3202, %v3194
        %v3667 = vpack.c.b16 %v3203, %v3195
        %v3668 = vpack.c.b16 %v3204, %v3196
        %v3669 = vpack.c.b16 %v3205, %v3197
        %v3670 = vpack.c.b16 %v3206, %v3198
        %v3671 = vpack.c.b16 %v3207, %v3199
        %v3672 = vpack.c.b16 %v3208, %v3200
        %v3673 = vpack.c.b16 %v3209, %v3201
        %v3674 = vpack.c.b16 %v3218, %v3210
        %v3675 = vpack.c.b16 %v3219, %v3211
        %v3676 = vpack.c.b16 %v3220, %v3212
        %v3677 = vpack.c.b16 %v3221, %v3213
        %v3678 = vpack.c.b16 %v3222, %v3214
        %v3679 = vpack.c.b16 %v3223, %v3215
        %v3680 = vpack.c.b16 %v3224, %v3216
        %v3681 = vpack.c.b16 %v3225, %v3217
        %v3682 = vpack.c.b16 %v3234, %v3226
        %v3683 = vpack.c.b16 %v3235, %v3227
        %v3684 = vpack.c.b16 %v3236, %v3228
        %v3685 = vpack.c.b16 %v3237, %v3229
        %v3686 = vpack.c.b16 %v3238, %v3230
        %v3687 = vpack.c.b16 %v3239, %v3231
        %v3688 = vpack.c.b16 %v3240, %v3232
        %v3689 = vpack.c.b16 %v3241, %v3233
        %v3690 = vpack.c.b16 %v3250, %v3242
        %v3691 = vpack.c.b16 %v3251, %v3243
        %v3692 = vpack.c.b16 %v3252, %v3244
        %v3693 = vpack.c.b16 %v3253, %v3245
        %v3694 = vpack.c.b16 %v3254, %v3246
        %v3695 = vpack.c.b16 %v3255, %v3247
        %v3696 = vpack.c.b16 %v3256, %v3248
        %v3697 = vpack.c.b16 %v3257, %v3249
        %v3698 = vpack.c.b16 %v3266, %v3258
        %v3699 = vpack.c.b16 %v3267, %v3259
        %v3700 = vpack.c.b16 %v3268, %v3260
        %v3701 = vpack.c.b16 %v3269, %v3261
        %v3702 = vpack.c.b16 %v3270, %v3262
        %v3703 = vpack.c.b16 %v3271, %v3263
        %v3704 = vpack.c.b16 %v3272, %v3264
        %v3705 = vpack.c.b16 %v3273, %v3265
        %v3706 = vpack.c.b16 %v3282, %v3274
        %v3707 = vpack.c.b16 %v3283, %v3275
        %v3708 = vpack.c.b16 %v3284, %v3276
        %v3709 = vpack.c.b16 %v3285, %v3277
        %v3710 = vpack.c.b16 %v3286, %v3278
        %v3711 = vpack.c.b16 %v3287, %v3279
        %v3712 = vpack.c.b16 %v3288, %v3280
        %v3713 = vpack.c.b16 %v3289, %v3281
        %v3714 = vpack.c.b16 %v3298, %v3290
        %v3715 = vpack.c.b16 %v3299, %v3291
        %v3716 = vpack.c.b16 %v3300, %v3292
        %v3717 = vpack.c.b16 %v3301, %v3293
        %v3718 = vpack.c.b16 %v3302, %v3294
        %v3719 = vpack.c.b16 %v3303, %v3295
        %v3720 = vpack.c.b16 %v3304, %v3296
        %v3721 = vpack.c.b16 %v3305, %v3297
        %v3722 = vpack.c.b16 %v3314, %v3306
        %v3723 = vpack.c.b16 %v3315, %v3307
        %v3724 = vpack.c.b16 %v3316, %v3308
        %v3725 = vpack.c.b16 %v3317, %v3309
        %v3726 = vpack.c.b16 %v3318, %v3310
        %v3727 = vpack.c.b16 %v3319, %v3311
        %v3728 = vpack.c.b16 %v3320, %v3312
        %v3729 = vpack.c.b16 %v3321, %v3313
        %v3730 = vpack.c.b16 %v3330, %v3322
        %v3731 = vpack.c.b16 %v3331, %v3323
        %v3732 = vpack.c.b16 %v3332, %v3324
        %v3733 = vpack.c.b16 %v3333, %v3325
        %v3734 = vpack.c.b16 %v3334, %v3326
        %v3735 = vpack.c.b16 %v3335, %v3327
        %v3736 = vpack.c.b16 %v3336, %v3328
        %v3737 = vpack.c.b16 %v3337, %v3329
        %v3738 = vpack.c.b16 %v3346, %v3338
        %v3739 = vpack.c.b16 %v3347, %v3339
        %v3740 = vpack.c.b16 %v3348, %v3340
        %v3741 = vpack.c.b16 %v3349, %v3341
        %v3742 = vpack.c.b16 %v3350, %v3342
        %v3743 = vpack.c.b16 %v3351, %v3343
        %v3744 = vpack.c.b16 %v3352, %v3344
        %v3745 = vpack.c.b16 %v3353, %v3345
        %v3746 = vpack.c.b16 %v3362, %v3354
        %v3747 = vpack.c.b16 %v3363, %v3355
        %v3748 = vpack.c.b16 %v3364, %v3356
        %v3749 = vpack.c.b16 %v3365, %v3357
        %v3750 = vpack.c.b16 %v3366, %v3358
        %v3751 = vpack.c.b16 %v3367, %v3359
        %v3752 = vpack.c.b16 %v3368, %v3360
        %v3753 = vpack.c.b16 %v3369, %v3361
        %v3754 = vpack.c.b16 %v3378, %v3370
        %v3755 = vpack.c.b16 %v3379, %v3371
        %v3756 = vpack.c.b16 %v3380, %v3372
        %v3757 = vpack.c.b16 %v3381, %v3373
        %v3758 = vpack.c.b16 %v3382, %v3374
        %v3759 = vpack.c.b16 %v3383, %v3375
        %v3760 = vpack.c.b16 %v3384, %v3376
        %v3761 = vpack.c.b16 %v3385, %v3377
        %v3762 = vpack.c.b16 %v3394, %v3386
        %v3763 = vpack.c.b16 %v3395, %v3387
        %v3764 = vpack.c.b16 %v3396, %v3388
        %v3765 = vpack.c.b16 %v3397, %v3389
        %v3766 = vpack.c.b16 %v3398, %v3390
        %v3767 = vpack.c.b16 %v3399, %v3391
        %v3768 = vpack.c.b16 %v3400, %v3392
        %v3769 = vpack.c.b16 %v3401, %v3393
        %v3770 = vpack.c.b16 %v3410, %v3402
        %v3771 = vpack.c.b16 %v3411, %v3403
        %v3772 = vpack.c.b16 %v3412, %v3404
        %v3773 = vpack.c.b16 %v3413, %v3405
        %v3774 = vpack.c.b16 %v3414, %v3406
        %v3775 = vpack.c.b16 %v3415, %v3407
        %v3776 = vpack.c.b16 %v3416, %v3408
        %v3777 = vpack.c.b16 %v3417, %v3409
        %v3778 = vpack.c.b16 %v3426, %v3418
        %v3779 = vpack.c.b16 %v3427, %v3419
        %v3780 = vpack.c.b16 %v3428, %v3420
        %v3781 = vpack.c.b16 %v3429, %v3421
        %v3782 = vpack.c.b16 %v3430, %v3422
        %v3783 = vpack.c.b16 %v3431, %v3423
        %v3784 = vpack.c.b16 %v3432, %v3424
        %v3785 = vpack.c.b16 %v3433, %v3425
        %v3786 = vpack.c.b16 %v3442, %v3434
        %v3787 = vpack.c.b16 %v3443, %v3435
        %v3788 = vpack.c.b16 %v3444, %v3436
        %v3789 = vpack.c.b16 %v3445, %v3437
        %v3790 = vpack.c.b16 %v3446, %v3438
        %v3791 = vpack.c.b16 %v3447, %v3439
        %v3792 = vpack.c.b16 %v3448, %v3440
        %v3793 = vpack.c.b16 %v3449, %v3441
        %v3794 = vpack.c.b16 %v3458, %v3450
        %v3795 = vpack.c.b16 %v3459, %v3451
        %v3796 = vpack.c.b16 %v3460, %v3452
        %v3797 = vpack.c.b16 %v3461, %v3453
        %v3798 = vpack.c.b16 %v3462, %v3454
        %v3799 = vpack.c.b16 %v3463, %v3455
        %v3800 = vpack.c.b16 %v3464, %v3456
        %v3801 = vpack.c.b16 %v3465, %v3457
        %v3802 = vpack.c.b16 %v3474, %v3466
        %v3803 = vpack.c.b16 %v3475, %v3467
        %v3804 = vpack.c.b16 %v3476, %v3468
        %v3805 = vpack.c.b16 %v3477, %v3469
        %v3806 = vpack.c.b16 %v3478, %v3470
        %v3807 = vpack.c.b16 %v3479, %v3471
        %v3808 = vpack.c.b16 %v3480, %v3472
        %v3809 = vpack.c.b16 %v3481, %v3473
        %v3810 = vpack.c.b16 %v3490, %v3482
        %v3811 = vpack.c.b16 %v3491, %v3483
        %v3812 = vpack.c.b16 %v3492, %v3484
        %v3813 = vpack.c.b16 %v3493, %v3485
        %v3814 = vpack.c.b16 %v3494, %v3486
        %v3815 = vpack.c.b16 %v3495, %v3487
        %v3816 = vpack.c.b16 %v3496, %v3488
        %v3817 = vpack.c.b16 %v3497, %v3489
        %v3818 = vpack.c.b16 %v3506, %v3498
        %v3819 = vpack.c.b16 %v3507, %v3499
        %v3820 = vpack.c.b16 %v3508, %v3500
        %v3821 = vpack.c.b16 %v3509, %v3501
        %v3822 = vpack.c.b16 %v3510, %v3502
        %v3823 = vpack.c.b16 %v3511, %v3503
        %v3824 = vpack.c.b16 %v3512, %v3504
        %v3825 = vpack.c.b16 %v3513, %v3505
        %v3826 = vpack.c.b16 %v3522, %v3514
        %v3827 = vpack.c.b16 %v3523, %v3515
        %v3828 = vpack.c.b16 %v3524, %v3516
        %v3829 = vpack.c.b16 %v3525, %v3517
        %v3830 = vpack.c.b16 %v3526, %v3518
        %v3831 = vpack.c.b16 %v3527, %v3519
        %v3832 = vpack.c.b16 %v3528, %v3520
        %v3833 = vpack.c.b16 %v3529, %v3521
        %v3834 = vpack.c.b16 %v3538, %v3530
        %v3835 = vpack.c.b16 %v3539, %v3531
        %v3836 = vpack.c.b16 %v3540, %v3532
        %v3837 = vpack.c.b16 %v3541, %v3533
        %v3838 = vpack.c.b16 %v3542, %v3534
        %v3839 = vpack.c.b16 %v3543, %v3535
        %v3840 = vpack.c.b16 %v3544, %v3536
        %v3841 = vpack.c.b16 %v3545, %v3537
        %v3842 = vpack.c.b16 %v3554, %v3546
        %v3843 = vpack.c.b16 %v3555, %v3547
        %v3844 = vpack.c.b16 %v3556, %v3548
        %v3845 = vpack.c.b16 %v3557, %v3549
        %v3846 = vpack.c.b16 %v3558, %v3550
        %v3847 = vpack.c.b16 %v3559, %v3551
        %v3848 = vpack.c.b16 %v3560, %v3552
        %v3849 = vpack.c.b16 %v3561, %v3553
        %v3850 = vpack.c.b16 %v3570, %v3562
        %v3851 = vpack.c.b16 %v3571, %v3563
        %v3852 = vpack.c.b16 %v3572, %v3564
        %v3853 = vpack.c.b16 %v3573, %v3565
        %v3854 = vpack.c.b16 %v3574, %v3566
        %v3855 = vpack.c.b16 %v3575, %v3567
        %v3856 = vpack.c.b16 %v3576, %v3568
        %v3857 = vpack.c.b16 %v3577, %v3569
        %v3858 = vpack.c.b16 %v3586, %v3578
        %v3859 = vpack.c.b16 %v3587, %v3579
        %v3860 = vpack.c.b16 %v3588, %v3580
        %v3861 = vpack.c.b16 %v3589, %v3581
        %v3862 = vpack.c.b16 %v3590, %v3582
        %v3863 = vpack.c.b16 %v3591, %v3583
        %v3864 = vpack.c.b16 %v3592, %v3584
        %v3865 = vpack.c.b16 %v3593, %v3585
        %v3866 = vpack.c.b16 %v3602, %v3594
        %v3867 = vpack.c.b16 %v3603, %v3595
        %v3868 = vpack.c.b16 %v3604, %v3596
        %v3869 = vpack.c.b16 %v3605, %v3597
        %v3870 = vpack.c.b16 %v3606, %v3598
        %v3871 = vpack.c.b16 %v3607, %v3599
        %v3872 = vpack.c.b16 %v3608, %v3600
        %v3873 = vpack.c.b16 %v3609, %v3601
        %v3874 = vpack.c.b16 %v3618, %v3610
        %v3875 = vpack.c.b16 %v3619, %v3611
        %v3876 = vpack.c.b16 %v3620, %v3612
        %v3877 = vpack.c.b16 %v3621, %v3613
        %v3878 = vpack.c.b16 %v3622, %v3614
        %v3879 = vpack.c.b16 %v3623, %v3615
        %v3880 = vpack.c.b16 %v3624, %v3616
        %v3881 = vpack.c.b16 %v3625, %v3617
        %4138 = vmatprep.subr.bf16.mxu0 %v3683
        %4139 = vmatpush1.bf16.msra.mxu0 %v3682
        %4140 = vmatprep.subr.bf16.mxu0 %v3675
        %4141 = vmatpush1.bf16.msra.mxu0 %v3674
        %4142 = vmatprep.subr.bf16.mxu0 %v3667
        %4143 = vmatpush1.bf16.msra.mxu0 %v3666
        %4144 = vmatprep.subr.bf16.mxu0 %v3659
        %4145 = vmatpush1.bf16.msra.mxu0 %v3658
        %4146 = vmatprep.subr.bf16.mxu0 %v3651
        %4147 = vmatpush1.bf16.msra.mxu0 %v3650
        %4148 = vmatprep.subr.bf16.mxu0 %v3643
        %4149 = vmatpush1.bf16.msra.mxu0 %v3642
        %4150 = vmatprep.subr.bf16.mxu0 %v3635
        %4151 = vmatpush1.bf16.msra.mxu0 %v3634
        %4152 = vmatprep.subr.bf16.mxu0 %v3627
        %4153 = vmatpush1.bf16.msra.mxu0 %v3626
        %4154 = vmatprep.subr.bf16.mxu0 %v3747
        %4155 = vmatpush2.bf16.msra.mxu0 %v3746
        %4156 = vmatprep.subr.bf16.mxu0 %v3739
        %4157 = vmatpush2.bf16.msra.mxu0 %v3738
        %4158 = vmatprep.subr.bf16.mxu0 %v3731
        %4159 = vmatpush2.bf16.msra.mxu0 %v3730
        %4160 = vmatprep.subr.bf16.mxu0 %v3723
        %4161 = vmatpush2.bf16.msra.mxu0 %v3722
        %4162 = vmatprep.subr.bf16.mxu0 %v3715
        %4163 = vmatpush2.bf16.msra.mxu0 %v3714
        %4164 = vmatprep.subr.bf16.mxu0 %v3707
        %4165 = vmatpush2.bf16.msra.mxu0 %v3706
        %4166 = vmatprep.subr.bf16.mxu0 %v3699
        %4167 = vmatpush2.bf16.msra.mxu0 %v3698
        %4168 = vmatprep.subr.bf16.mxu0 %v3691
        %4169 = vmatpush2.bf16.msra.mxu0 %v3690
        %4170 = vmatprep.mubr.bf16.mxu0 %v2529
        %4171 = vmatmul.mubr.bf16.gmra.mxu0 %v2528
        %v4172 = vpop.f32.mrf.mxu0
        %v4173 = vadd.f32 %v2821, %v4172
        %v4174 = vpop.f32.mrf.mxu0
        %v4175 = vadd.f32 %v2825, %v4174
        %v4176 = vpop.f32.mrf.mxu0
        %v4177 = vadd.f32 %v2821, %v4176
        %v4178 = vpop.f32.mrf.mxu0
        %v4179 = vadd.f32 %v2825, %v4178
        %4180 = vmatprep.mubr.bf16.mxu0 %v2533
        %4181 = vmatmul.mubr.bf16.gmra.mxu0 %v2532
        %v4182 = vpop.f32.mrf.mxu0
        %v4183 = vadd.f32 %v2821, %v4182
        %v4184 = vpop.f32.mrf.mxu0
        %v4185 = vadd.f32 %v2825, %v4184
        %v4186 = vpop.f32.mrf.mxu0
        %v4187 = vadd.f32 %v2821, %v4186
        %v4188 = vpop.f32.mrf.mxu0
        %v4189 = vadd.f32 %v2825, %v4188
        %4190 = vmatprep.mubr.bf16.mxu0 %v2537
        %4191 = vmatmul.mubr.bf16.gmra.mxu0 %v2536
        %v4192 = vpop.f32.mrf.mxu0
        %v4193 = vadd.f32 %v2821, %v4192
        %v4194 = vpop.f32.mrf.mxu0
        %v4195 = vadd.f32 %v2825, %v4194
        %v4196 = vpop.f32.mrf.mxu0
        %v4197 = vadd.f32 %v2821, %v4196
        %v4198 = vpop.f32.mrf.mxu0
        %v4199 = vadd.f32 %v2825, %v4198
        %4200 = vmatprep.mubr.bf16.mxu0 %v2541
        %4201 = vmatmul.mubr.bf16.gmra.mxu0 %v2540
        %v4202 = vpop.f32.mrf.mxu0
        %v4203 = vadd.f32 %v2821, %v4202
        %v4204 = vpop.f32.mrf.mxu0
        %v4205 = vadd.f32 %v2825, %v4204
        %v4206 = vpop.f32.mrf.mxu0
        %v4207 = vadd.f32 %v2821, %v4206
        %v4208 = vpop.f32.mrf.mxu0
        %v4209 = vadd.f32 %v2825, %v4208
        %4210 = vmatprep.mubr.bf16.mxu0 %v2545
        %4211 = vmatmul.mubr.bf16.gmra.mxu0 %v2544
        %v4212 = vpop.f32.mrf.mxu0
        %v4213 = vadd.f32 %v2821, %v4212
        %v4214 = vpop.f32.mrf.mxu0
        %v4215 = vadd.f32 %v2825, %v4214
        %v4216 = vpop.f32.mrf.mxu0
        %v4217 = vadd.f32 %v2821, %v4216
        %v4218 = vpop.f32.mrf.mxu0
        %v4219 = vadd.f32 %v2825, %v4218
        %4220 = vmatprep.mubr.bf16.mxu0 %v2549
        %4221 = vmatmul.mubr.bf16.gmra.mxu0 %v2548
        %v4222 = vpop.f32.mrf.mxu0
        %v4223 = vadd.f32 %v2821, %v4222
        %v4224 = vpop.f32.mrf.mxu0
        %v4225 = vadd.f32 %v2825, %v4224
        %v4226 = vpop.f32.mrf.mxu0
        %v4227 = vadd.f32 %v2821, %v4226
        %v4228 = vpop.f32.mrf.mxu0
        %v4229 = vadd.f32 %v2825, %v4228
        %4230 = vmatprep.mubr.bf16.mxu0 %v2553
        %4231 = vmatmul.mubr.bf16.gmra.mxu0 %v2552
        %v4232 = vpop.f32.mrf.mxu0
        %v4233 = vadd.f32 %v2821, %v4232
        %v4234 = vpop.f32.mrf.mxu0
        %v4235 = vadd.f32 %v2825, %v4234
        %v4236 = vpop.f32.mrf.mxu0
        %v4237 = vadd.f32 %v2821, %v4236
        %v4238 = vpop.f32.mrf.mxu0
        %v4239 = vadd.f32 %v2825, %v4238
        %4240 = vmatprep.mubr.bf16.mxu0 %v2557
        %4241 = vmatmul.mubr.bf16.gmra.mxu0 %v2556
        %v4242 = vpop.f32.mrf.mxu0
        %v4243 = vadd.f32 %v2821, %v4242
        %v4244 = vpop.f32.mrf.mxu0
        %v4245 = vadd.f32 %v2825, %v4244
        %v4246 = vpop.f32.mrf.mxu0
        %v4247 = vadd.f32 %v2821, %v4246
        %v4248 = vpop.f32.mrf.mxu0
        %v4249 = vadd.f32 %v2825, %v4248
        %4250 = vdwg.mxu0
        %4251 = vmatprep.subr.bf16.mxu0 %v3811
        %4252 = vmatpush1.bf16.msra.mxu0 %v3810
        %4253 = vmatprep.subr.bf16.mxu0 %v3803
        %4254 = vmatpush1.bf16.msra.mxu0 %v3802
        %4255 = vmatprep.subr.bf16.mxu0 %v3795
        %4256 = vmatpush1.bf16.msra.mxu0 %v3794
        %4257 = vmatprep.subr.bf16.mxu0 %v3787
        %4258 = vmatpush1.bf16.msra.mxu0 %v3786
        %4259 = vmatprep.subr.bf16.mxu0 %v3779
        %4260 = vmatpush1.bf16.msra.mxu0 %v3778
        %4261 = vmatprep.subr.bf16.mxu0 %v3771
        %4262 = vmatpush1.bf16.msra.mxu0 %v3770
        %4263 = vmatprep.subr.bf16.mxu0 %v3763
        %4264 = vmatpush1.bf16.msra.mxu0 %v3762
        %4265 = vmatprep.subr.bf16.mxu0 %v3755
        %4266 = vmatpush1.bf16.msra.mxu0 %v3754
        %4267 = vmatprep.subr.bf16.mxu0 %v3875
        %4268 = vmatpush2.bf16.msra.mxu0 %v3874
        %4269 = vmatprep.subr.bf16.mxu0 %v3867
        %4270 = vmatpush2.bf16.msra.mxu0 %v3866
        %4271 = vmatprep.subr.bf16.mxu0 %v3859
        %4272 = vmatpush2.bf16.msra.mxu0 %v3858
        %4273 = vmatprep.subr.bf16.mxu0 %v3851
        %4274 = vmatpush2.bf16.msra.mxu0 %v3850
        %4275 = vmatprep.subr.bf16.mxu0 %v3843
        %4276 = vmatpush2.bf16.msra.mxu0 %v3842
        %4277 = vmatprep.subr.bf16.mxu0 %v3835
        %4278 = vmatpush2.bf16.msra.mxu0 %v3834
        %4279 = vmatprep.subr.bf16.mxu0 %v3827
        %4280 = vmatpush2.bf16.msra.mxu0 %v3826
        %4281 = vmatprep.subr.bf16.mxu0 %v3819
        %4282 = vmatpush2.bf16.msra.mxu0 %v3818
        %4283 = vmatprep.mubr.bf16.mxu0 %v2531
        %4284 = vmatmul.mubr.bf16.gmra.mxu0 %v2530
        %v4285 = vpop.f32.mrf.mxu0
        %v4286 = vadd.f32 %v4173, %v4285
        %v4287 = vpop.f32.mrf.mxu0
        %v4288 = vadd.f32 %v4175, %v4287
        %v4289 = vpop.f32.mrf.mxu0
        %v4290 = vadd.f32 %v4177, %v4289
        %v4291 = vpop.f32.mrf.mxu0
        %v4292 = vadd.f32 %v4179, %v4291
        %4293 = vmatprep.mubr.bf16.mxu0 %v2535
        %4294 = vmatmul.mubr.bf16.gmra.mxu0 %v2534
        %v4295 = vpop.f32.mrf.mxu0
        %v4296 = vadd.f32 %v4183, %v4295
        %v4297 = vpop.f32.mrf.mxu0
        %v4298 = vadd.f32 %v4185, %v4297
        %v4299 = vpop.f32.mrf.mxu0
        %v4300 = vadd.f32 %v4187, %v4299
        %v4301 = vpop.f32.mrf.mxu0
        %v4302 = vadd.f32 %v4189, %v4301
        %4303 = vmatprep.mubr.bf16.mxu0 %v2539
        %4304 = vmatmul.mubr.bf16.gmra.mxu0 %v2538
        %v4305 = vpop.f32.mrf.mxu0
        %v4306 = vadd.f32 %v4193, %v4305
        %v4307 = vpop.f32.mrf.mxu0
        %v4308 = vadd.f32 %v4195, %v4307
        %v4309 = vpop.f32.mrf.mxu0
        %v4310 = vadd.f32 %v4197, %v4309
        %v4311 = vpop.f32.mrf.mxu0
        %v4312 = vadd.f32 %v4199, %v4311
        %4313 = vmatprep.mubr.bf16.mxu0 %v2543
        %4314 = vmatmul.mubr.bf16.gmra.mxu0 %v2542
        %v4315 = vpop.f32.mrf.mxu0
        %v4316 = vadd.f32 %v4203, %v4315
        %v4317 = vpop.f32.mrf.mxu0
        %v4318 = vadd.f32 %v4205, %v4317
        %v4319 = vpop.f32.mrf.mxu0
        %v4320 = vadd.f32 %v4207, %v4319
        %v4321 = vpop.f32.mrf.mxu0
        %v4322 = vadd.f32 %v4209, %v4321
        %4323 = vmatprep.mubr.bf16.mxu0 %v2547
        %4324 = vmatmul.mubr.bf16.gmra.mxu0 %v2546
        %v4325 = vpop.f32.mrf.mxu0
        %v4326 = vadd.f32 %v4213, %v4325
        %v4327 = vpop.f32.mrf.mxu0
        %v4328 = vadd.f32 %v4215, %v4327
        %v4329 = vpop.f32.mrf.mxu0
        %v4330 = vadd.f32 %v4217, %v4329
        %v4331 = vpop.f32.mrf.mxu0
        %v4332 = vadd.f32 %v4219, %v4331
        %4333 = vmatprep.mubr.bf16.mxu0 %v2551
        %4334 = vmatmul.mubr.bf16.gmra.mxu0 %v2550
        %v4335 = vpop.f32.mrf.mxu0
        %v4336 = vadd.f32 %v4223, %v4335
        %v4337 = vpop.f32.mrf.mxu0
        %v4338 = vadd.f32 %v4225, %v4337
        %v4339 = vpop.f32.mrf.mxu0
        %v4340 = vadd.f32 %v4227, %v4339
        %v4341 = vpop.f32.mrf.mxu0
        %v4342 = vadd.f32 %v4229, %v4341
        %4343 = vmatprep.mubr.bf16.mxu0 %v2555
        %4344 = vmatmul.mubr.bf16.gmra.mxu0 %v2554
        %v4345 = vpop.f32.mrf.mxu0
        %v4346 = vadd.f32 %v4233, %v4345
        %v4347 = vpop.f32.mrf.mxu0
        %v4348 = vadd.f32 %v4235, %v4347
        %v4349 = vpop.f32.mrf.mxu0
        %v4350 = vadd.f32 %v4237, %v4349
        %v4351 = vpop.f32.mrf.mxu0
        %v4352 = vadd.f32 %v4239, %v4351
        %4353 = vmatprep.mubr.bf16.mxu0 %v2559
        %4354 = vmatmul.mubr.bf16.gmra.mxu0 %v2558
        %v4355 = vpop.f32.mrf.mxu0
        %v4356 = vadd.f32 %v4243, %v4355
        %v4357 = vpop.f32.mrf.mxu0
        %v4358 = vadd.f32 %v4245, %v4357
        %v4359 = vpop.f32.mrf.mxu0
        %v4360 = vadd.f32 %v4247, %v4359
        %v4361 = vpop.f32.mrf.mxu0
        %v4362 = vadd.f32 %v4249, %v4361
        %4363 = vdwg.mxu0
        %4364 = vmatprep.subr.bf16.mxu0 %v3685
        %4365 = vmatpush1.bf16.msra.mxu0 %v3684
        %4366 = vmatprep.subr.bf16.mxu0 %v3677
        %4367 = vmatpush1.bf16.msra.mxu0 %v3676
        %4368 = vmatprep.subr.bf16.mxu0 %v3669
        %4369 = vmatpush1.bf16.msra.mxu0 %v3668
        %4370 = vmatprep.subr.bf16.mxu0 %v3661
        %4371 = vmatpush1.bf16.msra.mxu0 %v3660
        %4372 = vmatprep.subr.bf16.mxu0 %v3653
        %4373 = vmatpush1.bf16.msra.mxu0 %v3652
        %4374 = vmatprep.subr.bf16.mxu0 %v3645
        %4375 = vmatpush1.bf16.msra.mxu0 %v3644
        %4376 = vmatprep.subr.bf16.mxu0 %v3637
        %4377 = vmatpush1.bf16.msra.mxu0 %v3636
        %4378 = vmatprep.subr.bf16.mxu0 %v3629
        %4379 = vmatpush1.bf16.msra.mxu0 %v3628
        %4380 = vmatprep.subr.bf16.mxu0 %v3749
        %4381 = vmatpush2.bf16.msra.mxu0 %v3748
        %4382 = vmatprep.subr.bf16.mxu0 %v3741
        %4383 = vmatpush2.bf16.msra.mxu0 %v3740
        %4384 = vmatprep.subr.bf16.mxu0 %v3733
        %4385 = vmatpush2.bf16.msra.mxu0 %v3732
        %4386 = vmatprep.subr.bf16.mxu0 %v3725
        %4387 = vmatpush2.bf16.msra.mxu0 %v3724
        %4388 = vmatprep.subr.bf16.mxu0 %v3717
        %4389 = vmatpush2.bf16.msra.mxu0 %v3716
        %4390 = vmatprep.subr.bf16.mxu0 %v3709
        %4391 = vmatpush2.bf16.msra.mxu0 %v3708
        %4392 = vmatprep.subr.bf16.mxu0 %v3701
        %4393 = vmatpush2.bf16.msra.mxu0 %v3700
        %4394 = vmatprep.subr.bf16.mxu0 %v3693
        %4395 = vmatpush2.bf16.msra.mxu0 %v3692
        %4396 = vmatprep.mubr.bf16.mxu0 %v2529
        %4397 = vmatmul.mubr.bf16.gmra.mxu0 %v2528
        %v4398 = vpop.f32.mrf.mxu0
        %v4399 = vadd.f32 %v2829, %v4398
        %v4400 = vpop.f32.mrf.mxu0
        %v4401 = vadd.f32 %v2833, %v4400
        %v4402 = vpop.f32.mrf.mxu0
        %v4403 = vadd.f32 %v2829, %v4402
        %v4404 = vpop.f32.mrf.mxu0
        %v4405 = vadd.f32 %v2833, %v4404
        %4406 = vmatprep.mubr.bf16.mxu0 %v2533
        %4407 = vmatmul.mubr.bf16.gmra.mxu0 %v2532
        %v4408 = vpop.f32.mrf.mxu0
        %v4409 = vadd.f32 %v2829, %v4408
        %v4410 = vpop.f32.mrf.mxu0
        %v4411 = vadd.f32 %v2833, %v4410
        %v4412 = vpop.f32.mrf.mxu0
        %v4413 = vadd.f32 %v2829, %v4412
        %v4414 = vpop.f32.mrf.mxu0
        %v4415 = vadd.f32 %v2833, %v4414
        %4416 = vmatprep.mubr.bf16.mxu0 %v2537
        %4417 = vmatmul.mubr.bf16.gmra.mxu0 %v2536
        %v4418 = vpop.f32.mrf.mxu0
        %v4419 = vadd.f32 %v2829, %v4418
        %v4420 = vpop.f32.mrf.mxu0
        %v4421 = vadd.f32 %v2833, %v4420
        %v4422 = vpop.f32.mrf.mxu0
        %v4423 = vadd.f32 %v2829, %v4422
        %v4424 = vpop.f32.mrf.mxu0
        %v4425 = vadd.f32 %v2833, %v4424
        %4426 = vmatprep.mubr.bf16.mxu0 %v2541
        %4427 = vmatmul.mubr.bf16.gmra.mxu0 %v2540
        %v4428 = vpop.f32.mrf.mxu0
        %v4429 = vadd.f32 %v2829, %v4428
        %v4430 = vpop.f32.mrf.mxu0
        %v4431 = vadd.f32 %v2833, %v4430
        %v4432 = vpop.f32.mrf.mxu0
        %v4433 = vadd.f32 %v2829, %v4432
        %v4434 = vpop.f32.mrf.mxu0
        %v4435 = vadd.f32 %v2833, %v4434
        %4436 = vmatprep.mubr.bf16.mxu0 %v2545
        %4437 = vmatmul.mubr.bf16.gmra.mxu0 %v2544
        %v4438 = vpop.f32.mrf.mxu0
        %v4439 = vadd.f32 %v2829, %v4438
        %v4440 = vpop.f32.mrf.mxu0
        %v4441 = vadd.f32 %v2833, %v4440
        %v4442 = vpop.f32.mrf.mxu0
        %v4443 = vadd.f32 %v2829, %v4442
        %v4444 = vpop.f32.mrf.mxu0
        %v4445 = vadd.f32 %v2833, %v4444
        %4446 = vmatprep.mubr.bf16.mxu0 %v2549
        %4447 = vmatmul.mubr.bf16.gmra.mxu0 %v2548
        %v4448 = vpop.f32.mrf.mxu0
        %v4449 = vadd.f32 %v2829, %v4448
        %v4450 = vpop.f32.mrf.mxu0
        %v4451 = vadd.f32 %v2833, %v4450
        %v4452 = vpop.f32.mrf.mxu0
        %v4453 = vadd.f32 %v2829, %v4452
        %v4454 = vpop.f32.mrf.mxu0
        %v4455 = vadd.f32 %v2833, %v4454
        %4456 = vmatprep.mubr.bf16.mxu0 %v2553
        %4457 = vmatmul.mubr.bf16.gmra.mxu0 %v2552
        %v4458 = vpop.f32.mrf.mxu0
        %v4459 = vadd.f32 %v2829, %v4458
        %v4460 = vpop.f32.mrf.mxu0
        %v4461 = vadd.f32 %v2833, %v4460
        %v4462 = vpop.f32.mrf.mxu0
        %v4463 = vadd.f32 %v2829, %v4462
        %v4464 = vpop.f32.mrf.mxu0
        %v4465 = vadd.f32 %v2833, %v4464
        %4466 = vmatprep.mubr.bf16.mxu0 %v2557
        %4467 = vmatmul.mubr.bf16.gmra.mxu0 %v2556
        %v4468 = vpop.f32.mrf.mxu0
        %v4469 = vadd.f32 %v2829, %v4468
        %v4470 = vpop.f32.mrf.mxu0
        %v4471 = vadd.f32 %v2833, %v4470
        %v4472 = vpop.f32.mrf.mxu0
        %v4473 = vadd.f32 %v2829, %v4472
        %v4474 = vpop.f32.mrf.mxu0
        %v4475 = vadd.f32 %v2833, %v4474
        %4476 = vdwg.mxu0
        %4477 = vmatprep.subr.bf16.mxu0 %v3813
        %4478 = vmatpush1.bf16.msra.mxu0 %v3812
        %4479 = vmatprep.subr.bf16.mxu0 %v3805
        %4480 = vmatpush1.bf16.msra.mxu0 %v3804
        %4481 = vmatprep.subr.bf16.mxu0 %v3797
        %4482 = vmatpush1.bf16.msra.mxu0 %v3796
        %4483 = vmatprep.subr.bf16.mxu0 %v3789
        %4484 = vmatpush1.bf16.msra.mxu0 %v3788
        %4485 = vmatprep.subr.bf16.mxu0 %v3781
        %4486 = vmatpush1.bf16.msra.mxu0 %v3780
        %4487 = vmatprep.subr.bf16.mxu0 %v3773
        %4488 = vmatpush1.bf16.msra.mxu0 %v3772
        %4489 = vmatprep.subr.bf16.mxu0 %v3765
        %4490 = vmatpush1.bf16.msra.mxu0 %v3764
        %4491 = vmatprep.subr.bf16.mxu0 %v3757
        %4492 = vmatpush1.bf16.msra.mxu0 %v3756
        %4493 = vmatprep.subr.bf16.mxu0 %v3877
        %4494 = vmatpush2.bf16.msra.mxu0 %v3876
        %4495 = vmatprep.subr.bf16.mxu0 %v3869
        %4496 = vmatpush2.bf16.msra.mxu0 %v3868
        %4497 = vmatprep.subr.bf16.mxu0 %v3861
        %4498 = vmatpush2.bf16.msra.mxu0 %v3860
        %4499 = vmatprep.subr.bf16.mxu0 %v3853
        %4500 = vmatpush2.bf16.msra.mxu0 %v3852
        %4501 = vmatprep.subr.bf16.mxu0 %v3845
        %4502 = vmatpush2.bf16.msra.mxu0 %v3844
        %4503 = vmatprep.subr.bf16.mxu0 %v3837
        %4504 = vmatpush2.bf16.msra.mxu0 %v3836
        %4505 = vmatprep.subr.bf16.mxu0 %v3829
        %4506 = vmatpush2.bf16.msra.mxu0 %v3828
        %4507 = vmatprep.subr.bf16.mxu0 %v3821
        %4508 = vmatpush2.bf16.msra.mxu0 %v3820
        %4509 = vmatprep.mubr.bf16.mxu0 %v2531
        %4510 = vmatmul.mubr.bf16.gmra.mxu0 %v2530
        %v4511 = vpop.f32.mrf.mxu0
        %v4512 = vadd.f32 %v4399, %v4511
        %v4513 = vpop.f32.mrf.mxu0
        %v4514 = vadd.f32 %v4401, %v4513
        %v4515 = vpop.f32.mrf.mxu0
        %v4516 = vadd.f32 %v4403, %v4515
        %v4517 = vpop.f32.mrf.mxu0
        %v4518 = vadd.f32 %v4405, %v4517
        %4519 = vmatprep.mubr.bf16.mxu0 %v2535
        %4520 = vmatmul.mubr.bf16.gmra.mxu0 %v2534
        %v4521 = vpop.f32.mrf.mxu0
        %v4522 = vadd.f32 %v4409, %v4521
        %v4523 = vpop.f32.mrf.mxu0
        %v4524 = vadd.f32 %v4411, %v4523
        %v4525 = vpop.f32.mrf.mxu0
        %v4526 = vadd.f32 %v4413, %v4525
        %v4527 = vpop.f32.mrf.mxu0
        %v4528 = vadd.f32 %v4415, %v4527
        %4529 = vmatprep.mubr.bf16.mxu0 %v2539
        %4530 = vmatmul.mubr.bf16.gmra.mxu0 %v2538
        %v4531 = vpop.f32.mrf.mxu0
        %v4532 = vadd.f32 %v4419, %v4531
        %v4533 = vpop.f32.mrf.mxu0
        %v4534 = vadd.f32 %v4421, %v4533
        %v4535 = vpop.f32.mrf.mxu0
        %v4536 = vadd.f32 %v4423, %v4535
        %v4537 = vpop.f32.mrf.mxu0
        %v4538 = vadd.f32 %v4425, %v4537
        %4539 = vmatprep.mubr.bf16.mxu0 %v2543
        %4540 = vmatmul.mubr.bf16.gmra.mxu0 %v2542
        %v4541 = vpop.f32.mrf.mxu0
        %v4542 = vadd.f32 %v4429, %v4541
        %v4543 = vpop.f32.mrf.mxu0
        %v4544 = vadd.f32 %v4431, %v4543
        %v4545 = vpop.f32.mrf.mxu0
        %v4546 = vadd.f32 %v4433, %v4545
        %v4547 = vpop.f32.mrf.mxu0
        %v4548 = vadd.f32 %v4435, %v4547
        %4549 = vmatprep.mubr.bf16.mxu0 %v2547
        %4550 = vmatmul.mubr.bf16.gmra.mxu0 %v2546
        %v4551 = vpop.f32.mrf.mxu0
        %v4552 = vadd.f32 %v4439, %v4551
        %v4553 = vpop.f32.mrf.mxu0
        %v4554 = vadd.f32 %v4441, %v4553
        %v4555 = vpop.f32.mrf.mxu0
        %v4556 = vadd.f32 %v4443, %v4555
        %v4557 = vpop.f32.mrf.mxu0
        %v4558 = vadd.f32 %v4445, %v4557
        %4559 = vmatprep.mubr.bf16.mxu0 %v2551
        %4560 = vmatmul.mubr.bf16.gmra.mxu0 %v2550
        %v4561 = vpop.f32.mrf.mxu0
        %v4562 = vadd.f32 %v4449, %v4561
        %v4563 = vpop.f32.mrf.mxu0
        %v4564 = vadd.f32 %v4451, %v4563
        %v4565 = vpop.f32.mrf.mxu0
        %v4566 = vadd.f32 %v4453, %v4565
        %v4567 = vpop.f32.mrf.mxu0
        %v4568 = vadd.f32 %v4455, %v4567
        %4569 = vmatprep.mubr.bf16.mxu0 %v2555
        %4570 = vmatmul.mubr.bf16.gmra.mxu0 %v2554
        %v4571 = vpop.f32.mrf.mxu0
        %v4572 = vadd.f32 %v4459, %v4571
        %v4573 = vpop.f32.mrf.mxu0
        %v4574 = vadd.f32 %v4461, %v4573
        %v4575 = vpop.f32.mrf.mxu0
        %v4576 = vadd.f32 %v4463, %v4575
        %v4577 = vpop.f32.mrf.mxu0
        %v4578 = vadd.f32 %v4465, %v4577
        %4579 = vmatprep.mubr.bf16.mxu0 %v2559
        %4580 = vmatmul.mubr.bf16.gmra.mxu0 %v2558
        %v4581 = vpop.f32.mrf.mxu0
        %v4582 = vadd.f32 %v4469, %v4581
        %v4583 = vpop.f32.mrf.mxu0
        %v4584 = vadd.f32 %v4471, %v4583
        %v4585 = vpop.f32.mrf.mxu0
        %v4586 = vadd.f32 %v4473, %v4585
        %v4587 = vpop.f32.mrf.mxu0
        %v4588 = vadd.f32 %v4475, %v4587
        %4589 = vdwg.mxu0
        %4590 = vmatprep.subr.bf16.mxu0 %v3687
        %4591 = vmatpush1.bf16.msra.mxu0 %v3686
        %4592 = vmatprep.subr.bf16.mxu0 %v3679
        %4593 = vmatpush1.bf16.msra.mxu0 %v3678
        %4594 = vmatprep.subr.bf16.mxu0 %v3671
        %4595 = vmatpush1.bf16.msra.mxu0 %v3670
        %4596 = vmatprep.subr.bf16.mxu0 %v3663
        %4597 = vmatpush1.bf16.msra.mxu0 %v3662
        %4598 = vmatprep.subr.bf16.mxu0 %v3655
        %4599 = vmatpush1.bf16.msra.mxu0 %v3654
        %4600 = vmatprep.subr.bf16.mxu0 %v3647
        %4601 = vmatpush1.bf16.msra.mxu0 %v3646
        %4602 = vmatprep.subr.bf16.mxu0 %v3639
        %4603 = vmatpush1.bf16.msra.mxu0 %v3638
        %4604 = vmatprep.subr.bf16.mxu0 %v3631
        %4605 = vmatpush1.bf16.msra.mxu0 %v3630
        %4606 = vmatprep.subr.bf16.mxu0 %v3751
        %4607 = vmatpush2.bf16.msra.mxu0 %v3750
        %4608 = vmatprep.subr.bf16.mxu0 %v3743
        %4609 = vmatpush2.bf16.msra.mxu0 %v3742
        %4610 = vmatprep.subr.bf16.mxu0 %v3735
        %4611 = vmatpush2.bf16.msra.mxu0 %v3734
        %4612 = vmatprep.subr.bf16.mxu0 %v3727
        %4613 = vmatpush2.bf16.msra.mxu0 %v3726
        %4614 = vmatprep.subr.bf16.mxu0 %v3719
        %4615 = vmatpush2.bf16.msra.mxu0 %v3718
        %4616 = vmatprep.subr.bf16.mxu0 %v3711
        %4617 = vmatpush2.bf16.msra.mxu0 %v3710
        %4618 = vmatprep.subr.bf16.mxu0 %v3703
        %4619 = vmatpush2.bf16.msra.mxu0 %v3702
        %4620 = vmatprep.subr.bf16.mxu0 %v3695
        %4621 = vmatpush2.bf16.msra.mxu0 %v3694
        %4622 = vmatprep.mubr.bf16.mxu0 %v2529
        %4623 = vmatmul.mubr.bf16.gmra.mxu0 %v2528
        %v4624 = vpop.f32.mrf.mxu0
        %v4625 = vadd.f32 %v2837, %v4624
        %v4626 = vpop.f32.mrf.mxu0
        %v4627 = vadd.f32 %v2841, %v4626
        %v4628 = vpop.f32.mrf.mxu0
        %v4629 = vadd.f32 %v2837, %v4628
        %v4630 = vpop.f32.mrf.mxu0
        %v4631 = vadd.f32 %v2841, %v4630
        %4632 = vmatprep.mubr.bf16.mxu0 %v2533
        %4633 = vmatmul.mubr.bf16.gmra.mxu0 %v2532
        %v4634 = vpop.f32.mrf.mxu0
        %v4635 = vadd.f32 %v2837, %v4634
        %v4636 = vpop.f32.mrf.mxu0
        %v4637 = vadd.f32 %v2841, %v4636
        %v4638 = vpop.f32.mrf.mxu0
        %v4639 = vadd.f32 %v2837, %v4638
        %v4640 = vpop.f32.mrf.mxu0
        %v4641 = vadd.f32 %v2841, %v4640
        %4642 = vmatprep.mubr.bf16.mxu0 %v2537
        %4643 = vmatmul.mubr.bf16.gmra.mxu0 %v2536
        %v4644 = vpop.f32.mrf.mxu0
        %v4645 = vadd.f32 %v2837, %v4644
        %v4646 = vpop.f32.mrf.mxu0
        %v4647 = vadd.f32 %v2841, %v4646
        %v4648 = vpop.f32.mrf.mxu0
        %v4649 = vadd.f32 %v2837, %v4648
        %v4650 = vpop.f32.mrf.mxu0
        %v4651 = vadd.f32 %v2841, %v4650
        %4652 = vmatprep.mubr.bf16.mxu0 %v2541
        %4653 = vmatmul.mubr.bf16.gmra.mxu0 %v2540
        %v4654 = vpop.f32.mrf.mxu0
        %v4655 = vadd.f32 %v2837, %v4654
        %v4656 = vpop.f32.mrf.mxu0
        %v4657 = vadd.f32 %v2841, %v4656
        %v4658 = vpop.f32.mrf.mxu0
        %v4659 = vadd.f32 %v2837, %v4658
        %v4660 = vpop.f32.mrf.mxu0
        %v4661 = vadd.f32 %v2841, %v4660
        %4662 = vmatprep.mubr.bf16.mxu0 %v2545
        %4663 = vmatmul.mubr.bf16.gmra.mxu0 %v2544
        %v4664 = vpop.f32.mrf.mxu0
        %v4665 = vadd.f32 %v2837, %v4664
        %v4666 = vpop.f32.mrf.mxu0
        %v4667 = vadd.f32 %v2841, %v4666
        %v4668 = vpop.f32.mrf.mxu0
        %v4669 = vadd.f32 %v2837, %v4668
        %v4670 = vpop.f32.mrf.mxu0
        %v4671 = vadd.f32 %v2841, %v4670
        %4672 = vmatprep.mubr.bf16.mxu0 %v2549
        %4673 = vmatmul.mubr.bf16.gmra.mxu0 %v2548
        %v4674 = vpop.f32.mrf.mxu0
        %v4675 = vadd.f32 %v2837, %v4674
        %v4676 = vpop.f32.mrf.mxu0
        %v4677 = vadd.f32 %v2841, %v4676
        %v4678 = vpop.f32.mrf.mxu0
        %v4679 = vadd.f32 %v2837, %v4678
        %v4680 = vpop.f32.mrf.mxu0
        %v4681 = vadd.f32 %v2841, %v4680
        %4682 = vmatprep.mubr.bf16.mxu0 %v2553
        %4683 = vmatmul.mubr.bf16.gmra.mxu0 %v2552
        %v4684 = vpop.f32.mrf.mxu0
        %v4685 = vadd.f32 %v2837, %v4684
        %v4686 = vpop.f32.mrf.mxu0
        %v4687 = vadd.f32 %v2841, %v4686
        %v4688 = vpop.f32.mrf.mxu0
        %v4689 = vadd.f32 %v2837, %v4688
        %v4690 = vpop.f32.mrf.mxu0
        %v4691 = vadd.f32 %v2841, %v4690
        %4692 = vmatprep.mubr.bf16.mxu0 %v2557
        %4693 = vmatmul.mubr.bf16.gmra.mxu0 %v2556
        %v4694 = vpop.f32.mrf.mxu0
        %v4695 = vadd.f32 %v2837, %v4694
        %v4696 = vpop.f32.mrf.mxu0
        %v4697 = vadd.f32 %v2841, %v4696
        %v4698 = vpop.f32.mrf.mxu0
        %v4699 = vadd.f32 %v2837, %v4698
        %v4700 = vpop.f32.mrf.mxu0
        %v4701 = vadd.f32 %v2841, %v4700
        %4702 = vdwg.mxu0
        %4703 = vmatprep.subr.bf16.mxu0 %v3815
        %4704 = vmatpush1.bf16.msra.mxu0 %v3814
        %4705 = vmatprep.subr.bf16.mxu0 %v3807
        %4706 = vmatpush1.bf16.msra.mxu0 %v3806
        %4707 = vmatprep.subr.bf16.mxu0 %v3799
        %4708 = vmatpush1.bf16.msra.mxu0 %v3798
        %4709 = vmatprep.subr.bf16.mxu0 %v3791
        %4710 = vmatpush1.bf16.msra.mxu0 %v3790
        %4711 = vmatprep.subr.bf16.mxu0 %v3783
        %4712 = vmatpush1.bf16.msra.mxu0 %v3782
        %4713 = vmatprep.subr.bf16.mxu0 %v3775
        %4714 = vmatpush1.bf16.msra.mxu0 %v3774
        %4715 = vmatprep.subr.bf16.mxu0 %v3767
        %4716 = vmatpush1.bf16.msra.mxu0 %v3766
        %4717 = vmatprep.subr.bf16.mxu0 %v3759
        %4718 = vmatpush1.bf16.msra.mxu0 %v3758
        %4719 = vmatprep.subr.bf16.mxu0 %v3879
        %4720 = vmatpush2.bf16.msra.mxu0 %v3878
        %4721 = vmatprep.subr.bf16.mxu0 %v3871
        %4722 = vmatpush2.bf16.msra.mxu0 %v3870
        %4723 = vmatprep.subr.bf16.mxu0 %v3863
        %4724 = vmatpush2.bf16.msra.mxu0 %v3862
        %4725 = vmatprep.subr.bf16.mxu0 %v3855
        %4726 = vmatpush2.bf16.msra.mxu0 %v3854
        %4727 = vmatprep.subr.bf16.mxu0 %v3847
        %4728 = vmatpush2.bf16.msra.mxu0 %v3846
        %4729 = vmatprep.subr.bf16.mxu0 %v3839
        %4730 = vmatpush2.bf16.msra.mxu0 %v3838
        %4731 = vmatprep.subr.bf16.mxu0 %v3831
        %4732 = vmatpush2.bf16.msra.mxu0 %v3830
        %4733 = vmatprep.subr.bf16.mxu0 %v3823
        %4734 = vmatpush2.bf16.msra.mxu0 %v3822
        %4735 = vmatprep.mubr.bf16.mxu0 %v2531
        %4736 = vmatmul.mubr.bf16.gmra.mxu0 %v2530
        %v4737 = vpop.f32.mrf.mxu0
        %v4738 = vadd.f32 %v4625, %v4737
        %v4739 = vpop.f32.mrf.mxu0
        %v4740 = vadd.f32 %v4627, %v4739
        %v4741 = vpop.f32.mrf.mxu0
        %v4742 = vadd.f32 %v4629, %v4741
        %v4743 = vpop.f32.mrf.mxu0
        %v4744 = vadd.f32 %v4631, %v4743
        %4745 = vmatprep.mubr.bf16.mxu0 %v2535
        %4746 = vmatmul.mubr.bf16.gmra.mxu0 %v2534
        %v4747 = vpop.f32.mrf.mxu0
        %v4748 = vadd.f32 %v4635, %v4747
        %v4749 = vpop.f32.mrf.mxu0
        %v4750 = vadd.f32 %v4637, %v4749
        %v4751 = vpop.f32.mrf.mxu0
        %v4752 = vadd.f32 %v4639, %v4751
        %v4753 = vpop.f32.mrf.mxu0
        %v4754 = vadd.f32 %v4641, %v4753
        %4755 = vmatprep.mubr.bf16.mxu0 %v2539
        %4756 = vmatmul.mubr.bf16.gmra.mxu0 %v2538
        %v4757 = vpop.f32.mrf.mxu0
        %v4758 = vadd.f32 %v4645, %v4757
        %v4759 = vpop.f32.mrf.mxu0
        %v4760 = vadd.f32 %v4647, %v4759
        %v4761 = vpop.f32.mrf.mxu0
        %v4762 = vadd.f32 %v4649, %v4761
        %v4763 = vpop.f32.mrf.mxu0
        %v4764 = vadd.f32 %v4651, %v4763
        %4765 = vmatprep.mubr.bf16.mxu0 %v2543
        %4766 = vmatmul.mubr.bf16.gmra.mxu0 %v2542
        %v4767 = vpop.f32.mrf.mxu0
        %v4768 = vadd.f32 %v4655, %v4767
        %v4769 = vpop.f32.mrf.mxu0
        %v4770 = vadd.f32 %v4657, %v4769
        %v4771 = vpop.f32.mrf.mxu0
        %v4772 = vadd.f32 %v4659, %v4771
        %v4773 = vpop.f32.mrf.mxu0
        %v4774 = vadd.f32 %v4661, %v4773
        %4775 = vmatprep.mubr.bf16.mxu0 %v2547
        %4776 = vmatmul.mubr.bf16.gmra.mxu0 %v2546
        %v4777 = vpop.f32.mrf.mxu0
        %v4778 = vadd.f32 %v4665, %v4777
        %v4779 = vpop.f32.mrf.mxu0
        %v4780 = vadd.f32 %v4667, %v4779
        %v4781 = vpop.f32.mrf.mxu0
        %v4782 = vadd.f32 %v4669, %v4781
        %v4783 = vpop.f32.mrf.mxu0
        %v4784 = vadd.f32 %v4671, %v4783
        %4785 = vmatprep.mubr.bf16.mxu0 %v2551
        %4786 = vmatmul.mubr.bf16.gmra.mxu0 %v2550
        %v4787 = vpop.f32.mrf.mxu0
        %v4788 = vadd.f32 %v4675, %v4787
        %v4789 = vpop.f32.mrf.mxu0
        %v4790 = vadd.f32 %v4677, %v4789
        %v4791 = vpop.f32.mrf.mxu0
        %v4792 = vadd.f32 %v4679, %v4791
        %v4793 = vpop.f32.mrf.mxu0
        %v4794 = vadd.f32 %v4681, %v4793
        %4795 = vmatprep.mubr.bf16.mxu0 %v2555
        %4796 = vmatmul.mubr.bf16.gmra.mxu0 %v2554
        %v4797 = vpop.f32.mrf.mxu0
        %v4798 = vadd.f32 %v4685, %v4797
        %v4799 = vpop.f32.mrf.mxu0
        %v4800 = vadd.f32 %v4687, %v4799
        %v4801 = vpop.f32.mrf.mxu0
        %v4802 = vadd.f32 %v4689, %v4801
        %v4803 = vpop.f32.mrf.mxu0
        %v4804 = vadd.f32 %v4691, %v4803
        %4805 = vmatprep.mubr.bf16.mxu0 %v2559
        %4806 = vmatmul.mubr.bf16.gmra.mxu0 %v2558
        %v4807 = vpop.f32.mrf.mxu0
        %v4808 = vadd.f32 %v4695, %v4807
        %v4809 = vpop.f32.mrf.mxu0
        %v4810 = vadd.f32 %v4697, %v4809
        %v4811 = vpop.f32.mrf.mxu0
        %v4812 = vadd.f32 %v4699, %v4811
        %v4813 = vpop.f32.mrf.mxu0
        %v4814 = vadd.f32 %v4701, %v4813
        %4815 = vdwg.mxu0
        %4816 = vmatprep.subr.bf16.mxu0 %v3689
        %4817 = vmatpush1.bf16.msra.mxu0 %v3688
        %4818 = vmatprep.subr.bf16.mxu0 %v3681
        %4819 = vmatpush1.bf16.msra.mxu0 %v3680
        %4820 = vmatprep.subr.bf16.mxu0 %v3673
        %4821 = vmatpush1.bf16.msra.mxu0 %v3672
        %4822 = vmatprep.subr.bf16.mxu0 %v3665
        %4823 = vmatpush1.bf16.msra.mxu0 %v3664
        %4824 = vmatprep.subr.bf16.mxu0 %v3657
        %4825 = vmatpush1.bf16.msra.mxu0 %v3656
        %4826 = vmatprep.subr.bf16.mxu0 %v3649
        %4827 = vmatpush1.bf16.msra.mxu0 %v3648
        %4828 = vmatprep.subr.bf16.mxu0 %v3641
        %4829 = vmatpush1.bf16.msra.mxu0 %v3640
        %4830 = vmatprep.subr.bf16.mxu0 %v3633
        %4831 = vmatpush1.bf16.msra.mxu0 %v3632
        %4832 = vmatprep.subr.bf16.mxu0 %v3753
        %4833 = vmatpush2.bf16.msra.mxu0 %v3752
        %4834 = vmatprep.subr.bf16.mxu0 %v3745
        %4835 = vmatpush2.bf16.msra.mxu0 %v3744
        %4836 = vmatprep.subr.bf16.mxu0 %v3737
        %4837 = vmatpush2.bf16.msra.mxu0 %v3736
        %4838 = vmatprep.subr.bf16.mxu0 %v3729
        %4839 = vmatpush2.bf16.msra.mxu0 %v3728
        %4840 = vmatprep.subr.bf16.mxu0 %v3721
        %4841 = vmatpush2.bf16.msra.mxu0 %v3720
        %4842 = vmatprep.subr.bf16.mxu0 %v3713
        %4843 = vmatpush2.bf16.msra.mxu0 %v3712
        %4844 = vmatprep.subr.bf16.mxu0 %v3705
        %4845 = vmatpush2.bf16.msra.mxu0 %v3704
        %4846 = vmatprep.subr.bf16.mxu0 %v3697
        %4847 = vmatpush2.bf16.msra.mxu0 %v3696
        %4848 = vmatprep.mubr.bf16.mxu0 %v2529
        %4849 = vmatmul.mubr.bf16.gmra.mxu0 %v2528
        %v4850 = vpop.f32.mrf.mxu0
        %v4851 = vadd.f32 %v2845, %v4850
        %v4852 = vpop.f32.mrf.mxu0
        %v4853 = vadd.f32 %v2849, %v4852
        %v4854 = vpop.f32.mrf.mxu0
        %v4855 = vadd.f32 %v2845, %v4854
        %v4856 = vpop.f32.mrf.mxu0
        %v4857 = vadd.f32 %v2849, %v4856
        %4858 = vmatprep.mubr.bf16.mxu0 %v2533
        %4859 = vmatmul.mubr.bf16.gmra.mxu0 %v2532
        %v4860 = vpop.f32.mrf.mxu0
        %v4861 = vadd.f32 %v2845, %v4860
        %v4862 = vpop.f32.mrf.mxu0
        %v4863 = vadd.f32 %v2849, %v4862
        %v4864 = vpop.f32.mrf.mxu0
        %v4865 = vadd.f32 %v2845, %v4864
        %v4866 = vpop.f32.mrf.mxu0
        %v4867 = vadd.f32 %v2849, %v4866
        %4868 = vmatprep.mubr.bf16.mxu0 %v2537
        %4869 = vmatmul.mubr.bf16.gmra.mxu0 %v2536
        %v4870 = vpop.f32.mrf.mxu0
        %v4871 = vadd.f32 %v2845, %v4870
        %v4872 = vpop.f32.mrf.mxu0
        %v4873 = vadd.f32 %v2849, %v4872
        %v4874 = vpop.f32.mrf.mxu0
        %v4875 = vadd.f32 %v2845, %v4874
        %v4876 = vpop.f32.mrf.mxu0
        %v4877 = vadd.f32 %v2849, %v4876
        %4878 = vmatprep.mubr.bf16.mxu0 %v2541
        %4879 = vmatmul.mubr.bf16.gmra.mxu0 %v2540
        %v4880 = vpop.f32.mrf.mxu0
        %v4881 = vadd.f32 %v2845, %v4880
        %v4882 = vpop.f32.mrf.mxu0
        %v4883 = vadd.f32 %v2849, %v4882
        %v4884 = vpop.f32.mrf.mxu0
        %v4885 = vadd.f32 %v2845, %v4884
        %v4886 = vpop.f32.mrf.mxu0
        %v4887 = vadd.f32 %v2849, %v4886
        %4888 = vmatprep.mubr.bf16.mxu0 %v2545
        %4889 = vmatmul.mubr.bf16.gmra.mxu0 %v2544
        %v4890 = vpop.f32.mrf.mxu0
        %v4891 = vadd.f32 %v2845, %v4890
        %v4892 = vpop.f32.mrf.mxu0
        %v4893 = vadd.f32 %v2849, %v4892
        %v4894 = vpop.f32.mrf.mxu0
        %v4895 = vadd.f32 %v2845, %v4894
        %v4896 = vpop.f32.mrf.mxu0
        %v4897 = vadd.f32 %v2849, %v4896
        %4898 = vmatprep.mubr.bf16.mxu0 %v2549
        %4899 = vmatmul.mubr.bf16.gmra.mxu0 %v2548
        %v4900 = vpop.f32.mrf.mxu0
        %v4901 = vadd.f32 %v2845, %v4900
        %v4902 = vpop.f32.mrf.mxu0
        %v4903 = vadd.f32 %v2849, %v4902
        %v4904 = vpop.f32.mrf.mxu0
        %v4905 = vadd.f32 %v2845, %v4904
        %v4906 = vpop.f32.mrf.mxu0
        %v4907 = vadd.f32 %v2849, %v4906
        %4908 = vmatprep.mubr.bf16.mxu0 %v2553
        %4909 = vmatmul.mubr.bf16.gmra.mxu0 %v2552
        %v4910 = vpop.f32.mrf.mxu0
        %v4911 = vadd.f32 %v2845, %v4910
        %v4912 = vpop.f32.mrf.mxu0
        %v4913 = vadd.f32 %v2849, %v4912
        %v4914 = vpop.f32.mrf.mxu0
        %v4915 = vadd.f32 %v2845, %v4914
        %v4916 = vpop.f32.mrf.mxu0
        %v4917 = vadd.f32 %v2849, %v4916
        %4918 = vmatprep.mubr.bf16.mxu0 %v2557
        %4919 = vmatmul.mubr.bf16.gmra.mxu0 %v2556
        %v4920 = vpop.f32.mrf.mxu0
        %v4921 = vadd.f32 %v2845, %v4920
        %v4922 = vpop.f32.mrf.mxu0
        %v4923 = vadd.f32 %v2849, %v4922
        %v4924 = vpop.f32.mrf.mxu0
        %v4925 = vadd.f32 %v2845, %v4924
        %v4926 = vpop.f32.mrf.mxu0
        %v4927 = vadd.f32 %v2849, %v4926
        %4928 = vdwg.mxu0
        %4929 = vmatprep.subr.bf16.mxu0 %v3817
        %4930 = vmatpush1.bf16.msra.mxu0 %v3816
        %4931 = vmatprep.subr.bf16.mxu0 %v3809
        %4932 = vmatpush1.bf16.msra.mxu0 %v3808
        %4933 = vmatprep.subr.bf16.mxu0 %v3801
        %4934 = vmatpush1.bf16.msra.mxu0 %v3800
        %4935 = vmatprep.subr.bf16.mxu0 %v3793
        %4936 = vmatpush1.bf16.msra.mxu0 %v3792
        %4937 = vmatprep.subr.bf16.mxu0 %v3785
        %4938 = vmatpush1.bf16.msra.mxu0 %v3784
        %4939 = vmatprep.subr.bf16.mxu0 %v3777
        %4940 = vmatpush1.bf16.msra.mxu0 %v3776
        %4941 = vmatprep.subr.bf16.mxu0 %v3769
        %4942 = vmatpush1.bf16.msra.mxu0 %v3768
        %4943 = vmatprep.subr.bf16.mxu0 %v3761
        %4944 = vmatpush1.bf16.msra.mxu0 %v3760
        %4945 = vmatprep.subr.bf16.mxu0 %v3881
        %4946 = vmatpush2.bf16.msra.mxu0 %v3880
        %4947 = vmatprep.subr.bf16.mxu0 %v3873
        %4948 = vmatpush2.bf16.msra.mxu0 %v3872
        %4949 = vmatprep.subr.bf16.mxu0 %v3865
        %4950 = vmatpush2.bf16.msra.mxu0 %v3864
        %4951 = vmatprep.subr.bf16.mxu0 %v3857
        %4952 = vmatpush2.bf16.msra.mxu0 %v3856
        %4953 = vmatprep.subr.bf16.mxu0 %v3849
        %4954 = vmatpush2.bf16.msra.mxu0 %v3848
        %4955 = vmatprep.subr.bf16.mxu0 %v3841
        %4956 = vmatpush2.bf16.msra.mxu0 %v3840
        %4957 = vmatprep.subr.bf16.mxu0 %v3833
        %4958 = vmatpush2.bf16.msra.mxu0 %v3832
        %4959 = vmatprep.subr.bf16.mxu0 %v3825
        %4960 = vmatpush2.bf16.msra.mxu0 %v3824
        %4961 = vmatprep.mubr.bf16.mxu0 %v2531
        %4962 = vmatmul.mubr.bf16.gmra.mxu0 %v2530
        %v4963 = vpop.f32.mrf.mxu0
        %v4964 = vadd.f32 %v4851, %v4963
        %v4965 = vpop.f32.mrf.mxu0
        %v4966 = vadd.f32 %v4853, %v4965
        %v4967 = vpop.f32.mrf.mxu0
        %v4968 = vadd.f32 %v4855, %v4967
        %v4969 = vpop.f32.mrf.mxu0
        %v4970 = vadd.f32 %v4857, %v4969
        %4971 = vmatprep.mubr.bf16.mxu0 %v2535
        %4972 = vmatmul.mubr.bf16.gmra.mxu0 %v2534
        %v4973 = vpop.f32.mrf.mxu0
        %v4974 = vadd.f32 %v4861, %v4973
        %v4975 = vpop.f32.mrf.mxu0
        %v4976 = vadd.f32 %v4863, %v4975
        %v4977 = vpop.f32.mrf.mxu0
        %v4978 = vadd.f32 %v4865, %v4977
        %v4979 = vpop.f32.mrf.mxu0
        %v4980 = vadd.f32 %v4867, %v4979
        %4981 = vmatprep.mubr.bf16.mxu0 %v2539
        %4982 = vmatmul.mubr.bf16.gmra.mxu0 %v2538
        %v4983 = vpop.f32.mrf.mxu0
        %v4984 = vadd.f32 %v4871, %v4983
        %v4985 = vpop.f32.mrf.mxu0
        %v4986 = vadd.f32 %v4873, %v4985
        %v4987 = vpop.f32.mrf.mxu0
        %v4988 = vadd.f32 %v4875, %v4987
        %v4989 = vpop.f32.mrf.mxu0
        %v4990 = vadd.f32 %v4877, %v4989
        %4991 = vmatprep.mubr.bf16.mxu0 %v2543
        %4992 = vmatmul.mubr.bf16.gmra.mxu0 %v2542
        %v4993 = vpop.f32.mrf.mxu0
        %v4994 = vadd.f32 %v4881, %v4993
        %v4995 = vpop.f32.mrf.mxu0
        %v4996 = vadd.f32 %v4883, %v4995
        %v4997 = vpop.f32.mrf.mxu0
        %v4998 = vadd.f32 %v4885, %v4997
        %v4999 = vpop.f32.mrf.mxu0
        %v5000 = vadd.f32 %v4887, %v4999
        %5001 = vmatprep.mubr.bf16.mxu0 %v2547
        %5002 = vmatmul.mubr.bf16.gmra.mxu0 %v2546
        %v5003 = vpop.f32.mrf.mxu0
        %v5004 = vadd.f32 %v4891, %v5003
        %v5005 = vpop.f32.mrf.mxu0
        %v5006 = vadd.f32 %v4893, %v5005
        %v5007 = vpop.f32.mrf.mxu0
        %v5008 = vadd.f32 %v4895, %v5007
        %v5009 = vpop.f32.mrf.mxu0
        %v5010 = vadd.f32 %v4897, %v5009
        %5011 = vmatprep.mubr.bf16.mxu0 %v2551
        %5012 = vmatmul.mubr.bf16.gmra.mxu0 %v2550
        %v5013 = vpop.f32.mrf.mxu0
        %v5014 = vadd.f32 %v4901, %v5013
        %v5015 = vpop.f32.mrf.mxu0
        %v5016 = vadd.f32 %v4903, %v5015
        %v5017 = vpop.f32.mrf.mxu0
        %v5018 = vadd.f32 %v4905, %v5017
        %v5019 = vpop.f32.mrf.mxu0
        %v5020 = vadd.f32 %v4907, %v5019
        %5021 = vmatprep.mubr.bf16.mxu0 %v2555
        %5022 = vmatmul.mubr.bf16.gmra.mxu0 %v2554
        %v5023 = vpop.f32.mrf.mxu0
        %v5024 = vadd.f32 %v4911, %v5023
        %v5025 = vpop.f32.mrf.mxu0
        %v5026 = vadd.f32 %v4913, %v5025
        %v5027 = vpop.f32.mrf.mxu0
        %v5028 = vadd.f32 %v4915, %v5027
        %v5029 = vpop.f32.mrf.mxu0
        %v5030 = vadd.f32 %v4917, %v5029
        %5031 = vmatprep.mubr.bf16.mxu0 %v2559
        %5032 = vmatmul.mubr.bf16.gmra.mxu0 %v2558
        %v5033 = vpop.f32.mrf.mxu0
        %v5034 = vadd.f32 %v4921, %v5033
        %v5035 = vpop.f32.mrf.mxu0
        %v5036 = vadd.f32 %v4923, %v5035
        %v5037 = vpop.f32.mrf.mxu0
        %v5038 = vadd.f32 %v4925, %v5037
        %v5039 = vpop.f32.mrf.mxu0
        %v5040 = vadd.f32 %v4927, %v5039
        %5041 = vdwg.mxu0
        %v5042 = vld [vmem:[%s7 + $0x1a] sm:$0xff]
        %v5043 = vld [vmem:[%s7 + $0x22] sm:$0xff]
        %v5044 = vadd.f32 %v4286, %v4290
        %v5045 = vadd.f32 %v5044, %v4296
        %v5046 = vadd.f32 %v5045, %v4300
        %v5047 = vadd.f32 %v5046, %v4306
        %v5048 = vadd.f32 %v5047, %v4310
        %v5049 = vadd.f32 %v5048, %v4316
        %v5050 = vadd.f32 %v5049, %v4320
        %v5051 = vadd.f32 %v5050, %v4326
        %v5052 = vadd.f32 %v5051, %v4330
        %v5053 = vadd.f32 %v5052, %v4336
        %v5054 = vadd.f32 %v5053, %v4340
        %v5055 = vadd.f32 %v5054, %v4346
        %v5056 = vadd.f32 %v5055, %v4350
        %v5057 = vadd.f32 %v5056, %v4356
        %v5058 = vadd.f32 %v5057, %v4360
        %v5059 = vrot.slane %v5058, 4
        %v5060 = vadd.f32 %v5058, %v5059
        %v5061 = vrot.slane %v5060, 2
        %v5062 = vadd.f32 %v5060, %v5061
        %v5063 = vrot.slane %v5062, 1
        %v5064 = vadd.f32 %v5062, %v5063
        %v5065 = vadd.f32 %v4288, %v4292
        %v5066 = vadd.f32 %v5065, %v4298
        %v5067 = vadd.f32 %v5066, %v4302
        %v5068 = vadd.f32 %v5067, %v4308
        %v5069 = vadd.f32 %v5068, %v4312
        %v5070 = vadd.f32 %v5069, %v4318
        %v5071 = vadd.f32 %v5070, %v4322
        %v5072 = vadd.f32 %v5071, %v4328
        %v5073 = vadd.f32 %v5072, %v4332
        %v5074 = vadd.f32 %v5073, %v4338
        %v5075 = vadd.f32 %v5074, %v4342
        %v5076 = vadd.f32 %v5075, %v4348
        %v5077 = vadd.f32 %v5076, %v4352
        %v5078 = vadd.f32 %v5077, %v4358
        %v5079 = vadd.f32 %v5078, %v4362
        %v5080 = vrot.slane %v5079, 4
        %v5081 = vadd.f32 %v5079, %v5080
        %v5082 = vrot.slane %v5081, 2
        %v5083 = vadd.f32 %v5081, %v5082
        %v5084 = vrot.slane %v5083, 1
        %v5085 = vadd.f32 %v5083, %v5084
        %v5086 = vadd.f32 %v4512, %v4516
        %v5087 = vadd.f32 %v5086, %v4522
        %v5088 = vadd.f32 %v5087, %v4526
        %v5089 = vadd.f32 %v5088, %v4532
        %v5090 = vadd.f32 %v5089, %v4536
        %v5091 = vadd.f32 %v5090, %v4542
        %v5092 = vadd.f32 %v5091, %v4546
        %v5093 = vadd.f32 %v5092, %v4552
        %v5094 = vadd.f32 %v5093, %v4556
        %v5095 = vadd.f32 %v5094, %v4562
        %v5096 = vadd.f32 %v5095, %v4566
        %v5097 = vadd.f32 %v5096, %v4572
        %v5098 = vadd.f32 %v5097, %v4576
        %v5099 = vadd.f32 %v5098, %v4582
        %v5100 = vadd.f32 %v5099, %v4586
        %v5101 = vrot.slane %v5100, 4
        %v5102 = vadd.f32 %v5100, %v5101
        %v5103 = vrot.slane %v5102, 2
        %v5104 = vadd.f32 %v5102, %v5103
        %v5105 = vrot.slane %v5104, 1
        %v5106 = vadd.f32 %v5104, %v5105
        %v5107 = vadd.f32 %v4514, %v4518
        %v5108 = vadd.f32 %v5107, %v4524
        %v5109 = vadd.f32 %v5108, %v4528
        %v5110 = vadd.f32 %v5109, %v4534
        %v5111 = vadd.f32 %v5110, %v4538
        %v5112 = vadd.f32 %v5111, %v4544
        %v5113 = vadd.f32 %v5112, %v4548
        %v5114 = vadd.f32 %v5113, %v4554
        %v5115 = vadd.f32 %v5114, %v4558
        %v5116 = vadd.f32 %v5115, %v4564
        %v5117 = vadd.f32 %v5116, %v4568
        %v5118 = vadd.f32 %v5117, %v4574
        %v5119 = vadd.f32 %v5118, %v4578
        %v5120 = vadd.f32 %v5119, %v4584
        %v5121 = vadd.f32 %v5120, %v4588
        %v5122 = vrot.slane %v5121, 4
        %v5123 = vadd.f32 %v5121, %v5122
        %v5124 = vrot.slane %v5123, 2
        %v5125 = vadd.f32 %v5123, %v5124
        %v5126 = vrot.slane %v5125, 1
        %v5127 = vadd.f32 %v5125, %v5126
        %v5128 = vadd.f32 %v4738, %v4742
        %v5129 = vadd.f32 %v5128, %v4748
        %v5130 = vadd.f32 %v5129, %v4752
        %v5131 = vadd.f32 %v5130, %v4758
        %v5132 = vadd.f32 %v5131, %v4762
        %v5133 = vadd.f32 %v5132, %v4768
        %v5134 = vadd.f32 %v5133, %v4772
        %v5135 = vadd.f32 %v5134, %v4778
        %v5136 = vadd.f32 %v5135, %v4782
        %v5137 = vadd.f32 %v5136, %v4788
        %v5138 = vadd.f32 %v5137, %v4792
        %v5139 = vadd.f32 %v5138, %v4798
        %v5140 = vadd.f32 %v5139, %v4802
        %v5141 = vadd.f32 %v5140, %v4808
        %v5142 = vadd.f32 %v5141, %v4812
        %v5143 = vrot.slane %v5142, 4
        %v5144 = vadd.f32 %v5142, %v5143
        %v5145 = vrot.slane %v5144, 2
        %v5146 = vadd.f32 %v5144, %v5145
        %v5147 = vrot.slane %v5146, 1
        %v5148 = vadd.f32 %v5146, %v5147
        %v5149 = vadd.f32 %v4740, %v4744
        %v5150 = vadd.f32 %v5149, %v4750
        %v5151 = vadd.f32 %v5150, %v4754
        %v5152 = vadd.f32 %v5151, %v4760
        %v5153 = vadd.f32 %v5152, %v4764
        %v5154 = vadd.f32 %v5153, %v4770
        %v5155 = vadd.f32 %v5154, %v4774
        %v5156 = vadd.f32 %v5155, %v4780
        %v5157 = vadd.f32 %v5156, %v4784
        %v5158 = vadd.f32 %v5157, %v4790
        %v5159 = vadd.f32 %v5158, %v4794
        %v5160 = vadd.f32 %v5159, %v4800
        %v5161 = vadd.f32 %v5160, %v4804
        %v5162 = vadd.f32 %v5161, %v4810
        %v5163 = vadd.f32 %v5162, %v4814
        %v5164 = vrot.slane %v5163, 4
        %v5165 = vadd.f32 %v5163, %v5164
        %v5166 = vrot.slane %v5165, 2
        %v5167 = vadd.f32 %v5165, %v5166
        %v5168 = vrot.slane %v5167, 1
        %v5169 = vadd.f32 %v5167, %v5168
        %v5170 = vadd.f32 %v4964, %v4968
        %v5171 = vadd.f32 %v5170, %v4974
        %v5172 = vadd.f32 %v5171, %v4978
        %v5173 = vadd.f32 %v5172, %v4984
        %v5174 = vadd.f32 %v5173, %v4988
        %v5175 = vadd.f32 %v5174, %v4994
        %v5176 = vadd.f32 %v5175, %v4998
        %v5177 = vadd.f32 %v5176, %v5004
        %v5178 = vadd.f32 %v5177, %v5008
        %v5179 = vadd.f32 %v5178, %v5014
        %v5180 = vadd.f32 %v5179, %v5018
        %v5181 = vadd.f32 %v5180, %v5024
        %v5182 = vadd.f32 %v5181, %v5028
        %v5183 = vadd.f32 %v5182, %v5034
        %v5184 = vadd.f32 %v5183, %v5038
        %v5185 = vrot.slane %v5184, 4
        %v5186 = vadd.f32 %v5184, %v5185
        %v5187 = vrot.slane %v5186, 2
        %v5188 = vadd.f32 %v5186, %v5187
        %v5189 = vrot.slane %v5188, 1
        %v5190 = vadd.f32 %v5188, %v5189
        %v5191 = vadd.f32 %v4966, %v4970
        %v5192 = vadd.f32 %v5191, %v4976
        %v5193 = vadd.f32 %v5192, %v4980
        %v5194 = vadd.f32 %v5193, %v4986
        %v5195 = vadd.f32 %v5194, %v4990
        %v5196 = vadd.f32 %v5195, %v4996
        %v5197 = vadd.f32 %v5196, %v5000
        %v5198 = vadd.f32 %v5197, %v5006
        %v5199 = vadd.f32 %v5198, %v5010
        %v5200 = vadd.f32 %v5199, %v5016
        %v5201 = vadd.f32 %v5200, %v5020
        %v5202 = vadd.f32 %v5201, %v5026
        %v5203 = vadd.f32 %v5202, %v5030
        %v5204 = vadd.f32 %v5203, %v5036
        %v5205 = vadd.f32 %v5204, %v5040
        %v5206 = vrot.slane %v5205, 4
        %v5207 = vadd.f32 %v5205, %v5206
        %v5208 = vrot.slane %v5207, 2
        %v5209 = vadd.f32 %v5207, %v5208
        %v5210 = vrot.slane %v5209, 1
        %v5211 = vadd.f32 %v5209, %v5210
        %v5212 = vmul.f32 %v5064, 0.0078125
        %v5213 = vmul.f32 %v5085, 0.0078125
        %v5214 = vmul.f32 %v5106, 0.0078125
        %v5215 = vmul.f32 %v5127, 0.0078125
        %v5216 = vmul.f32 %v5148, 0.0078125
        %v5217 = vmul.f32 %v5169, 0.0078125
        %v5218 = vmul.f32 %v5190, 0.0078125
        %v5219 = vmul.f32 %v5211, 0.0078125
        %v5220 = vmul.f32 %v4286, %v4286
        %v5221 = vmul.f32 %v4288, %v4288
        %v5222 = vmul.f32 %v4512, %v4512
        %v5223 = vmul.f32 %v4514, %v4514
        %v5224 = vmul.f32 %v4738, %v4738
        %v5225 = vmul.f32 %v4740, %v4740
        %v5226 = vmul.f32 %v4964, %v4964
        %v5227 = vmul.f32 %v4966, %v4966
        %v5228 = vmul.f32 %v4290, %v4290
        %v5229 = vmul.f32 %v4292, %v4292
        %v5230 = vmul.f32 %v4516, %v4516
        %v5231 = vmul.f32 %v4518, %v4518
        %v5232 = vmul.f32 %v4742, %v4742
        %v5233 = vmul.f32 %v4744, %v4744
        %v5234 = vmul.f32 %v4968, %v4968
        %v5235 = vmul.f32 %v4970, %v4970
        %v5236 = vmul.f32 %v4296, %v4296
        %v5237 = vmul.f32 %v4298, %v4298
        %v5238 = vmul.f32 %v4522, %v4522
        %v5239 = vmul.f32 %v4524, %v4524
        %v5240 = vmul.f32 %v4748, %v4748
        %v5241 = vmul.f32 %v4750, %v4750
        %v5242 = vmul.f32 %v4974, %v4974
        %v5243 = vmul.f32 %v4976, %v4976
        %v5244 = vmul.f32 %v4300, %v4300
        %v5245 = vmul.f32 %v4302, %v4302
        %v5246 = vmul.f32 %v4526, %v4526
        %v5247 = vmul.f32 %v4528, %v4528
        %v5248 = vmul.f32 %v4752, %v4752
        %v5249 = vmul.f32 %v4754, %v4754
        %v5250 = vmul.f32 %v4978, %v4978
        %v5251 = vmul.f32 %v4980, %v4980
        %v5252 = vmul.f32 %v4306, %v4306
        %v5253 = vmul.f32 %v4308, %v4308
        %v5254 = vmul.f32 %v4532, %v4532
        %v5255 = vmul.f32 %v4534, %v4534
        %v5256 = vmul.f32 %v4758, %v4758
        %v5257 = vmul.f32 %v4760, %v4760
        %v5258 = vmul.f32 %v4984, %v4984
        %v5259 = vmul.f32 %v4986, %v4986
        %v5260 = vmul.f32 %v4310, %v4310
        %v5261 = vmul.f32 %v4312, %v4312
        %v5262 = vmul.f32 %v4536, %v4536
        %v5263 = vmul.f32 %v4538, %v4538
        %v5264 = vmul.f32 %v4762, %v4762
        %v5265 = vmul.f32 %v4764, %v4764
        %v5266 = vmul.f32 %v4988, %v4988
        %v5267 = vmul.f32 %v4990, %v4990
        %v5268 = vmul.f32 %v4316, %v4316
        %v5269 = vmul.f32 %v4318, %v4318
        %v5270 = vmul.f32 %v4542, %v4542
        %v5271 = vmul.f32 %v4544, %v4544
        %v5272 = vmul.f32 %v4768, %v4768
        %v5273 = vmul.f32 %v4770, %v4770
        %v5274 = vmul.f32 %v4994, %v4994
        %v5275 = vmul.f32 %v4996, %v4996
        %v5276 = vmul.f32 %v4320, %v4320
        %v5277 = vmul.f32 %v4322, %v4322
        %v5278 = vmul.f32 %v4546, %v4546
        %v5279 = vmul.f32 %v4548, %v4548
        %v5280 = vmul.f32 %v4772, %v4772
        %v5281 = vmul.f32 %v4774, %v4774
        %v5282 = vmul.f32 %v4998, %v4998
        %v5283 = vmul.f32 %v5000, %v5000
        %v5284 = vmul.f32 %v4326, %v4326
        %v5285 = vmul.f32 %v4328, %v4328
        %v5286 = vmul.f32 %v4552, %v4552
        %v5287 = vmul.f32 %v4554, %v4554
        %v5288 = vmul.f32 %v4778, %v4778
        %v5289 = vmul.f32 %v4780, %v4780
        %v5290 = vmul.f32 %v5004, %v5004
        %v5291 = vmul.f32 %v5006, %v5006
        %v5292 = vmul.f32 %v4330, %v4330
        %v5293 = vmul.f32 %v4332, %v4332
        %v5294 = vmul.f32 %v4556, %v4556
        %v5295 = vmul.f32 %v4558, %v4558
        %v5296 = vmul.f32 %v4782, %v4782
        %v5297 = vmul.f32 %v4784, %v4784
        %v5298 = vmul.f32 %v5008, %v5008
        %v5299 = vmul.f32 %v5010, %v5010
        %v5300 = vmul.f32 %v4336, %v4336
        %v5301 = vmul.f32 %v4338, %v4338
        %v5302 = vmul.f32 %v4562, %v4562
        %v5303 = vmul.f32 %v4564, %v4564
        %v5304 = vmul.f32 %v4788, %v4788
        %v5305 = vmul.f32 %v4790, %v4790
        %v5306 = vmul.f32 %v5014, %v5014
        %v5307 = vmul.f32 %v5016, %v5016
        %v5308 = vmul.f32 %v4340, %v4340
        %v5309 = vmul.f32 %v4342, %v4342
        %v5310 = vmul.f32 %v4566, %v4566
        %v5311 = vmul.f32 %v4568, %v4568
        %v5312 = vmul.f32 %v4792, %v4792
        %v5313 = vmul.f32 %v4794, %v4794
        %v5314 = vmul.f32 %v5018, %v5018
        %v5315 = vmul.f32 %v5020, %v5020
        %v5316 = vmul.f32 %v4346, %v4346
        %v5317 = vmul.f32 %v4348, %v4348
        %v5318 = vmul.f32 %v4572, %v4572
        %v5319 = vmul.f32 %v4574, %v4574
        %v5320 = vmul.f32 %v4798, %v4798
        %v5321 = vmul.f32 %v4800, %v4800
        %v5322 = vmul.f32 %v5024, %v5024
        %v5323 = vmul.f32 %v5026, %v5026
        %v5324 = vmul.f32 %v4350, %v4350
        %v5325 = vmul.f32 %v4352, %v4352
        %v5326 = vmul.f32 %v4576, %v4576
        %v5327 = vmul.f32 %v4578, %v4578
        %v5328 = vmul.f32 %v4802, %v4802
        %v5329 = vmul.f32 %v4804, %v4804
        %v5330 = vmul.f32 %v5028, %v5028
        %v5331 = vmul.f32 %v5030, %v5030
        %v5332 = vmul.f32 %v4356, %v4356
        %v5333 = vmul.f32 %v4358, %v4358
        %v5334 = vmul.f32 %v4582, %v4582
        %v5335 = vmul.f32 %v4584, %v4584
        %v5336 = vmul.f32 %v4808, %v4808
        %v5337 = vmul.f32 %v4810, %v4810
        %v5338 = vmul.f32 %v5034, %v5034
        %v5339 = vmul.f32 %v5036, %v5036
        %v5340 = vmul.f32 %v4360, %v4360
        %v5341 = vmul.f32 %v4362, %v4362
        %v5342 = vmul.f32 %v4586, %v4586
        %v5343 = vmul.f32 %v4588, %v4588
        %v5344 = vmul.f32 %v4812, %v4812
        %v5345 = vmul.f32 %v4814, %v4814
        %v5346 = vmul.f32 %v5038, %v5038
        %v5347 = vmul.f32 %v5040, %v5040
        %v5348 = vadd.f32 %v5220, %v5228
        %v5349 = vadd.f32 %v5348, %v5236
        %v5350 = vadd.f32 %v5349, %v5244
        %v5351 = vadd.f32 %v5350, %v5252
        %v5352 = vadd.f32 %v5351, %v5260
        %v5353 = vadd.f32 %v5352, %v5268
        %v5354 = vadd.f32 %v5353, %v5276
        %v5355 = vadd.f32 %v5354, %v5284
        %v5356 = vadd.f32 %v5355, %v5292
        %v5357 = vadd.f32 %v5356, %v5300
        %v5358 = vadd.f32 %v5357, %v5308
        %v5359 = vadd.f32 %v5358, %v5316
        %v5360 = vadd.f32 %v5359, %v5324
        %v5361 = vadd.f32 %v5360, %v5332
        %v5362 = vadd.f32 %v5361, %v5340
        %v5363 = vrot.slane %v5362, 4
        %v5364 = vadd.f32 %v5362, %v5363
        %v5365 = vrot.slane %v5364, 2
        %v5366 = vadd.f32 %v5364, %v5365
        %v5367 = vrot.slane %v5366, 1
        %v5368 = vadd.f32 %v5366, %v5367
        %v5369 = vadd.f32 %v5221, %v5229
        %v5370 = vadd.f32 %v5369, %v5237
        %v5371 = vadd.f32 %v5370, %v5245
        %v5372 = vadd.f32 %v5371, %v5253
        %v5373 = vadd.f32 %v5372, %v5261
        %v5374 = vadd.f32 %v5373, %v5269
        %v5375 = vadd.f32 %v5374, %v5277
        %v5376 = vadd.f32 %v5375, %v5285
        %v5377 = vadd.f32 %v5376, %v5293
        %v5378 = vadd.f32 %v5377, %v5301
        %v5379 = vadd.f32 %v5378, %v5309
        %v5380 = vadd.f32 %v5379, %v5317
        %v5381 = vadd.f32 %v5380, %v5325
        %v5382 = vadd.f32 %v5381, %v5333
        %v5383 = vadd.f32 %v5382, %v5341
        %v5384 = vrot.slane %v5383, 4
        %v5385 = vadd.f32 %v5383, %v5384
        %v5386 = vrot.slane %v5385, 2
        %v5387 = vadd.f32 %v5385, %v5386
        %v5388 = vrot.slane %v5387, 1
        %v5389 = vadd.f32 %v5387, %v5388
        %v5390 = vadd.f32 %v5222, %v5230
        %v5391 = vadd.f32 %v5390, %v5238
        %v5392 = vadd.f32 %v5391, %v5246
        %v5393 = vadd.f32 %v5392, %v5254
        %v5394 = vadd.f32 %v5393, %v5262
        %v5395 = vadd.f32 %v5394, %v5270
        %v5396 = vadd.f32 %v5395, %v5278
        %v5397 = vadd.f32 %v5396, %v5286
        %v5398 = vadd.f32 %v5397, %v5294
        %v5399 = vadd.f32 %v5398, %v5302
        %v5400 = vadd.f32 %v5399, %v5310
        %v5401 = vadd.f32 %v5400, %v5318
        %v5402 = vadd.f32 %v5401, %v5326
        %v5403 = vadd.f32 %v5402, %v5334
        %v5404 = vadd.f32 %v5403, %v5342
        %v5405 = vrot.slane %v5404, 4
        %v5406 = vadd.f32 %v5404, %v5405
        %v5407 = vrot.slane %v5406, 2
        %v5408 = vadd.f32 %v5406, %v5407
        %v5409 = vrot.slane %v5408, 1
        %v5410 = vadd.f32 %v5408, %v5409
        %v5411 = vadd.f32 %v5223, %v5231
        %v5412 = vadd.f32 %v5411, %v5239
        %v5413 = vadd.f32 %v5412, %v5247
        %v5414 = vadd.f32 %v5413, %v5255
        %v5415 = vadd.f32 %v5414, %v5263
        %v5416 = vadd.f32 %v5415, %v5271
        %v5417 = vadd.f32 %v5416, %v5279
        %v5418 = vadd.f32 %v5417, %v5287
        %v5419 = vadd.f32 %v5418, %v5295
        %v5420 = vadd.f32 %v5419, %v5303
        %v5421 = vadd.f32 %v5420, %v5311
        %v5422 = vadd.f32 %v5421, %v5319
        %v5423 = vadd.f32 %v5422, %v5327
        %v5424 = vadd.f32 %v5423, %v5335
        %v5425 = vadd.f32 %v5424, %v5343
        %v5426 = vrot.slane %v5425, 4
        %v5427 = vadd.f32 %v5425, %v5426
        %v5428 = vrot.slane %v5427, 2
        %v5429 = vadd.f32 %v5427, %v5428
        %v5430 = vrot.slane %v5429, 1
        %v5431 = vadd.f32 %v5429, %v5430
        %v5432 = vadd.f32 %v5224, %v5232
        %v5433 = vadd.f32 %v5432, %v5240
        %v5434 = vadd.f32 %v5433, %v5248
        %v5435 = vadd.f32 %v5434, %v5256
        %v5436 = vadd.f32 %v5435, %v5264
        %v5437 = vadd.f32 %v5436, %v5272
        %v5438 = vadd.f32 %v5437, %v5280
        %v5439 = vadd.f32 %v5438, %v5288
        %v5440 = vadd.f32 %v5439, %v5296
        %v5441 = vadd.f32 %v5440, %v5304
        %v5442 = vadd.f32 %v5441, %v5312
        %v5443 = vadd.f32 %v5442, %v5320
        %v5444 = vadd.f32 %v5443, %v5328
        %v5445 = vadd.f32 %v5444, %v5336
        %v5446 = vadd.f32 %v5445, %v5344
        %v5447 = vrot.slane %v5446, 4
        %v5448 = vadd.f32 %v5446, %v5447
        %v5449 = vrot.slane %v5448, 2
        %v5450 = vadd.f32 %v5448, %v5449
        %v5451 = vrot.slane %v5450, 1
        %v5452 = vadd.f32 %v5450, %v5451
        %v5453 = vadd.f32 %v5225, %v5233
        %v5454 = vadd.f32 %v5453, %v5241
        %v5455 = vadd.f32 %v5454, %v5249
        %v5456 = vadd.f32 %v5455, %v5257
        %v5457 = vadd.f32 %v5456, %v5265
        %v5458 = vadd.f32 %v5457, %v5273
        %v5459 = vadd.f32 %v5458, %v5281
        %v5460 = vadd.f32 %v5459, %v5289
        %v5461 = vadd.f32 %v5460, %v5297
        %v5462 = vadd.f32 %v5461, %v5305
        %v5463 = vadd.f32 %v5462, %v5313
        %v5464 = vadd.f32 %v5463, %v5321
        %v5465 = vadd.f32 %v5464, %v5329
        %v5466 = vadd.f32 %v5465, %v5337
        %v5467 = vadd.f32 %v5466, %v5345
        %v5468 = vrot.slane %v5467, 4
        %v5469 = vadd.f32 %v5467, %v5468
        %v5470 = vrot.slane %v5469, 2
        %v5471 = vadd.f32 %v5469, %v5470
        %v5472 = vrot.slane %v5471, 1
        %v5473 = vadd.f32 %v5471, %v5472
        %v5474 = vadd.f32 %v5226, %v5234
        %v5475 = vadd.f32 %v5474, %v5242
        %v5476 = vadd.f32 %v5475, %v5250
        %v5477 = vadd.f32 %v5476, %v5258
        %v5478 = vadd.f32 %v5477, %v5266
        %v5479 = vadd.f32 %v5478, %v5274
        %v5480 = vadd.f32 %v5479, %v5282
        %v5481 = vadd.f32 %v5480, %v5290
        %v5482 = vadd.f32 %v5481, %v5298
        %v5483 = vadd.f32 %v5482, %v5306
        %v5484 = vadd.f32 %v5483, %v5314
        %v5485 = vadd.f32 %v5484, %v5322
        %v5486 = vadd.f32 %v5485, %v5330
        %v5487 = vadd.f32 %v5486, %v5338
        %v5488 = vadd.f32 %v5487, %v5346
        %v5489 = vrot.slane %v5488, 4
        %v5490 = vadd.f32 %v5488, %v5489
        %v5491 = vrot.slane %v5490, 2
        %v5492 = vadd.f32 %v5490, %v5491
        %v5493 = vrot.slane %v5492, 1
        %v5494 = vadd.f32 %v5492, %v5493
        %v5495 = vadd.f32 %v5227, %v5235
        %v5496 = vadd.f32 %v5495, %v5243
        %v5497 = vadd.f32 %v5496, %v5251
        %v5498 = vadd.f32 %v5497, %v5259
        %v5499 = vadd.f32 %v5498, %v5267
        %v5500 = vadd.f32 %v5499, %v5275
        %v5501 = vadd.f32 %v5500, %v5283
        %v5502 = vadd.f32 %v5501, %v5291
        %v5503 = vadd.f32 %v5502, %v5299
        %v5504 = vadd.f32 %v5503, %v5307
        %v5505 = vadd.f32 %v5504, %v5315
        %v5506 = vadd.f32 %v5505, %v5323
        %v5507 = vadd.f32 %v5506, %v5331
        %v5508 = vadd.f32 %v5507, %v5339
        %v5509 = vadd.f32 %v5508, %v5347
        %v5510 = vrot.slane %v5509, 4
        %v5511 = vadd.f32 %v5509, %v5510
        %v5512 = vrot.slane %v5511, 2
        %v5513 = vadd.f32 %v5511, %v5512
        %v5514 = vrot.slane %v5513, 1
        %v5515 = vadd.f32 %v5513, %v5514
        %v5516 = vmul.f32 %v5368, 0.0078125
        %v5517 = vmul.f32 %v5389, 0.0078125
        %v5518 = vmul.f32 %v5410, 0.0078125
        %v5519 = vmul.f32 %v5431, 0.0078125
        %v5520 = vmul.f32 %v5452, 0.0078125
        %v5521 = vmul.f32 %v5473, 0.0078125
        %v5522 = vmul.f32 %v5494, 0.0078125
        %v5523 = vmul.f32 %v5515, 0.0078125
        %v5524 = vmul.f32 %v5212, %v5212
        %v5525 = vmul.f32 %v5213, %v5213
        %v5526 = vmul.f32 %v5214, %v5214
        %v5527 = vmul.f32 %v5215, %v5215
        %v5528 = vmul.f32 %v5216, %v5216
        %v5529 = vmul.f32 %v5217, %v5217
        %v5530 = vmul.f32 %v5218, %v5218
        %v5531 = vmul.f32 %v5219, %v5219
        %v5532 = vsub.f32 %v5516, %v5524
        %v5533 = vsub.f32 %v5517, %v5525
        %v5534 = vsub.f32 %v5518, %v5526
        %v5535 = vsub.f32 %v5519, %v5527
        %v5536 = vsub.f32 %v5520, %v5528
        %v5537 = vsub.f32 %v5521, %v5529
        %v5538 = vsub.f32 %v5522, %v5530
        %v5539 = vsub.f32 %v5523, %v5531
        %v5540 = vadd.f32 %v5532, 0.8
        %v5541 = vadd.f32 %v5533, 0.8
        %v5542 = vadd.f32 %v5534, 0.8
        %v5543 = vadd.f32 %v5535, 0.8
        %v5544 = vadd.f32 %v5536, 0.8
        %v5545 = vadd.f32 %v5537, 0.8
        %v5546 = vadd.f32 %v5538, 0.8
        %v5547 = vadd.f32 %v5539, 0.8
        %v5548 = vrsqrt.pop %v5540
        %v5549 = vrsqrt.pop %v5541
        %v5550 = vrsqrt.pop %v5542
        %v5551 = vrsqrt.pop %v5543
        %v5552 = vrsqrt.pop %v5544
        %v5553 = vrsqrt.pop %v5545
        %v5554 = vrsqrt.pop %v5546
        %v5555 = vrsqrt.pop %v5547
        %v5564 = vcombine.low %v5548, %v5549
        %v5565 = vcombine.low %v5550, %v5551
        %v5566 = vcombine.low %v5552, %v5553
        %v5567 = vcombine.low %v5554, %v5555
        %v5569 = vunpack.c.l.s4 1966171168
        %v5570 = vunpack.c.0.s8 %v5569
        %v5571 = vlaneseq
        %v5572 = vshrl.u32 %v5571, 7
        %v5573 = vsub.s32 %v5570, %v5572
        %v5574 = vrot.slane %v5564, %v5573
        %v5576 = vunpack.c.l.s4 1966171168
        %v5577 = vunpack.c.0.s8 %v5576
        %v5578 = vlaneseq
        %v5579 = vshrl.u32 %v5578, 7
        %v5580 = vsub.s32 %v5577, %v5579
        %v5581 = vrot.slane %v5565, %v5580
        %v5583 = vunpack.c.l.s4 1966171168
        %v5584 = vunpack.c.0.s8 %v5583
        %v5585 = vlaneseq
        %v5586 = vshrl.u32 %v5585, 7
        %v5587 = vsub.s32 %v5584, %v5586
        %v5588 = vrot.slane %v5566, %v5587
        %v5590 = vunpack.c.l.s4 1966171168
        %v5591 = vunpack.c.0.s8 %v5590
        %v5592 = vlaneseq
        %v5593 = vshrl.u32 %v5592, 7
        %v5594 = vsub.s32 %v5591, %v5593
        %v5595 = vrot.slane %v5567, %v5594
        %v5596 = vcombine.low %v5574, %v5581
        %v5597 = vcombine.low %v5588, %v5595
        %v5599 = vunpack.c.l.s4 1966171168
        %v5600 = vunpack.c.0.s8 %v5599
        %v5601 = vlaneseq
        %v5602 = vshrl.u32 %v5601, 7
        %v5603 = vsub.s32 %v5600, %v5602
        %v5604 = vrot.slane %v5596, %v5603
        %v5606 = vunpack.c.l.s4 1966171168
        %v5607 = vunpack.c.0.s8 %v5606
        %v5608 = vlaneseq
        %v5609 = vshrl.u32 %v5608, 7
        %v5610 = vsub.s32 %v5607, %v5609
        %v5611 = vrot.slane %v5597, %v5610
        %v5612 = vcombine.low %v5604, %v5611
        %v5614 = vmul.f32 %v5042, %v5612
        %v5616 = vlaneseq
        %v5617 = vshrl.u32 %v5616, 7
        %v5618 = vsub.s32 0, %v5617
        %v5619 = vrot.slane %v5614, %v5618
        %v5620 = vlaneseq
        %v5621 = vshrl.u32 %v5620, 7
        %v5622 = vsub.s32 1, %v5621
        %v5623 = vrot.slane %v5614, %v5622
        %v5624 = vlaneseq
        %v5625 = vshrl.u32 %v5624, 7
        %v5626 = vsub.s32 2, %v5625
        %v5627 = vrot.slane %v5614, %v5626
        %v5628 = vlaneseq
        %v5629 = vshrl.u32 %v5628, 7
        %v5630 = vsub.s32 3, %v5629
        %v5631 = vrot.slane %v5614, %v5630
        %v5632 = vlaneseq
        %v5633 = vshrl.u32 %v5632, 7
        %v5634 = vsub.s32 4, %v5633
        %v5635 = vrot.slane %v5614, %v5634
        %v5636 = vlaneseq
        %v5637 = vshrl.u32 %v5636, 7
        %v5638 = vsub.s32 5, %v5637
        %v5639 = vrot.slane %v5614, %v5638
        %v5640 = vlaneseq
        %v5641 = vshrl.u32 %v5640, 7
        %v5642 = vsub.s32 6, %v5641
        %v5643 = vrot.slane %v5614, %v5642
        %v5644 = vlaneseq
        %v5645 = vshrl.u32 %v5644, 7
        %v5646 = vsub.s32 7, %v5645
        %v5647 = vrot.slane %v5614, %v5646
        %v5656 = vmul.f32 %v4286, %v5619
        %v5657 = vmul.f32 %v4288, %v5623
        %v5658 = vmul.f32 %v4512, %v5627
        %v5659 = vmul.f32 %v4514, %v5631
        %v5660 = vmul.f32 %v4738, %v5635
        %v5661 = vmul.f32 %v4740, %v5639
        %v5662 = vmul.f32 %v4964, %v5643
        %v5663 = vmul.f32 %v4966, %v5647
        %v5664 = vmul.f32 %v4290, %v5619
        %v5665 = vmul.f32 %v4292, %v5623
        %v5666 = vmul.f32 %v4516, %v5627
        %v5667 = vmul.f32 %v4518, %v5631
        %v5668 = vmul.f32 %v4742, %v5635
        %v5669 = vmul.f32 %v4744, %v5639
        %v5670 = vmul.f32 %v4968, %v5643
        %v5671 = vmul.f32 %v4970, %v5647
        %v5672 = vmul.f32 %v4296, %v5619
        %v5673 = vmul.f32 %v4298, %v5623
        %v5674 = vmul.f32 %v4522, %v5627
        %v5675 = vmul.f32 %v4524, %v5631
        %v5676 = vmul.f32 %v4748, %v5635
        %v5677 = vmul.f32 %v4750, %v5639
        %v5678 = vmul.f32 %v4974, %v5643
        %v5679 = vmul.f32 %v4976, %v5647
        %v5680 = vmul.f32 %v4300, %v5619
        %v5681 = vmul.f32 %v4302, %v5623
        %v5682 = vmul.f32 %v4526, %v5627
        %v5683 = vmul.f32 %v4528, %v5631
        %v5684 = vmul.f32 %v4752, %v5635
        %v5685 = vmul.f32 %v4754, %v5639
        %v5686 = vmul.f32 %v4978, %v5643
        %v5687 = vmul.f32 %v4980, %v5647
        %v5688 = vmul.f32 %v4306, %v5619
        %v5689 = vmul.f32 %v4308, %v5623
        %v5690 = vmul.f32 %v4532, %v5627
        %v5691 = vmul.f32 %v4534, %v5631
        %v5692 = vmul.f32 %v4758, %v5635
        %v5693 = vmul.f32 %v4760, %v5639
        %v5694 = vmul.f32 %v4984, %v5643
        %v5695 = vmul.f32 %v4986, %v5647
        %v5696 = vmul.f32 %v4310, %v5619
        %v5697 = vmul.f32 %v4312, %v5623
        %v5698 = vmul.f32 %v4536, %v5627
        %v5699 = vmul.f32 %v4538, %v5631
        %v5700 = vmul.f32 %v4762, %v5635
        %v5701 = vmul.f32 %v4764, %v5639
        %v5702 = vmul.f32 %v4988, %v5643
        %v5703 = vmul.f32 %v4990, %v5647
        %v5704 = vmul.f32 %v4316, %v5619
        %v5705 = vmul.f32 %v4318, %v5623
        %v5706 = vmul.f32 %v4542, %v5627
        %v5707 = vmul.f32 %v4544, %v5631
        %v5708 = vmul.f32 %v4768, %v5635
        %v5709 = vmul.f32 %v4770, %v5639
        %v5710 = vmul.f32 %v4994, %v5643
        %v5711 = vmul.f32 %v4996, %v5647
        %v5712 = vmul.f32 %v4320, %v5619
        %v5713 = vmul.f32 %v4322, %v5623
        %v5714 = vmul.f32 %v4546, %v5627
        %v5715 = vmul.f32 %v4548, %v5631
        %v5716 = vmul.f32 %v4772, %v5635
        %v5717 = vmul.f32 %v4774, %v5639
        %v5718 = vmul.f32 %v4998, %v5643
        %v5719 = vmul.f32 %v5000, %v5647
        %v5720 = vmul.f32 %v4326, %v5619
        %v5721 = vmul.f32 %v4328, %v5623
        %v5722 = vmul.f32 %v4552, %v5627
        %v5723 = vmul.f32 %v4554, %v5631
        %v5724 = vmul.f32 %v4778, %v5635
        %v5725 = vmul.f32 %v4780, %v5639
        %v5726 = vmul.f32 %v5004, %v5643
        %v5727 = vmul.f32 %v5006, %v5647
        %v5728 = vmul.f32 %v4330, %v5619
        %v5729 = vmul.f32 %v4332, %v5623
        %v5730 = vmul.f32 %v4556, %v5627
        %v5731 = vmul.f32 %v4558, %v5631
        %v5732 = vmul.f32 %v4782, %v5635
        %v5733 = vmul.f32 %v4784, %v5639
        %v5734 = vmul.f32 %v5008, %v5643
        %v5735 = vmul.f32 %v5010, %v5647
        %v5736 = vmul.f32 %v4336, %v5619
        %v5737 = vmul.f32 %v4338, %v5623
        %v5738 = vmul.f32 %v4562, %v5627
        %v5739 = vmul.f32 %v4564, %v5631
        %v5740 = vmul.f32 %v4788, %v5635
        %v5741 = vmul.f32 %v4790, %v5639
        %v5742 = vmul.f32 %v5014, %v5643
        %v5743 = vmul.f32 %v5016, %v5647
        %v5744 = vmul.f32 %v4340, %v5619
        %v5745 = vmul.f32 %v4342, %v5623
        %v5746 = vmul.f32 %v4566, %v5627
        %v5747 = vmul.f32 %v4568, %v5631
        %v5748 = vmul.f32 %v4792, %v5635
        %v5749 = vmul.f32 %v4794, %v5639
        %v5750 = vmul.f32 %v5018, %v5643
        %v5751 = vmul.f32 %v5020, %v5647
        %v5752 = vmul.f32 %v4346, %v5619
        %v5753 = vmul.f32 %v4348, %v5623
        %v5754 = vmul.f32 %v4572, %v5627
        %v5755 = vmul.f32 %v4574, %v5631
        %v5756 = vmul.f32 %v4798, %v5635
        %v5757 = vmul.f32 %v4800, %v5639
        %v5758 = vmul.f32 %v5024, %v5643
        %v5759 = vmul.f32 %v5026, %v5647
        %v5760 = vmul.f32 %v4350, %v5619
        %v5761 = vmul.f32 %v4352, %v5623
        %v5762 = vmul.f32 %v4576, %v5627
        %v5763 = vmul.f32 %v4578, %v5631
        %v5764 = vmul.f32 %v4802, %v5635
        %v5765 = vmul.f32 %v4804, %v5639
        %v5766 = vmul.f32 %v5028, %v5643
        %v5767 = vmul.f32 %v5030, %v5647
        %v5768 = vmul.f32 %v4356, %v5619
        %v5769 = vmul.f32 %v4358, %v5623
        %v5770 = vmul.f32 %v4582, %v5627
        %v5771 = vmul.f32 %v4584, %v5631
        %v5772 = vmul.f32 %v4808, %v5635
        %v5773 = vmul.f32 %v4810, %v5639
        %v5774 = vmul.f32 %v5034, %v5643
        %v5775 = vmul.f32 %v5036, %v5647
        %v5776 = vmul.f32 %v4360, %v5619
        %v5777 = vmul.f32 %v4362, %v5623
        %v5778 = vmul.f32 %v4586, %v5627
        %v5779 = vmul.f32 %v4588, %v5631
        %v5780 = vmul.f32 %v4812, %v5635
        %v5781 = vmul.f32 %v4814, %v5639
        %v5782 = vmul.f32 %v5038, %v5643
        %v5783 = vmul.f32 %v5040, %v5647
        %v5784 = vmul.f32 %v5212, %v5619
        %v5785 = vmul.f32 %v5213, %v5623
        %v5786 = vmul.f32 %v5214, %v5627
        %v5787 = vmul.f32 %v5215, %v5631
        %v5788 = vmul.f32 %v5216, %v5635
        %v5789 = vmul.f32 %v5217, %v5639
        %v5790 = vmul.f32 %v5218, %v5643
        %v5791 = vmul.f32 %v5219, %v5647
        %v5800 = vcombine.low %v5784, %v5785
        %v5801 = vcombine.low %v5786, %v5787
        %v5802 = vcombine.low %v5788, %v5789
        %v5803 = vcombine.low %v5790, %v5791
        %v5805 = vunpack.c.l.s4 1966171168
        %v5806 = vunpack.c.0.s8 %v5805
        %v5807 = vlaneseq
        %v5808 = vshrl.u32 %v5807, 7
        %v5809 = vsub.s32 %v5806, %v5808
        %v5810 = vrot.slane %v5800, %v5809
        %v5812 = vunpack.c.l.s4 1966171168
        %v5813 = vunpack.c.0.s8 %v5812
        %v5814 = vlaneseq
        %v5815 = vshrl.u32 %v5814, 7
        %v5816 = vsub.s32 %v5813, %v5815
        %v5817 = vrot.slane %v5801, %v5816
        %v5819 = vunpack.c.l.s4 1966171168
        %v5820 = vunpack.c.0.s8 %v5819
        %v5821 = vlaneseq
        %v5822 = vshrl.u32 %v5821, 7
        %v5823 = vsub.s32 %v5820, %v5822
        %v5824 = vrot.slane %v5802, %v5823
        %v5826 = vunpack.c.l.s4 1966171168
        %v5827 = vunpack.c.0.s8 %v5826
        %v5828 = vlaneseq
        %v5829 = vshrl.u32 %v5828, 7
        %v5830 = vsub.s32 %v5827, %v5829
        %v5831 = vrot.slane %v5803, %v5830
        %v5832 = vcombine.low %v5810, %v5817
        %v5833 = vcombine.low %v5824, %v5831
        %v5835 = vunpack.c.l.s4 1966171168
        %v5836 = vunpack.c.0.s8 %v5835
        %v5837 = vlaneseq
        %v5838 = vshrl.u32 %v5837, 7
        %v5839 = vsub.s32 %v5836, %v5838
        %v5840 = vrot.slane %v5832, %v5839
        %v5842 = vunpack.c.l.s4 1966171168
        %v5843 = vunpack.c.0.s8 %v5842
        %v5844 = vlaneseq
        %v5845 = vshrl.u32 %v5844, 7
        %v5846 = vsub.s32 %v5843, %v5845
        %v5847 = vrot.slane %v5833, %v5846
        %v5848 = vcombine.low %v5840, %v5847
        %v5850 = vsub.f32 %v5043, %v5848
        %v5852 = vlaneseq
        %v5853 = vshrl.u32 %v5852, 7
        %v5854 = vsub.s32 0, %v5853
        %v5855 = vrot.slane %v5850, %v5854
        %v5856 = vlaneseq
        %v5857 = vshrl.u32 %v5856, 7
        %v5858 = vsub.s32 1, %v5857
        %v5859 = vrot.slane %v5850, %v5858
        %v5860 = vlaneseq
        %v5861 = vshrl.u32 %v5860, 7
        %v5862 = vsub.s32 2, %v5861
        %v5863 = vrot.slane %v5850, %v5862
        %v5864 = vlaneseq
        %v5865 = vshrl.u32 %v5864, 7
        %v5866 = vsub.s32 3, %v5865
        %v5867 = vrot.slane %v5850, %v5866
        %v5868 = vlaneseq
        %v5869 = vshrl.u32 %v5868, 7
        %v5870 = vsub.s32 4, %v5869
        %v5871 = vrot.slane %v5850, %v5870
        %v5872 = vlaneseq
        %v5873 = vshrl.u32 %v5872, 7
        %v5874 = vsub.s32 5, %v5873
        %v5875 = vrot.slane %v5850, %v5874
        %v5876 = vlaneseq
        %v5877 = vshrl.u32 %v5876, 7
        %v5878 = vsub.s32 6, %v5877
        %v5879 = vrot.slane %v5850, %v5878
        %v5880 = vlaneseq
        %v5881 = vshrl.u32 %v5880, 7
        %v5882 = vsub.s32 7, %v5881
        %v5883 = vrot.slane %v5850, %v5882
        %v5892 = vadd.f32 %v5656, %v5855
        %v5893 = vadd.f32 %v5657, %v5859
        %v5894 = vadd.f32 %v5658, %v5863
        %v5895 = vadd.f32 %v5659, %v5867
        %v5896 = vadd.f32 %v5660, %v5871
        %v5897 = vadd.f32 %v5661, %v5875
        %v5898 = vadd.f32 %v5662, %v5879
        %v5899 = vadd.f32 %v5663, %v5883
        %v5900 = vadd.f32 %v5664, %v5855
        %v5901 = vadd.f32 %v5665, %v5859
        %v5902 = vadd.f32 %v5666, %v5863
        %v5903 = vadd.f32 %v5667, %v5867
        %v5904 = vadd.f32 %v5668, %v5871
        %v5905 = vadd.f32 %v5669, %v5875
        %v5906 = vadd.f32 %v5670, %v5879
        %v5907 = vadd.f32 %v5671, %v5883
        %v5908 = vadd.f32 %v5672, %v5855
        %v5909 = vadd.f32 %v5673, %v5859
        %v5910 = vadd.f32 %v5674, %v5863
        %v5911 = vadd.f32 %v5675, %v5867
        %v5912 = vadd.f32 %v5676, %v5871
        %v5913 = vadd.f32 %v5677, %v5875
        %v5914 = vadd.f32 %v5678, %v5879
        %v5915 = vadd.f32 %v5679, %v5883
        %v5916 = vadd.f32 %v5680, %v5855
        %v5917 = vadd.f32 %v5681, %v5859
        %v5918 = vadd.f32 %v5682, %v5863
        %v5919 = vadd.f32 %v5683, %v5867
        %v5920 = vadd.f32 %v5684, %v5871
        %v5921 = vadd.f32 %v5685, %v5875
        %v5922 = vadd.f32 %v5686, %v5879
        %v5923 = vadd.f32 %v5687, %v5883
        %v5924 = vadd.f32 %v5688, %v5855
        %v5925 = vadd.f32 %v5689, %v5859
        %v5926 = vadd.f32 %v5690, %v5863
        %v5927 = vadd.f32 %v5691, %v5867
        %v5928 = vadd.f32 %v5692, %v5871
        %v5929 = vadd.f32 %v5693, %v5875
        %v5930 = vadd.f32 %v5694, %v5879
        %v5931 = vadd.f32 %v5695, %v5883
        %v5932 = vadd.f32 %v5696, %v5855
        %v5933 = vadd.f32 %v5697, %v5859
        %v5934 = vadd.f32 %v5698, %v5863
        %v5935 = vadd.f32 %v5699, %v5867
        %v5936 = vadd.f32 %v5700, %v5871
        %v5937 = vadd.f32 %v5701, %v5875
        %v5938 = vadd.f32 %v5702, %v5879
        %v5939 = vadd.f32 %v5703, %v5883
        %v5940 = vadd.f32 %v5704, %v5855
        %v5941 = vadd.f32 %v5705, %v5859
        %v5942 = vadd.f32 %v5706, %v5863
        %v5943 = vadd.f32 %v5707, %v5867
        %v5944 = vadd.f32 %v5708, %v5871
        %v5945 = vadd.f32 %v5709, %v5875
        %v5946 = vadd.f32 %v5710, %v5879
        %v5947 = vadd.f32 %v5711, %v5883
        %v5948 = vadd.f32 %v5712, %v5855
        %v5949 = vadd.f32 %v5713, %v5859
        %v5950 = vadd.f32 %v5714, %v5863
        %v5951 = vadd.f32 %v5715, %v5867
        %v5952 = vadd.f32 %v5716, %v5871
        %v5953 = vadd.f32 %v5717, %v5875
        %v5954 = vadd.f32 %v5718, %v5879
        %v5955 = vadd.f32 %v5719, %v5883
        %v5956 = vadd.f32 %v5720, %v5855
        %v5957 = vadd.f32 %v5721, %v5859
        %v5958 = vadd.f32 %v5722, %v5863
        %v5959 = vadd.f32 %v5723, %v5867
        %v5960 = vadd.f32 %v5724, %v5871
        %v5961 = vadd.f32 %v5725, %v5875
        %v5962 = vadd.f32 %v5726, %v5879
        %v5963 = vadd.f32 %v5727, %v5883
        %v5964 = vadd.f32 %v5728, %v5855
        %v5965 = vadd.f32 %v5729, %v5859
        %v5966 = vadd.f32 %v5730, %v5863
        %v5967 = vadd.f32 %v5731, %v5867
        %v5968 = vadd.f32 %v5732, %v5871
        %v5969 = vadd.f32 %v5733, %v5875
        %v5970 = vadd.f32 %v5734, %v5879
        %v5971 = vadd.f32 %v5735, %v5883
        %v5972 = vadd.f32 %v5736, %v5855
        %v5973 = vadd.f32 %v5737, %v5859
        %v5974 = vadd.f32 %v5738, %v5863
        %v5975 = vadd.f32 %v5739, %v5867
        %v5976 = vadd.f32 %v5740, %v5871
        %v5977 = vadd.f32 %v5741, %v5875
        %v5978 = vadd.f32 %v5742, %v5879
        %v5979 = vadd.f32 %v5743, %v5883
        %v5980 = vadd.f32 %v5744, %v5855
        %v5981 = vadd.f32 %v5745, %v5859
        %v5982 = vadd.f32 %v5746, %v5863
        %v5983 = vadd.f32 %v5747, %v5867
        %v5984 = vadd.f32 %v5748, %v5871
        %v5985 = vadd.f32 %v5749, %v5875
        %v5986 = vadd.f32 %v5750, %v5879
        %v5987 = vadd.f32 %v5751, %v5883
        %v5988 = vadd.f32 %v5752, %v5855
        %v5989 = vadd.f32 %v5753, %v5859
        %v5990 = vadd.f32 %v5754, %v5863
        %v5991 = vadd.f32 %v5755, %v5867
        %v5992 = vadd.f32 %v5756, %v5871
        %v5993 = vadd.f32 %v5757, %v5875
        %v5994 = vadd.f32 %v5758, %v5879
        %v5995 = vadd.f32 %v5759, %v5883
        %v5996 = vadd.f32 %v5760, %v5855
        %v5997 = vadd.f32 %v5761, %v5859
        %v5998 = vadd.f32 %v5762, %v5863
        %v5999 = vadd.f32 %v5763, %v5867
        %v6000 = vadd.f32 %v5764, %v5871
        %v6001 = vadd.f32 %v5765, %v5875
        %v6002 = vadd.f32 %v5766, %v5879
        %v6003 = vadd.f32 %v5767, %v5883
        %v6004 = vadd.f32 %v5768, %v5855
        %v6005 = vadd.f32 %v5769, %v5859
        %v6006 = vadd.f32 %v5770, %v5863
        %v6007 = vadd.f32 %v5771, %v5867
        %v6008 = vadd.f32 %v5772, %v5871
        %v6009 = vadd.f32 %v5773, %v5875
        %v6010 = vadd.f32 %v5774, %v5879
        %v6011 = vadd.f32 %v5775, %v5883
        %v6012 = vadd.f32 %v5776, %v5855
        %v6013 = vadd.f32 %v5777, %v5859
        %v6014 = vadd.f32 %v5778, %v5863
        %v6015 = vadd.f32 %v5779, %v5867
        %v6016 = vadd.f32 %v5780, %v5871
        %v6017 = vadd.f32 %v5781, %v5875
        %v6018 = vadd.f32 %v5782, %v5879
        %v6019 = vadd.f32 %v5783, %v5883
        %vm6020 = vcmp.gt.f32.partialorder %v5892, 0.0
        %vm6021 = vcmp.gt.f32.partialorder %v5893, 0.0
        %vm6022 = vcmp.gt.f32.partialorder %v5894, 0.0
        %vm6023 = vcmp.gt.f32.partialorder %v5895, 0.0
        %vm6024 = vcmp.gt.f32.partialorder %v5896, 0.0
        %vm6025 = vcmp.gt.f32.partialorder %v5897, 0.0
        %vm6026 = vcmp.gt.f32.partialorder %v5898, 0.0
        %vm6027 = vcmp.gt.f32.partialorder %v5899, 0.0
        %vm6028 = vcmp.gt.f32.partialorder %v5900, 0.0
        %vm6029 = vcmp.gt.f32.partialorder %v5901, 0.0
        %vm6030 = vcmp.gt.f32.partialorder %v5902, 0.0
        %vm6031 = vcmp.gt.f32.partialorder %v5903, 0.0
        %vm6032 = vcmp.gt.f32.partialorder %v5904, 0.0
        %vm6033 = vcmp.gt.f32.partialorder %v5905, 0.0
        %vm6034 = vcmp.gt.f32.partialorder %v5906, 0.0
        %vm6035 = vcmp.gt.f32.partialorder %v5907, 0.0
        %vm6036 = vcmp.gt.f32.partialorder %v5908, 0.0
        %vm6037 = vcmp.gt.f32.partialorder %v5909, 0.0
        %vm6038 = vcmp.gt.f32.partialorder %v5910, 0.0
        %vm6039 = vcmp.gt.f32.partialorder %v5911, 0.0
        %vm6040 = vcmp.gt.f32.partialorder %v5912, 0.0
        %vm6041 = vcmp.gt.f32.partialorder %v5913, 0.0
        %vm6042 = vcmp.gt.f32.partialorder %v5914, 0.0
        %vm6043 = vcmp.gt.f32.partialorder %v5915, 0.0
        %vm6044 = vcmp.gt.f32.partialorder %v5916, 0.0
        %vm6045 = vcmp.gt.f32.partialorder %v5917, 0.0
        %vm6046 = vcmp.gt.f32.partialorder %v5918, 0.0
        %vm6047 = vcmp.gt.f32.partialorder %v5919, 0.0
        %vm6048 = vcmp.gt.f32.partialorder %v5920, 0.0
        %vm6049 = vcmp.gt.f32.partialorder %v5921, 0.0
        %vm6050 = vcmp.gt.f32.partialorder %v5922, 0.0
        %vm6051 = vcmp.gt.f32.partialorder %v5923, 0.0
        %vm6052 = vcmp.gt.f32.partialorder %v5924, 0.0
        %vm6053 = vcmp.gt.f32.partialorder %v5925, 0.0
        %vm6054 = vcmp.gt.f32.partialorder %v5926, 0.0
        %vm6055 = vcmp.gt.f32.partialorder %v5927, 0.0
        %vm6056 = vcmp.gt.f32.partialorder %v5928, 0.0
        %vm6057 = vcmp.gt.f32.partialorder %v5929, 0.0
        %vm6058 = vcmp.gt.f32.partialorder %v5930, 0.0
        %vm6059 = vcmp.gt.f32.partialorder %v5931, 0.0
        %vm6060 = vcmp.gt.f32.partialorder %v5932, 0.0
        %vm6061 = vcmp.gt.f32.partialorder %v5933, 0.0
        %vm6062 = vcmp.gt.f32.partialorder %v5934, 0.0
        %vm6063 = vcmp.gt.f32.partialorder %v5935, 0.0
        %vm6064 = vcmp.gt.f32.partialorder %v5936, 0.0
        %vm6065 = vcmp.gt.f32.partialorder %v5937, 0.0
        %vm6066 = vcmp.gt.f32.partialorder %v5938, 0.0
        %vm6067 = vcmp.gt.f32.partialorder %v5939, 0.0
        %vm6068 = vcmp.gt.f32.partialorder %v5940, 0.0
        %vm6069 = vcmp.gt.f32.partialorder %v5941, 0.0
        %vm6070 = vcmp.gt.f32.partialorder %v5942, 0.0
        %vm6071 = vcmp.gt.f32.partialorder %v5943, 0.0
        %vm6072 = vcmp.gt.f32.partialorder %v5944, 0.0
        %vm6073 = vcmp.gt.f32.partialorder %v5945, 0.0
        %vm6074 = vcmp.gt.f32.partialorder %v5946, 0.0
        %vm6075 = vcmp.gt.f32.partialorder %v5947, 0.0
        %vm6076 = vcmp.gt.f32.partialorder %v5948, 0.0
        %vm6077 = vcmp.gt.f32.partialorder %v5949, 0.0
        %vm6078 = vcmp.gt.f32.partialorder %v5950, 0.0
        %vm6079 = vcmp.gt.f32.partialorder %v5951, 0.0
        %vm6080 = vcmp.gt.f32.partialorder %v5952, 0.0
        %vm6081 = vcmp.gt.f32.partialorder %v5953, 0.0
        %vm6082 = vcmp.gt.f32.partialorder %v5954, 0.0
        %vm6083 = vcmp.gt.f32.partialorder %v5955, 0.0
        %vm6084 = vcmp.gt.f32.partialorder %v5956, 0.0
        %vm6085 = vcmp.gt.f32.partialorder %v5957, 0.0
        %vm6086 = vcmp.gt.f32.partialorder %v5958, 0.0
        %vm6087 = vcmp.gt.f32.partialorder %v5959, 0.0
        %vm6088 = vcmp.gt.f32.partialorder %v5960, 0.0
        %vm6089 = vcmp.gt.f32.partialorder %v5961, 0.0
        %vm6090 = vcmp.gt.f32.partialorder %v5962, 0.0
        %vm6091 = vcmp.gt.f32.partialorder %v5963, 0.0
        %vm6092 = vcmp.gt.f32.partialorder %v5964, 0.0
        %vm6093 = vcmp.gt.f32.partialorder %v5965, 0.0
        %vm6094 = vcmp.gt.f32.partialorder %v5966, 0.0
        %vm6095 = vcmp.gt.f32.partialorder %v5967, 0.0
        %vm6096 = vcmp.gt.f32.partialorder %v5968, 0.0
        %vm6097 = vcmp.gt.f32.partialorder %v5969, 0.0
        %vm6098 = vcmp.gt.f32.partialorder %v5970, 0.0
        %vm6099 = vcmp.gt.f32.partialorder %v5971, 0.0
        %vm6100 = vcmp.gt.f32.partialorder %v5972, 0.0
        %vm6101 = vcmp.gt.f32.partialorder %v5973, 0.0
        %vm6102 = vcmp.gt.f32.partialorder %v5974, 0.0
        %vm6103 = vcmp.gt.f32.partialorder %v5975, 0.0
        %vm6104 = vcmp.gt.f32.partialorder %v5976, 0.0
        %vm6105 = vcmp.gt.f32.partialorder %v5977, 0.0
        %vm6106 = vcmp.gt.f32.partialorder %v5978, 0.0
        %vm6107 = vcmp.gt.f32.partialorder %v5979, 0.0
        %vm6108 = vcmp.gt.f32.partialorder %v5980, 0.0
        %vm6109 = vcmp.gt.f32.partialorder %v5981, 0.0
        %vm6110 = vcmp.gt.f32.partialorder %v5982, 0.0
        %vm6111 = vcmp.gt.f32.partialorder %v5983, 0.0
        %vm6112 = vcmp.gt.f32.partialorder %v5984, 0.0
        %vm6113 = vcmp.gt.f32.partialorder %v5985, 0.0
        %vm6114 = vcmp.gt.f32.partialorder %v5986, 0.0
        %vm6115 = vcmp.gt.f32.partialorder %v5987, 0.0
        %vm6116 = vcmp.gt.f32.partialorder %v5988, 0.0
        %vm6117 = vcmp.gt.f32.partialorder %v5989, 0.0
        %vm6118 = vcmp.gt.f32.partialorder %v5990, 0.0
        %vm6119 = vcmp.gt.f32.partialorder %v5991, 0.0
        %vm6120 = vcmp.gt.f32.partialorder %v5992, 0.0
        %vm6121 = vcmp.gt.f32.partialorder %v5993, 0.0
        %vm6122 = vcmp.gt.f32.partialorder %v5994, 0.0
        %vm6123 = vcmp.gt.f32.partialorder %v5995, 0.0
        %vm6124 = vcmp.gt.f32.partialorder %v5996, 0.0
        %vm6125 = vcmp.gt.f32.partialorder %v5997, 0.0
        %vm6126 = vcmp.gt.f32.partialorder %v5998, 0.0
        %vm6127 = vcmp.gt.f32.partialorder %v5999, 0.0
        %vm6128 = vcmp.gt.f32.partialorder %v6000, 0.0
        %vm6129 = vcmp.gt.f32.partialorder %v6001, 0.0
        %vm6130 = vcmp.gt.f32.partialorder %v6002, 0.0
        %vm6131 = vcmp.gt.f32.partialorder %v6003, 0.0
        %vm6132 = vcmp.gt.f32.partialorder %v6004, 0.0
        %vm6133 = vcmp.gt.f32.partialorder %v6005, 0.0
        %vm6134 = vcmp.gt.f32.partialorder %v6006, 0.0
        %vm6135 = vcmp.gt.f32.partialorder %v6007, 0.0
        %vm6136 = vcmp.gt.f32.partialorder %v6008, 0.0
        %vm6137 = vcmp.gt.f32.partialorder %v6009, 0.0
        %vm6138 = vcmp.gt.f32.partialorder %v6010, 0.0
        %vm6139 = vcmp.gt.f32.partialorder %v6011, 0.0
        %vm6140 = vcmp.gt.f32.partialorder %v6012, 0.0
        %vm6141 = vcmp.gt.f32.partialorder %v6013, 0.0
        %vm6142 = vcmp.gt.f32.partialorder %v6014, 0.0
        %vm6143 = vcmp.gt.f32.partialorder %v6015, 0.0
        %vm6144 = vcmp.gt.f32.partialorder %v6016, 0.0
        %vm6145 = vcmp.gt.f32.partialorder %v6017, 0.0
        %vm6146 = vcmp.gt.f32.partialorder %v6018, 0.0
        %vm6147 = vcmp.gt.f32.partialorder %v6019, 0.0
        %v6148 = vmul.f32 %v5892, 0.2
        %v6149 = vmul.f32 %v5893, 0.2
        %v6150 = vmul.f32 %v5894, 0.2
        %v6151 = vmul.f32 %v5895, 0.2
        %v6152 = vmul.f32 %v5896, 0.2
        %v6153 = vmul.f32 %v5897, 0.2
        %v6154 = vmul.f32 %v5898, 0.2
        %v6155 = vmul.f32 %v5899, 0.2
        %v6156 = vmul.f32 %v5900, 0.2
        %v6157 = vmul.f32 %v5901, 0.2
        %v6158 = vmul.f32 %v5902, 0.2
        %v6159 = vmul.f32 %v5903, 0.2
        %v6160 = vmul.f32 %v5904, 0.2
        %v6161 = vmul.f32 %v5905, 0.2
        %v6162 = vmul.f32 %v5906, 0.2
        %v6163 = vmul.f32 %v5907, 0.2
        %v6164 = vmul.f32 %v5908, 0.2
        %v6165 = vmul.f32 %v5909, 0.2
        %v6166 = vmul.f32 %v5910, 0.2
        %v6167 = vmul.f32 %v5911, 0.2
        %v6168 = vmul.f32 %v5912, 0.2
        %v6169 = vmul.f32 %v5913, 0.2
        %v6170 = vmul.f32 %v5914, 0.2
        %v6171 = vmul.f32 %v5915, 0.2
        %v6172 = vmul.f32 %v5916, 0.2
        %v6173 = vmul.f32 %v5917, 0.2
        %v6174 = vmul.f32 %v5918, 0.2
        %v6175 = vmul.f32 %v5919, 0.2
        %v6176 = vmul.f32 %v5920, 0.2
        %v6177 = vmul.f32 %v5921, 0.2
        %v6178 = vmul.f32 %v5922, 0.2
        %v6179 = vmul.f32 %v5923, 0.2
        %v6180 = vmul.f32 %v5924, 0.2
        %v6181 = vmul.f32 %v5925, 0.2
        %v6182 = vmul.f32 %v5926, 0.2
        %v6183 = vmul.f32 %v5927, 0.2
        %v6184 = vmul.f32 %v5928, 0.2
        %v6185 = vmul.f32 %v5929, 0.2
        %v6186 = vmul.f32 %v5930, 0.2
        %v6187 = vmul.f32 %v5931, 0.2
        %v6188 = vmul.f32 %v5932, 0.2
        %v6189 = vmul.f32 %v5933, 0.2
        %v6190 = vmul.f32 %v5934, 0.2
        %v6191 = vmul.f32 %v5935, 0.2
        %v6192 = vmul.f32 %v5936, 0.2
        %v6193 = vmul.f32 %v5937, 0.2
        %v6194 = vmul.f32 %v5938, 0.2
        %v6195 = vmul.f32 %v5939, 0.2
        %v6196 = vmul.f32 %v5940, 0.2
        %v6197 = vmul.f32 %v5941, 0.2
        %v6198 = vmul.f32 %v5942, 0.2
        %v6199 = vmul.f32 %v5943, 0.2
        %v6200 = vmul.f32 %v5944, 0.2
        %v6201 = vmul.f32 %v5945, 0.2
        %v6202 = vmul.f32 %v5946, 0.2
        %v6203 = vmul.f32 %v5947, 0.2
        %v6204 = vmul.f32 %v5948, 0.2
        %v6205 = vmul.f32 %v5949, 0.2
        %v6206 = vmul.f32 %v5950, 0.2
        %v6207 = vmul.f32 %v5951, 0.2
        %v6208 = vmul.f32 %v5952, 0.2
        %v6209 = vmul.f32 %v5953, 0.2
        %v6210 = vmul.f32 %v5954, 0.2
        %v6211 = vmul.f32 %v5955, 0.2
        %v6212 = vmul.f32 %v5956, 0.2
        %v6213 = vmul.f32 %v5957, 0.2
        %v6214 = vmul.f32 %v5958, 0.2
        %v6215 = vmul.f32 %v5959, 0.2
        %v6216 = vmul.f32 %v5960, 0.2
        %v6217 = vmul.f32 %v5961, 0.2
        %v6218 = vmul.f32 %v5962, 0.2
        %v6219 = vmul.f32 %v5963, 0.2
        %v6220 = vmul.f32 %v5964, 0.2
        %v6221 = vmul.f32 %v5965, 0.2
        %v6222 = vmul.f32 %v5966, 0.2
        %v6223 = vmul.f32 %v5967, 0.2
        %v6224 = vmul.f32 %v5968, 0.2
        %v6225 = vmul.f32 %v5969, 0.2
        %v6226 = vmul.f32 %v5970, 0.2
        %v6227 = vmul.f32 %v5971, 0.2
        %v6228 = vmul.f32 %v5972, 0.2
        %v6229 = vmul.f32 %v5973, 0.2
        %v6230 = vmul.f32 %v5974, 0.2
        %v6231 = vmul.f32 %v5975, 0.2
        %v6232 = vmul.f32 %v5976, 0.2
        %v6233 = vmul.f32 %v5977, 0.2
        %v6234 = vmul.f32 %v5978, 0.2
        %v6235 = vmul.f32 %v5979, 0.2
        %v6236 = vmul.f32 %v5980, 0.2
        %v6237 = vmul.f32 %v5981, 0.2
        %v6238 = vmul.f32 %v5982, 0.2
        %v6239 = vmul.f32 %v5983, 0.2
        %v6240 = vmul.f32 %v5984, 0.2
        %v6241 = vmul.f32 %v5985, 0.2
        %v6242 = vmul.f32 %v5986, 0.2
        %v6243 = vmul.f32 %v5987, 0.2
        %v6244 = vmul.f32 %v5988, 0.2
        %v6245 = vmul.f32 %v5989, 0.2
        %v6246 = vmul.f32 %v5990, 0.2
        %v6247 = vmul.f32 %v5991, 0.2
        %v6248 = vmul.f32 %v5992, 0.2
        %v6249 = vmul.f32 %v5993, 0.2
        %v6250 = vmul.f32 %v5994, 0.2
        %v6251 = vmul.f32 %v5995, 0.2
        %v6252 = vmul.f32 %v5996, 0.2
        %v6253 = vmul.f32 %v5997, 0.2
        %v6254 = vmul.f32 %v5998, 0.2
        %v6255 = vmul.f32 %v5999, 0.2
        %v6256 = vmul.f32 %v6000, 0.2
        %v6257 = vmul.f32 %v6001, 0.2
        %v6258 = vmul.f32 %v6002, 0.2
        %v6259 = vmul.f32 %v6003, 0.2
        %v6260 = vmul.f32 %v6004, 0.2
        %v6261 = vmul.f32 %v6005, 0.2
        %v6262 = vmul.f32 %v6006, 0.2
        %v6263 = vmul.f32 %v6007, 0.2
        %v6264 = vmul.f32 %v6008, 0.2
        %v6265 = vmul.f32 %v6009, 0.2
        %v6266 = vmul.f32 %v6010, 0.2
        %v6267 = vmul.f32 %v6011, 0.2
        %v6268 = vmul.f32 %v6012, 0.2
        %v6269 = vmul.f32 %v6013, 0.2
        %v6270 = vmul.f32 %v6014, 0.2
        %v6271 = vmul.f32 %v6015, 0.2
        %v6272 = vmul.f32 %v6016, 0.2
        %v6273 = vmul.f32 %v6017, 0.2
        %v6274 = vmul.f32 %v6018, 0.2
        %v6275 = vmul.f32 %v6019, 0.2
        %v6276 = vsel %vm6020, %v5892, %v6148
        %v6277 = vsel %vm6021, %v5893, %v6149
        %v6278 = vsel %vm6022, %v5894, %v6150
        %v6279 = vsel %vm6023, %v5895, %v6151
        %v6280 = vsel %vm6024, %v5896, %v6152
        %v6281 = vsel %vm6025, %v5897, %v6153
        %v6282 = vsel %vm6026, %v5898, %v6154
        %v6283 = vsel %vm6027, %v5899, %v6155
        %v6284 = vsel %vm6028, %v5900, %v6156
        %v6285 = vsel %vm6029, %v5901, %v6157
        %v6286 = vsel %vm6030, %v5902, %v6158
        %v6287 = vsel %vm6031, %v5903, %v6159
        %v6288 = vsel %vm6032, %v5904, %v6160
        %v6289 = vsel %vm6033, %v5905, %v6161
        %v6290 = vsel %vm6034, %v5906, %v6162
        %v6291 = vsel %vm6035, %v5907, %v6163
        %v6292 = vsel %vm6036, %v5908, %v6164
        %v6293 = vsel %vm6037, %v5909, %v6165
        %v6294 = vsel %vm6038, %v5910, %v6166
        %v6295 = vsel %vm6039, %v5911, %v6167
        %v6296 = vsel %vm6040, %v5912, %v6168
        %v6297 = vsel %vm6041, %v5913, %v6169
        %v6298 = vsel %vm6042, %v5914, %v6170
        %v6299 = vsel %vm6043, %v5915, %v6171
        %v6300 = vsel %vm6044, %v5916, %v6172
        %v6301 = vsel %vm6045, %v5917, %v6173
        %v6302 = vsel %vm6046, %v5918, %v6174
        %v6303 = vsel %vm6047, %v5919, %v6175
        %v6304 = vsel %vm6048, %v5920, %v6176
        %v6305 = vsel %vm6049, %v5921, %v6177
        %v6306 = vsel %vm6050, %v5922, %v6178
        %v6307 = vsel %vm6051, %v5923, %v6179
        %v6308 = vsel %vm6052, %v5924, %v6180
        %v6309 = vsel %vm6053, %v5925, %v6181
        %v6310 = vsel %vm6054, %v5926, %v6182
        %v6311 = vsel %vm6055, %v5927, %v6183
        %v6312 = vsel %vm6056, %v5928, %v6184
        %v6313 = vsel %vm6057, %v5929, %v6185
        %v6314 = vsel %vm6058, %v5930, %v6186
        %v6315 = vsel %vm6059, %v5931, %v6187
        %v6316 = vsel %vm6060, %v5932, %v6188
        %v6317 = vsel %vm6061, %v5933, %v6189
        %v6318 = vsel %vm6062, %v5934, %v6190
        %v6319 = vsel %vm6063, %v5935, %v6191
        %v6320 = vsel %vm6064, %v5936, %v6192
        %v6321 = vsel %vm6065, %v5937, %v6193
        %v6322 = vsel %vm6066, %v5938, %v6194
        %v6323 = vsel %vm6067, %v5939, %v6195
        %v6324 = vsel %vm6068, %v5940, %v6196
        %v6325 = vsel %vm6069, %v5941, %v6197
        %v6326 = vsel %vm6070, %v5942, %v6198
        %v6327 = vsel %vm6071, %v5943, %v6199
        %v6328 = vsel %vm6072, %v5944, %v6200
        %v6329 = vsel %vm6073, %v5945, %v6201
        %v6330 = vsel %vm6074, %v5946, %v6202
        %v6331 = vsel %vm6075, %v5947, %v6203
        %v6332 = vsel %vm6076, %v5948, %v6204
        %v6333 = vsel %vm6077, %v5949, %v6205
        %v6334 = vsel %vm6078, %v5950, %v6206
        %v6335 = vsel %vm6079, %v5951, %v6207
        %v6336 = vsel %vm6080, %v5952, %v6208
        %v6337 = vsel %vm6081, %v5953, %v6209
        %v6338 = vsel %vm6082, %v5954, %v6210
        %v6339 = vsel %vm6083, %v5955, %v6211
        %v6340 = vsel %vm6084, %v5956, %v6212
        %v6341 = vsel %vm6085, %v5957, %v6213
        %v6342 = vsel %vm6086, %v5958, %v6214
        %v6343 = vsel %vm6087, %v5959, %v6215
        %v6344 = vsel %vm6088, %v5960, %v6216
        %v6345 = vsel %vm6089, %v5961, %v6217
        %v6346 = vsel %vm6090, %v5962, %v6218
        %v6347 = vsel %vm6091, %v5963, %v6219
        %v6348 = vsel %vm6092, %v5964, %v6220
        %v6349 = vsel %vm6093, %v5965, %v6221
        %v6350 = vsel %vm6094, %v5966, %v6222
        %v6351 = vsel %vm6095, %v5967, %v6223
        %v6352 = vsel %vm6096, %v5968, %v6224
        %v6353 = vsel %vm6097, %v5969, %v6225
        %v6354 = vsel %vm6098, %v5970, %v6226
        %v6355 = vsel %vm6099, %v5971, %v6227
        %v6356 = vsel %vm6100, %v5972, %v6228
        %v6357 = vsel %vm6101, %v5973, %v6229
        %v6358 = vsel %vm6102, %v5974, %v6230
        %v6359 = vsel %vm6103, %v5975, %v6231
        %v6360 = vsel %vm6104, %v5976, %v6232
        %v6361 = vsel %vm6105, %v5977, %v6233
        %v6362 = vsel %vm6106, %v5978, %v6234
        %v6363 = vsel %vm6107, %v5979, %v6235
        %v6364 = vsel %vm6108, %v5980, %v6236
        %v6365 = vsel %vm6109, %v5981, %v6237
        %v6366 = vsel %vm6110, %v5982, %v6238
        %v6367 = vsel %vm6111, %v5983, %v6239
        %v6368 = vsel %vm6112, %v5984, %v6240
        %v6369 = vsel %vm6113, %v5985, %v6241
        %v6370 = vsel %vm6114, %v5986, %v6242
        %v6371 = vsel %vm6115, %v5987, %v6243
        %v6372 = vsel %vm6116, %v5988, %v6244
        %v6373 = vsel %vm6117, %v5989, %v6245
        %v6374 = vsel %vm6118, %v5990, %v6246
        %v6375 = vsel %vm6119, %v5991, %v6247
        %v6376 = vsel %vm6120, %v5992, %v6248
        %v6377 = vsel %vm6121, %v5993, %v6249
        %v6378 = vsel %vm6122, %v5994, %v6250
        %v6379 = vsel %vm6123, %v5995, %v6251
        %v6380 = vsel %vm6124, %v5996, %v6252
        %v6381 = vsel %vm6125, %v5997, %v6253
        %v6382 = vsel %vm6126, %v5998, %v6254
        %v6383 = vsel %vm6127, %v5999, %v6255
        %v6384 = vsel %vm6128, %v6000, %v6256
        %v6385 = vsel %vm6129, %v6001, %v6257
        %v6386 = vsel %vm6130, %v6002, %v6258
        %v6387 = vsel %vm6131, %v6003, %v6259
        %v6388 = vsel %vm6132, %v6004, %v6260
        %v6389 = vsel %vm6133, %v6005, %v6261
        %v6390 = vsel %vm6134, %v6006, %v6262
        %v6391 = vsel %vm6135, %v6007, %v6263
        %v6392 = vsel %vm6136, %v6008, %v6264
        %v6393 = vsel %vm6137, %v6009, %v6265
        %v6394 = vsel %vm6138, %v6010, %v6266
        %v6395 = vsel %vm6139, %v6011, %v6267
        %v6396 = vsel %vm6140, %v6012, %v6268
        %v6397 = vsel %vm6141, %v6013, %v6269
        %v6398 = vsel %vm6142, %v6014, %v6270
        %v6399 = vsel %vm6143, %v6015, %v6271
        %v6400 = vsel %vm6144, %v6016, %v6272
        %v6401 = vsel %vm6145, %v6017, %v6273
        %v6402 = vsel %vm6146, %v6018, %v6274
        %v6403 = vsel %vm6147, %v6019, %v6275
        %v6404 = vpack.c.bf16 %v6284, %v6276
        %v6405 = vpack.c.bf16 %v6285, %v6277
        %v6406 = vpack.c.bf16 %v6286, %v6278
        %v6407 = vpack.c.bf16 %v6287, %v6279
        %v6408 = vpack.c.bf16 %v6288, %v6280
        %v6409 = vpack.c.bf16 %v6289, %v6281
        %v6410 = vpack.c.bf16 %v6290, %v6282
        %v6411 = vpack.c.bf16 %v6291, %v6283
        %v6412 = vpack.c.bf16 %v6300, %v6292
        %v6413 = vpack.c.bf16 %v6301, %v6293
        %v6414 = vpack.c.bf16 %v6302, %v6294
        %v6415 = vpack.c.bf16 %v6303, %v6295
        %v6416 = vpack.c.bf16 %v6304, %v6296
        %v6417 = vpack.c.bf16 %v6305, %v6297
        %v6418 = vpack.c.bf16 %v6306, %v6298
        %v6419 = vpack.c.bf16 %v6307, %v6299
        %v6420 = vpack.c.bf16 %v6316, %v6308
        %v6421 = vpack.c.bf16 %v6317, %v6309
        %v6422 = vpack.c.bf16 %v6318, %v6310
        %v6423 = vpack.c.bf16 %v6319, %v6311
        %v6424 = vpack.c.bf16 %v6320, %v6312
        %v6425 = vpack.c.bf16 %v6321, %v6313
        %v6426 = vpack.c.bf16 %v6322, %v6314
        %v6427 = vpack.c.bf16 %v6323, %v6315
        %v6428 = vpack.c.bf16 %v6332, %v6324
        %v6429 = vpack.c.bf16 %v6333, %v6325
        %v6430 = vpack.c.bf16 %v6334, %v6326
        %v6431 = vpack.c.bf16 %v6335, %v6327
        %v6432 = vpack.c.bf16 %v6336, %v6328
        %v6433 = vpack.c.bf16 %v6337, %v6329
        %v6434 = vpack.c.bf16 %v6338, %v6330
        %v6435 = vpack.c.bf16 %v6339, %v6331
        %v6436 = vpack.c.bf16 %v6348, %v6340
        %v6437 = vpack.c.bf16 %v6349, %v6341
        %v6438 = vpack.c.bf16 %v6350, %v6342
        %v6439 = vpack.c.bf16 %v6351, %v6343
        %v6440 = vpack.c.bf16 %v6352, %v6344
        %v6441 = vpack.c.bf16 %v6353, %v6345
        %v6442 = vpack.c.bf16 %v6354, %v6346
        %v6443 = vpack.c.bf16 %v6355, %v6347
        %v6444 = vpack.c.bf16 %v6364, %v6356
        %v6445 = vpack.c.bf16 %v6365, %v6357
        %v6446 = vpack.c.bf16 %v6366, %v6358
        %v6447 = vpack.c.bf16 %v6367, %v6359
        %v6448 = vpack.c.bf16 %v6368, %v6360
        %v6449 = vpack.c.bf16 %v6369, %v6361
        %v6450 = vpack.c.bf16 %v6370, %v6362
        %v6451 = vpack.c.bf16 %v6371, %v6363
        %v6452 = vpack.c.bf16 %v6380, %v6372
        %v6453 = vpack.c.bf16 %v6381, %v6373
        %v6454 = vpack.c.bf16 %v6382, %v6374
        %v6455 = vpack.c.bf16 %v6383, %v6375
        %v6456 = vpack.c.bf16 %v6384, %v6376
        %v6457 = vpack.c.bf16 %v6385, %v6377
        %v6458 = vpack.c.bf16 %v6386, %v6378
        %v6459 = vpack.c.bf16 %v6387, %v6379
        %v6460 = vpack.c.bf16 %v6396, %v6388
        %v6461 = vpack.c.bf16 %v6397, %v6389
        %v6462 = vpack.c.bf16 %v6398, %v6390
        %v6463 = vpack.c.bf16 %v6399, %v6391
        %v6464 = vpack.c.bf16 %v6400, %v6392
        %v6465 = vpack.c.bf16 %v6401, %v6393
        %v6466 = vpack.c.bf16 %v6402, %v6394
        %v6467 = vpack.c.bf16 %v6403, %v6395
        %v6468 = vld [vmem:[%s6] sm:$0xff]
        %v6469 = vld [vmem:[%s6 + $0x8] sm:$0xff]
        %v6470 = vld [vmem:[%s6 + $0x10] sm:$0xff]
        %v6471 = vld [vmem:[%s6 + $0x18] sm:$0xff]
        %v6472 = vld [vmem:[%s6 + $0x20] sm:$0xff]
        %v6473 = vld [vmem:[%s6 + $0x28] sm:$0xff]
        %v6474 = vld [vmem:[%s6 + $0x30] sm:$0xff]
        %v6475 = vld [vmem:[%s6 + $0x38] sm:$0xff]
        %v6476 = vld [vmem:[%s6 + $0x40] sm:$0xff]
        %v6477 = vld [vmem:[%s6 + $0x48] sm:$0xff]
        %v6478 = vld [vmem:[%s6 + $0x50] sm:$0xff]
        %v6479 = vld [vmem:[%s6 + $0x58] sm:$0xff]
        %v6480 = vld [vmem:[%s6 + $0x60] sm:$0xff]
        %v6481 = vld [vmem:[%s6 + $0x68] sm:$0xff]
        %v6482 = vld [vmem:[%s6 + $0x70] sm:$0xff]
        %v6483 = vld [vmem:[%s6 + $0x78] sm:$0xff]
        %v6484 = vld [vmem:[%s6 + $0x80] sm:$0xff]
        %v6485 = vld [vmem:[%s6 + $0x88] sm:$0xff]
        %v6486 = vld [vmem:[%s6 + $0x90] sm:$0xff]
        %v6487 = vld [vmem:[%s6 + $0x98] sm:$0xff]
        %v6488 = vld [vmem:[%s6 + $0xa0] sm:$0xff]
        %v6489 = vld [vmem:[%s6 + $0xa8] sm:$0xff]
        %v6490 = vld [vmem:[%s6 + $0xb0] sm:$0xff]
        %v6491 = vld [vmem:[%s6 + $0xb8] sm:$0xff]
        %v6492 = vld [vmem:[%s6 + $0xc0] sm:$0xff]
        %v6493 = vld [vmem:[%s6 + $0xc8] sm:$0xff]
        %v6494 = vld [vmem:[%s6 + $0xd0] sm:$0xff]
        %v6495 = vld [vmem:[%s6 + $0xd8] sm:$0xff]
        %v6496 = vld [vmem:[%s6 + $0xe0] sm:$0xff]
        %v6497 = vld [vmem:[%s6 + $0xe8] sm:$0xff]
        %v6498 = vld [vmem:[%s6 + $0xf0] sm:$0xff]
        %v6499 = vld [vmem:[%s6 + $0xf8] sm:$0xff]
        %v6500 = vld [vmem:[%s6 + $0x100] sm:$0xff]
        %v6501 = vld [vmem:[%s6 + $0x108] sm:$0xff]
        %v6502 = vld [vmem:[%s6 + $0x110] sm:$0xff]
        %v6503 = vld [vmem:[%s6 + $0x118] sm:$0xff]
        %v6504 = vld [vmem:[%s6 + $0x120] sm:$0xff]
        %v6505 = vld [vmem:[%s6 + $0x128] sm:$0xff]
        %v6506 = vld [vmem:[%s6 + $0x130] sm:$0xff]
        %v6507 = vld [vmem:[%s6 + $0x138] sm:$0xff]
        %v6508 = vld [vmem:[%s6 + $0x140] sm:$0xff]
        %v6509 = vld [vmem:[%s6 + $0x148] sm:$0xff]
        %v6510 = vld [vmem:[%s6 + $0x150] sm:$0xff]
        %v6511 = vld [vmem:[%s6 + $0x158] sm:$0xff]
        %v6512 = vld [vmem:[%s6 + $0x160] sm:$0xff]
        %v6513 = vld [vmem:[%s6 + $0x168] sm:$0xff]
        %v6514 = vld [vmem:[%s6 + $0x170] sm:$0xff]
        %v6515 = vld [vmem:[%s6 + $0x178] sm:$0xff]
        %v6516 = vld [vmem:[%s6 + $0x180] sm:$0xff]
        %v6517 = vld [vmem:[%s6 + $0x188] sm:$0xff]
        %v6518 = vld [vmem:[%s6 + $0x190] sm:$0xff]
        %v6519 = vld [vmem:[%s6 + $0x198] sm:$0xff]
        %v6520 = vld [vmem:[%s6 + $0x1a0] sm:$0xff]
        %v6521 = vld [vmem:[%s6 + $0x1a8] sm:$0xff]
        %v6522 = vld [vmem:[%s6 + $0x1b0] sm:$0xff]
        %v6523 = vld [vmem:[%s6 + $0x1b8] sm:$0xff]
        %v6524 = vld [vmem:[%s6 + $0x1c0] sm:$0xff]
        %v6525 = vld [vmem:[%s6 + $0x1c8] sm:$0xff]
        %v6526 = vld [vmem:[%s6 + $0x1d0] sm:$0xff]
        %v6527 = vld [vmem:[%s6 + $0x1d8] sm:$0xff]
        %v6528 = vld [vmem:[%s6 + $0x1e0] sm:$0xff]
        %v6529 = vld [vmem:[%s6 + $0x1e8] sm:$0xff]
        %v6530 = vld [vmem:[%s6 + $0x1f0] sm:$0xff]
        %v6531 = vld [vmem:[%s6 + $0x1f8] sm:$0xff]
        %v6532 = vld [vmem:[%s6 + $0x200] sm:$0xff]
        %v6533 = vld [vmem:[%s6 + $0x208] sm:$0xff]
        %v6534 = vld [vmem:[%s6 + $0x210] sm:$0xff]
        %v6535 = vld [vmem:[%s6 + $0x218] sm:$0xff]
        %v6536 = vld [vmem:[%s6 + $0x220] sm:$0xff]
        %v6537 = vld [vmem:[%s6 + $0x228] sm:$0xff]
        %v6538 = vld [vmem:[%s6 + $0x230] sm:$0xff]
        %v6539 = vld [vmem:[%s6 + $0x238] sm:$0xff]
        %v6540 = vld [vmem:[%s6 + $0x240] sm:$0xff]
        %v6541 = vld [vmem:[%s6 + $0x248] sm:$0xff]
        %v6542 = vld [vmem:[%s6 + $0x250] sm:$0xff]
        %v6543 = vld [vmem:[%s6 + $0x258] sm:$0xff]
        %v6544 = vld [vmem:[%s6 + $0x260] sm:$0xff]
        %v6545 = vld [vmem:[%s6 + $0x268] sm:$0xff]
        %v6546 = vld [vmem:[%s6 + $0x270] sm:$0xff]
        %v6547 = vld [vmem:[%s6 + $0x278] sm:$0xff]
        %v6548 = vld [vmem:[%s6 + $0x280] sm:$0xff]
        %v6549 = vld [vmem:[%s6 + $0x288] sm:$0xff]
        %v6550 = vld [vmem:[%s6 + $0x290] sm:$0xff]
        %v6551 = vld [vmem:[%s6 + $0x298] sm:$0xff]
        %v6552 = vld [vmem:[%s6 + $0x2a0] sm:$0xff]
        %v6553 = vld [vmem:[%s6 + $0x2a8] sm:$0xff]
        %v6554 = vld [vmem:[%s6 + $0x2b0] sm:$0xff]
        %v6555 = vld [vmem:[%s6 + $0x2b8] sm:$0xff]
        %v6556 = vld [vmem:[%s6 + $0x2c0] sm:$0xff]
        %v6557 = vld [vmem:[%s6 + $0x2c8] sm:$0xff]
        %v6558 = vld [vmem:[%s6 + $0x2d0] sm:$0xff]
        %v6559 = vld [vmem:[%s6 + $0x2d8] sm:$0xff]
        %v6560 = vld [vmem:[%s6 + $0x2e0] sm:$0xff]
        %v6561 = vld [vmem:[%s6 + $0x2e8] sm:$0xff]
        %v6562 = vld [vmem:[%s6 + $0x2f0] sm:$0xff]
        %v6563 = vld [vmem:[%s6 + $0x2f8] sm:$0xff]
        %v6564 = vld [vmem:[%s6 + $0x300] sm:$0xff]
        %v6565 = vld [vmem:[%s6 + $0x308] sm:$0xff]
        %v6566 = vld [vmem:[%s6 + $0x310] sm:$0xff]
        %v6567 = vld [vmem:[%s6 + $0x318] sm:$0xff]
        %v6568 = vld [vmem:[%s6 + $0x320] sm:$0xff]
        %v6569 = vld [vmem:[%s6 + $0x328] sm:$0xff]
        %v6570 = vld [vmem:[%s6 + $0x330] sm:$0xff]
        %v6571 = vld [vmem:[%s6 + $0x338] sm:$0xff]
        %v6572 = vld [vmem:[%s6 + $0x340] sm:$0xff]
        %v6573 = vld [vmem:[%s6 + $0x348] sm:$0xff]
        %v6574 = vld [vmem:[%s6 + $0x350] sm:$0xff]
        %v6575 = vld [vmem:[%s6 + $0x358] sm:$0xff]
        %v6576 = vld [vmem:[%s6 + $0x360] sm:$0xff]
        %v6577 = vld [vmem:[%s6 + $0x368] sm:$0xff]
        %v6578 = vld [vmem:[%s6 + $0x370] sm:$0xff]
        %v6579 = vld [vmem:[%s6 + $0x378] sm:$0xff]
        %v6580 = vld [vmem:[%s6 + $0x380] sm:$0xff]
        %v6581 = vld [vmem:[%s6 + $0x388] sm:$0xff]
        %v6582 = vld [vmem:[%s6 + $0x390] sm:$0xff]
        %v6583 = vld [vmem:[%s6 + $0x398] sm:$0xff]
        %v6584 = vld [vmem:[%s6 + $0x3a0] sm:$0xff]
        %v6585 = vld [vmem:[%s6 + $0x3a8] sm:$0xff]
        %v6586 = vld [vmem:[%s6 + $0x3b0] sm:$0xff]
        %v6587 = vld [vmem:[%s6 + $0x3b8] sm:$0xff]
        %v6588 = vld [vmem:[%s6 + $0x3c0] sm:$0xff]
        %v6589 = vld [vmem:[%s6 + $0x3c8] sm:$0xff]
        %v6590 = vld [vmem:[%s6 + $0x3d0] sm:$0xff]
        %v6591 = vld [vmem:[%s6 + $0x3d8] sm:$0xff]
        %v6592 = vld [vmem:[%s6 + $0x3e0] sm:$0xff]
        %v6593 = vld [vmem:[%s6 + $0x3e8] sm:$0xff]
        %v6594 = vld [vmem:[%s6 + $0x3f0] sm:$0xff]
        %v6595 = vld [vmem:[%s6 + $0x3f8] sm:$0xff]
        %v6596 = vld [vmem:[%s7 + $0x2a] sm:$0x3]
        %v6598 = vlaneseq
        %v6599 = vshrl.u32 %v6598, 7
        %v6600 = vsub.s32 0, %v6599
        %v6601 = vrot.slane %v6596, %v6600
        %v6602 = vlaneseq
        %v6603 = vshrl.u32 %v6602, 7
        %v6604 = vsub.s32 1, %v6603
        %v6605 = vrot.slane %v6596, %v6604
        %v6736 = vunpack.c.l.b16 %v6468
        %v6737 = vunpack.c.h.b16 %v6468
        %v6738 = vunpack.c.l.b16 %v6469
        %v6739 = vunpack.c.h.b16 %v6469
        %v6740 = vunpack.c.l.b16 %v6470
        %v6741 = vunpack.c.h.b16 %v6470
        %v6742 = vunpack.c.l.b16 %v6471
        %v6743 = vunpack.c.h.b16 %v6471
        %v6744 = vunpack.c.l.b16 %v6472
        %v6745 = vunpack.c.h.b16 %v6472
        %v6746 = vunpack.c.l.b16 %v6473
        %v6747 = vunpack.c.h.b16 %v6473
        %v6748 = vunpack.c.l.b16 %v6474
        %v6749 = vunpack.c.h.b16 %v6474
        %v6750 = vunpack.c.l.b16 %v6475
        %v6751 = vunpack.c.h.b16 %v6475
        %v6752 = vunpack.c.l.b16 %v6476
        %v6753 = vunpack.c.h.b16 %v6476
        %v6754 = vunpack.c.l.b16 %v6477
        %v6755 = vunpack.c.h.b16 %v6477
        %v6756 = vunpack.c.l.b16 %v6478
        %v6757 = vunpack.c.h.b16 %v6478
        %v6758 = vunpack.c.l.b16 %v6479
        %v6759 = vunpack.c.h.b16 %v6479
        %v6760 = vunpack.c.l.b16 %v6480
        %v6761 = vunpack.c.h.b16 %v6480
        %v6762 = vunpack.c.l.b16 %v6481
        %v6763 = vunpack.c.h.b16 %v6481
        %v6764 = vunpack.c.l.b16 %v6482
        %v6765 = vunpack.c.h.b16 %v6482
        %v6766 = vunpack.c.l.b16 %v6483
        %v6767 = vunpack.c.h.b16 %v6483
        %v6768 = vunpack.c.l.b16 %v6484
        %v6769 = vunpack.c.h.b16 %v6484
        %v6770 = vunpack.c.l.b16 %v6485
        %v6771 = vunpack.c.h.b16 %v6485
        %v6772 = vunpack.c.l.b16 %v6486
        %v6773 = vunpack.c.h.b16 %v6486
        %v6774 = vunpack.c.l.b16 %v6487
        %v6775 = vunpack.c.h.b16 %v6487
        %v6776 = vunpack.c.l.b16 %v6488
        %v6777 = vunpack.c.h.b16 %v6488
        %v6778 = vunpack.c.l.b16 %v6489
        %v6779 = vunpack.c.h.b16 %v6489
        %v6780 = vunpack.c.l.b16 %v6490
        %v6781 = vunpack.c.h.b16 %v6490
        %v6782 = vunpack.c.l.b16 %v6491
        %v6783 = vunpack.c.h.b16 %v6491
        %v6784 = vunpack.c.l.b16 %v6492
        %v6785 = vunpack.c.h.b16 %v6492
        %v6786 = vunpack.c.l.b16 %v6493
        %v6787 = vunpack.c.h.b16 %v6493
        %v6788 = vunpack.c.l.b16 %v6494
        %v6789 = vunpack.c.h.b16 %v6494
        %v6790 = vunpack.c.l.b16 %v6495
        %v6791 = vunpack.c.h.b16 %v6495
        %v6792 = vunpack.c.l.b16 %v6496
        %v6793 = vunpack.c.h.b16 %v6496
        %v6794 = vunpack.c.l.b16 %v6497
        %v6795 = vunpack.c.h.b16 %v6497
        %v6796 = vunpack.c.l.b16 %v6498
        %v6797 = vunpack.c.h.b16 %v6498
        %v6798 = vunpack.c.l.b16 %v6499
        %v6799 = vunpack.c.h.b16 %v6499
        %v6800 = vunpack.c.l.b16 %v6500
        %v6801 = vunpack.c.h.b16 %v6500
        %v6802 = vunpack.c.l.b16 %v6501
        %v6803 = vunpack.c.h.b16 %v6501
        %v6804 = vunpack.c.l.b16 %v6502
        %v6805 = vunpack.c.h.b16 %v6502
        %v6806 = vunpack.c.l.b16 %v6503
        %v6807 = vunpack.c.h.b16 %v6503
        %v6808 = vunpack.c.l.b16 %v6504
        %v6809 = vunpack.c.h.b16 %v6504
        %v6810 = vunpack.c.l.b16 %v6505
        %v6811 = vunpack.c.h.b16 %v6505
        %v6812 = vunpack.c.l.b16 %v6506
        %v6813 = vunpack.c.h.b16 %v6506
        %v6814 = vunpack.c.l.b16 %v6507
        %v6815 = vunpack.c.h.b16 %v6507
        %v6816 = vunpack.c.l.b16 %v6508
        %v6817 = vunpack.c.h.b16 %v6508
        %v6818 = vunpack.c.l.b16 %v6509
        %v6819 = vunpack.c.h.b16 %v6509
        %v6820 = vunpack.c.l.b16 %v6510
        %v6821 = vunpack.c.h.b16 %v6510
        %v6822 = vunpack.c.l.b16 %v6511
        %v6823 = vunpack.c.h.b16 %v6511
        %v6824 = vunpack.c.l.b16 %v6512
        %v6825 = vunpack.c.h.b16 %v6512
        %v6826 = vunpack.c.l.b16 %v6513
        %v6827 = vunpack.c.h.b16 %v6513
        %v6828 = vunpack.c.l.b16 %v6514
        %v6829 = vunpack.c.h.b16 %v6514
        %v6830 = vunpack.c.l.b16 %v6515
        %v6831 = vunpack.c.h.b16 %v6515
        %v6832 = vunpack.c.l.b16 %v6516
        %v6833 = vunpack.c.h.b16 %v6516
        %v6834 = vunpack.c.l.b16 %v6517
        %v6835 = vunpack.c.h.b16 %v6517
        %v6836 = vunpack.c.l.b16 %v6518
        %v6837 = vunpack.c.h.b16 %v6518
        %v6838 = vunpack.c.l.b16 %v6519
        %v6839 = vunpack.c.h.b16 %v6519
        %v6840 = vunpack.c.l.b16 %v6520
        %v6841 = vunpack.c.h.b16 %v6520
        %v6842 = vunpack.c.l.b16 %v6521
        %v6843 = vunpack.c.h.b16 %v6521
        %v6844 = vunpack.c.l.b16 %v6522
        %v6845 = vunpack.c.h.b16 %v6522
        %v6846 = vunpack.c.l.b16 %v6523
        %v6847 = vunpack.c.h.b16 %v6523
        %v6848 = vunpack.c.l.b16 %v6524
        %v6849 = vunpack.c.h.b16 %v6524
        %v6850 = vunpack.c.l.b16 %v6525
        %v6851 = vunpack.c.h.b16 %v6525
        %v6852 = vunpack.c.l.b16 %v6526
        %v6853 = vunpack.c.h.b16 %v6526
        %v6854 = vunpack.c.l.b16 %v6527
        %v6855 = vunpack.c.h.b16 %v6527
        %v6856 = vunpack.c.l.b16 %v6528
        %v6857 = vunpack.c.h.b16 %v6528
        %v6858 = vunpack.c.l.b16 %v6529
        %v6859 = vunpack.c.h.b16 %v6529
        %v6860 = vunpack.c.l.b16 %v6530
        %v6861 = vunpack.c.h.b16 %v6530
        %v6862 = vunpack.c.l.b16 %v6531
        %v6863 = vunpack.c.h.b16 %v6531
        %v6864 = vunpack.c.l.b16 %v6532
        %v6865 = vunpack.c.h.b16 %v6532
        %v6866 = vunpack.c.l.b16 %v6533
        %v6867 = vunpack.c.h.b16 %v6533
        %v6868 = vunpack.c.l.b16 %v6534
        %v6869 = vunpack.c.h.b16 %v6534
        %v6870 = vunpack.c.l.b16 %v6535
        %v6871 = vunpack.c.h.b16 %v6535
        %v6872 = vunpack.c.l.b16 %v6536
        %v6873 = vunpack.c.h.b16 %v6536
        %v6874 = vunpack.c.l.b16 %v6537
        %v6875 = vunpack.c.h.b16 %v6537
        %v6876 = vunpack.c.l.b16 %v6538
        %v6877 = vunpack.c.h.b16 %v6538
        %v6878 = vunpack.c.l.b16 %v6539
        %v6879 = vunpack.c.h.b16 %v6539
        %v6880 = vunpack.c.l.b16 %v6540
        %v6881 = vunpack.c.h.b16 %v6540
        %v6882 = vunpack.c.l.b16 %v6541
        %v6883 = vunpack.c.h.b16 %v6541
        %v6884 = vunpack.c.l.b16 %v6542
        %v6885 = vunpack.c.h.b16 %v6542
        %v6886 = vunpack.c.l.b16 %v6543
        %v6887 = vunpack.c.h.b16 %v6543
        %v6888 = vunpack.c.l.b16 %v6544
        %v6889 = vunpack.c.h.b16 %v6544
        %v6890 = vunpack.c.l.b16 %v6545
        %v6891 = vunpack.c.h.b16 %v6545
        %v6892 = vunpack.c.l.b16 %v6546
        %v6893 = vunpack.c.h.b16 %v6546
        %v6894 = vunpack.c.l.b16 %v6547
        %v6895 = vunpack.c.h.b16 %v6547
        %v6896 = vunpack.c.l.b16 %v6548
        %v6897 = vunpack.c.h.b16 %v6548
        %v6898 = vunpack.c.l.b16 %v6549
        %v6899 = vunpack.c.h.b16 %v6549
        %v6900 = vunpack.c.l.b16 %v6550
        %v6901 = vunpack.c.h.b16 %v6550
        %v6902 = vunpack.c.l.b16 %v6551
        %v6903 = vunpack.c.h.b16 %v6551
        %v6904 = vunpack.c.l.b16 %v6552
        %v6905 = vunpack.c.h.b16 %v6552
        %v6906 = vunpack.c.l.b16 %v6553
        %v6907 = vunpack.c.h.b16 %v6553
        %v6908 = vunpack.c.l.b16 %v6554
        %v6909 = vunpack.c.h.b16 %v6554
        %v6910 = vunpack.c.l.b16 %v6555
        %v6911 = vunpack.c.h.b16 %v6555
        %v6912 = vunpack.c.l.b16 %v6556
        %v6913 = vunpack.c.h.b16 %v6556
        %v6914 = vunpack.c.l.b16 %v6557
        %v6915 = vunpack.c.h.b16 %v6557
        %v6916 = vunpack.c.l.b16 %v6558
        %v6917 = vunpack.c.h.b16 %v6558
        %v6918 = vunpack.c.l.b16 %v6559
        %v6919 = vunpack.c.h.b16 %v6559
        %v6920 = vunpack.c.l.b16 %v6560
        %v6921 = vunpack.c.h.b16 %v6560
        %v6922 = vunpack.c.l.b16 %v6561
        %v6923 = vunpack.c.h.b16 %v6561
        %v6924 = vunpack.c.l.b16 %v6562
        %v6925 = vunpack.c.h.b16 %v6562
        %v6926 = vunpack.c.l.b16 %v6563
        %v6927 = vunpack.c.h.b16 %v6563
        %v6928 = vunpack.c.l.b16 %v6564
        %v6929 = vunpack.c.h.b16 %v6564
        %v6930 = vunpack.c.l.b16 %v6565
        %v6931 = vunpack.c.h.b16 %v6565
        %v6932 = vunpack.c.l.b16 %v6566
        %v6933 = vunpack.c.h.b16 %v6566
        %v6934 = vunpack.c.l.b16 %v6567
        %v6935 = vunpack.c.h.b16 %v6567
        %v6936 = vunpack.c.l.b16 %v6568
        %v6937 = vunpack.c.h.b16 %v6568
        %v6938 = vunpack.c.l.b16 %v6569
        %v6939 = vunpack.c.h.b16 %v6569
        %v6940 = vunpack.c.l.b16 %v6570
        %v6941 = vunpack.c.h.b16 %v6570
        %v6942 = vunpack.c.l.b16 %v6571
        %v6943 = vunpack.c.h.b16 %v6571
        %v6944 = vunpack.c.l.b16 %v6572
        %v6945 = vunpack.c.h.b16 %v6572
        %v6946 = vunpack.c.l.b16 %v6573
        %v6947 = vunpack.c.h.b16 %v6573
        %v6948 = vunpack.c.l.b16 %v6574
        %v6949 = vunpack.c.h.b16 %v6574
        %v6950 = vunpack.c.l.b16 %v6575
        %v6951 = vunpack.c.h.b16 %v6575
        %v6952 = vunpack.c.l.b16 %v6576
        %v6953 = vunpack.c.h.b16 %v6576
        %v6954 = vunpack.c.l.b16 %v6577
        %v6955 = vunpack.c.h.b16 %v6577
        %v6956 = vunpack.c.l.b16 %v6578
        %v6957 = vunpack.c.h.b16 %v6578
        %v6958 = vunpack.c.l.b16 %v6579
        %v6959 = vunpack.c.h.b16 %v6579
        %v6960 = vunpack.c.l.b16 %v6580
        %v6961 = vunpack.c.h.b16 %v6580
        %v6962 = vunpack.c.l.b16 %v6581
        %v6963 = vunpack.c.h.b16 %v6581
        %v6964 = vunpack.c.l.b16 %v6582
        %v6965 = vunpack.c.h.b16 %v6582
        %v6966 = vunpack.c.l.b16 %v6583
        %v6967 = vunpack.c.h.b16 %v6583
        %v6968 = vunpack.c.l.b16 %v6584
        %v6969 = vunpack.c.h.b16 %v6584
        %v6970 = vunpack.c.l.b16 %v6585
        %v6971 = vunpack.c.h.b16 %v6585
        %v6972 = vunpack.c.l.b16 %v6586
        %v6973 = vunpack.c.h.b16 %v6586
        %v6974 = vunpack.c.l.b16 %v6587
        %v6975 = vunpack.c.h.b16 %v6587
        %v6976 = vunpack.c.l.b16 %v6588
        %v6977 = vunpack.c.h.b16 %v6588
        %v6978 = vunpack.c.l.b16 %v6589
        %v6979 = vunpack.c.h.b16 %v6589
        %v6980 = vunpack.c.l.b16 %v6590
        %v6981 = vunpack.c.h.b16 %v6590
        %v6982 = vunpack.c.l.b16 %v6591
        %v6983 = vunpack.c.h.b16 %v6591
        %v6984 = vunpack.c.l.b16 %v6592
        %v6985 = vunpack.c.h.b16 %v6592
        %v6986 = vunpack.c.l.b16 %v6593
        %v6987 = vunpack.c.h.b16 %v6593
        %v6988 = vunpack.c.l.b16 %v6594
        %v6989 = vunpack.c.h.b16 %v6594
        %v6990 = vunpack.c.l.b16 %v6595
        %v6991 = vunpack.c.h.b16 %v6595
        %v6992 = vpack.c.b16 %v6738, %v6736
        %v6993 = vpack.c.b16 %v6739, %v6737
        %v6994 = vpack.c.b16 %v6742, %v6740
        %v6995 = vpack.c.b16 %v6743, %v6741
        %v6996 = vpack.c.b16 %v6746, %v6744
        %v6997 = vpack.c.b16 %v6747, %v6745
        %v6998 = vpack.c.b16 %v6750, %v6748
        %v6999 = vpack.c.b16 %v6751, %v6749
        %v7000 = vpack.c.b16 %v6754, %v6752
        %v7001 = vpack.c.b16 %v6755, %v6753
        %v7002 = vpack.c.b16 %v6758, %v6756
        %v7003 = vpack.c.b16 %v6759, %v6757
        %v7004 = vpack.c.b16 %v6762, %v6760
        %v7005 = vpack.c.b16 %v6763, %v6761
        %v7006 = vpack.c.b16 %v6766, %v6764
        %v7007 = vpack.c.b16 %v6767, %v6765
        %v7008 = vpack.c.b16 %v6770, %v6768
        %v7009 = vpack.c.b16 %v6771, %v6769
        %v7010 = vpack.c.b16 %v6774, %v6772
        %v7011 = vpack.c.b16 %v6775, %v6773
        %v7012 = vpack.c.b16 %v6778, %v6776
        %v7013 = vpack.c.b16 %v6779, %v6777
        %v7014 = vpack.c.b16 %v6782, %v6780
        %v7015 = vpack.c.b16 %v6783, %v6781
        %v7016 = vpack.c.b16 %v6786, %v6784
        %v7017 = vpack.c.b16 %v6787, %v6785
        %v7018 = vpack.c.b16 %v6790, %v6788
        %v7019 = vpack.c.b16 %v6791, %v6789
        %v7020 = vpack.c.b16 %v6794, %v6792
        %v7021 = vpack.c.b16 %v6795, %v6793
        %v7022 = vpack.c.b16 %v6798, %v6796
        %v7023 = vpack.c.b16 %v6799, %v6797
        %v7024 = vpack.c.b16 %v6802, %v6800
        %v7025 = vpack.c.b16 %v6803, %v6801
        %v7026 = vpack.c.b16 %v6806, %v6804
        %v7027 = vpack.c.b16 %v6807, %v6805
        %v7028 = vpack.c.b16 %v6810, %v6808
        %v7029 = vpack.c.b16 %v6811, %v6809
        %v7030 = vpack.c.b16 %v6814, %v6812
        %v7031 = vpack.c.b16 %v6815, %v6813
        %v7032 = vpack.c.b16 %v6818, %v6816
        %v7033 = vpack.c.b16 %v6819, %v6817
        %v7034 = vpack.c.b16 %v6822, %v6820
        %v7035 = vpack.c.b16 %v6823, %v6821
        %v7036 = vpack.c.b16 %v6826, %v6824
        %v7037 = vpack.c.b16 %v6827, %v6825
        %v7038 = vpack.c.b16 %v6830, %v6828
        %v7039 = vpack.c.b16 %v6831, %v6829
        %v7040 = vpack.c.b16 %v6834, %v6832
        %v7041 = vpack.c.b16 %v6835, %v6833
        %v7042 = vpack.c.b16 %v6838, %v6836
        %v7043 = vpack.c.b16 %v6839, %v6837
        %v7044 = vpack.c.b16 %v6842, %v6840
        %v7045 = vpack.c.b16 %v6843, %v6841
        %v7046 = vpack.c.b16 %v6846, %v6844
        %v7047 = vpack.c.b16 %v6847, %v6845
        %v7048 = vpack.c.b16 %v6850, %v6848
        %v7049 = vpack.c.b16 %v6851, %v6849
        %v7050 = vpack.c.b16 %v6854, %v6852
        %v7051 = vpack.c.b16 %v6855, %v6853
        %v7052 = vpack.c.b16 %v6858, %v6856
        %v7053 = vpack.c.b16 %v6859, %v6857
        %v7054 = vpack.c.b16 %v6862, %v6860
        %v7055 = vpack.c.b16 %v6863, %v6861
        %v7056 = vpack.c.b16 %v6866, %v6864
        %v7057 = vpack.c.b16 %v6867, %v6865
        %v7058 = vpack.c.b16 %v6870, %v6868
        %v7059 = vpack.c.b16 %v6871, %v6869
        %v7060 = vpack.c.b16 %v6874, %v6872
        %v7061 = vpack.c.b16 %v6875, %v6873
        %v7062 = vpack.c.b16 %v6878, %v6876
        %v7063 = vpack.c.b16 %v6879, %v6877
        %v7064 = vpack.c.b16 %v6882, %v6880
        %v7065 = vpack.c.b16 %v6883, %v6881
        %v7066 = vpack.c.b16 %v6886, %v6884
        %v7067 = vpack.c.b16 %v6887, %v6885
        %v7068 = vpack.c.b16 %v6890, %v6888
        %v7069 = vpack.c.b16 %v6891, %v6889
        %v7070 = vpack.c.b16 %v6894, %v6892
        %v7071 = vpack.c.b16 %v6895, %v6893
        %v7072 = vpack.c.b16 %v6898, %v6896
        %v7073 = vpack.c.b16 %v6899, %v6897
        %v7074 = vpack.c.b16 %v6902, %v6900
        %v7075 = vpack.c.b16 %v6903, %v6901
        %v7076 = vpack.c.b16 %v6906, %v6904
        %v7077 = vpack.c.b16 %v6907, %v6905
        %v7078 = vpack.c.b16 %v6910, %v6908
        %v7079 = vpack.c.b16 %v6911, %v6909
        %v7080 = vpack.c.b16 %v6914, %v6912
        %v7081 = vpack.c.b16 %v6915, %v6913
        %v7082 = vpack.c.b16 %v6918, %v6916
        %v7083 = vpack.c.b16 %v6919, %v6917
        %v7084 = vpack.c.b16 %v6922, %v6920
        %v7085 = vpack.c.b16 %v6923, %v6921
        %v7086 = vpack.c.b16 %v6926, %v6924
        %v7087 = vpack.c.b16 %v6927, %v6925
        %v7088 = vpack.c.b16 %v6930, %v6928
        %v7089 = vpack.c.b16 %v6931, %v6929
        %v7090 = vpack.c.b16 %v6934, %v6932
        %v7091 = vpack.c.b16 %v6935, %v6933
        %v7092 = vpack.c.b16 %v6938, %v6936
        %v7093 = vpack.c.b16 %v6939, %v6937
        %v7094 = vpack.c.b16 %v6942, %v6940
        %v7095 = vpack.c.b16 %v6943, %v6941
        %v7096 = vpack.c.b16 %v6946, %v6944
        %v7097 = vpack.c.b16 %v6947, %v6945
        %v7098 = vpack.c.b16 %v6950, %v6948
        %v7099 = vpack.c.b16 %v6951, %v6949
        %v7100 = vpack.c.b16 %v6954, %v6952
        %v7101 = vpack.c.b16 %v6955, %v6953
        %v7102 = vpack.c.b16 %v6958, %v6956
        %v7103 = vpack.c.b16 %v6959, %v6957
        %v7104 = vpack.c.b16 %v6962, %v6960
        %v7105 = vpack.c.b16 %v6963, %v6961
        %v7106 = vpack.c.b16 %v6966, %v6964
        %v7107 = vpack.c.b16 %v6967, %v6965
        %v7108 = vpack.c.b16 %v6970, %v6968
        %v7109 = vpack.c.b16 %v6971, %v6969
        %v7110 = vpack.c.b16 %v6974, %v6972
        %v7111 = vpack.c.b16 %v6975, %v6973
        %v7112 = vpack.c.b16 %v6978, %v6976
        %v7113 = vpack.c.b16 %v6979, %v6977
        %v7114 = vpack.c.b16 %v6982, %v6980
        %v7115 = vpack.c.b16 %v6983, %v6981
        %v7116 = vpack.c.b16 %v6986, %v6984
        %v7117 = vpack.c.b16 %v6987, %v6985
        %v7118 = vpack.c.b16 %v6990, %v6988
        %v7119 = vpack.c.b16 %v6991, %v6989
        %7248 = vmatprep.subr.bf16.mxu0 %v7007
        %7249 = vmatpush1.bf16.msra.mxu0 %v7006
        %7250 = vmatprep.subr.bf16.mxu0 %v7005
        %7251 = vmatpush1.bf16.msra.mxu0 %v7004
        %7252 = vmatprep.subr.bf16.mxu0 %v7003
        %7253 = vmatpush1.bf16.msra.mxu0 %v7002
        %7254 = vmatprep.subr.bf16.mxu0 %v7001
        %7255 = vmatpush1.bf16.msra.mxu0 %v7000
        %7256 = vmatprep.subr.bf16.mxu0 %v6999
        %7257 = vmatpush1.bf16.msra.mxu0 %v6998
        %7258 = vmatprep.subr.bf16.mxu0 %v6997
        %7259 = vmatpush1.bf16.msra.mxu0 %v6996
        %7260 = vmatprep.subr.bf16.mxu0 %v6995
        %7261 = vmatpush1.bf16.msra.mxu0 %v6994
        %7262 = vmatprep.subr.bf16.mxu0 %v6993
        %7263 = vmatpush1.bf16.msra.mxu0 %v6992
        %7264 = vmatprep.subr.bf16.mxu0 %v7023
        %7265 = vmatpush2.bf16.msra.mxu0 %v7022
        %7266 = vmatprep.subr.bf16.mxu0 %v7021
        %7267 = vmatpush2.bf16.msra.mxu0 %v7020
        %7268 = vmatprep.subr.bf16.mxu0 %v7019
        %7269 = vmatpush2.bf16.msra.mxu0 %v7018
        %7270 = vmatprep.subr.bf16.mxu0 %v7017
        %7271 = vmatpush2.bf16.msra.mxu0 %v7016
        %7272 = vmatprep.subr.bf16.mxu0 %v7015
        %7273 = vmatpush2.bf16.msra.mxu0 %v7014
        %7274 = vmatprep.subr.bf16.mxu0 %v7013
        %7275 = vmatpush2.bf16.msra.mxu0 %v7012
        %7276 = vmatprep.subr.bf16.mxu0 %v7011
        %7277 = vmatpush2.bf16.msra.mxu0 %v7010
        %7278 = vmatprep.subr.bf16.mxu0 %v7009
        %7279 = vmatpush2.bf16.msra.mxu0 %v7008
        %7280 = vmatprep.mubr.bf16.mxu0 %v6405
        %7281 = vmatmul.mubr.bf16.gmra.mxu0 %v6404
        %v7282 = vpop.f32.mrf.mxu0
        %v7283 = vadd.f32 %v6601, %v7282
        %v7284 = vpop.f32.mrf.mxu0
        %v7285 = vadd.f32 %v6605, %v7284
        %v7286 = vpop.f32.mrf.mxu0
        %v7287 = vadd.f32 %v6601, %v7286
        %v7288 = vpop.f32.mrf.mxu0
        %v7289 = vadd.f32 %v6605, %v7288
        %7290 = vmatprep.mubr.bf16.mxu0 %v6413
        %7291 = vmatmul.mubr.bf16.gmra.mxu0 %v6412
        %v7292 = vpop.f32.mrf.mxu0
        %v7293 = vadd.f32 %v6601, %v7292
        %v7294 = vpop.f32.mrf.mxu0
        %v7295 = vadd.f32 %v6605, %v7294
        %v7296 = vpop.f32.mrf.mxu0
        %v7297 = vadd.f32 %v6601, %v7296
        %v7298 = vpop.f32.mrf.mxu0
        %v7299 = vadd.f32 %v6605, %v7298
        %7300 = vmatprep.mubr.bf16.mxu0 %v6421
        %7301 = vmatmul.mubr.bf16.gmra.mxu0 %v6420
        %v7302 = vpop.f32.mrf.mxu0
        %v7303 = vadd.f32 %v6601, %v7302
        %v7304 = vpop.f32.mrf.mxu0
        %v7305 = vadd.f32 %v6605, %v7304
        %v7306 = vpop.f32.mrf.mxu0
        %v7307 = vadd.f32 %v6601, %v7306
        %v7308 = vpop.f32.mrf.mxu0
        %v7309 = vadd.f32 %v6605, %v7308
        %7310 = vmatprep.mubr.bf16.mxu0 %v6429
        %7311 = vmatmul.mubr.bf16.gmra.mxu0 %v6428
        %v7312 = vpop.f32.mrf.mxu0
        %v7313 = vadd.f32 %v6601, %v7312
        %v7314 = vpop.f32.mrf.mxu0
        %v7315 = vadd.f32 %v6605, %v7314
        %v7316 = vpop.f32.mrf.mxu0
        %v7317 = vadd.f32 %v6601, %v7316
        %v7318 = vpop.f32.mrf.mxu0
        %v7319 = vadd.f32 %v6605, %v7318
        %7320 = vmatprep.mubr.bf16.mxu0 %v6437
        %7321 = vmatmul.mubr.bf16.gmra.mxu0 %v6436
        %v7322 = vpop.f32.mrf.mxu0
        %v7323 = vadd.f32 %v6601, %v7322
        %v7324 = vpop.f32.mrf.mxu0
        %v7325 = vadd.f32 %v6605, %v7324
        %v7326 = vpop.f32.mrf.mxu0
        %v7327 = vadd.f32 %v6601, %v7326
        %v7328 = vpop.f32.mrf.mxu0
        %v7329 = vadd.f32 %v6605, %v7328
        %7330 = vmatprep.mubr.bf16.mxu0 %v6445
        %7331 = vmatmul.mubr.bf16.gmra.mxu0 %v6444
        %v7332 = vpop.f32.mrf.mxu0
        %v7333 = vadd.f32 %v6601, %v7332
        %v7334 = vpop.f32.mrf.mxu0
        %v7335 = vadd.f32 %v6605, %v7334
        %v7336 = vpop.f32.mrf.mxu0
        %v7337 = vadd.f32 %v6601, %v7336
        %v7338 = vpop.f32.mrf.mxu0
        %v7339 = vadd.f32 %v6605, %v7338
        %7340 = vmatprep.mubr.bf16.mxu0 %v6453
        %7341 = vmatmul.mubr.bf16.gmra.mxu0 %v6452
        %v7342 = vpop.f32.mrf.mxu0
        %v7343 = vadd.f32 %v6601, %v7342
        %v7344 = vpop.f32.mrf.mxu0
        %v7345 = vadd.f32 %v6605, %v7344
        %v7346 = vpop.f32.mrf.mxu0
        %v7347 = vadd.f32 %v6601, %v7346
        %v7348 = vpop.f32.mrf.mxu0
        %v7349 = vadd.f32 %v6605, %v7348
        %7350 = vmatprep.mubr.bf16.mxu0 %v6461
        %7351 = vmatmul.mubr.bf16.gmra.mxu0 %v6460
        %v7352 = vpop.f32.mrf.mxu0
        %v7353 = vadd.f32 %v6601, %v7352
        %v7354 = vpop.f32.mrf.mxu0
        %v7355 = vadd.f32 %v6605, %v7354
        %v7356 = vpop.f32.mrf.mxu0
        %v7357 = vadd.f32 %v6601, %v7356
        %v7358 = vpop.f32.mrf.mxu0
        %v7359 = vadd.f32 %v6605, %v7358
        %7360 = vdwg.mxu0
        %7361 = vmatprep.subr.bf16.mxu0 %v7039
        %7362 = vmatpush1.bf16.msra.mxu0 %v7038
        %7363 = vmatprep.subr.bf16.mxu0 %v7037
        %7364 = vmatpush1.bf16.msra.mxu0 %v7036
        %7365 = vmatprep.subr.bf16.mxu0 %v7035
        %7366 = vmatpush1.bf16.msra.mxu0 %v7034
        %7367 = vmatprep.subr.bf16.mxu0 %v7033
        %7368 = vmatpush1.bf16.msra.mxu0 %v7032
        %7369 = vmatprep.subr.bf16.mxu0 %v7031
        %7370 = vmatpush1.bf16.msra.mxu0 %v7030
        %7371 = vmatprep.subr.bf16.mxu0 %v7029
        %7372 = vmatpush1.bf16.msra.mxu0 %v7028
        %7373 = vmatprep.subr.bf16.mxu0 %v7027
        %7374 = vmatpush1.bf16.msra.mxu0 %v7026
        %7375 = vmatprep.subr.bf16.mxu0 %v7025
        %7376 = vmatpush1.bf16.msra.mxu0 %v7024
        %7377 = vmatprep.subr.bf16.mxu0 %v7055
        %7378 = vmatpush2.bf16.msra.mxu0 %v7054
        %7379 = vmatprep.subr.bf16.mxu0 %v7053
        %7380 = vmatpush2.bf16.msra.mxu0 %v7052
        %7381 = vmatprep.subr.bf16.mxu0 %v7051
        %7382 = vmatpush2.bf16.msra.mxu0 %v7050
        %7383 = vmatprep.subr.bf16.mxu0 %v7049
        %7384 = vmatpush2.bf16.msra.mxu0 %v7048
        %7385 = vmatprep.subr.bf16.mxu0 %v7047
        %7386 = vmatpush2.bf16.msra.mxu0 %v7046
        %7387 = vmatprep.subr.bf16.mxu0 %v7045
        %7388 = vmatpush2.bf16.msra.mxu0 %v7044
        %7389 = vmatprep.subr.bf16.mxu0 %v7043
        %7390 = vmatpush2.bf16.msra.mxu0 %v7042
        %7391 = vmatprep.subr.bf16.mxu0 %v7041
        %7392 = vmatpush2.bf16.msra.mxu0 %v7040
        %7393 = vmatprep.mubr.bf16.mxu0 %v6407
        %7394 = vmatmul.mubr.bf16.gmra.mxu0 %v6406
        %v7395 = vpop.f32.mrf.mxu0
        %v7396 = vadd.f32 %v7283, %v7395
        %v7397 = vpop.f32.mrf.mxu0
        %v7398 = vadd.f32 %v7285, %v7397
        %v7399 = vpop.f32.mrf.mxu0
        %v7400 = vadd.f32 %v7287, %v7399
        %v7401 = vpop.f32.mrf.mxu0
        %v7402 = vadd.f32 %v7289, %v7401
        %7403 = vmatprep.mubr.bf16.mxu0 %v6415
        %7404 = vmatmul.mubr.bf16.gmra.mxu0 %v6414
        %v7405 = vpop.f32.mrf.mxu0
        %v7406 = vadd.f32 %v7293, %v7405
        %v7407 = vpop.f32.mrf.mxu0
        %v7408 = vadd.f32 %v7295, %v7407
        %v7409 = vpop.f32.mrf.mxu0
        %v7410 = vadd.f32 %v7297, %v7409
        %v7411 = vpop.f32.mrf.mxu0
        %v7412 = vadd.f32 %v7299, %v7411
        %7413 = vmatprep.mubr.bf16.mxu0 %v6423
        %7414 = vmatmul.mubr.bf16.gmra.mxu0 %v6422
        %v7415 = vpop.f32.mrf.mxu0
        %v7416 = vadd.f32 %v7303, %v7415
        %v7417 = vpop.f32.mrf.mxu0
        %v7418 = vadd.f32 %v7305, %v7417
        %v7419 = vpop.f32.mrf.mxu0
        %v7420 = vadd.f32 %v7307, %v7419
        %v7421 = vpop.f32.mrf.mxu0
        %v7422 = vadd.f32 %v7309, %v7421
        %7423 = vmatprep.mubr.bf16.mxu0 %v6431
        %7424 = vmatmul.mubr.bf16.gmra.mxu0 %v6430
        %v7425 = vpop.f32.mrf.mxu0
        %v7426 = vadd.f32 %v7313, %v7425
        %v7427 = vpop.f32.mrf.mxu0
        %v7428 = vadd.f32 %v7315, %v7427
        %v7429 = vpop.f32.mrf.mxu0
        %v7430 = vadd.f32 %v7317, %v7429
        %v7431 = vpop.f32.mrf.mxu0
        %v7432 = vadd.f32 %v7319, %v7431
        %7433 = vmatprep.mubr.bf16.mxu0 %v6439
        %7434 = vmatmul.mubr.bf16.gmra.mxu0 %v6438
        %v7435 = vpop.f32.mrf.mxu0
        %v7436 = vadd.f32 %v7323, %v7435
        %v7437 = vpop.f32.mrf.mxu0
        %v7438 = vadd.f32 %v7325, %v7437
        %v7439 = vpop.f32.mrf.mxu0
        %v7440 = vadd.f32 %v7327, %v7439
        %v7441 = vpop.f32.mrf.mxu0
        %v7442 = vadd.f32 %v7329, %v7441
        %7443 = vmatprep.mubr.bf16.mxu0 %v6447
        %7444 = vmatmul.mubr.bf16.gmra.mxu0 %v6446
        %v7445 = vpop.f32.mrf.mxu0
        %v7446 = vadd.f32 %v7333, %v7445
        %v7447 = vpop.f32.mrf.mxu0
        %v7448 = vadd.f32 %v7335, %v7447
        %v7449 = vpop.f32.mrf.mxu0
        %v7450 = vadd.f32 %v7337, %v7449
        %v7451 = vpop.f32.mrf.mxu0
        %v7452 = vadd.f32 %v7339, %v7451
        %7453 = vmatprep.mubr.bf16.mxu0 %v6455
        %7454 = vmatmul.mubr.bf16.gmra.mxu0 %v6454
        %v7455 = vpop.f32.mrf.mxu0
        %v7456 = vadd.f32 %v7343, %v7455
        %v7457 = vpop.f32.mrf.mxu0
        %v7458 = vadd.f32 %v7345, %v7457
        %v7459 = vpop.f32.mrf.mxu0
        %v7460 = vadd.f32 %v7347, %v7459
        %v7461 = vpop.f32.mrf.mxu0
        %v7462 = vadd.f32 %v7349, %v7461
        %7463 = vmatprep.mubr.bf16.mxu0 %v6463
        %7464 = vmatmul.mubr.bf16.gmra.mxu0 %v6462
        %v7465 = vpop.f32.mrf.mxu0
        %v7466 = vadd.f32 %v7353, %v7465
        %v7467 = vpop.f32.mrf.mxu0
        %v7468 = vadd.f32 %v7355, %v7467
        %v7469 = vpop.f32.mrf.mxu0
        %v7470 = vadd.f32 %v7357, %v7469
        %v7471 = vpop.f32.mrf.mxu0
        %v7472 = vadd.f32 %v7359, %v7471
        %7473 = vdwg.mxu0
        %7474 = vmatprep.subr.bf16.mxu0 %v7071
        %7475 = vmatpush1.bf16.msra.mxu0 %v7070
        %7476 = vmatprep.subr.bf16.mxu0 %v7069
        %7477 = vmatpush1.bf16.msra.mxu0 %v7068
        %7478 = vmatprep.subr.bf16.mxu0 %v7067
        %7479 = vmatpush1.bf16.msra.mxu0 %v7066
        %7480 = vmatprep.subr.bf16.mxu0 %v7065
        %7481 = vmatpush1.bf16.msra.mxu0 %v7064
        %7482 = vmatprep.subr.bf16.mxu0 %v7063
        %7483 = vmatpush1.bf16.msra.mxu0 %v7062
        %7484 = vmatprep.subr.bf16.mxu0 %v7061
        %7485 = vmatpush1.bf16.msra.mxu0 %v7060
        %7486 = vmatprep.subr.bf16.mxu0 %v7059
        %7487 = vmatpush1.bf16.msra.mxu0 %v7058
        %7488 = vmatprep.subr.bf16.mxu0 %v7057
        %7489 = vmatpush1.bf16.msra.mxu0 %v7056
        %7490 = vmatprep.subr.bf16.mxu0 %v7087
        %7491 = vmatpush2.bf16.msra.mxu0 %v7086
        %7492 = vmatprep.subr.bf16.mxu0 %v7085
        %7493 = vmatpush2.bf16.msra.mxu0 %v7084
        %7494 = vmatprep.subr.bf16.mxu0 %v7083
        %7495 = vmatpush2.bf16.msra.mxu0 %v7082
        %7496 = vmatprep.subr.bf16.mxu0 %v7081
        %7497 = vmatpush2.bf16.msra.mxu0 %v7080
        %7498 = vmatprep.subr.bf16.mxu0 %v7079
        %7499 = vmatpush2.bf16.msra.mxu0 %v7078
        %7500 = vmatprep.subr.bf16.mxu0 %v7077
        %7501 = vmatpush2.bf16.msra.mxu0 %v7076
        %7502 = vmatprep.subr.bf16.mxu0 %v7075
        %7503 = vmatpush2.bf16.msra.mxu0 %v7074
        %7504 = vmatprep.subr.bf16.mxu0 %v7073
        %7505 = vmatpush2.bf16.msra.mxu0 %v7072
        %7506 = vmatprep.mubr.bf16.mxu0 %v6409
        %7507 = vmatmul.mubr.bf16.gmra.mxu0 %v6408
        %v7508 = vpop.f32.mrf.mxu0
        %v7509 = vadd.f32 %v7396, %v7508
        %v7510 = vpop.f32.mrf.mxu0
        %v7511 = vadd.f32 %v7398, %v7510
        %v7512 = vpop.f32.mrf.mxu0
        %v7513 = vadd.f32 %v7400, %v7512
        %v7514 = vpop.f32.mrf.mxu0
        %v7515 = vadd.f32 %v7402, %v7514
        %7516 = vmatprep.mubr.bf16.mxu0 %v6417
        %7517 = vmatmul.mubr.bf16.gmra.mxu0 %v6416
        %v7518 = vpop.f32.mrf.mxu0
        %v7519 = vadd.f32 %v7406, %v7518
        %v7520 = vpop.f32.mrf.mxu0
        %v7521 = vadd.f32 %v7408, %v7520
        %v7522 = vpop.f32.mrf.mxu0
        %v7523 = vadd.f32 %v7410, %v7522
        %v7524 = vpop.f32.mrf.mxu0
        %v7525 = vadd.f32 %v7412, %v7524
        %7526 = vmatprep.mubr.bf16.mxu0 %v6425
        %7527 = vmatmul.mubr.bf16.gmra.mxu0 %v6424
        %v7528 = vpop.f32.mrf.mxu0
        %v7529 = vadd.f32 %v7416, %v7528
        %v7530 = vpop.f32.mrf.mxu0
        %v7531 = vadd.f32 %v7418, %v7530
        %v7532 = vpop.f32.mrf.mxu0
        %v7533 = vadd.f32 %v7420, %v7532
        %v7534 = vpop.f32.mrf.mxu0
        %v7535 = vadd.f32 %v7422, %v7534
        %7536 = vmatprep.mubr.bf16.mxu0 %v6433
        %7537 = vmatmul.mubr.bf16.gmra.mxu0 %v6432
        %v7538 = vpop.f32.mrf.mxu0
        %v7539 = vadd.f32 %v7426, %v7538
        %v7540 = vpop.f32.mrf.mxu0
        %v7541 = vadd.f32 %v7428, %v7540
        %v7542 = vpop.f32.mrf.mxu0
        %v7543 = vadd.f32 %v7430, %v7542
        %v7544 = vpop.f32.mrf.mxu0
        %v7545 = vadd.f32 %v7432, %v7544
        %7546 = vmatprep.mubr.bf16.mxu0 %v6441
        %7547 = vmatmul.mubr.bf16.gmra.mxu0 %v6440
        %v7548 = vpop.f32.mrf.mxu0
        %v7549 = vadd.f32 %v7436, %v7548
        %v7550 = vpop.f32.mrf.mxu0
        %v7551 = vadd.f32 %v7438, %v7550
        %v7552 = vpop.f32.mrf.mxu0
        %v7553 = vadd.f32 %v7440, %v7552
        %v7554 = vpop.f32.mrf.mxu0
        %v7555 = vadd.f32 %v7442, %v7554
        %7556 = vmatprep.mubr.bf16.mxu0 %v6449
        %7557 = vmatmul.mubr.bf16.gmra.mxu0 %v6448
        %v7558 = vpop.f32.mrf.mxu0
        %v7559 = vadd.f32 %v7446, %v7558
        %v7560 = vpop.f32.mrf.mxu0
        %v7561 = vadd.f32 %v7448, %v7560
        %v7562 = vpop.f32.mrf.mxu0
        %v7563 = vadd.f32 %v7450, %v7562
        %v7564 = vpop.f32.mrf.mxu0
        %v7565 = vadd.f32 %v7452, %v7564
        %7566 = vmatprep.mubr.bf16.mxu0 %v6457
        %7567 = vmatmul.mubr.bf16.gmra.mxu0 %v6456
        %v7568 = vpop.f32.mrf.mxu0
        %v7569 = vadd.f32 %v7456, %v7568
        %v7570 = vpop.f32.mrf.mxu0
        %v7571 = vadd.f32 %v7458, %v7570
        %v7572 = vpop.f32.mrf.mxu0
        %v7573 = vadd.f32 %v7460, %v7572
        %v7574 = vpop.f32.mrf.mxu0
        %v7575 = vadd.f32 %v7462, %v7574
        %7576 = vmatprep.mubr.bf16.mxu0 %v6465
        %7577 = vmatmul.mubr.bf16.gmra.mxu0 %v6464
        %v7578 = vpop.f32.mrf.mxu0
        %v7579 = vadd.f32 %v7466, %v7578
        %v7580 = vpop.f32.mrf.mxu0
        %v7581 = vadd.f32 %v7468, %v7580
        %v7582 = vpop.f32.mrf.mxu0
        %v7583 = vadd.f32 %v7470, %v7582
        %v7584 = vpop.f32.mrf.mxu0
        %v7585 = vadd.f32 %v7472, %v7584
        %7586 = vdwg.mxu0
        %7587 = vmatprep.subr.bf16.mxu0 %v7103
        %7588 = vmatpush1.bf16.msra.mxu0 %v7102
        %7589 = vmatprep.subr.bf16.mxu0 %v7101
        %7590 = vmatpush1.bf16.msra.mxu0 %v7100
        %7591 = vmatprep.subr.bf16.mxu0 %v7099
        %7592 = vmatpush1.bf16.msra.mxu0 %v7098
        %7593 = vmatprep.subr.bf16.mxu0 %v7097
        %7594 = vmatpush1.bf16.msra.mxu0 %v7096
        %7595 = vmatprep.subr.bf16.mxu0 %v7095
        %7596 = vmatpush1.bf16.msra.mxu0 %v7094
        %7597 = vmatprep.subr.bf16.mxu0 %v7093
        %7598 = vmatpush1.bf16.msra.mxu0 %v7092
        %7599 = vmatprep.subr.bf16.mxu0 %v7091
        %7600 = vmatpush1.bf16.msra.mxu0 %v7090
        %7601 = vmatprep.subr.bf16.mxu0 %v7089
        %7602 = vmatpush1.bf16.msra.mxu0 %v7088
        %7603 = vmatprep.subr.bf16.mxu0 %v7119
        %7604 = vmatpush2.bf16.msra.mxu0 %v7118
        %7605 = vmatprep.subr.bf16.mxu0 %v7117
        %7606 = vmatpush2.bf16.msra.mxu0 %v7116
        %7607 = vmatprep.subr.bf16.mxu0 %v7115
        %7608 = vmatpush2.bf16.msra.mxu0 %v7114
        %7609 = vmatprep.subr.bf16.mxu0 %v7113
        %7610 = vmatpush2.bf16.msra.mxu0 %v7112
        %7611 = vmatprep.subr.bf16.mxu0 %v7111
        %7612 = vmatpush2.bf16.msra.mxu0 %v7110
        %7613 = vmatprep.subr.bf16.mxu0 %v7109
        %7614 = vmatpush2.bf16.msra.mxu0 %v7108
        %7615 = vmatprep.subr.bf16.mxu0 %v7107
        %7616 = vmatpush2.bf16.msra.mxu0 %v7106
        %7617 = vmatprep.subr.bf16.mxu0 %v7105
        %7618 = vmatpush2.bf16.msra.mxu0 %v7104
        %7619 = vmatprep.mubr.bf16.mxu0 %v6411
        %7620 = vmatmul.mubr.bf16.gmra.mxu0 %v6410
        %v7621 = vpop.f32.mrf.mxu0
        %v7622 = vadd.f32 %v7509, %v7621
        %v7623 = vpop.f32.mrf.mxu0
        %v7624 = vadd.f32 %v7511, %v7623
        %v7625 = vpop.f32.mrf.mxu0
        %v7626 = vadd.f32 %v7513, %v7625
        %v7627 = vpop.f32.mrf.mxu0
        %v7628 = vadd.f32 %v7515, %v7627
        %7629 = vmatprep.mubr.bf16.mxu0 %v6419
        %7630 = vmatmul.mubr.bf16.gmra.mxu0 %v6418
        %v7631 = vpop.f32.mrf.mxu0
        %v7632 = vadd.f32 %v7519, %v7631
        %v7633 = vpop.f32.mrf.mxu0
        %v7634 = vadd.f32 %v7521, %v7633
        %v7635 = vpop.f32.mrf.mxu0
        %v7636 = vadd.f32 %v7523, %v7635
        %v7637 = vpop.f32.mrf.mxu0
        %v7638 = vadd.f32 %v7525, %v7637
        %7639 = vmatprep.mubr.bf16.mxu0 %v6427
        %7640 = vmatmul.mubr.bf16.gmra.mxu0 %v6426
        %v7641 = vpop.f32.mrf.mxu0
        %v7642 = vadd.f32 %v7529, %v7641
        %v7643 = vpop.f32.mrf.mxu0
        %v7644 = vadd.f32 %v7531, %v7643
        %v7645 = vpop.f32.mrf.mxu0
        %v7646 = vadd.f32 %v7533, %v7645
        %v7647 = vpop.f32.mrf.mxu0
        %v7648 = vadd.f32 %v7535, %v7647
        %7649 = vmatprep.mubr.bf16.mxu0 %v6435
        %7650 = vmatmul.mubr.bf16.gmra.mxu0 %v6434
        %v7651 = vpop.f32.mrf.mxu0
        %v7652 = vadd.f32 %v7539, %v7651
        %v7653 = vpop.f32.mrf.mxu0
        %v7654 = vadd.f32 %v7541, %v7653
        %v7655 = vpop.f32.mrf.mxu0
        %v7656 = vadd.f32 %v7543, %v7655
        %v7657 = vpop.f32.mrf.mxu0
        %v7658 = vadd.f32 %v7545, %v7657
        %7659 = vmatprep.mubr.bf16.mxu0 %v6443
        %7660 = vmatmul.mubr.bf16.gmra.mxu0 %v6442
        %v7661 = vpop.f32.mrf.mxu0
        %v7662 = vadd.f32 %v7549, %v7661
        %v7663 = vpop.f32.mrf.mxu0
        %v7664 = vadd.f32 %v7551, %v7663
        %v7665 = vpop.f32.mrf.mxu0
        %v7666 = vadd.f32 %v7553, %v7665
        %v7667 = vpop.f32.mrf.mxu0
        %v7668 = vadd.f32 %v7555, %v7667
        %7669 = vmatprep.mubr.bf16.mxu0 %v6451
        %7670 = vmatmul.mubr.bf16.gmra.mxu0 %v6450
        %v7671 = vpop.f32.mrf.mxu0
        %v7672 = vadd.f32 %v7559, %v7671
        %v7673 = vpop.f32.mrf.mxu0
        %v7674 = vadd.f32 %v7561, %v7673
        %v7675 = vpop.f32.mrf.mxu0
        %v7676 = vadd.f32 %v7563, %v7675
        %v7677 = vpop.f32.mrf.mxu0
        %v7678 = vadd.f32 %v7565, %v7677
        %7679 = vmatprep.mubr.bf16.mxu0 %v6459
        %7680 = vmatmul.mubr.bf16.gmra.mxu0 %v6458
        %v7681 = vpop.f32.mrf.mxu0
        %v7682 = vadd.f32 %v7569, %v7681
        %v7683 = vpop.f32.mrf.mxu0
        %v7684 = vadd.f32 %v7571, %v7683
        %v7685 = vpop.f32.mrf.mxu0
        %v7686 = vadd.f32 %v7573, %v7685
        %v7687 = vpop.f32.mrf.mxu0
        %v7688 = vadd.f32 %v7575, %v7687
        %7689 = vmatprep.mubr.bf16.mxu0 %v6467
        %7690 = vmatmul.mubr.bf16.gmra.mxu0 %v6466
        %v7691 = vpop.f32.mrf.mxu0
        %v7692 = vadd.f32 %v7579, %v7691
        %v7693 = vpop.f32.mrf.mxu0
        %v7694 = vadd.f32 %v7581, %v7693
        %v7695 = vpop.f32.mrf.mxu0
        %v7696 = vadd.f32 %v7583, %v7695
        %v7697 = vpop.f32.mrf.mxu0
        %v7698 = vadd.f32 %v7585, %v7697
        %7699 = vdwg.mxu0
        %v7700 = vtanh.pop %v7622
        %v7701 = vtanh.pop %v7624
        %v7702 = vtanh.pop %v7626
        %v7703 = vtanh.pop %v7628
        %v7704 = vtanh.pop %v7632
        %v7705 = vtanh.pop %v7634
        %v7706 = vtanh.pop %v7636
        %v7707 = vtanh.pop %v7638
        %v7708 = vtanh.pop %v7642
        %v7709 = vtanh.pop %v7644
        %v7710 = vtanh.pop %v7646
        %v7711 = vtanh.pop %v7648
        %v7712 = vtanh.pop %v7652
        %v7713 = vtanh.pop %v7654
        %v7714 = vtanh.pop %v7656
        %v7715 = vtanh.pop %v7658
        %v7716 = vtanh.pop %v7662
        %v7717 = vtanh.pop %v7664
        %v7718 = vtanh.pop %v7666
        %v7719 = vtanh.pop %v7668
        %v7720 = vtanh.pop %v7672
        %v7721 = vtanh.pop %v7674
        %v7722 = vtanh.pop %v7676
        %v7723 = vtanh.pop %v7678
        %v7724 = vtanh.pop %v7682
        %v7725 = vtanh.pop %v7684
        %v7726 = vtanh.pop %v7686
        %v7727 = vtanh.pop %v7688
        %v7728 = vtanh.pop %v7692
        %v7729 = vtanh.pop %v7694
        %v7730 = vtanh.pop %v7696
        %v7731 = vtanh.pop %v7698
        %7732 = vst [vmem:[%s346] sm:$0xff] %v7700
        %7733 = vst [vmem:[%s346 + $0x8] sm:$0xff] %v7701
        %7734 = vst [vmem:[%s346 + $0x10] sm:$0xff] %v7702
        %7735 = vst [vmem:[%s346 + $0x18] sm:$0xff] %v7703
        %7736 = vst [vmem:[%s346 + $0x20] sm:$0xff] %v7704
        %7737 = vst [vmem:[%s346 + $0x28] sm:$0xff] %v7705
        %7738 = vst [vmem:[%s346 + $0x30] sm:$0xff] %v7706
        %7739 = vst [vmem:[%s346 + $0x38] sm:$0xff] %v7707
        %7740 = vst [vmem:[%s346 + $0x40] sm:$0xff] %v7708
        %7741 = vst [vmem:[%s346 + $0x48] sm:$0xff] %v7709
        %7742 = vst [vmem:[%s346 + $0x50] sm:$0xff] %v7710
        %7743 = vst [vmem:[%s346 + $0x58] sm:$0xff] %v7711
        %7744 = vst [vmem:[%s346 + $0x60] sm:$0xff] %v7712
        %7745 = vst [vmem:[%s346 + $0x68] sm:$0xff] %v7713
        %7746 = vst [vmem:[%s346 + $0x70] sm:$0xff] %v7714
        %7747 = vst [vmem:[%s346 + $0x78] sm:$0xff] %v7715
        %7748 = vst [vmem:[%s346 + $0x80] sm:$0xff] %v7716
        %7749 = vst [vmem:[%s346 + $0x88] sm:$0xff] %v7717
        %7750 = vst [vmem:[%s346 + $0x90] sm:$0xff] %v7718
        %7751 = vst [vmem:[%s346 + $0x98] sm:$0xff] %v7719
        %7752 = vst [vmem:[%s346 + $0xa0] sm:$0xff] %v7720
        %7753 = vst [vmem:[%s346 + $0xa8] sm:$0xff] %v7721
        %7754 = vst [vmem:[%s346 + $0xb0] sm:$0xff] %v7722
        %7755 = vst [vmem:[%s346 + $0xb8] sm:$0xff] %v7723
        %7756 = vst [vmem:[%s346 + $0xc0] sm:$0xff] %v7724
        %7757 = vst [vmem:[%s346 + $0xc8] sm:$0xff] %v7725
        %7758 = vst [vmem:[%s346 + $0xd0] sm:$0xff] %v7726
        %7759 = vst [vmem:[%s346 + $0xd8] sm:$0xff] %v7727
        %7760 = vst [vmem:[%s346 + $0xe0] sm:$0xff] %v7728
        %7761 = vst [vmem:[%s346 + $0xe8] sm:$0xff] %v7729
        %7762 = vst [vmem:[%s346 + $0xf0] sm:$0xff] %v7730
        %7763 = vst [vmem:[%s346 + $0xf8] sm:$0xff] %v7731
        %s7764 = smul.u32 16, %s20
        %p7765 = scmp.lt.s32.totalorder %s7764, 31
        %s7766 = scalar_select %p7765, %s7764, 31
        %s7767 = smul.addr %s7766, 2
        %s7768 = smul.addr %s7767, 8
        %s7769 = scalar_lea.vmem %s8, %s7768
        // Predicated region
        $region57: #{generator_forward.1} parent=51 // pred_check
          %p7770 = pneg %p216
        $region58: #{generator_forward.1} parent=51 // pred_check_branch
          %7772 = sbr.rel (%p7770) target = $region60
        $region59: #{generator_forward.1} parent=51 // pred_region
          %s7773 = smul.u32 16, %s20
        $region60: #{generator_forward.1} parent=51 // pred_fallthru
          _
      $region52: #{generator_forward.1} parent=5 // pred_fallthru
        _
      %p7774 = scmp.le.s32.totalorder 2, %s15
      // Predicated region
      $region61: #{generator_forward.1} parent=5 // pred_check
        %p7775 = pneg %p7774
      $region62: #{generator_forward.1} parent=5 // pred_check_branch
        %7777 = sbr.rel (%p7775) target = $region64
      $region63: #{generator_forward.1} parent=5 // pred_region
        %s7778 = ssub.s32 %s15, 2
        // Predicated region
        $region65: #{generator_forward.1} parent=63 // pred_check
          %p7779 = pneg %p222
        $region66: #{generator_forward.1} parent=63 // pred_check_branch
          %7781 = sbr.rel (%p7779) target = $region68
        $region67: #{generator_forward.1} parent=63 // pred_region
          %s7782 = smul.u32 16, %s21
          %p7783 = scmp.lt.s32.totalorder %s7782, 31
          %s7784 = scalar_select %p7783, %s7782, 31
          %s7785 = smul.addr %s7784, 2
          %s7786 = smul.addr %s7785, 8
          %s7787 = scalar_lea.vmem %s8, %s7786
        $region68: #{generator_forward.1} parent=63 // pred_fallthru
          _
      $region64: #{generator_forward.1} parent=5 // pred_fallthru
        _
    $region6: #{generator_forward.1} parent=1 // loop_footer
      %s19 = sadd.s32 1, %s15
    $region7: #{generator_forward.1} parent=1 // loop_footer_branch
      %14 = sbr.rel target = $region3
    $region8: #{generator_forward.1} parent=1 // loop_exit
      _
    %7788 = vsyncpa [#allocation3], 1
    %s7789 = scalar_lea.sflag [#allocation3], 1
    %7790 = vsyncpa %s7789, 1

</llo_original>
